<compile_context>
chip_gen: v6e
topology: v6e:2x2x1
jax: 0.10.0
libtpu: 0.0.40
codegen_flags: <defaults>
</compile_context>

<pallas_src>
import functools

import jax
import jax.numpy as jnp
from jax import lax
from jax.experimental import pallas as pl
from jax.experimental.pallas import tpu as pltpu
from jax.scipy.special import gammaln


# ----------------------------------------------------------------------------
# Compiler-param helpers
# ----------------------------------------------------------------------------

_CompilerParams = (getattr(pltpu, "CompilerParams", None)
                   or getattr(pltpu, "TPUCompilerParams", None))


def _pick_vmem_limit():
    cap = None
    try:
        info = pltpu.get_tpu_info()
        cap = int(getattr(info, "vmem_capacity_bytes", 0)) or None
    except Exception:
        cap = None
    if cap is None:
        return 48 * 1024 * 1024                      # conservative default
    if cap <= 64 * 1024 * 1024:                      # v7x-class (64 MiB VMEM)
        return 40 * 1024 * 1024
    return 96 * 1024 * 1024                          # v5e / v6e (128 MiB VMEM)


_VMEM_LIMIT = _pick_vmem_limit()


def _cparams(dims):
    return _CompilerParams(dimension_semantics=dims,
                           vmem_limit_bytes=_VMEM_LIMIT)


def _recip(x):
    if hasattr(pl, "reciprocal"):
        return pl.reciprocal(x, approx=True)   # EUP slot — free under the MXU
    return 1.0 / x


def _gelu_tanh(x):
    # TODO(synk): reference nn.GELU() is exact (erf); the tanh approximation is
    # used inside kernels because erf has no guaranteed Mosaic lowering.
    c = 0.7978845608028654  # sqrt(2/pi)
    return 0.5 * x * (1.0 + jnp.tanh(c * (x + 0.044715 * x * x * x)))


def _layernorm(x, g, b, eps=1e-5):
    m = jnp.mean(x, axis=-1, keepdims=True)
    v = jnp.mean(jnp.square(x - m), axis=-1, keepdims=True)
    return (x - m) * lax.rsqrt(v + eps) * g + b


def _row_tiling(M, tm_max=512):
    if M <= tm_max:
        return M, 1, M
    tm = tm_max                       # multiple of 8
    Mp = ((M + tm - 1) // tm) * tm
    return tm, Mp // tm, Mp


def _pad_rows(a, Mp):
    M = a.shape[0]
    if Mp == M:
        return a
    return jnp.pad(a, ((0, Mp - M), (0, 0)))


# ----------------------------------------------------------------------------
# Pallas kernels
# ----------------------------------------------------------------------------

def _linear_kernel(a_ref, w_ref, b_ref, o_ref):
    # Row-tiled matmul with a VMEM-resident weight (constant index_map):
    # o = a @ w + b.
    y = jnp.dot(a_ref[...], w_ref[...],
                preferred_element_type=jnp.float32) + b_ref[...]
    o_ref[...] = y.astype(o_ref.dtype)


def _ln_linear_kernel(x_ref, g_ref, bt_ref, w_ref, b_ref, o_ref):
    # LayerNorm fused into the matmul prologue: o = LN(x) @ w + b.
    x = x_ref[...].astype(jnp.float32)
    xn = _layernorm(x, g_ref[...], bt_ref[...]).astype(jnp.bfloat16)
    y = jnp.dot(xn, w_ref[...], preferred_element_type=jnp.float32) + b_ref[...]
    o_ref[...] = y.astype(o_ref.dtype)


def _mlp_kernel(x_ref, g_ref, bt_ref, w1_ref, b1_ref, w2_ref, b2_ref, o_ref,
                acc_ref, *, hm_chunk):
    # Whole MLP sub-block: o = x + fc2(gelu(fc1(LN2(x)))).  The hidden dim is
    # processed in chunks with an f32 VMEM accumulator so the GELU intermediate
    # stays bounded (keeps v7x's 64-MiB VMEM / vreg file happy).
    x = x_ref[...].astype(jnp.float32)
    xn = _layernorm(x, g_ref[...], bt_ref[...]).astype(jnp.bfloat16)
    acc_ref[...] = x + b2_ref[...]
    Hm = w1_ref.shape[1]
    for c in range(0, Hm, hm_chunk):
        cw = min(hm_chunk, Hm - c)
        h = jnp.dot(xn, w1_ref[:, c:c + cw],
                    preferred_element_type=jnp.float32) + b1_ref[:, c:c + cw]
        h = _gelu_tanh(h)
        acc_ref[...] += jnp.dot(h.astype(jnp.bfloat16), w2_ref[c:c + cw, :],
                                preferred_element_type=jnp.float32)
    o_ref[...] = acc_ref[...].astype(o_ref.dtype)


def _attn_kernel(qkv_ref, m_ref, w_ref, b_ref, r_ref, o_ref, ctx_ref, *,
                 num_heads, head_dim, embed_dim):
    # Per-batch multi-head attention + out-projection + residual.
    #   qkv_ref: (L, 3E) bf16  -- [q | k | v], head-major columns within each E
    #   ctx_ref: (L, E) f32 VMEM scratch; each head's context is written into
    #            its column slice, then one (L,E)@(E,E) MXU matmul applies the
    #            out-projection (E-deep contraction, no vreg-resident acc).
    E, Dh = embed_dim, head_dim
    mask = m_ref[...]                                   # (1, Lk) additive mask
    for h in range(num_heads):
        q = qkv_ref[:, h * Dh:(h + 1) * Dh]
        k = qkv_ref[:, E + h * Dh:E + (h + 1) * Dh]
        v = qkv_ref[:, 2 * E + h * Dh:2 * E + (h + 1) * Dh]
        # softmax scale is pre-folded into the Q columns of in_proj_w.
        s = lax.dot_general(q, k, (((1,), (1,)), ((), ())),
                            preferred_element_type=jnp.float32)
        s = s + mask
        s = s - jnp.max(s, axis=-1, keepdims=True)
        p = jnp.exp(s)
        p = p * _recip(jnp.sum(p, axis=-1, keepdims=True))
        ctx_ref[:, h * Dh:(h + 1) * Dh] = jnp.dot(
            p.astype(jnp.bfloat16), v, preferred_element_type=jnp.float32)
    out = jnp.dot(ctx_ref[...].astype(jnp.bfloat16), w_ref[...],
                  preferred_element_type=jnp.float32)
    out = out + b_ref[...] + r_ref[...].astype(jnp.float32)
    o_ref[...] = out.astype(o_ref.dtype)


def _boundary_kernel(x_ref, w1_ref, b1_ref, w2_ref, b2_ref, o_ref):
    # Fused boundary predictor: Linear -> GELU -> Linear(., 1) as a reduction.
    # Output is (tm, 1); total bytes are tiny so the masked store is ignorable.
    h = jnp.dot(x_ref[...], w1_ref[...],
                preferred_element_type=jnp.float32) + b1_ref[...]
    h = _gelu_tanh(h)
    o_ref[...] = jnp.sum(h * w2_ref[...], axis=-1, keepdims=True) + b2_ref[...]


def _ln_kernel(x_ref, g_ref, b_ref, o_ref):
    x = x_ref[...].astype(jnp.float32)
    o_ref[...] = _layernorm(x, g_ref[...], b_ref[...]).astype(o_ref.dtype)


def _seg_pool_kernel(bar_ref, h_ref, o_ref):
    # (S, L) @ (L, D) in bf16 with f32 accumulation (clean MXU path).
    o_ref[...] = jnp.dot(bar_ref[...], h_ref[...],
                         preferred_element_type=jnp.float32).astype(o_ref.dtype)


# ----------------------------------------------------------------------------
# Kernel wrappers
# ----------------------------------------------------------------------------

def linear(a, w, b, *, out_dtype=jnp.float32, tm_max=512):
    """Row-tiled matmul; the (K, N) weight is VMEM-resident (no K-tiling)."""
    M, K = a.shape
    N = w.shape[1]
    tm, gm, Mp = _row_tiling(M, tm_max)
    out = pl.pallas_call(
        _linear_kernel,
        out_shape=jax.ShapeDtypeStruct((Mp, N), out_dtype),
        grid=(gm,),
        in_specs=[
            pl.BlockSpec((tm, K), lambda i: (i, 0)),
            pl.BlockSpec((K, N), lambda i: (0, 0)),
            pl.BlockSpec((1, N), lambda i: (0, 0)),
        ],
        out_specs=pl.BlockSpec((tm, N), lambda i: (i, 0)),
        compiler_params=_cparams(("parallel",)),
    )(_pad_rows(a, Mp), w, b.reshape(1, N).astype(jnp.float32))
    return out[:M]


def ln_linear(x2d, g, beta, w, b, *, out_dtype=jnp.bfloat16, tm_max=512):
    M, E = x2d.shape
    N = w.shape[1]
    tm, gm, Mp = _row_tiling(M, tm_max)
    out = pl.pallas_call(
        _ln_linear_kernel,
        out_shape=jax.ShapeDtypeStruct((Mp, N), out_dtype),
        grid=(gm,),
        in_specs=[
            pl.BlockSpec((tm, E), lambda i: (i, 0)),
            pl.BlockSpec((1, E), lambda i: (0, 0)),
            pl.BlockSpec((1, E), lambda i: (0, 0)),
            pl.BlockSpec((E, N), lambda i: (0, 0)),
            pl.BlockSpec((1, N), lambda i: (0, 0)),
        ],
        out_specs=pl.BlockSpec((tm, N), lambda i: (i, 0)),
        compiler_params=_cparams(("parallel",)),
    )(_pad_rows(x2d, Mp), g.reshape(1, E), beta.reshape(1, E), w,
      b.reshape(1, N).astype(jnp.float32))
    return out[:M]


def mlp_block(x, g, beta, w1, b1, w2, b2, *, tm_max=256, hm_chunk=512):
    B, L, E = x.shape
    Hm = w1.shape[1]
    M = B * L
    tm, gm, Mp = _row_tiling(M, tm_max)
    kern = functools.partial(_mlp_kernel, hm_chunk=min(hm_chunk, Hm))
    out = pl.pallas_call(
        kern,
        out_shape=jax.ShapeDtypeStruct((Mp, E), jnp.bfloat16),
        grid=(gm,),
        in_specs=[
            pl.BlockSpec((tm, E), lambda i: (i, 0)),
            pl.BlockSpec((1, E), lambda i: (0, 0)),
            pl.BlockSpec((1, E), lambda i: (0, 0)),
            pl.BlockSpec((E, Hm), lambda i: (0, 0)),
            pl.BlockSpec((1, Hm), lambda i: (0, 0)),
            pl.BlockSpec((Hm, E), lambda i: (0, 0)),
            pl.BlockSpec((1, E), lambda i: (0, 0)),
        ],
        out_specs=pl.BlockSpec((tm, E), lambda i: (i, 0)),
        scratch_shapes=[pltpu.VMEM((tm, E), jnp.float32)],
        compiler_params=_cparams(("parallel",)),
    )(_pad_rows(x.reshape(M, E), Mp), g.reshape(1, E), beta.reshape(1, E),
      w1, b1.reshape(1, Hm), w2, b2.reshape(1, E))
    return out[:M].reshape(B, L, E)


def attention_block(qkv, mask, w, b, x_res, *, num_heads):
    """qkv: (B, L, 3E) bf16 straight from the QKV projection (no relayout)."""
    B, L, E3 = qkv.shape
    E = x_res.shape[-1]
    Dh = E // num_heads
    kern = functools.partial(_attn_kernel, num_heads=num_heads,
                             head_dim=Dh, embed_dim=E)
    return pl.pallas_call(
        kern,
        out_shape=jax.ShapeDtypeStruct((B, L, E), jnp.bfloat16),
        grid=(B,),
        in_specs=[
            pl.BlockSpec((None, L, E3), lambda i: (i, 0, 0)),
            pl.BlockSpec((1, L), lambda i: (0, 0)),
            pl.BlockSpec((E, E), lambda i: (0, 0)),
            pl.BlockSpec((1, E), lambda i: (0, 0)),
            pl.BlockSpec((None, L, E), lambda i: (i, 0, 0)),
        ],
        out_specs=pl.BlockSpec((None, L, E), lambda i: (i, 0, 0)),
        scratch_shapes=[pltpu.VMEM((L, E), jnp.float32)],
        compiler_params=_cparams(("parallel",)),
    )(qkv, mask, w, b.reshape(1, E).astype(jnp.float32), x_res)


def layernorm_rows(x2d, g, beta, *, tm_max=512):
    M, E = x2d.shape
    tm, gm, Mp = _row_tiling(M, tm_max)
    out = pl.pallas_call(
        _ln_kernel,
        out_shape=jax.ShapeDtypeStruct((Mp, E), jnp.bfloat16),
        grid=(gm,),
        in_specs=[
            pl.BlockSpec((tm, E), lambda i: (i, 0)),
            pl.BlockSpec((1, E), lambda i: (0, 0)),
            pl.BlockSpec((1, E), lambda i: (0, 0)),
        ],
        out_specs=pl.BlockSpec((tm, E), lambda i: (i, 0)),
        compiler_params=_cparams(("parallel",)),
    )(_pad_rows(x2d, Mp), g.reshape(1, E), beta.reshape(1, E))
    return out[:M]


def seg_pool(bar, hidden):
    B, S, L = bar.shape
    D = hidden.shape[-1]
    return pl.pallas_call(
        _seg_pool_kernel,
        out_shape=jax.ShapeDtypeStruct((B, S, D), jnp.bfloat16),
        grid=(B,),
        in_specs=[
            pl.BlockSpec((None, S, L), lambda i: (i, 0, 0)),
            pl.BlockSpec((None, L, D), lambda i: (i, 0, 0)),
        ],
        out_specs=pl.BlockSpec((None, S, D), lambda i: (i, 0, 0)),
        compiler_params=_cparams(("parallel",)),
    )(bar, hidden)


def boundary_logits_fn(x, params, *, tm_max=512):
    B, L, E = x.shape
    M = B * L
    Hm = params['bp_fc1_w'].shape[1]
    tm, gm, Mp = _row_tiling(M, tm_max)
    out = pl.pallas_call(
        _boundary_kernel,
        out_shape=jax.ShapeDtypeStruct((Mp, 1), jnp.float32),
        grid=(gm,),
        in_specs=[
            pl.BlockSpec((tm, E), lambda i: (i, 0)),
            pl.BlockSpec((E, Hm), lambda i: (0, 0)),
            pl.BlockSpec((1, Hm), lambda i: (0, 0)),
            pl.BlockSpec((1, Hm), lambda i: (0, 0)),
            pl.BlockSpec((1, 1), lambda i: (0, 0)),
        ],
        out_specs=pl.BlockSpec((tm, 1), lambda i: (i, 0)),
        compiler_params=_cparams(("parallel",)),
    )(_pad_rows(x.reshape(M, E), Mp), params['bp_fc1_w'],
      params['bp_fc1_b'].reshape(1, Hm), params['bp_fc2_wT'],
      params['bp_fc2_b'].reshape(1, 1))
    return out[:M].reshape(B, L)


# ----------------------------------------------------------------------------
# Model glue (plain JAX reshapes + calls into the kernels above)
# ----------------------------------------------------------------------------

def patch_embed(x, w, b, patch_size):
    """Conv2d(kernel=stride=patch) as an unfold + row-tiled matmul."""
    B, C, H, W = x.shape
    p = patch_size
    GH, GW = H // p, W // p
    patches = (x.reshape(B, C, GH, p, GW, p)
               .transpose(0, 2, 4, 1, 3, 5)
               .reshape(B * GH * GW, C * p * p)).astype(jnp.bfloat16)
    return linear(patches, w, b).reshape(B, GH * GW, -1)


def transformer_block(x, p, num_heads, attn_mask):
    """Pre-LN transformer block (3 fused kernels), dropout = identity."""
    B, L, E = x.shape
    # LayerNorm1 + QKV projection -> (B, L, 3E) bf16, consumed in place by the
    # attention kernel (no XLA-side head transpose).
    qkv = ln_linear(x.reshape(B * L, E), p['ln1_g'], p['ln1_b'],
                    p['in_proj_w'], p['in_proj_b'])
    qkv = qkv.reshape(B, L, 3 * E)
    # Attention (all heads per batch) + out-projection + residual.
    x = attention_block(qkv, attn_mask, p['out_proj_w'], p['out_proj_b'], x,
                        num_heads=num_heads)
    # LayerNorm2 + fc1 + GELU + fc2 + residual.
    x = mlp_block(x, p['ln2_g'], p['ln2_b'], p['fc1_w'], p['fc1_b'],
                  p['fc2_w'], p['fc2_b'])
    return x


def gumbel_sample(logits, temp, threshold, key):
    """RelaxedBernoulli rsample via the logistic reparameterisation (uses the
    raw logits directly — numerically safe vs log(p) - log1p(-p))."""
    u = jax.random.uniform(key, logits.shape, minval=1e-6, maxval=1.0 - 1e-6)
    g = (logits + jnp.log(u) - jnp.log1p(-u)) / temp
    soft = jax.nn.sigmoid(g)
    hard = (soft > threshold).astype(jnp.float32)
    return soft, hard


def build_bar(hard, n_cols):
    """Segment membership matrix with a static column count (S_max = L).
    Columns beyond the realised segment count are all-zero and masked later."""
    counts = jnp.sum(hard, axis=-1)
    n_seg = jnp.max(counts)
    hh1 = jnp.cumsum(hard, axis=1) - hard                               # (B, L)
    sids = jnp.arange(n_cols, dtype=jnp.float32)                        # (S,)
    lel = (sids[None, :, None] == hh1[:, None, :]).astype(jnp.float32)  # (B,S,L)
    bar = lel / (jnp.sum(lel, axis=2, keepdims=True) + 1e-9)
    return bar.astype(jnp.bfloat16), n_seg


def dtp_vit_forward(x, params, cfg, key):
    B = x.shape[0]
    E = cfg['embed_dim']
    H = cfg['num_heads']

    x = patch_embed(x, params['patch_w'], params['patch_b'], cfg['patch_size'])
    cls = jnp.broadcast_to(params['cls_token'], (B, 1, E))
    x = jnp.concatenate([cls, x], axis=1) + params['pos_embed']   # (B, L, E)
    x = x.astype(jnp.bfloat16)          # bf16 activation stream between kernels
    # pos_drop / dropout layers: identity (eval mode)
    L = x.shape[1]

    zero_mask = jnp.zeros((1, L), jnp.float32)
    for p in params['pre_blocks']:
        x = transformer_block(x, p, H, zero_mask)

    logits_bp = boundary_logits_fn(x, params)                     # (B, L)
    soft, hard = gumbel_sample(logits_bp, cfg['temp'], cfg['threshold'], key)

    # Boundary loss: computed by the reference even with return_loss=False;
    # it is unused here (dead code under jit) but kept for fidelity.
    total_count = soft.shape[-1]
    target_count = jnp.round(jnp.sum(soft, axis=-1))
    pr = cfg['compression_rate']
    _log_binom = (gammaln(total_count + 1.0) - gammaln(target_count + 1.0)
                  - gammaln(total_count - target_count + 1.0)
                  + target_count * jnp.log(pr)
                  + (total_count - target_count) * jnp.log1p(-pr))
    _boundary_loss = -jnp.mean(_log_binom) / total_count  # noqa: F841

    # Downsampling with static segment bound (S_max = L) + validity masking
    # (matches the reference's batch-global max segment count).
    bar, n_seg = build_bar(hard, L)
    pooled = seg_pool(bar, x)                                      # (B, L, E)
    null = jnp.broadcast_to(params['null_group'], (B, 1, E)).astype(jnp.bfloat16)
    x = jnp.concatenate([null, pooled], axis=1)                    # (B, L+1, E)
    Lp = L + 1
    valid = n_seg + 1.0
    pos = jnp.arange(Lp, dtype=jnp.float32)
    attn_mask = jnp.where(pos < valid, 0.0, -1e30).reshape(1, Lp)
    pool_w = jnp.where(pos < valid, 1.0 / valid, 0.0).reshape(1, Lp)

    x = layernorm_rows(x.reshape(B * Lp, E), params['norm_g'],
                       params['norm_b']).reshape(B, Lp, E)

    for p in params['shorten_blocks']:
        x = transformer_block(x, p, H, attn_mask)

    # Tiny tail (final LN + masked mean-pool + head): plain XLA — kernel-launch
    # overhead would exceed the compute for N=num_classes << 128.
    xn = _layernorm(x.astype(jnp.float32), params['norm_g'], params['norm_b'])
    feats = jnp.sum(xn * pool_w.reshape(1, Lp, 1), axis=1)         # (B, E)
    return feats @ params['head_w'] + params['head_b']


# ----------------------------------------------------------------------------
# Deterministic parameter init (synthetic, shapes per the module's __init__)
# ----------------------------------------------------------------------------

def init_params(key, cfg):
    E = cfg['embed_dim']
    C = cfg['in_chans']
    p = cfg['patch_size']
    num_patches = (cfg['image_size'] // p) ** 2
    mlp_hidden = int(E * cfg['mlp_ratio'])
    keys = iter(jax.random.split(key, 128))

    def dense(fan_in, shape):
        return jax.random.normal(next(keys), shape, jnp.float32) / jnp.sqrt(fan_in)

    def block_params():
        return dict(
            ln1_g=jnp.ones((E,), jnp.float32), ln1_b=jnp.zeros((E,), jnp.float32),
            in_proj_w=dense(E, (E, 3 * E)), in_proj_b=jnp.zeros((3 * E,), jnp.float32),
            out_proj_w=dense(E, (E, E)), out_proj_b=jnp.zeros((E,), jnp.float32),
            ln2_g=jnp.ones((E,), jnp.float32), ln2_b=jnp.zeros((E,), jnp.float32),
            fc1_w=dense(E, (E, mlp_hidden)), fc1_b=jnp.zeros((mlp_hidden,), jnp.float32),
            fc2_w=dense(mlp_hidden, (mlp_hidden, E)), fc2_b=jnp.zeros((E,), jnp.float32),
        )

    return dict(
        patch_w=dense(C * p * p, (C * p * p, E)),
        patch_b=jnp.zeros((E,), jnp.float32),
        cls_token=jax.random.normal(next(keys), (1, 1, E), jnp.float32) * 0.02,
        pos_embed=jax.random.normal(next(keys), (1, 1 + num_patches, E), jnp.float32) * 0.02,
        pre_blocks=[block_params() for _ in range(cfg['depth'][0])],
        shorten_blocks=[block_params() for _ in range(cfg['depth'][1])],
        bp_fc1_w=dense(E, (E, 2 * E)), bp_fc1_b=jnp.zeros((2 * E,), jnp.float32),
        bp_fc2_w=dense(2 * E, (2 * E, 1)), bp_fc2_b=jnp.zeros((1,), jnp.float32),
        norm_g=jnp.ones((E,), jnp.float32), norm_b=jnp.zeros((E,), jnp.float32),
        head_w=dense(E, (E, cfg['num_classes'])),
        head_b=jnp.zeros((cfg['num_classes'],), jnp.float32),
        null_group=jax.random.normal(next(keys), (1, 1, E), jnp.float32),
    )


def prepare_params(params, cfg):
    """One-time weight prep: bf16 casts for MXU operands + softmax-scale fold."""
    E = cfg['embed_dim']
    H = cfg['num_heads']
    Dh = E // H
    scale = 1.0 / (Dh ** 0.5)
    bf = lambda w: w.astype(jnp.bfloat16)

    def prep_block(p):
        # Fold 1/sqrt(Dh) into the Q columns of the input projection.
        w_in = jnp.concatenate([p['in_proj_w'][:, :E] * scale,
                                p['in_proj_w'][:, E:]], axis=1)
        b_in = jnp.concatenate([p['in_proj_b'][:E] * scale, p['in_proj_b'][E:]])
        return dict(
            ln1_g=p['ln1_g'], ln1_b=p['ln1_b'],
            in_proj_w=bf(w_in), in_proj_b=b_in,
            out_proj_w=bf(p['out_proj_w']), out_proj_b=p['out_proj_b'],
            ln2_g=p['ln2_g'], ln2_b=p['ln2_b'],
            fc1_w=bf(p['fc1_w']), fc1_b=p['fc1_b'],
            fc2_w=bf(p['fc2_w']), fc2_b=p['fc2_b'],
        )

    return dict(
        patch_w=bf(params['patch_w']), patch_b=params['patch_b'],
        cls_token=params['cls_token'], pos_embed=params['pos_embed'],
        pre_blocks=[prep_block(p) for p in params['pre_blocks']],
        shorten_blocks=[prep_block(p) for p in params['shorten_blocks']],
        bp_fc1_w=bf(params['bp_fc1_w']), bp_fc1_b=params['bp_fc1_b'],
        bp_fc2_wT=params['bp_fc2_w'].T.astype(jnp.float32),   # (1, 2E)
        bp_fc2_b=params['bp_fc2_b'],
        norm_g=params['norm_g'], norm_b=params['norm_b'],
        head_w=params['head_w'], head_b=params['head_b'],     # head stays in XLA
        null_group=params['null_group'],
    )


# ----------------------------------------------------------------------------

if __name__ == "__main__":
    cfg = dict(
        image_size=16,
        patch_size=4,
        in_chans=3,
        embed_dim=256,
        depth=(1, 1),
        num_heads=2,
        mlp_ratio=2.0,
        temp=0.5,
        compression_rate=0.25,
        threshold=0.5,
        num_classes=10,
    )

    root = jax.random.PRNGKey(0)
    k_params, k_input, k_gumbel = jax.random.split(root, 3)

    params = prepare_params(init_params(k_params, cfg), cfg)
    x = jax.random.normal(
        k_input, (2, cfg['in_chans'], cfg['image_size'], cfg['image_size']),
        jnp.float32,
    )

    forward = jax.jit(lambda p, xx, kk: dtp_vit_forward(xx, p, cfg, kk))
    logits = forward(params, x, k_gumbel)
    logits = jax.block_until_ready(logits)
    assert logits.shape == (2, cfg['num_classes'])
    assert bool(jnp.all(jnp.isfinite(logits)))
    print("KERNEL_OK")
</pallas_src>

<mosaic_0001>
module attributes {stable_mosaic.version = 11 : i64} {
  func.func @_ln_linear_kernel(%arg0: i32, %arg1: memref<34x256xbf16, #tpu.memory_space<vmem>>, %arg2: memref<1x256xf32, #tpu.memory_space<vmem>>, %arg3: memref<1x256xf32, #tpu.memory_space<vmem>>, %arg4: memref<256x768xbf16, #tpu.memory_space<vmem>>, %arg5: memref<1x768xf32, #tpu.memory_space<vmem>>, %arg6: memref<34x768xbf16, #tpu.memory_space<vmem>>) attributes {dimension_semantics = [#tpu.dimension_semantics<parallel>], iteration_bounds = array<i64: 1>, scalar_prefetch = 0 : i64, scratch_operands = 0 : i64, tpu.core_type = #tpu.core_type<tc>, window_params = [{transform_indices = @transform_0, window_bounds = array<i64: 34, 256>}, {pipeline_mode = #tpu.pipeline_mode<synchronous>, transform_indices = @transform_1, window_bounds = array<i64: 1, 256>}, {pipeline_mode = #tpu.pipeline_mode<synchronous>, transform_indices = @transform_2, window_bounds = array<i64: 1, 256>}, {pipeline_mode = #tpu.pipeline_mode<synchronous>, transform_indices = @transform_3, window_bounds = array<i64: 256, 768>}, {pipeline_mode = #tpu.pipeline_mode<synchronous>, transform_indices = @transform_4, window_bounds = array<i64: 1, 768>}, {transform_indices = @transform_5, window_bounds = array<i64: 34, 768>}]} {
    %c0 = arith.constant 0 : index
    %c0_0 = arith.constant 0 : index
    %0 = vector.load %arg1[%c0, %c0_0] : memref<34x256xbf16, #tpu.memory_space<vmem>>, vector<34x256xbf16>
    %1 = arith.extf %0 : vector<34x256xbf16> to vector<34x256xf32>
    %c0_1 = arith.constant 0 : index
    %c0_2 = arith.constant 0 : index
    %2 = vector.load %arg2[%c0_1, %c0_2] : memref<1x256xf32, #tpu.memory_space<vmem>>, vector<1x256xf32>
    %c0_3 = arith.constant 0 : index
    %c0_4 = arith.constant 0 : index
    %3 = vector.load %arg3[%c0_3, %c0_4] : memref<1x256xf32, #tpu.memory_space<vmem>>, vector<1x256xf32>
    %cst = arith.constant dense<0.000000e+00> : vector<34xf32>
    %4 = vector.multi_reduction <add>, %1, %cst [1] : vector<34x256xf32> to vector<34xf32>
    %5 = vector.shape_cast %4 : vector<34xf32> to vector<34x1xf32>
    %cst_5 = arith.constant 2.560000e+02 : f32
    %6 = vector.broadcast %cst_5 : f32 to vector<34x1xf32>
    %7 = arith.divf %5, %6 : vector<34x1xf32>
    %8 = vector.broadcast %7 : vector<34x1xf32> to vector<34x256xf32>
    %9 = arith.subf %1, %8 : vector<34x256xf32>
    %10 = arith.mulf %9, %9 : vector<34x256xf32>
    %cst_6 = arith.constant dense<0.000000e+00> : vector<34xf32>
    %11 = vector.multi_reduction <add>, %10, %cst_6 [1] : vector<34x256xf32> to vector<34xf32>
    %12 = vector.shape_cast %11 : vector<34xf32> to vector<34x1xf32>
    %cst_7 = arith.constant 2.560000e+02 : f32
    %13 = vector.broadcast %cst_7 : f32 to vector<34x1xf32>
    %14 = arith.divf %12, %13 : vector<34x1xf32>
    %15 = vector.broadcast %7 : vector<34x1xf32> to vector<34x256xf32>
    %16 = arith.subf %1, %15 : vector<34x256xf32>
    %cst_8 = arith.constant 9.99999974E-6 : f32
    %17 = vector.broadcast %cst_8 : f32 to vector<34x1xf32>
    %18 = arith.addf %14, %17 : vector<34x1xf32>
    %19 = math.rsqrt %18 : vector<34x1xf32>
    %20 = vector.broadcast %19 : vector<34x1xf32> to vector<34x256xf32>
    %21 = arith.mulf %16, %20 : vector<34x256xf32>
    %22 = vector.broadcast %2 : vector<1x256xf32> to vector<34x256xf32>
    %23 = arith.mulf %21, %22 : vector<34x256xf32>
    %24 = vector.broadcast %3 : vector<1x256xf32> to vector<34x256xf32>
    %25 = arith.addf %23, %24 : vector<34x256xf32>
    %26 = arith.truncf %25 : vector<34x256xf32> to vector<34x256xbf16>
    %c0_9 = arith.constant 0 : index
    %c0_10 = arith.constant 0 : index
    %27 = vector.load %arg4[%c0_9, %c0_10] : memref<256x768xbf16, #tpu.memory_space<vmem>>, vector<256x768xbf16>
    %cst_11 = arith.constant dense<0.000000e+00> : vector<34x768xf32>
    %28 = tpu.matmul %26, %27, %cst_11 {dimension_numbers = #tpu.dot_dimension_numbers<[1], [0], [0], [1], [0, 0, 1, 1], [], []>} : vector<34x256xbf16>, vector<256x768xbf16>, vector<34x768xf32> -> vector<34x768xf32>
    %c0_12 = arith.constant 0 : index
    %c0_13 = arith.constant 0 : index
    %29 = vector.load %arg5[%c0_12, %c0_13] : memref<1x768xf32, #tpu.memory_space<vmem>>, vector<1x768xf32>
    %30 = vector.broadcast %29 : vector<1x768xf32> to vector<34x768xf32>
    %31 = arith.addf %28, %30 : vector<34x768xf32>
    %32 = arith.truncf %31 : vector<34x768xf32> to vector<34x768xbf16>
    %c0_14 = arith.constant 0 : index
    %c0_15 = arith.constant 0 : index
    %33 = vector.load %arg6[%c0_14, %c0_15] : memref<34x768xbf16, #tpu.memory_space<vmem>>, vector<34x768xbf16>
    tpu.vector_store %arg6[%c0_14, %c0_15], %32 {strides = array<i32>} : memref<34x768xbf16, #tpu.memory_space<vmem>>, vector<34x768xbf16>,
    return
  }
  func.func @transform_0(%arg0: i32) -> (i32, i32) {
    %c0_i32 = arith.constant 0 : i32
    %c0_i32_0 = arith.constant 0 : i32
    return %arg0, %c0_i32 : i32, i32
  }
  func.func @transform_1(%arg0: i32) -> (i32, i32) {
    %c0_i32 = arith.constant 0 : i32
    %c0_i32_0 = arith.constant 0 : i32
    %c0_i32_1 = arith.constant 0 : i32
    return %c0_i32, %c0_i32_0 : i32, i32
  }
  func.func @transform_2(%arg0: i32) -> (i32, i32) {
    %c0_i32 = arith.constant 0 : i32
    %c0_i32_0 = arith.constant 0 : i32
    %c0_i32_1 = arith.constant 0 : i32
    return %c0_i32, %c0_i32_0 : i32, i32
  }
  func.func @transform_3(%arg0: i32) -> (i32, i32) {
    %c0_i32 = arith.constant 0 : i32
    %c0_i32_0 = arith.constant 0 : i32
    %c0_i32_1 = arith.constant 0 : i32
    return %c0_i32, %c0_i32_0 : i32, i32
  }
  func.func @transform_4(%arg0: i32) -> (i32, i32) {
    %c0_i32 = arith.constant 0 : i32
    %c0_i32_0 = arith.constant 0 : i32
    %c0_i32_1 = arith.constant 0 : i32
    return %c0_i32, %c0_i32_0 : i32, i32
  }
  func.func @transform_5(%arg0: i32) -> (i32, i32) {
    %c0_i32 = arith.constant 0 : i32
    %c0_i32_0 = arith.constant 0 : i32
    return %arg0, %c0_i32 : i32, i32
  }
}

module attributes {stable_mosaic.version = 11 : i64} {
  func.func @_attn_kernel(%arg0: i32, %arg1: memref<1x17x768xbf16, #tpu.memory_space<vmem>>, %arg2: memref<1x17xf32, #tpu.memory_space<vmem>>, %arg3: memref<256x256xbf16, #tpu.memory_space<vmem>>, %arg4: memref<1x256xf32, #tpu.memory_space<vmem>>, %arg5: memref<1x17x256xbf16, #tpu.memory_space<vmem>>, %arg6: memref<1x17x256xbf16, #tpu.memory_space<vmem>>, %arg7: memref<17x256xf32, #tpu.memory_space<vmem>>) attributes {dimension_semantics = [#tpu.dimension_semantics<parallel>], iteration_bounds = array<i64: 2>, scalar_prefetch = 0 : i64, scratch_operands = 1 : i64, tpu.core_type = #tpu.core_type<tc>, window_params = [{transform_indices = @transform_0, window_bounds = array<i64: 1, 17, 768>}, {pipeline_mode = #tpu.pipeline_mode<synchronous>, transform_indices = @transform_1, window_bounds = array<i64: 1, 17>}, {pipeline_mode = #tpu.pipeline_mode<synchronous>, transform_indices = @transform_2, window_bounds = array<i64: 256, 256>}, {pipeline_mode = #tpu.pipeline_mode<synchronous>, transform_indices = @transform_3, window_bounds = array<i64: 1, 256>}, {transform_indices = @transform_4, window_bounds = array<i64: 1, 17, 256>}, {transform_indices = @transform_5, window_bounds = array<i64: 1, 17, 256>}]} {
    %c0 = arith.constant 0 : index
    %c0_0 = arith.constant 0 : index
    %0 = vector.load %arg2[%c0, %c0_0] : memref<1x17xf32, #tpu.memory_space<vmem>>, vector<1x17xf32>
    %c0_1 = arith.constant 0 : index
    %c0_2 = arith.constant 0 : index
    %c0_3 = arith.constant 0 : index
    %1 = vector.load %arg1[%c0_1, %c0_2, %c0_3] : memref<1x17x768xbf16, #tpu.memory_space<vmem>>, vector<1x17x128xbf16>
    %2 = vector.shape_cast %1 : vector<1x17x128xbf16> to vector<17x128xbf16>
    %c0_4 = arith.constant 0 : index
    %c0_5 = arith.constant 0 : index
    %c256 = arith.constant 256 : index
    %3 = vector.load %arg1[%c0_4, %c0_5, %c256] : memref<1x17x768xbf16, #tpu.memory_space<vmem>>, vector<1x17x128xbf16>
    %4 = vector.shape_cast %3 : vector<1x17x128xbf16> to vector<17x128xbf16>
    %c0_6 = arith.constant 0 : index
    %c0_7 = arith.constant 0 : index
    %c512 = arith.constant 512 : index
    %5 = vector.load %arg1[%c0_6, %c0_7, %c512] : memref<1x17x768xbf16, #tpu.memory_space<vmem>>, vector<1x17x128xbf16>
    %6 = vector.shape_cast %5 : vector<1x17x128xbf16> to vector<17x128xbf16>
    %cst = arith.constant dense<0.000000e+00> : vector<17x17xf32>
    %7 = tpu.matmul %2, %4, %cst {dimension_numbers = #tpu.dot_dimension_numbers<[1], [1], [0], [0], [0, 0, 1, 0], [], []>} : vector<17x128xbf16>, vector<17x128xbf16>, vector<17x17xf32> -> vector<17x17xf32>
    %8 = vector.broadcast %0 : vector<1x17xf32> to vector<17x17xf32>
    %9 = arith.addf %7, %8 : vector<17x17xf32>
    %cst_8 = arith.constant dense<0xFF800000> : vector<17xf32>
    %10 = vector.multi_reduction <maximumf>, %9, %cst_8 [1] : vector<17x17xf32> to vector<17xf32>
    %11 = vector.shape_cast %10 : vector<17xf32> to vector<17x1xf32>
    %12 = vector.broadcast %11 : vector<17x1xf32> to vector<17x17xf32>
    %13 = arith.subf %9, %12 : vector<17x17xf32>
    %14 = math.exp %13 : vector<17x17xf32>
    %cst_9 = arith.constant dense<0.000000e+00> : vector<17xf32>
    %15 = vector.multi_reduction <add>, %14, %cst_9 [1] : vector<17x17xf32> to vector<17xf32>
    %16 = vector.shape_cast %15 : vector<17xf32> to vector<17x1xf32>
    %17 = tpu.reciprocal %16 {approx = true} : vector<17x1xf32> -> vector<17x1xf32>
    %18 = vector.broadcast %17 : vector<17x1xf32> to vector<17x17xf32>
    %19 = arith.mulf %14, %18 : vector<17x17xf32>
    %20 = arith.truncf %19 : vector<17x17xf32> to vector<17x17xbf16>
    %cst_10 = arith.constant dense<0.000000e+00> : vector<17x128xf32>
    %21 = tpu.matmul %20, %6, %cst_10 {dimension_numbers = #tpu.dot_dimension_numbers<[1], [0], [0], [1], [0, 0, 1, 1], [], []>} : vector<17x17xbf16>, vector<17x128xbf16>, vector<17x128xf32> -> vector<17x128xf32>
    %c0_11 = arith.constant 0 : index
    %c0_12 = arith.constant 0 : index
    %22 = vector.load %arg7[%c0_11, %c0_12] : memref<17x256xf32, #tpu.memory_space<vmem>>, vector<17x128xf32>
    tpu.vector_store %arg7[%c0_11, %c0_12], %21 {strides = array<i32>} : memref<17x256xf32, #tpu.memory_space<vmem>>, vector<17x128xf32>,
    %c0_13 = arith.constant 0 : index
    %c0_14 = arith.constant 0 : index
    %c128 = arith.constant 128 : index
    %23 = vector.load %arg1[%c0_13, %c0_14, %c128] : memref<1x17x768xbf16, #tpu.memory_space<vmem>>, vector<1x17x128xbf16>
    %24 = vector.shape_cast %23 : vector<1x17x128xbf16> to vector<17x128xbf16>
    %c0_15 = arith.constant 0 : index
    %c0_16 = arith.constant 0 : index
    %c384 = arith.constant 384 : index
    %25 = vector.load %arg1[%c0_15, %c0_16, %c384] : memref<1x17x768xbf16, #tpu.memory_space<vmem>>, vector<1x17x128xbf16>
    %26 = vector.shape_cast %25 : vector<1x17x128xbf16> to vector<17x128xbf16>
    %c0_17 = arith.constant 0 : index
    %c0_18 = arith.constant 0 : index
    %c640 = arith.constant 640 : index
    %27 = vector.load %arg1[%c0_17, %c0_18, %c640] : memref<1x17x768xbf16, #tpu.memory_space<vmem>>, vector<1x17x128xbf16>
    %28 = vector.shape_cast %27 : vector<1x17x128xbf16> to vector<17x128xbf16>
    %cst_19 = arith.constant dense<0.000000e+00> : vector<17x17xf32>
    %29 = tpu.matmul %24, %26, %cst_19 {dimension_numbers = #tpu.dot_dimension_numbers<[1], [1], [0], [0], [0, 0, 1, 0], [], []>} : vector<17x128xbf16>, vector<17x128xbf16>, vector<17x17xf32> -> vector<17x17xf32>
    %30 = vector.broadcast %0 : vector<1x17xf32> to vector<17x17xf32>
    %31 = arith.addf %29, %30 : vector<17x17xf32>
    %cst_20 = arith.constant dense<0xFF800000> : vector<17xf32>
    %32 = vector.multi_reduction <maximumf>, %31, %cst_20 [1] : vector<17x17xf32> to vector<17xf32>
    %33 = vector.shape_cast %32 : vector<17xf32> to vector<17x1xf32>
    %34 = vector.broadcast %33 : vector<17x1xf32> to vector<17x17xf32>
    %35 = arith.subf %31, %34 : vector<17x17xf32>
    %36 = math.exp %35 : vector<17x17xf32>
    %cst_21 = arith.constant dense<0.000000e+00> : vector<17xf32>
    %37 = vector.multi_reduction <add>, %36, %cst_21 [1] : vector<17x17xf32> to vector<17xf32>
    %38 = vector.shape_cast %37 : vector<17xf32> to vector<17x1xf32>
    %39 = tpu.reciprocal %38 {approx = true} : vector<17x1xf32> -> vector<17x1xf32>
    %40 = vector.broadcast %39 : vector<17x1xf32> to vector<17x17xf32>
    %41 = arith.mulf %36, %40 : vector<17x17xf32>
    %42 = arith.truncf %41 : vector<17x17xf32> to vector<17x17xbf16>
    %cst_22 = arith.constant dense<0.000000e+00> : vector<17x128xf32>
    %43 = tpu.matmul %42, %28, %cst_22 {dimension_numbers = #tpu.dot_dimension_numbers<[1], [0], [0], [1], [0, 0, 1, 1], [], []>} : vector<17x17xbf16>, vector<17x128xbf16>, vector<17x128xf32> -> vector<17x128xf32>
    %c0_23 = arith.constant 0 : index
    %c128_24 = arith.constant 128 : index
    %44 = vector.load %arg7[%c0_23, %c128_24] : memref<17x256xf32, #tpu.memory_space<vmem>>, vector<17x128xf32>
    tpu.vector_store %arg7[%c0_23, %c128_24], %43 {strides = array<i32>} : memref<17x256xf32, #tpu.memory_space<vmem>>, vector<17x128xf32>,
    %c0_25 = arith.constant 0 : index
    %c0_26 = arith.constant 0 : index
    %45 = vector.load %arg7[%c0_25, %c0_26] : memref<17x256xf32, #tpu.memory_space<vmem>>, vector<17x256xf32>
    %46 = arith.truncf %45 : vector<17x256xf32> to vector<17x256xbf16>
    %c0_27 = arith.constant 0 : index
    %c0_28 = arith.constant 0 : index
    %47 = vector.load %arg3[%c0_27, %c0_28] : memref<256x256xbf16, #tpu.memory_space<vmem>>, vector<256x256xbf16>
    %cst_29 = arith.constant dense<0.000000e+00> : vector<17x256xf32>
    %48 = tpu.matmul %46, %47, %cst_29 {dimension_numbers = #tpu.dot_dimension_numbers<[1], [0], [0], [1], [0, 0, 1, 1], [], []>} : vector<17x256xbf16>, vector<256x256xbf16>, vector<17x256xf32> -> vector<17x256xf32>
    %c0_30 = arith.constant 0 : index
    %c0_31 = arith.constant 0 : index
    %49 = vector.load %arg4[%c0_30, %c0_31] : memref<1x256xf32, #tpu.memory_space<vmem>>, vector<1x256xf32>
    %50 = vector.broadcast %49 : vector<1x256xf32> to vector<17x256xf32>
    %51 = arith.addf %48, %50 : vector<17x256xf32>
    %c0_32 = arith.constant 0 : index
    %c0_33 = arith.constant 0 : index
    %c0_34 = arith.constant 0 : index
    %52 = vector.load %arg5[%c0_32, %c0_33, %c0_34] : memref<1x17x256xbf16, #tpu.memory_space<vmem>>, vector<1x17x256xbf16>
    %53 = vector.shape_cast %52 : vector<1x17x256xbf16> to vector<17x256xbf16>
    %54 = arith.extf %53 : vector<17x256xbf16> to vector<17x256xf32>
    %55 = arith.addf %51, %54 : vector<17x256xf32>
    %56 = arith.truncf %55 : vector<17x256xf32> to vector<17x256xbf16>
    %c0_35 = arith.constant 0 : index
    %c0_36 = arith.constant 0 : index
    %c0_37 = arith.constant 0 : index
    %57 = vector.load %arg6[%c0_35, %c0_36, %c0_37] : memref<1x17x256xbf16, #tpu.memory_space<vmem>>, vector<1x17x256xbf16>
    %58 = vector.shape_cast %57 : vector<1x17x256xbf16> to vector<17x256xbf16>
    %59 = vector.shape_cast %56 : vector<17x256xbf16> to vector<1x17x256xbf16>
    tpu.vector_store %arg6[%c0_35, %c0_36, %c0_37], %59 {strides = array<i32>} : memref<1x17x256xbf16, #tpu.memory_space<vmem>>, vector<1x17x256xbf16>,
    return
  }
  func.func @transform_0(%arg0: i32) -> (i32, i32, i32) {
    %c0_i32 = arith.constant 0 : i32
    %c0_i32_0 = arith.constant 0 : i32
    %c0_i32_1 = arith.constant 0 : i32
    return %arg0, %c0_i32, %c0_i32_0 : i32, i32, i32
  }
  func.func @transform_1(%arg0: i32) -> (i32, i32) {
    %c0_i32 = arith.constant 0 : i32
    %c0_i32_0 = arith.constant 0 : i32
    %c0_i32_1 = arith.constant 0 : i32
    return %c0_i32, %c0_i32_0 : i32, i32
  }
  func.func @transform_2(%arg0: i32) -> (i32, i32) {
    %c0_i32 = arith.constant 0 : i32
    %c0_i32_0 = arith.constant 0 : i32
    %c0_i32_1 = arith.constant 0 : i32
    return %c0_i32, %c0_i32_0 : i32, i32
  }
  func.func @transform_3(%arg0: i32) -> (i32, i32) {
    %c0_i32 = arith.constant 0 : i32
    %c0_i32_0 = arith.constant 0 : i32
    %c0_i32_1 = arith.constant 0 : i32
    return %c0_i32, %c0_i32_0 : i32, i32
  }
  func.func @transform_4(%arg0: i32) -> (i32, i32, i32) {
    %c0_i32 = arith.constant 0 : i32
    %c0_i32_0 = arith.constant 0 : i32
    %c0_i32_1 = arith.constant 0 : i32
    return %arg0, %c0_i32, %c0_i32_0 : i32, i32, i32
  }
  func.func @transform_5(%arg0: i32) -> (i32, i32, i32) {
    %c0_i32 = arith.constant 0 : i32
    %c0_i32_0 = arith.constant 0 : i32
    %c0_i32_1 = arith.constant 0 : i32
    return %arg0, %c0_i32, %c0_i32_0 : i32, i32, i32
  }
}

module attributes {stable_mosaic.version = 11 : i64} {
  func.func @_linear_kernel(%arg0: i32, %arg1: memref<32x48xbf16, #tpu.memory_space<vmem>>, %arg2: memref<48x256xbf16, #tpu.memory_space<vmem>>, %arg3: memref<1x256xf32, #tpu.memory_space<vmem>>, %arg4: memref<32x256xf32, #tpu.memory_space<vmem>>) attributes {dimension_semantics = [#tpu.dimension_semantics<parallel>], iteration_bounds = array<i64: 1>, scalar_prefetch = 0 : i64, scratch_operands = 0 : i64, tpu.core_type = #tpu.core_type<tc>, window_params = [{transform_indices = @transform_0, window_bounds = array<i64: 32, 48>}, {pipeline_mode = #tpu.pipeline_mode<synchronous>, transform_indices = @transform_1, window_bounds = array<i64: 48, 256>}, {pipeline_mode = #tpu.pipeline_mode<synchronous>, transform_indices = @transform_2, window_bounds = array<i64: 1, 256>}, {transform_indices = @transform_3, window_bounds = array<i64: 32, 256>}]} {
    %c0 = arith.constant 0 : index
    %c0_0 = arith.constant 0 : index
    %0 = vector.load %arg1[%c0, %c0_0] : memref<32x48xbf16, #tpu.memory_space<vmem>>, vector<32x48xbf16>
    %c0_1 = arith.constant 0 : index
    %c0_2 = arith.constant 0 : index
    %1 = vector.load %arg2[%c0_1, %c0_2] : memref<48x256xbf16, #tpu.memory_space<vmem>>, vector<48x256xbf16>
    %cst = arith.constant dense<0.000000e+00> : vector<32x256xf32>
    %2 = tpu.matmul %0, %1, %cst {dimension_numbers = #tpu.dot_dimension_numbers<[1], [0], [0], [1], [0, 0, 1, 1], [], []>} : vector<32x48xbf16>, vector<48x256xbf16>, vector<32x256xf32> -> vector<32x256xf32>
    %c0_3 = arith.constant 0 : index
    %c0_4 = arith.constant 0 : index
    %3 = vector.load %arg3[%c0_3, %c0_4] : memref<1x256xf32, #tpu.memory_space<vmem>>, vector<1x256xf32>
    %4 = vector.broadcast %3 : vector<1x256xf32> to vector<32x256xf32>
    %5 = arith.addf %2, %4 : vector<32x256xf32>
    %c0_5 = arith.constant 0 : index
    %c0_6 = arith.constant 0 : index
    %6 = vector.load %arg4[%c0_5, %c0_6] : memref<32x256xf32, #tpu.memory_space<vmem>>, vector<32x256xf32>
    tpu.vector_store %arg4[%c0_5, %c0_6], %5 {strides = array<i32>} : memref<32x256xf32, #tpu.memory_space<vmem>>, vector<32x256xf32>,
    return
  }
  func.func @transform_0(%arg0: i32) -> (i32, i32) {
    %c0_i32 = arith.constant 0 : i32
    %c0_i32_0 = arith.constant 0 : i32
    return %arg0, %c0_i32 : i32, i32
  }
  func.func @transform_1(%arg0: i32) -> (i32, i32) {
    %c0_i32 = arith.constant 0 : i32
    %c0_i32_0 = arith.constant 0 : i32
    %c0_i32_1 = arith.constant 0 : i32
    return %c0_i32, %c0_i32_0 : i32, i32
  }
  func.func @transform_2(%arg0: i32) -> (i32, i32) {
    %c0_i32 = arith.constant 0 : i32
    %c0_i32_0 = arith.constant 0 : i32
    %c0_i32_1 = arith.constant 0 : i32
    return %c0_i32, %c0_i32_0 : i32, i32
  }
  func.func @transform_3(%arg0: i32) -> (i32, i32) {
    %c0_i32 = arith.constant 0 : i32
    %c0_i32_0 = arith.constant 0 : i32
    return %arg0, %c0_i32 : i32, i32
  }
}

module attributes {stable_mosaic.version = 11 : i64} {
  func.func @_mlp_kernel(%arg0: i32, %arg1: memref<34x256xbf16, #tpu.memory_space<vmem>>, %arg2: memref<1x256xf32, #tpu.memory_space<vmem>>, %arg3: memref<1x256xf32, #tpu.memory_space<vmem>>, %arg4: memref<256x512xbf16, #tpu.memory_space<vmem>>, %arg5: memref<1x512xf32, #tpu.memory_space<vmem>>, %arg6: memref<512x256xbf16, #tpu.memory_space<vmem>>, %arg7: memref<1x256xf32, #tpu.memory_space<vmem>>, %arg8: memref<34x256xbf16, #tpu.memory_space<vmem>>, %arg9: memref<34x256xf32, #tpu.memory_space<vmem>>) attributes {dimension_semantics = [#tpu.dimension_semantics<parallel>], iteration_bounds = array<i64: 1>, scalar_prefetch = 0 : i64, scratch_operands = 1 : i64, tpu.core_type = #tpu.core_type<tc>, window_params = [{transform_indices = @transform_0, window_bounds = array<i64: 34, 256>}, {pipeline_mode = #tpu.pipeline_mode<synchronous>, transform_indices = @transform_1, window_bounds = array<i64: 1, 256>}, {pipeline_mode = #tpu.pipeline_mode<synchronous>, transform_indices = @transform_2, window_bounds = array<i64: 1, 256>}, {pipeline_mode = #tpu.pipeline_mode<synchronous>, transform_indices = @transform_3, window_bounds = array<i64: 256, 512>}, {pipeline_mode = #tpu.pipeline_mode<synchronous>, transform_indices = @transform_4, window_bounds = array<i64: 1, 512>}, {pipeline_mode = #tpu.pipeline_mode<synchronous>, transform_indices = @transform_5, window_bounds = array<i64: 512, 256>}, {pipeline_mode = #tpu.pipeline_mode<synchronous>, transform_indices = @transform_6, window_bounds = array<i64: 1, 256>}, {transform_indices = @transform_7, window_bounds = array<i64: 34, 256>}]} {
    %c0 = arith.constant 0 : index
    %c0_0 = arith.constant 0 : index
    %0 = vector.load %arg1[%c0, %c0_0] : memref<34x256xbf16, #tpu.memory_space<vmem>>, vector<34x256xbf16>
    %1 = arith.extf %0 : vector<34x256xbf16> to vector<34x256xf32>
    %c0_1 = arith.constant 0 : index
    %c0_2 = arith.constant 0 : index
    %2 = vector.load %arg2[%c0_1, %c0_2] : memref<1x256xf32, #tpu.memory_space<vmem>>, vector<1x256xf32>
    %c0_3 = arith.constant 0 : index
    %c0_4 = arith.constant 0 : index
    %3 = vector.load %arg3[%c0_3, %c0_4] : memref<1x256xf32, #tpu.memory_space<vmem>>, vector<1x256xf32>
    %cst = arith.constant dense<0.000000e+00> : vector<34xf32>
    %4 = vector.multi_reduction <add>, %1, %cst [1] : vector<34x256xf32> to vector<34xf32>
    %5 = vector.shape_cast %4 : vector<34xf32> to vector<34x1xf32>
    %cst_5 = arith.constant 2.560000e+02 : f32
    %6 = vector.broadcast %cst_5 : f32 to vector<34x1xf32>
    %7 = arith.divf %5, %6 : vector<34x1xf32>
    %8 = vector.broadcast %7 : vector<34x1xf32> to vector<34x256xf32>
    %9 = arith.subf %1, %8 : vector<34x256xf32>
    %10 = arith.mulf %9, %9 : vector<34x256xf32>
    %cst_6 = arith.constant dense<0.000000e+00> : vector<34xf32>
    %11 = vector.multi_reduction <add>, %10, %cst_6 [1] : vector<34x256xf32> to vector<34xf32>
    %12 = vector.shape_cast %11 : vector<34xf32> to vector<34x1xf32>
    %cst_7 = arith.constant 2.560000e+02 : f32
    %13 = vector.broadcast %cst_7 : f32 to vector<34x1xf32>
    %14 = arith.divf %12, %13 : vector<34x1xf32>
    %15 = vector.broadcast %7 : vector<34x1xf32> to vector<34x256xf32>
    %16 = arith.subf %1, %15 : vector<34x256xf32>
    %cst_8 = arith.constant 9.99999974E-6 : f32
    %17 = vector.broadcast %cst_8 : f32 to vector<34x1xf32>
    %18 = arith.addf %14, %17 : vector<34x1xf32>
    %19 = math.rsqrt %18 : vector<34x1xf32>
    %20 = vector.broadcast %19 : vector<34x1xf32> to vector<34x256xf32>
    %21 = arith.mulf %16, %20 : vector<34x256xf32>
    %22 = vector.broadcast %2 : vector<1x256xf32> to vector<34x256xf32>
    %23 = arith.mulf %21, %22 : vector<34x256xf32>
    %24 = vector.broadcast %3 : vector<1x256xf32> to vector<34x256xf32>
    %25 = arith.addf %23, %24 : vector<34x256xf32>
    %26 = arith.truncf %25 : vector<34x256xf32> to vector<34x256xbf16>
    %c0_9 = arith.constant 0 : index
    %c0_10 = arith.constant 0 : index
    %27 = vector.load %arg7[%c0_9, %c0_10] : memref<1x256xf32, #tpu.memory_space<vmem>>, vector<1x256xf32>
    %28 = vector.broadcast %27 : vector<1x256xf32> to vector<34x256xf32>
    %29 = arith.addf %1, %28 : vector<34x256xf32>
    %c0_11 = arith.constant 0 : index
    %c0_12 = arith.constant 0 : index
    %30 = vector.load %arg9[%c0_11, %c0_12] : memref<34x256xf32, #tpu.memory_space<vmem>>, vector<34x256xf32>
    tpu.vector_store %arg9[%c0_11, %c0_12], %29 {strides = array<i32>} : memref<34x256xf32, #tpu.memory_space<vmem>>, vector<34x256xf32>,
    %c0_13 = arith.constant 0 : index
    %c0_14 = arith.constant 0 : index
    %31 = vector.load %arg4[%c0_13, %c0_14] : memref<256x512xbf16, #tpu.memory_space<vmem>>, vector<256x512xbf16>
    %cst_15 = arith.constant dense<0.000000e+00> : vector<34x512xf32>
    %32 = tpu.matmul %26, %31, %cst_15 {dimension_numbers = #tpu.dot_dimension_numbers<[1], [0], [0], [1], [0, 0, 1, 1], [], []>} : vector<34x256xbf16>, vector<256x512xbf16>, vector<34x512xf32> -> vector<34x512xf32>
    %c0_16 = arith.constant 0 : index
    %c0_17 = arith.constant 0 : index
    %33 = vector.load %arg5[%c0_16, %c0_17] : memref<1x512xf32, #tpu.memory_space<vmem>>, vector<1x512xf32>
    %34 = vector.broadcast %33 : vector<1x512xf32> to vector<34x512xf32>
    %35 = arith.addf %32, %34 : vector<34x512xf32>
    %cst_18 = arith.constant 5.000000e-01 : f32
    %36 = vector.broadcast %cst_18 : f32 to vector<34x512xf32>
    %37 = arith.mulf %36, %35 : vector<34x512xf32>
    %cst_19 = arith.constant 4.471500e-02 : f32
    %38 = vector.broadcast %cst_19 : f32 to vector<34x512xf32>
    %39 = arith.mulf %38, %35 : vector<34x512xf32>
    %40 = arith.mulf %39, %35 : vector<34x512xf32>
    %41 = arith.mulf %40, %35 : vector<34x512xf32>
    %42 = arith.addf %35, %41 : vector<34x512xf32>
    %cst_20 = arith.constant 0.797884583 : f32
    %43 = vector.broadcast %cst_20 : f32 to vector<34x512xf32>
    %44 = arith.mulf %43, %42 : vector<34x512xf32>
    %45 = math.tanh %44 : vector<34x512xf32>
    %cst_21 = arith.constant 1.000000e+00 : f32
    %46 = vector.broadcast %cst_21 : f32 to vector<34x512xf32>
    %47 = arith.addf %46, %45 : vector<34x512xf32>
    %48 = arith.mulf %37, %47 : vector<34x512xf32>
    %c0_22 = arith.constant 0 : index
    %c0_23 = arith.constant 0 : index
    %49 = vector.load %arg9[%c0_22, %c0_23] : memref<34x256xf32, #tpu.memory_space<vmem>>, vector<34x256xf32>
    %50 = arith.truncf %48 : vector<34x512xf32> to vector<34x512xbf16>
    %c0_24 = arith.constant 0 : index
    %c0_25 = arith.constant 0 : index
    %51 = vector.load %arg6[%c0_24, %c0_25] : memref<512x256xbf16, #tpu.memory_space<vmem>>, vector<512x256xbf16>
    %cst_26 = arith.constant dense<0.000000e+00> : vector<34x256xf32>
    %52 = tpu.matmul %50, %51, %cst_26 {dimension_numbers = #tpu.dot_dimension_numbers<[1], [0], [0], [1], [0, 0, 1, 1], [], []>} : vector<34x512xbf16>, vector<512x256xbf16>, vector<34x256xf32> -> vector<34x256xf32>
    %53 = arith.addf %49, %52 : vector<34x256xf32>
    %c0_27 = arith.constant 0 : index
    %c0_28 = arith.constant 0 : index
    %54 = vector.load %arg9[%c0_27, %c0_28] : memref<34x256xf32, #tpu.memory_space<vmem>>, vector<34x256xf32>
    tpu.vector_store %arg9[%c0_27, %c0_28], %53 {strides = array<i32>} : memref<34x256xf32, #tpu.memory_space<vmem>>, vector<34x256xf32>,
    %c0_29 = arith.constant 0 : index
    %c0_30 = arith.constant 0 : index
    %55 = vector.load %arg9[%c0_29, %c0_30] : memref<34x256xf32, #tpu.memory_space<vmem>>, vector<34x256xf32>
    %56 = arith.truncf %55 : vector<34x256xf32> to vector<34x256xbf16>
    %c0_31 = arith.constant 0 : index
    %c0_32 = arith.constant 0 : index
    %57 = vector.load %arg8[%c0_31, %c0_32] : memref<34x256xbf16, #tpu.memory_space<vmem>>, vector<34x256xbf16>
    tpu.vector_store %arg8[%c0_31, %c0_32], %56 {strides = array<i32>} : memref<34x256xbf16, #tpu.memory_space<vmem>>, vector<34x256xbf16>,
    return
  }
  func.func @transform_0(%arg0: i32) -> (i32, i32) {
    %c0_i32 = arith.constant 0 : i32
    %c0_i32_0 = arith.constant 0 : i32
    return %arg0, %c0_i32 : i32, i32
  }
  func.func @transform_1(%arg0: i32) -> (i32, i32) {
    %c0_i32 = arith.constant 0 : i32
    %c0_i32_0 = arith.constant 0 : i32
    %c0_i32_1 = arith.constant 0 : i32
    return %c0_i32, %c0_i32_0 : i32, i32
  }
  func.func @transform_2(%arg0: i32) -> (i32, i32) {
    %c0_i32 = arith.constant 0 : i32
    %c0_i32_0 = arith.constant 0 : i32
    %c0_i32_1 = arith.constant 0 : i32
    return %c0_i32, %c0_i32_0 : i32, i32
  }
  func.func @transform_3(%arg0: i32) -> (i32, i32) {
    %c0_i32 = arith.constant 0 : i32
    %c0_i32_0 = arith.constant 0 : i32
    %c0_i32_1 = arith.constant 0 : i32
    return %c0_i32, %c0_i32_0 : i32, i32
  }
  func.func @transform_4(%arg0: i32) -> (i32, i32) {
    %c0_i32 = arith.constant 0 : i32
    %c0_i32_0 = arith.constant 0 : i32
    %c0_i32_1 = arith.constant 0 : i32
    return %c0_i32, %c0_i32_0 : i32, i32
  }
  func.func @transform_5(%arg0: i32) -> (i32, i32) {
    %c0_i32 = arith.constant 0 : i32
    %c0_i32_0 = arith.constant 0 : i32
    %c0_i32_1 = arith.constant 0 : i32
    return %c0_i32, %c0_i32_0 : i32, i32
  }
  func.func @transform_6(%arg0: i32) -> (i32, i32) {
    %c0_i32 = arith.constant 0 : i32
    %c0_i32_0 = arith.constant 0 : i32
    %c0_i32_1 = arith.constant 0 : i32
    return %c0_i32, %c0_i32_0 : i32, i32
  }
  func.func @transform_7(%arg0: i32) -> (i32, i32) {
    %c0_i32 = arith.constant 0 : i32
    %c0_i32_0 = arith.constant 0 : i32
    return %arg0, %c0_i32 : i32, i32
  }
}

module attributes {stable_mosaic.version = 11 : i64} {
  func.func @_boundary_kernel(%arg0: i32, %arg1: memref<34x256xbf16, #tpu.memory_space<vmem>>, %arg2: memref<256x512xbf16, #tpu.memory_space<vmem>>, %arg3: memref<1x512xf32, #tpu.memory_space<vmem>>, %arg4: memref<1x512xf32, #tpu.memory_space<vmem>>, %arg5: memref<1x1xf32, #tpu.memory_space<vmem>>, %arg6: memref<34x1xf32, #tpu.memory_space<vmem>>) attributes {dimension_semantics = [#tpu.dimension_semantics<parallel>], iteration_bounds = array<i64: 1>, scalar_prefetch = 0 : i64, scratch_operands = 0 : i64, tpu.core_type = #tpu.core_type<tc>, window_params = [{transform_indices = @transform_0, window_bounds = array<i64: 34, 256>}, {pipeline_mode = #tpu.pipeline_mode<synchronous>, transform_indices = @transform_1, window_bounds = array<i64: 256, 512>}, {pipeline_mode = #tpu.pipeline_mode<synchronous>, transform_indices = @transform_2, window_bounds = array<i64: 1, 512>}, {pipeline_mode = #tpu.pipeline_mode<synchronous>, transform_indices = @transform_3, window_bounds = array<i64: 1, 512>}, {pipeline_mode = #tpu.pipeline_mode<synchronous>, transform_indices = @transform_4, window_bounds = array<i64: 1, 1>}, {transform_indices = @transform_5, window_bounds = array<i64: 34, 1>}]} {
    %c0 = arith.constant 0 : index
    %c0_0 = arith.constant 0 : index
    %0 = vector.load %arg1[%c0, %c0_0] : memref<34x256xbf16, #tpu.memory_space<vmem>>, vector<34x256xbf16>
    %c0_1 = arith.constant 0 : index
    %c0_2 = arith.constant 0 : index
    %1 = vector.load %arg2[%c0_1, %c0_2] : memref<256x512xbf16, #tpu.memory_space<vmem>>, vector<256x512xbf16>
    %cst = arith.constant dense<0.000000e+00> : vector<34x512xf32>
    %2 = tpu.matmul %0, %1, %cst {dimension_numbers = #tpu.dot_dimension_numbers<[1], [0], [0], [1], [0, 0, 1, 1], [], []>} : vector<34x256xbf16>, vector<256x512xbf16>, vector<34x512xf32> -> vector<34x512xf32>
    %c0_3 = arith.constant 0 : index
    %c0_4 = arith.constant 0 : index
    %3 = vector.load %arg3[%c0_3, %c0_4] : memref<1x512xf32, #tpu.memory_space<vmem>>, vector<1x512xf32>
    %4 = vector.broadcast %3 : vector<1x512xf32> to vector<34x512xf32>
    %5 = arith.addf %2, %4 : vector<34x512xf32>
    %cst_5 = arith.constant 5.000000e-01 : f32
    %6 = vector.broadcast %cst_5 : f32 to vector<34x512xf32>
    %7 = arith.mulf %6, %5 : vector<34x512xf32>
    %cst_6 = arith.constant 4.471500e-02 : f32
    %8 = vector.broadcast %cst_6 : f32 to vector<34x512xf32>
    %9 = arith.mulf %8, %5 : vector<34x512xf32>
    %10 = arith.mulf %9, %5 : vector<34x512xf32>
    %11 = arith.mulf %10, %5 : vector<34x512xf32>
    %12 = arith.addf %5, %11 : vector<34x512xf32>
    %cst_7 = arith.constant 0.797884583 : f32
    %13 = vector.broadcast %cst_7 : f32 to vector<34x512xf32>
    %14 = arith.mulf %13, %12 : vector<34x512xf32>
    %15 = math.tanh %14 : vector<34x512xf32>
    %cst_8 = arith.constant 1.000000e+00 : f32
    %16 = vector.broadcast %cst_8 : f32 to vector<34x512xf32>
    %17 = arith.addf %16, %15 : vector<34x512xf32>
    %18 = arith.mulf %7, %17 : vector<34x512xf32>
    %c0_9 = arith.constant 0 : index
    %c0_10 = arith.constant 0 : index
    %19 = vector.load %arg4[%c0_9, %c0_10] : memref<1x512xf32, #tpu.memory_space<vmem>>, vector<1x512xf32>
    %20 = vector.broadcast %19 : vector<1x512xf32> to vector<34x512xf32>
    %21 = arith.mulf %18, %20 : vector<34x512xf32>
    %cst_11 = arith.constant dense<0.000000e+00> : vector<34xf32>
    %22 = vector.multi_reduction <add>, %21, %cst_11 [1] : vector<34x512xf32> to vector<34xf32>
    %23 = vector.shape_cast %22 : vector<34xf32> to vector<34x1xf32>
    %c0_12 = arith.constant 0 : index
    %c0_13 = arith.constant 0 : index
    %24 = vector.load %arg5[%c0_12, %c0_13] : memref<1x1xf32, #tpu.memory_space<vmem>>, vector<1x1xf32>
    %25 = vector.broadcast %24 : vector<1x1xf32> to vector<34x1xf32>
    %26 = arith.addf %23, %25 : vector<34x1xf32>
    %c0_14 = arith.constant 0 : index
    %c0_15 = arith.constant 0 : index
    %27 = vector.load %arg6[%c0_14, %c0_15] : memref<34x1xf32, #tpu.memory_space<vmem>>, vector<34x1xf32>
    tpu.vector_store %arg6[%c0_14, %c0_15], %26 {strides = array<i32>} : memref<34x1xf32, #tpu.memory_space<vmem>>, vector<34x1xf32>,
    return
  }
  func.func @transform_0(%arg0: i32) -> (i32, i32) {
    %c0_i32 = arith.constant 0 : i32
    %c0_i32_0 = arith.constant 0 : i32
    return %arg0, %c0_i32 : i32, i32
  }
  func.func @transform_1(%arg0: i32) -> (i32, i32) {
    %c0_i32 = arith.constant 0 : i32
    %c0_i32_0 = arith.constant 0 : i32
    %c0_i32_1 = arith.constant 0 : i32
    return %c0_i32, %c0_i32_0 : i32, i32
  }
  func.func @transform_2(%arg0: i32) -> (i32, i32) {
    %c0_i32 = arith.constant 0 : i32
    %c0_i32_0 = arith.constant 0 : i32
    %c0_i32_1 = arith.constant 0 : i32
    return %c0_i32, %c0_i32_0 : i32, i32
  }
  func.func @transform_3(%arg0: i32) -> (i32, i32) {
    %c0_i32 = arith.constant 0 : i32
    %c0_i32_0 = arith.constant 0 : i32
    %c0_i32_1 = arith.constant 0 : i32
    return %c0_i32, %c0_i32_0 : i32, i32
  }
  func.func @transform_4(%arg0: i32) -> (i32, i32) {
    %c0_i32 = arith.constant 0 : i32
    %c0_i32_0 = arith.constant 0 : i32
    %c0_i32_1 = arith.constant 0 : i32
    return %c0_i32, %c0_i32_0 : i32, i32
  }
  func.func @transform_5(%arg0: i32) -> (i32, i32) {
    %c0_i32 = arith.constant 0 : i32
    %c0_i32_0 = arith.constant 0 : i32
    return %arg0, %c0_i32 : i32, i32
  }
}

module attributes {stable_mosaic.version = 11 : i64} {
  func.func @_ln_linear_kernel(%arg0: i32, %arg1: memref<36x256xbf16, #tpu.memory_space<vmem>>, %arg2: memref<1x256xf32, #tpu.memory_space<vmem>>, %arg3: memref<1x256xf32, #tpu.memory_space<vmem>>, %arg4: memref<256x768xbf16, #tpu.memory_space<vmem>>, %arg5: memref<1x768xf32, #tpu.memory_space<vmem>>, %arg6: memref<36x768xbf16, #tpu.memory_space<vmem>>) attributes {dimension_semantics = [#tpu.dimension_semantics<parallel>], iteration_bounds = array<i64: 1>, scalar_prefetch = 0 : i64, scratch_operands = 0 : i64, tpu.core_type = #tpu.core_type<tc>, window_params = [{transform_indices = @transform_0, window_bounds = array<i64: 36, 256>}, {pipeline_mode = #tpu.pipeline_mode<synchronous>, transform_indices = @transform_1, window_bounds = array<i64: 1, 256>}, {pipeline_mode = #tpu.pipeline_mode<synchronous>, transform_indices = @transform_2, window_bounds = array<i64: 1, 256>}, {pipeline_mode = #tpu.pipeline_mode<synchronous>, transform_indices = @transform_3, window_bounds = array<i64: 256, 768>}, {pipeline_mode = #tpu.pipeline_mode<synchronous>, transform_indices = @transform_4, window_bounds = array<i64: 1, 768>}, {transform_indices = @transform_5, window_bounds = array<i64: 36, 768>}]} {
    %c0 = arith.constant 0 : index
    %c0_0 = arith.constant 0 : index
    %0 = vector.load %arg1[%c0, %c0_0] : memref<36x256xbf16, #tpu.memory_space<vmem>>, vector<36x256xbf16>
    %1 = arith.extf %0 : vector<36x256xbf16> to vector<36x256xf32>
    %c0_1 = arith.constant 0 : index
    %c0_2 = arith.constant 0 : index
    %2 = vector.load %arg2[%c0_1, %c0_2] : memref<1x256xf32, #tpu.memory_space<vmem>>, vector<1x256xf32>
    %c0_3 = arith.constant 0 : index
    %c0_4 = arith.constant 0 : index
    %3 = vector.load %arg3[%c0_3, %c0_4] : memref<1x256xf32, #tpu.memory_space<vmem>>, vector<1x256xf32>
    %cst = arith.constant dense<0.000000e+00> : vector<36xf32>
    %4 = vector.multi_reduction <add>, %1, %cst [1] : vector<36x256xf32> to vector<36xf32>
    %5 = vector.shape_cast %4 : vector<36xf32> to vector<36x1xf32>
    %cst_5 = arith.constant 2.560000e+02 : f32
    %6 = vector.broadcast %cst_5 : f32 to vector<36x1xf32>
    %7 = arith.divf %5, %6 : vector<36x1xf32>
    %8 = vector.broadcast %7 : vector<36x1xf32> to vector<36x256xf32>
    %9 = arith.subf %1, %8 : vector<36x256xf32>
    %10 = arith.mulf %9, %9 : vector<36x256xf32>
    %cst_6 = arith.constant dense<0.000000e+00> : vector<36xf32>
    %11 = vector.multi_reduction <add>, %10, %cst_6 [1] : vector<36x256xf32> to vector<36xf32>
    %12 = vector.shape_cast %11 : vector<36xf32> to vector<36x1xf32>
    %cst_7 = arith.constant 2.560000e+02 : f32
    %13 = vector.broadcast %cst_7 : f32 to vector<36x1xf32>
    %14 = arith.divf %12, %13 : vector<36x1xf32>
    %15 = vector.broadcast %7 : vector<36x1xf32> to vector<36x256xf32>
    %16 = arith.subf %1, %15 : vector<36x256xf32>
    %cst_8 = arith.constant 9.99999974E-6 : f32
    %17 = vector.broadcast %cst_8 : f32 to vector<36x1xf32>
    %18 = arith.addf %14, %17 : vector<36x1xf32>
    %19 = math.rsqrt %18 : vector<36x1xf32>
    %20 = vector.broadcast %19 : vector<36x1xf32> to vector<36x256xf32>
    %21 = arith.mulf %16, %20 : vector<36x256xf32>
    %22 = vector.broadcast %2 : vector<1x256xf32> to vector<36x256xf32>
    %23 = arith.mulf %21, %22 : vector<36x256xf32>
    %24 = vector.broadcast %3 : vector<1x256xf32> to vector<36x256xf32>
    %25 = arith.addf %23, %24 : vector<36x256xf32>
    %26 = arith.truncf %25 : vector<36x256xf32> to vector<36x256xbf16>
    %c0_9 = arith.constant 0 : index
    %c0_10 = arith.constant 0 : index
    %27 = vector.load %arg4[%c0_9, %c0_10] : memref<256x768xbf16, #tpu.memory_space<vmem>>, vector<256x768xbf16>
    %cst_11 = arith.constant dense<0.000000e+00> : vector<36x768xf32>
    %28 = tpu.matmul %26, %27, %cst_11 {dimension_numbers = #tpu.dot_dimension_numbers<[1], [0], [0], [1], [0, 0, 1, 1], [], []>} : vector<36x256xbf16>, vector<256x768xbf16>, vector<36x768xf32> -> vector<36x768xf32>
    %c0_12 = arith.constant 0 : index
    %c0_13 = arith.constant 0 : index
    %29 = vector.load %arg5[%c0_12, %c0_13] : memref<1x768xf32, #tpu.memory_space<vmem>>, vector<1x768xf32>
    %30 = vector.broadcast %29 : vector<1x768xf32> to vector<36x768xf32>
    %31 = arith.addf %28, %30 : vector<36x768xf32>
    %32 = arith.truncf %31 : vector<36x768xf32> to vector<36x768xbf16>
    %c0_14 = arith.constant 0 : index
    %c0_15 = arith.constant 0 : index
    %33 = vector.load %arg6[%c0_14, %c0_15] : memref<36x768xbf16, #tpu.memory_space<vmem>>, vector<36x768xbf16>
    tpu.vector_store %arg6[%c0_14, %c0_15], %32 {strides = array<i32>} : memref<36x768xbf16, #tpu.memory_space<vmem>>, vector<36x768xbf16>,
    return
  }
  func.func @transform_0(%arg0: i32) -> (i32, i32) {
    %c0_i32 = arith.constant 0 : i32
    %c0_i32_0 = arith.constant 0 : i32
    return %arg0, %c0_i32 : i32, i32
  }
  func.func @transform_1(%arg0: i32) -> (i32, i32) {
    %c0_i32 = arith.constant 0 : i32
    %c0_i32_0 = arith.constant 0 : i32
    %c0_i32_1 = arith.constant 0 : i32
    return %c0_i32, %c0_i32_0 : i32, i32
  }
  func.func @transform_2(%arg0: i32) -> (i32, i32) {
    %c0_i32 = arith.constant 0 : i32
    %c0_i32_0 = arith.constant 0 : i32
    %c0_i32_1 = arith.constant 0 : i32
    return %c0_i32, %c0_i32_0 : i32, i32
  }
  func.func @transform_3(%arg0: i32) -> (i32, i32) {
    %c0_i32 = arith.constant 0 : i32
    %c0_i32_0 = arith.constant 0 : i32
    %c0_i32_1 = arith.constant 0 : i32
    return %c0_i32, %c0_i32_0 : i32, i32
  }
  func.func @transform_4(%arg0: i32) -> (i32, i32) {
    %c0_i32 = arith.constant 0 : i32
    %c0_i32_0 = arith.constant 0 : i32
    %c0_i32_1 = arith.constant 0 : i32
    return %c0_i32, %c0_i32_0 : i32, i32
  }
  func.func @transform_5(%arg0: i32) -> (i32, i32) {
    %c0_i32 = arith.constant 0 : i32
    %c0_i32_0 = arith.constant 0 : i32
    return %arg0, %c0_i32 : i32, i32
  }
}

module attributes {stable_mosaic.version = 11 : i64} {
  func.func @_ln_kernel(%arg0: i32, %arg1: memref<36x256xbf16, #tpu.memory_space<vmem>>, %arg2: memref<1x256xf32, #tpu.memory_space<vmem>>, %arg3: memref<1x256xf32, #tpu.memory_space<vmem>>, %arg4: memref<36x256xbf16, #tpu.memory_space<vmem>>) attributes {dimension_semantics = [#tpu.dimension_semantics<parallel>], iteration_bounds = array<i64: 1>, scalar_prefetch = 0 : i64, scratch_operands = 0 : i64, tpu.core_type = #tpu.core_type<tc>, window_params = [{transform_indices = @transform_0, window_bounds = array<i64: 36, 256>}, {pipeline_mode = #tpu.pipeline_mode<synchronous>, transform_indices = @transform_1, window_bounds = array<i64: 1, 256>}, {pipeline_mode = #tpu.pipeline_mode<synchronous>, transform_indices = @transform_2, window_bounds = array<i64: 1, 256>}, {transform_indices = @transform_3, window_bounds = array<i64: 36, 256>}]} {
    %c0 = arith.constant 0 : index
    %c0_0 = arith.constant 0 : index
    %0 = vector.load %arg1[%c0, %c0_0] : memref<36x256xbf16, #tpu.memory_space<vmem>>, vector<36x256xbf16>
    %1 = arith.extf %0 : vector<36x256xbf16> to vector<36x256xf32>
    %c0_1 = arith.constant 0 : index
    %c0_2 = arith.constant 0 : index
    %2 = vector.load %arg2[%c0_1, %c0_2] : memref<1x256xf32, #tpu.memory_space<vmem>>, vector<1x256xf32>
    %c0_3 = arith.constant 0 : index
    %c0_4 = arith.constant 0 : index
    %3 = vector.load %arg3[%c0_3, %c0_4] : memref<1x256xf32, #tpu.memory_space<vmem>>, vector<1x256xf32>
    %cst = arith.constant dense<0.000000e+00> : vector<36xf32>
    %4 = vector.multi_reduction <add>, %1, %cst [1] : vector<36x256xf32> to vector<36xf32>
    %5 = vector.shape_cast %4 : vector<36xf32> to vector<36x1xf32>
    %cst_5 = arith.constant 2.560000e+02 : f32
    %6 = vector.broadcast %cst_5 : f32 to vector<36x1xf32>
    %7 = arith.divf %5, %6 : vector<36x1xf32>
    %8 = vector.broadcast %7 : vector<36x1xf32> to vector<36x256xf32>
    %9 = arith.subf %1, %8 : vector<36x256xf32>
    %10 = arith.mulf %9, %9 : vector<36x256xf32>
    %cst_6 = arith.constant dense<0.000000e+00> : vector<36xf32>
    %11 = vector.multi_reduction <add>, %10, %cst_6 [1] : vector<36x256xf32> to vector<36xf32>
    %12 = vector.shape_cast %11 : vector<36xf32> to vector<36x1xf32>
    %cst_7 = arith.constant 2.560000e+02 : f32
    %13 = vector.broadcast %cst_7 : f32 to vector<36x1xf32>
    %14 = arith.divf %12, %13 : vector<36x1xf32>
    %15 = vector.broadcast %7 : vector<36x1xf32> to vector<36x256xf32>
    %16 = arith.subf %1, %15 : vector<36x256xf32>
    %cst_8 = arith.constant 9.99999974E-6 : f32
    %17 = vector.broadcast %cst_8 : f32 to vector<36x1xf32>
    %18 = arith.addf %14, %17 : vector<36x1xf32>
    %19 = math.rsqrt %18 : vector<36x1xf32>
    %20 = vector.broadcast %19 : vector<36x1xf32> to vector<36x256xf32>
    %21 = arith.mulf %16, %20 : vector<36x256xf32>
    %22 = vector.broadcast %2 : vector<1x256xf32> to vector<36x256xf32>
    %23 = arith.mulf %21, %22 : vector<36x256xf32>
    %24 = vector.broadcast %3 : vector<1x256xf32> to vector<36x256xf32>
    %25 = arith.addf %23, %24 : vector<36x256xf32>
    %26 = arith.truncf %25 : vector<36x256xf32> to vector<36x256xbf16>
    %c0_9 = arith.constant 0 : index
    %c0_10 = arith.constant 0 : index
    %27 = vector.load %arg4[%c0_9, %c0_10] : memref<36x256xbf16, #tpu.memory_space<vmem>>, vector<36x256xbf16>
    tpu.vector_store %arg4[%c0_9, %c0_10], %26 {strides = array<i32>} : memref<36x256xbf16, #tpu.memory_space<vmem>>, vector<36x256xbf16>,
    return
  }
  func.func @transform_0(%arg0: i32) -> (i32, i32) {
    %c0_i32 = arith.constant 0 : i32
    %c0_i32_0 = arith.constant 0 : i32
    return %arg0, %c0_i32 : i32, i32
  }
  func.func @transform_1(%arg0: i32) -> (i32, i32) {
    %c0_i32 = arith.constant 0 : i32
    %c0_i32_0 = arith.constant 0 : i32
    %c0_i32_1 = arith.constant 0 : i32
    return %c0_i32, %c0_i32_0 : i32, i32
  }
  func.func @transform_2(%arg0: i32) -> (i32, i32) {
    %c0_i32 = arith.constant 0 : i32
    %c0_i32_0 = arith.constant 0 : i32
    %c0_i32_1 = arith.constant 0 : i32
    return %c0_i32, %c0_i32_0 : i32, i32
  }
  func.func @transform_3(%arg0: i32) -> (i32, i32) {
    %c0_i32 = arith.constant 0 : i32
    %c0_i32_0 = arith.constant 0 : i32
    return %arg0, %c0_i32 : i32, i32
  }
}

module attributes {stable_mosaic.version = 11 : i64} {
  func.func @_seg_pool_kernel(%arg0: i32, %arg1: memref<1x17x17xbf16, #tpu.memory_space<vmem>>, %arg2: memref<1x17x256xbf16, #tpu.memory_space<vmem>>, %arg3: memref<1x17x256xbf16, #tpu.memory_space<vmem>>) attributes {dimension_semantics = [#tpu.dimension_semantics<parallel>], iteration_bounds = array<i64: 2>, scalar_prefetch = 0 : i64, scratch_operands = 0 : i64, tpu.core_type = #tpu.core_type<tc>, window_params = [{transform_indices = @transform_0, window_bounds = array<i64: 1, 17, 17>}, {transform_indices = @transform_1, window_bounds = array<i64: 1, 17, 256>}, {transform_indices = @transform_2, window_bounds = array<i64: 1, 17, 256>}]} {
    %c0 = arith.constant 0 : index
    %c0_0 = arith.constant 0 : index
    %c0_1 = arith.constant 0 : index
    %0 = vector.load %arg1[%c0, %c0_0, %c0_1] : memref<1x17x17xbf16, #tpu.memory_space<vmem>>, vector<1x17x17xbf16>
    %1 = vector.shape_cast %0 : vector<1x17x17xbf16> to vector<17x17xbf16>
    %c0_2 = arith.constant 0 : index
    %c0_3 = arith.constant 0 : index
    %c0_4 = arith.constant 0 : index
    %2 = vector.load %arg2[%c0_2, %c0_3, %c0_4] : memref<1x17x256xbf16, #tpu.memory_space<vmem>>, vector<1x17x256xbf16>
    %3 = vector.shape_cast %2 : vector<1x17x256xbf16> to vector<17x256xbf16>
    %cst = arith.constant dense<0.000000e+00> : vector<17x256xf32>
    %4 = tpu.matmul %1, %3, %cst {dimension_numbers = #tpu.dot_dimension_numbers<[1], [0], [0], [1], [0, 0, 1, 1], [], []>} : vector<17x17xbf16>, vector<17x256xbf16>, vector<17x256xf32> -> vector<17x256xf32>
    %5 = arith.truncf %4 : vector<17x256xf32> to vector<17x256xbf16>
    %c0_5 = arith.constant 0 : index
    %c0_6 = arith.constant 0 : index
    %c0_7 = arith.constant 0 : index
    %6 = vector.load %arg3[%c0_5, %c0_6, %c0_7] : memref<1x17x256xbf16, #tpu.memory_space<vmem>>, vector<1x17x256xbf16>
    %7 = vector.shape_cast %6 : vector<1x17x256xbf16> to vector<17x256xbf16>
    %8 = vector.shape_cast %5 : vector<17x256xbf16> to vector<1x17x256xbf16>
    tpu.vector_store %arg3[%c0_5, %c0_6, %c0_7], %8 {strides = array<i32>} : memref<1x17x256xbf16, #tpu.memory_space<vmem>>, vector<1x17x256xbf16>,
    return
  }
  func.func @transform_0(%arg0: i32) -> (i32, i32, i32) {
    %c0_i32 = arith.constant 0 : i32
    %c0_i32_0 = arith.constant 0 : i32
    %c0_i32_1 = arith.constant 0 : i32
    return %arg0, %c0_i32, %c0_i32_0 : i32, i32, i32
  }
  func.func @transform_1(%arg0: i32) -> (i32, i32, i32) {
    %c0_i32 = arith.constant 0 : i32
    %c0_i32_0 = arith.constant 0 : i32
    %c0_i32_1 = arith.constant 0 : i32
    return %arg0, %c0_i32, %c0_i32_0 : i32, i32, i32
  }
  func.func @transform_2(%arg0: i32) -> (i32, i32, i32) {
    %c0_i32 = arith.constant 0 : i32
    %c0_i32_0 = arith.constant 0 : i32
    %c0_i32_1 = arith.constant 0 : i32
    return %arg0, %c0_i32, %c0_i32_0 : i32, i32, i32
  }
}

module attributes {stable_mosaic.version = 11 : i64} {
  func.func @_attn_kernel(%arg0: i32, %arg1: memref<1x18x768xbf16, #tpu.memory_space<vmem>>, %arg2: memref<1x18xf32, #tpu.memory_space<vmem>>, %arg3: memref<256x256xbf16, #tpu.memory_space<vmem>>, %arg4: memref<1x256xf32, #tpu.memory_space<vmem>>, %arg5: memref<1x18x256xbf16, #tpu.memory_space<vmem>>, %arg6: memref<1x18x256xbf16, #tpu.memory_space<vmem>>, %arg7: memref<18x256xf32, #tpu.memory_space<vmem>>) attributes {dimension_semantics = [#tpu.dimension_semantics<parallel>], iteration_bounds = array<i64: 2>, scalar_prefetch = 0 : i64, scratch_operands = 1 : i64, tpu.core_type = #tpu.core_type<tc>, window_params = [{transform_indices = @transform_0, window_bounds = array<i64: 1, 18, 768>}, {pipeline_mode = #tpu.pipeline_mode<synchronous>, transform_indices = @transform_1, window_bounds = array<i64: 1, 18>}, {pipeline_mode = #tpu.pipeline_mode<synchronous>, transform_indices = @transform_2, window_bounds = array<i64: 256, 256>}, {pipeline_mode = #tpu.pipeline_mode<synchronous>, transform_indices = @transform_3, window_bounds = array<i64: 1, 256>}, {transform_indices = @transform_4, window_bounds = array<i64: 1, 18, 256>}, {transform_indices = @transform_5, window_bounds = array<i64: 1, 18, 256>}]} {
    %c0 = arith.constant 0 : index
    %c0_0 = arith.constant 0 : index
    %0 = vector.load %arg2[%c0, %c0_0] : memref<1x18xf32, #tpu.memory_space<vmem>>, vector<1x18xf32>
    %1 = vector.shape_cast %0 : vector<1x18xf32> to vector<1x18xf32>
    %c0_1 = arith.constant 0 : index
    %c0_2 = arith.constant 0 : index
    %c0_3 = arith.constant 0 : index
    %2 = vector.load %arg1[%c0_1, %c0_2, %c0_3] : memref<1x18x768xbf16, #tpu.memory_space<vmem>>, vector<1x18x128xbf16>
    %3 = vector.shape_cast %2 : vector<1x18x128xbf16> to vector<18x128xbf16>
    %c0_4 = arith.constant 0 : index
    %c0_5 = arith.constant 0 : index
    %c256 = arith.constant 256 : index
    %4 = vector.load %arg1[%c0_4, %c0_5, %c256] : memref<1x18x768xbf16, #tpu.memory_space<vmem>>, vector<1x18x128xbf16>
    %5 = vector.shape_cast %4 : vector<1x18x128xbf16> to vector<18x128xbf16>
    %c0_6 = arith.constant 0 : index
    %c0_7 = arith.constant 0 : index
    %c512 = arith.constant 512 : index
    %6 = vector.load %arg1[%c0_6, %c0_7, %c512] : memref<1x18x768xbf16, #tpu.memory_space<vmem>>, vector<1x18x128xbf16>
    %7 = vector.shape_cast %6 : vector<1x18x128xbf16> to vector<18x128xbf16>
    %cst = arith.constant dense<0.000000e+00> : vector<18x18xf32>
    %8 = tpu.matmul %3, %5, %cst {dimension_numbers = #tpu.dot_dimension_numbers<[1], [1], [0], [0], [0, 0, 1, 0], [], []>} : vector<18x128xbf16>, vector<18x128xbf16>, vector<18x18xf32> -> vector<18x18xf32>
    %9 = vector.broadcast %1 : vector<1x18xf32> to vector<18x18xf32>
    %10 = arith.addf %8, %9 : vector<18x18xf32>
    %cst_8 = arith.constant dense<0xFF800000> : vector<18xf32>
    %11 = vector.multi_reduction <maximumf>, %10, %cst_8 [1] : vector<18x18xf32> to vector<18xf32>
    %12 = vector.shape_cast %11 : vector<18xf32> to vector<18x1xf32>
    %13 = vector.broadcast %12 : vector<18x1xf32> to vector<18x18xf32>
    %14 = arith.subf %10, %13 : vector<18x18xf32>
    %15 = math.exp %14 : vector<18x18xf32>
    %cst_9 = arith.constant dense<0.000000e+00> : vector<18xf32>
    %16 = vector.multi_reduction <add>, %15, %cst_9 [1] : vector<18x18xf32> to vector<18xf32>
    %17 = vector.shape_cast %16 : vector<18xf32> to vector<18x1xf32>
    %18 = tpu.reciprocal %17 {approx = true} : vector<18x1xf32> -> vector<18x1xf32>
    %19 = vector.broadcast %18 : vector<18x1xf32> to vector<18x18xf32>
    %20 = arith.mulf %15, %19 : vector<18x18xf32>
    %21 = arith.truncf %20 : vector<18x18xf32> to vector<18x18xbf16>
    %cst_10 = arith.constant dense<0.000000e+00> : vector<18x128xf32>
    %22 = tpu.matmul %21, %7, %cst_10 {dimension_numbers = #tpu.dot_dimension_numbers<[1], [0], [0], [1], [0, 0, 1, 1], [], []>} : vector<18x18xbf16>, vector<18x128xbf16>, vector<18x128xf32> -> vector<18x128xf32>
    %c0_11 = arith.constant 0 : index
    %c0_12 = arith.constant 0 : index
    %23 = vector.load %arg7[%c0_11, %c0_12] : memref<18x256xf32, #tpu.memory_space<vmem>>, vector<18x128xf32>
    tpu.vector_store %arg7[%c0_11, %c0_12], %22 {strides = array<i32>} : memref<18x256xf32, #tpu.memory_space<vmem>>, vector<18x128xf32>,
    %c0_13 = arith.constant 0 : index
    %c0_14 = arith.constant 0 : index
    %c128 = arith.constant 128 : index
    %24 = vector.load %arg1[%c0_13, %c0_14, %c128] : memref<1x18x768xbf16, #tpu.memory_space<vmem>>, vector<1x18x128xbf16>
    %25 = vector.shape_cast %24 : vector<1x18x128xbf16> to vector<18x128xbf16>
    %c0_15 = arith.constant 0 : index
    %c0_16 = arith.constant 0 : index
    %c384 = arith.constant 384 : index
    %26 = vector.load %arg1[%c0_15, %c0_16, %c384] : memref<1x18x768xbf16, #tpu.memory_space<vmem>>, vector<1x18x128xbf16>
    %27 = vector.shape_cast %26 : vector<1x18x128xbf16> to vector<18x128xbf16>
    %c0_17 = arith.constant 0 : index
    %c0_18 = arith.constant 0 : index
    %c640 = arith.constant 640 : index
    %28 = vector.load %arg1[%c0_17, %c0_18, %c640] : memref<1x18x768xbf16, #tpu.memory_space<vmem>>, vector<1x18x128xbf16>
    %29 = vector.shape_cast %28 : vector<1x18x128xbf16> to vector<18x128xbf16>
    %cst_19 = arith.constant dense<0.000000e+00> : vector<18x18xf32>
    %30 = tpu.matmul %25, %27, %cst_19 {dimension_numbers = #tpu.dot_dimension_numbers<[1], [1], [0], [0], [0, 0, 1, 0], [], []>} : vector<18x128xbf16>, vector<18x128xbf16>, vector<18x18xf32> -> vector<18x18xf32>
    %31 = vector.broadcast %1 : vector<1x18xf32> to vector<18x18xf32>
    %32 = arith.addf %30, %31 : vector<18x18xf32>
    %cst_20 = arith.constant dense<0xFF800000> : vector<18xf32>
    %33 = vector.multi_reduction <maximumf>, %32, %cst_20 [1] : vector<18x18xf32> to vector<18xf32>
    %34 = vector.shape_cast %33 : vector<18xf32> to vector<18x1xf32>
    %35 = vector.broadcast %34 : vector<18x1xf32> to vector<18x18xf32>
    %36 = arith.subf %32, %35 : vector<18x18xf32>
    %37 = math.exp %36 : vector<18x18xf32>
    %cst_21 = arith.constant dense<0.000000e+00> : vector<18xf32>
    %38 = vector.multi_reduction <add>, %37, %cst_21 [1] : vector<18x18xf32> to vector<18xf32>
    %39 = vector.shape_cast %38 : vector<18xf32> to vector<18x1xf32>
    %40 = tpu.reciprocal %39 {approx = true} : vector<18x1xf32> -> vector<18x1xf32>
    %41 = vector.broadcast %40 : vector<18x1xf32> to vector<18x18xf32>
    %42 = arith.mulf %37, %41 : vector<18x18xf32>
    %43 = arith.truncf %42 : vector<18x18xf32> to vector<18x18xbf16>
    %cst_22 = arith.constant dense<0.000000e+00> : vector<18x128xf32>
    %44 = tpu.matmul %43, %29, %cst_22 {dimension_numbers = #tpu.dot_dimension_numbers<[1], [0], [0], [1], [0, 0, 1, 1], [], []>} : vector<18x18xbf16>, vector<18x128xbf16>, vector<18x128xf32> -> vector<18x128xf32>
    %c0_23 = arith.constant 0 : index
    %c128_24 = arith.constant 128 : index
    %45 = vector.load %arg7[%c0_23, %c128_24] : memref<18x256xf32, #tpu.memory_space<vmem>>, vector<18x128xf32>
    tpu.vector_store %arg7[%c0_23, %c128_24], %44 {strides = array<i32>} : memref<18x256xf32, #tpu.memory_space<vmem>>, vector<18x128xf32>,
    %c0_25 = arith.constant 0 : index
    %c0_26 = arith.constant 0 : index
    %46 = vector.load %arg7[%c0_25, %c0_26] : memref<18x256xf32, #tpu.memory_space<vmem>>, vector<18x256xf32>
    %47 = arith.truncf %46 : vector<18x256xf32> to vector<18x256xbf16>
    %c0_27 = arith.constant 0 : index
    %c0_28 = arith.constant 0 : index
    %48 = vector.load %arg3[%c0_27, %c0_28] : memref<256x256xbf16, #tpu.memory_space<vmem>>, vector<256x256xbf16>
    %cst_29 = arith.constant dense<0.000000e+00> : vector<18x256xf32>
    %49 = tpu.matmul %47, %48, %cst_29 {dimension_numbers = #tpu.dot_dimension_numbers<[1], [0], [0], [1], [0, 0, 1, 1], [], []>} : vector<18x256xbf16>, vector<256x256xbf16>, vector<18x256xf32> -> vector<18x256xf32>
    %c0_30 = arith.constant 0 : index
    %c0_31 = arith.constant 0 : index
    %50 = vector.load %arg4[%c0_30, %c0_31] : memref<1x256xf32, #tpu.memory_space<vmem>>, vector<1x256xf32>
    %51 = vector.broadcast %50 : vector<1x256xf32> to vector<18x256xf32>
    %52 = arith.addf %49, %51 : vector<18x256xf32>
    %c0_32 = arith.constant 0 : index
    %c0_33 = arith.constant 0 : index
    %c0_34 = arith.constant 0 : index
    %53 = vector.load %arg5[%c0_32, %c0_33, %c0_34] : memref<1x18x256xbf16, #tpu.memory_space<vmem>>, vector<1x18x256xbf16>
    %54 = vector.shape_cast %53 : vector<1x18x256xbf16> to vector<18x256xbf16>
    %55 = arith.extf %54 : vector<18x256xbf16> to vector<18x256xf32>
    %56 = arith.addf %52, %55 : vector<18x256xf32>
    %57 = arith.truncf %56 : vector<18x256xf32> to vector<18x256xbf16>
    %c0_35 = arith.constant 0 : index
    %c0_36 = arith.constant 0 : index
    %c0_37 = arith.constant 0 : index
    %58 = vector.load %arg6[%c0_35, %c0_36, %c0_37] : memref<1x18x256xbf16, #tpu.memory_space<vmem>>, vector<1x18x256xbf16>
    %59 = vector.shape_cast %58 : vector<1x18x256xbf16> to vector<18x256xbf16>
    %60 = vector.shape_cast %57 : vector<18x256xbf16> to vector<1x18x256xbf16>
    tpu.vector_store %arg6[%c0_35, %c0_36, %c0_37], %60 {strides = array<i32>} : memref<1x18x256xbf16, #tpu.memory_space<vmem>>, vector<1x18x256xbf16>,
    return
  }
  func.func @transform_0(%arg0: i32) -> (i32, i32, i32) {
    %c0_i32 = arith.constant 0 : i32
    %c0_i32_0 = arith.constant 0 : i32
    %c0_i32_1 = arith.constant 0 : i32
    return %arg0, %c0_i32, %c0_i32_0 : i32, i32, i32
  }
  func.func @transform_1(%arg0: i32) -> (i32, i32) {
    %c0_i32 = arith.constant 0 : i32
    %c0_i32_0 = arith.constant 0 : i32
    %c0_i32_1 = arith.constant 0 : i32
    return %c0_i32, %c0_i32_0 : i32, i32
  }
  func.func @transform_2(%arg0: i32) -> (i32, i32) {
    %c0_i32 = arith.constant 0 : i32
    %c0_i32_0 = arith.constant 0 : i32
    %c0_i32_1 = arith.constant 0 : i32
    return %c0_i32, %c0_i32_0 : i32, i32
  }
  func.func @transform_3(%arg0: i32) -> (i32, i32) {
    %c0_i32 = arith.constant 0 : i32
    %c0_i32_0 = arith.constant 0 : i32
    %c0_i32_1 = arith.constant 0 : i32
    return %c0_i32, %c0_i32_0 : i32, i32
  }
  func.func @transform_4(%arg0: i32) -> (i32, i32, i32) {
    %c0_i32 = arith.constant 0 : i32
    %c0_i32_0 = arith.constant 0 : i32
    %c0_i32_1 = arith.constant 0 : i32
    return %arg0, %c0_i32, %c0_i32_0 : i32, i32, i32
  }
  func.func @transform_5(%arg0: i32) -> (i32, i32, i32) {
    %c0_i32 = arith.constant 0 : i32
    %c0_i32_0 = arith.constant 0 : i32
    %c0_i32_1 = arith.constant 0 : i32
    return %arg0, %c0_i32, %c0_i32_0 : i32, i32, i32
  }
}

module attributes {stable_mosaic.version = 11 : i64} {
  func.func @_mlp_kernel(%arg0: i32, %arg1: memref<36x256xbf16, #tpu.memory_space<vmem>>, %arg2: memref<1x256xf32, #tpu.memory_space<vmem>>, %arg3: memref<1x256xf32, #tpu.memory_space<vmem>>, %arg4: memref<256x512xbf16, #tpu.memory_space<vmem>>, %arg5: memref<1x512xf32, #tpu.memory_space<vmem>>, %arg6: memref<512x256xbf16, #tpu.memory_space<vmem>>, %arg7: memref<1x256xf32, #tpu.memory_space<vmem>>, %arg8: memref<36x256xbf16, #tpu.memory_space<vmem>>, %arg9: memref<36x256xf32, #tpu.memory_space<vmem>>) attributes {dimension_semantics = [#tpu.dimension_semantics<parallel>], iteration_bounds = array<i64: 1>, scalar_prefetch = 0 : i64, scratch_operands = 1 : i64, tpu.core_type = #tpu.core_type<tc>, window_params = [{transform_indices = @transform_0, window_bounds = array<i64: 36, 256>}, {pipeline_mode = #tpu.pipeline_mode<synchronous>, transform_indices = @transform_1, window_bounds = array<i64: 1, 256>}, {pipeline_mode = #tpu.pipeline_mode<synchronous>, transform_indices = @transform_2, window_bounds = array<i64: 1, 256>}, {pipeline_mode = #tpu.pipeline_mode<synchronous>, transform_indices = @transform_3, window_bounds = array<i64: 256, 512>}, {pipeline_mode = #tpu.pipeline_mode<synchronous>, transform_indices = @transform_4, window_bounds = array<i64: 1, 512>}, {pipeline_mode = #tpu.pipeline_mode<synchronous>, transform_indices = @transform_5, window_bounds = array<i64: 512, 256>}, {pipeline_mode = #tpu.pipeline_mode<synchronous>, transform_indices = @transform_6, window_bounds = array<i64: 1, 256>}, {transform_indices = @transform_7, window_bounds = array<i64: 36, 256>}]} {
    %c0 = arith.constant 0 : index
    %c0_0 = arith.constant 0 : index
    %0 = vector.load %arg1[%c0, %c0_0] : memref<36x256xbf16, #tpu.memory_space<vmem>>, vector<36x256xbf16>
    %1 = arith.extf %0 : vector<36x256xbf16> to vector<36x256xf32>
    %c0_1 = arith.constant 0 : index
    %c0_2 = arith.constant 0 : index
    %2 = vector.load %arg2[%c0_1, %c0_2] : memref<1x256xf32, #tpu.memory_space<vmem>>, vector<1x256xf32>
    %c0_3 = arith.constant 0 : index
    %c0_4 = arith.constant 0 : index
    %3 = vector.load %arg3[%c0_3, %c0_4] : memref<1x256xf32, #tpu.memory_space<vmem>>, vector<1x256xf32>
    %cst = arith.constant dense<0.000000e+00> : vector<36xf32>
    %4 = vector.multi_reduction <add>, %1, %cst [1] : vector<36x256xf32> to vector<36xf32>
    %5 = vector.shape_cast %4 : vector<36xf32> to vector<36x1xf32>
    %cst_5 = arith.constant 2.560000e+02 : f32
    %6 = vector.broadcast %cst_5 : f32 to vector<36x1xf32>
    %7 = arith.divf %5, %6 : vector<36x1xf32>
    %8 = vector.broadcast %7 : vector<36x1xf32> to vector<36x256xf32>
    %9 = arith.subf %1, %8 : vector<36x256xf32>
    %10 = arith.mulf %9, %9 : vector<36x256xf32>
    %cst_6 = arith.constant dense<0.000000e+00> : vector<36xf32>
    %11 = vector.multi_reduction <add>, %10, %cst_6 [1] : vector<36x256xf32> to vector<36xf32>
    %12 = vector.shape_cast %11 : vector<36xf32> to vector<36x1xf32>
    %cst_7 = arith.constant 2.560000e+02 : f32
    %13 = vector.broadcast %cst_7 : f32 to vector<36x1xf32>
    %14 = arith.divf %12, %13 : vector<36x1xf32>
    %15 = vector.broadcast %7 : vector<36x1xf32> to vector<36x256xf32>
    %16 = arith.subf %1, %15 : vector<36x256xf32>
    %cst_8 = arith.constant 9.99999974E-6 : f32
    %17 = vector.broadcast %cst_8 : f32 to vector<36x1xf32>
    %18 = arith.addf %14, %17 : vector<36x1xf32>
    %19 = math.rsqrt %18 : vector<36x1xf32>
    %20 = vector.broadcast %19 : vector<36x1xf32> to vector<36x256xf32>
    %21 = arith.mulf %16, %20 : vector<36x256xf32>
    %22 = vector.broadcast %2 : vector<1x256xf32> to vector<36x256xf32>
    %23 = arith.mulf %21, %22 : vector<36x256xf32>
    %24 = vector.broadcast %3 : vector<1x256xf32> to vector<36x256xf32>
    %25 = arith.addf %23, %24 : vector<36x256xf32>
    %26 = arith.truncf %25 : vector<36x256xf32> to vector<36x256xbf16>
    %c0_9 = arith.constant 0 : index
    %c0_10 = arith.constant 0 : index
    %27 = vector.load %arg7[%c0_9, %c0_10] : memref<1x256xf32, #tpu.memory_space<vmem>>, vector<1x256xf32>
    %28 = vector.broadcast %27 : vector<1x256xf32> to vector<36x256xf32>
    %29 = arith.addf %1, %28 : vector<36x256xf32>
    %c0_11 = arith.constant 0 : index
    %c0_12 = arith.constant 0 : index
    %30 = vector.load %arg9[%c0_11, %c0_12] : memref<36x256xf32, #tpu.memory_space<vmem>>, vector<36x256xf32>
    tpu.vector_store %arg9[%c0_11, %c0_12], %29 {strides = array<i32>} : memref<36x256xf32, #tpu.memory_space<vmem>>, vector<36x256xf32>,
    %c0_13 = arith.constant 0 : index
    %c0_14 = arith.constant 0 : index
    %31 = vector.load %arg4[%c0_13, %c0_14] : memref<256x512xbf16, #tpu.memory_space<vmem>>, vector<256x512xbf16>
    %cst_15 = arith.constant dense<0.000000e+00> : vector<36x512xf32>
    %32 = tpu.matmul %26, %31, %cst_15 {dimension_numbers = #tpu.dot_dimension_numbers<[1], [0], [0], [1], [0, 0, 1, 1], [], []>} : vector<36x256xbf16>, vector<256x512xbf16>, vector<36x512xf32> -> vector<36x512xf32>
    %c0_16 = arith.constant 0 : index
    %c0_17 = arith.constant 0 : index
    %33 = vector.load %arg5[%c0_16, %c0_17] : memref<1x512xf32, #tpu.memory_space<vmem>>, vector<1x512xf32>
    %34 = vector.broadcast %33 : vector<1x512xf32> to vector<36x512xf32>
    %35 = arith.addf %32, %34 : vector<36x512xf32>
    %cst_18 = arith.constant 5.000000e-01 : f32
    %36 = vector.broadcast %cst_18 : f32 to vector<36x512xf32>
    %37 = arith.mulf %36, %35 : vector<36x512xf32>
    %cst_19 = arith.constant 4.471500e-02 : f32
    %38 = vector.broadcast %cst_19 : f32 to vector<36x512xf32>
    %39 = arith.mulf %38, %35 : vector<36x512xf32>
    %40 = arith.mulf %39, %35 : vector<36x512xf32>
    %41 = arith.mulf %40, %35 : vector<36x512xf32>
    %42 = arith.addf %35, %41 : vector<36x512xf32>
    %cst_20 = arith.constant 0.797884583 : f32
    %43 = vector.broadcast %cst_20 : f32 to vector<36x512xf32>
    %44 = arith.mulf %43, %42 : vector<36x512xf32>
    %45 = math.tanh %44 : vector<36x512xf32>
    %cst_21 = arith.constant 1.000000e+00 : f32
    %46 = vector.broadcast %cst_21 : f32 to vector<36x512xf32>
    %47 = arith.addf %46, %45 : vector<36x512xf32>
    %48 = arith.mulf %37, %47 : vector<36x512xf32>
    %c0_22 = arith.constant 0 : index
    %c0_23 = arith.constant 0 : index
    %49 = vector.load %arg9[%c0_22, %c0_23] : memref<36x256xf32, #tpu.memory_space<vmem>>, vector<36x256xf32>
    %50 = arith.truncf %48 : vector<36x512xf32> to vector<36x512xbf16>
    %c0_24 = arith.constant 0 : index
    %c0_25 = arith.constant 0 : index
    %51 = vector.load %arg6[%c0_24, %c0_25] : memref<512x256xbf16, #tpu.memory_space<vmem>>, vector<512x256xbf16>
    %cst_26 = arith.constant dense<0.000000e+00> : vector<36x256xf32>
    %52 = tpu.matmul %50, %51, %cst_26 {dimension_numbers = #tpu.dot_dimension_numbers<[1], [0], [0], [1], [0, 0, 1, 1], [], []>} : vector<36x512xbf16>, vector<512x256xbf16>, vector<36x256xf32> -> vector<36x256xf32>
    %53 = arith.addf %49, %52 : vector<36x256xf32>
    %c0_27 = arith.constant 0 : index
    %c0_28 = arith.constant 0 : index
    %54 = vector.load %arg9[%c0_27, %c0_28] : memref<36x256xf32, #tpu.memory_space<vmem>>, vector<36x256xf32>
    tpu.vector_store %arg9[%c0_27, %c0_28], %53 {strides = array<i32>} : memref<36x256xf32, #tpu.memory_space<vmem>>, vector<36x256xf32>,
    %c0_29 = arith.constant 0 : index
    %c0_30 = arith.constant 0 : index
    %55 = vector.load %arg9[%c0_29, %c0_30] : memref<36x256xf32, #tpu.memory_space<vmem>>, vector<36x256xf32>
    %56 = arith.truncf %55 : vector<36x256xf32> to vector<36x256xbf16>
    %c0_31 = arith.constant 0 : index
    %c0_32 = arith.constant 0 : index
    %57 = vector.load %arg8[%c0_31, %c0_32] : memref<36x256xbf16, #tpu.memory_space<vmem>>, vector<36x256xbf16>
    tpu.vector_store %arg8[%c0_31, %c0_32], %56 {strides = array<i32>} : memref<36x256xbf16, #tpu.memory_space<vmem>>, vector<36x256xbf16>,
    return
  }
  func.func @transform_0(%arg0: i32) -> (i32, i32) {
    %c0_i32 = arith.constant 0 : i32
    %c0_i32_0 = arith.constant 0 : i32
    return %arg0, %c0_i32 : i32, i32
  }
  func.func @transform_1(%arg0: i32) -> (i32, i32) {
    %c0_i32 = arith.constant 0 : i32
    %c0_i32_0 = arith.constant 0 : i32
    %c0_i32_1 = arith.constant 0 : i32
    return %c0_i32, %c0_i32_0 : i32, i32
  }
  func.func @transform_2(%arg0: i32) -> (i32, i32) {
    %c0_i32 = arith.constant 0 : i32
    %c0_i32_0 = arith.constant 0 : i32
    %c0_i32_1 = arith.constant 0 : i32
    return %c0_i32, %c0_i32_0 : i32, i32
  }
  func.func @transform_3(%arg0: i32) -> (i32, i32) {
    %c0_i32 = arith.constant 0 : i32
    %c0_i32_0 = arith.constant 0 : i32
    %c0_i32_1 = arith.constant 0 : i32
    return %c0_i32, %c0_i32_0 : i32, i32
  }
  func.func @transform_4(%arg0: i32) -> (i32, i32) {
    %c0_i32 = arith.constant 0 : i32
    %c0_i32_0 = arith.constant 0 : i32
    %c0_i32_1 = arith.constant 0 : i32
    return %c0_i32, %c0_i32_0 : i32, i32
  }
  func.func @transform_5(%arg0: i32) -> (i32, i32) {
    %c0_i32 = arith.constant 0 : i32
    %c0_i32_0 = arith.constant 0 : i32
    %c0_i32_1 = arith.constant 0 : i32
    return %c0_i32, %c0_i32_0 : i32, i32
  }
  func.func @transform_6(%arg0: i32) -> (i32, i32) {
    %c0_i32 = arith.constant 0 : i32
    %c0_i32_0 = arith.constant 0 : i32
    %c0_i32_1 = arith.constant 0 : i32
    return %c0_i32, %c0_i32_0 : i32, i32
  }
  func.func @transform_7(%arg0: i32) -> (i32, i32) {
    %c0_i32 = arith.constant 0 : i32
    %c0_i32_0 = arith.constant 0 : i32
    return %arg0, %c0_i32 : i32, i32
  }
}

</mosaic_0001>

<llo_original>
// kernel: _lambda_.10
$region0: #{_lambda_.10}
  #allocation0 [shape = 'u32[]', space=smem, size = 0x4, offset = 0x4, fixed_abs, tag = 'smem constant byte address 0x4 - core index']
  #allocation1 [shape = 'u32[144,128]{1,0:T(1,128)}', space=vmem, size = 0x12000, scoped, tag = 'internal scratch']
  %s0 = inlined_call_operand.vmem [shape: bf16[32,48], index: 0, kind: input, shape index: {}]
  %s1 = inlined_call_operand.vmem [shape: bf16[48,256], index: 1, kind: input, shape index: {}]
  %s2 = inlined_call_operand.vmem [shape: f32[1,256], index: 2, kind: input, shape index: {}]
  %s3 = inlined_call_operand.vmem [shape: f32[32,256], index: 3, kind: output, shape index: {}]
  %s4 = sld [smem:[#allocation0]]
  $region22: #{_lambda_.10} parent=0
    _
  %s6 = ssub.s32 1, %s4
  %s7 = scalar_select 0, %s6, %s4
  // Predicated region
  $region2: #{_lambda_.10} parent=0 // pred_check
    _
  $region3: #{_lambda_.10} parent=0 // pred_check_branch
    %9 = sbr.rel (0) target = $region5
  $region4: #{_lambda_.10} parent=0 // pred_region
    _
  $region5: #{_lambda_.10} parent=0 // pred_fallthru
    _
  // Predicated region
  $region6: #{_lambda_.10} parent=0 // pred_check
    _
  $region7: #{_lambda_.10} parent=0 // pred_check_branch
    %11 = sbr.rel (0) target = $region9
  $region8: #{_lambda_.10} parent=0 // pred_region
    _
  $region9: #{_lambda_.10} parent=0 // pred_fallthru
    _
  // Predicated region
  $region10: #{_lambda_.10} parent=0 // pred_check
    _
  $region11: #{_lambda_.10} parent=0 // pred_check_branch
    %13 = sbr.rel (0) target = $region13
  $region12: #{_lambda_.10} parent=0 // pred_region
    _
  $region13: #{_lambda_.10} parent=0 // pred_fallthru
    _
  %v15 = vld [vmem:[%s0] sm:$0xf]
  %v16 = vld [vmem:[%s0 + $0x4] sm:$0xf]
  %v17 = vld [vmem:[%s0 + $0x8] sm:$0xf]
  %v18 = vld [vmem:[%s0 + $0xc] sm:$0xf]
  %v19 = vld [vmem:[%s1] sm:$0xff]
  %v20 = vld [vmem:[%s1 + $0x8] sm:$0xff]
  %v21 = vld [vmem:[%s1 + $0x10] sm:$0xff]
  %v22 = vld [vmem:[%s1 + $0x18] sm:$0xff]
  %v23 = vld [vmem:[%s1 + $0x20] sm:$0xff]
  %v24 = vld [vmem:[%s1 + $0x28] sm:$0xff]
  %v25 = vld [vmem:[%s2] sm:$0x3]
  %v27 = vlaneseq
  %v28 = vshrl.u32 %v27, 7
  %v29 = vsub.s32 0, %v28
  %v30 = vrot.slane %v25, %v29
  %v31 = vlaneseq
  %v32 = vshrl.u32 %v31, 7
  %v33 = vsub.s32 1, %v32
  %v34 = vrot.slane %v25, %v33
  %v41 = vunpack.c.l.b16 %v15
  %v42 = vunpack.c.l.b16 %v16
  %v43 = vunpack.c.l.b16 %v17
  %v44 = vunpack.c.l.b16 %v18
  %v45 = vpack.c.b16 %v42, %v41
  %v46 = vpack.c.b16 %v44, %v43
  %v53 = vunpack.c.l.b16 %v19
  %v54 = vunpack.c.h.b16 %v19
  %v55 = vunpack.c.l.b16 %v20
  %v56 = vunpack.c.h.b16 %v20
  %v57 = vunpack.c.l.b16 %v21
  %v58 = vunpack.c.h.b16 %v21
  %v59 = vunpack.c.l.b16 %v22
  %v60 = vunpack.c.h.b16 %v22
  %v61 = vunpack.c.l.b16 %v23
  %v62 = vunpack.c.h.b16 %v23
  %v63 = vunpack.c.l.b16 %v24
  %v64 = vunpack.c.h.b16 %v24
  %v65 = vpack.c.b16 %v55, %v53
  %v66 = vpack.c.b16 %v56, %v54
  %v67 = vpack.c.b16 %v59, %v57
  %v68 = vpack.c.b16 %v60, %v58
  %v69 = vpack.c.b16 %v63, %v61
  %v70 = vpack.c.b16 %v64, %v62
  %vm77 = vcmask 392192
  %v79 = vsel %vm77, %v45, 0
  %v82 = vsel %vm77, %v46, 0
  %84 = vmatprep.subr.bf16.mxu0 0
  %85 = vmatpush1.bf16.msra.mxu0 0
  %86 = vmatprep.subr.bf16.mxu0 0
  %87 = vmatpush1.bf16.msra.mxu0 0
  %88 = vmatprep.subr.bf16.mxu0 0
  %89 = vmatpush1.bf16.msra.mxu0 0
  %90 = vmatprep.subr.bf16.mxu0 0
  %91 = vmatpush1.bf16.msra.mxu0 0
  %92 = vmatprep.subr.bf16.mxu0 0
  %93 = vmatpush1.bf16.msra.mxu0 0
  %94 = vmatprep.subr.bf16.mxu0 %v70
  %95 = vmatpush1.bf16.msra.mxu0 %v69
  %96 = vmatprep.subr.bf16.mxu0 %v68
  %97 = vmatpush1.bf16.msra.mxu0 %v67
  %98 = vmatprep.subr.bf16.mxu0 %v66
  %99 = vmatpush1.bf16.msra.mxu0 %v65
  %100 = vmatprep.subr.bf16.mxu0 0
  %101 = vmatpush2.bf16.msra.mxu0 0
  %102 = vmatprep.subr.bf16.mxu0 0
  %103 = vmatpush2.bf16.msra.mxu0 0
  %104 = vmatprep.subr.bf16.mxu0 0
  %105 = vmatpush2.bf16.msra.mxu0 0
  %106 = vmatprep.subr.bf16.mxu0 0
  %107 = vmatpush2.bf16.msra.mxu0 0
  %108 = vmatprep.subr.bf16.mxu0 0
  %109 = vmatpush2.bf16.msra.mxu0 0
  %110 = vmatprep.subr.bf16.mxu0 0
  %111 = vmatpush2.bf16.msra.mxu0 0
  %112 = vmatprep.subr.bf16.mxu0 0
  %113 = vmatpush2.bf16.msra.mxu0 0
  %114 = vmatprep.subr.bf16.mxu0 0
  %115 = vmatpush2.bf16.msra.mxu0 0
  %116 = vmatprep.mubr.bf16.mxu0 0
  %117 = vmatmul.mubr.bf16.gmra.mxu0 %v79
  %v118 = vpop.f32.mrf.mxu0
  %v119 = vadd.f32 %v30, %v118
  %v120 = vpop.f32.mrf.mxu0
  %v121 = vadd.f32 %v34, %v120
  %v122 = vpop.f32.mrf.mxu0
  %v123 = vadd.f32 %v30, %v122
  %v124 = vpop.f32.mrf.mxu0
  %v125 = vadd.f32 %v34, %v124
  %126 = vmatprep.mubr.bf16.mxu0 0
  %127 = vmatmul.mubr.bf16.gmra.mxu0 %v82
  %v128 = vpop.f32.mrf.mxu0
  %v129 = vadd.f32 %v30, %v128
  %v130 = vpop.f32.mrf.mxu0
  %v131 = vadd.f32 %v34, %v130
  %v132 = vpop.f32.mrf.mxu0
  %v133 = vadd.f32 %v30, %v132
  %v134 = vpop.f32.mrf.mxu0
  %v135 = vadd.f32 %v34, %v134
  %136 = vdwg.mxu0
  %137 = vst [vmem:[%s3] sm:$0xff] %v119
  %138 = vst [vmem:[%s3 + $0x8] sm:$0xff] %v121
  %139 = vst [vmem:[%s3 + $0x10] sm:$0xff] %v123
  %140 = vst [vmem:[%s3 + $0x18] sm:$0xff] %v125
  %141 = vst [vmem:[%s3 + $0x20] sm:$0xff] %v129
  %142 = vst [vmem:[%s3 + $0x28] sm:$0xff] %v131
  %143 = vst [vmem:[%s3 + $0x30] sm:$0xff] %v133
  %144 = vst [vmem:[%s3 + $0x38] sm:$0xff] %v135
  // Predicated region
  $region14: #{_lambda_.10} parent=0 // pred_check
    _
  $region15: #{_lambda_.10} parent=0 // pred_check_branch
    %146 = sbr.rel (0) target = $region17
  $region16: #{_lambda_.10} parent=0 // pred_region
    _
  $region17: #{_lambda_.10} parent=0 // pred_fallthru
    _
  // Predicated region
  $region18: #{_lambda_.10} parent=0 // pred_check
    _
  $region19: #{_lambda_.10} parent=0 // pred_check_branch
    %148 = sbr.rel (0) target = $region21
  $region20: #{_lambda_.10} parent=0 // pred_region
    _
  $region21: #{_lambda_.10} parent=0 // pred_fallthru
    _

// kernel: _lambda_.12
$region0: #{_lambda_.12}
  #allocation0 [shape = 'u32[]', space=smem, size = 0x4, offset = 0x4, fixed_abs, tag = 'smem constant byte address 0x4 - core index']
  #allocation1 [shape = 'u32[144,128]{1,0:T(1,128)}', space=vmem, size = 0x12000, scoped, tag = 'internal scratch']
  #allocation2 [shape = 'f32[17,256]{1,0:T(8,128)}', space=vmem, size = 0x6000, scoped, tag = 'scratch operand']
  %s0 = inlined_call_operand.vmem [shape: bf16[2,17,768], index: 0, kind: input, shape index: {}]
  %s1 = inlined_call_operand.vmem [shape: f32[1,17], index: 1, kind: input, shape index: {}]
  %s2 = inlined_call_operand.vmem [shape: bf16[256,256], index: 2, kind: input, shape index: {}]
  %s3 = inlined_call_operand.vmem [shape: f32[1,256], index: 3, kind: input, shape index: {}]
  %s4 = inlined_call_operand.vmem [shape: bf16[2,17,256], index: 4, kind: input, shape index: {}]
  %s5 = inlined_call_operand.vmem [shape: bf16[2,17,256], index: 5, kind: output, shape index: {}]
  %s6 = sld [smem:[#allocation0]]
  $region53: #{_lambda_.12} parent=0
    _
  %s8 = ssub.s32 1, %s6
  %s9 = scalar_select 0, %s8, %s6
  loop: start=0, step=1, limit=4
  $region2: #{_lambda_.12} parent=0 // loop_pre_header
    _
  $region3: #{_lambda_.12} parent=0 // loop_header
    %s11 = sphi 0, %s15
    %p12 = scmp.ge.s32.totalorder %s11, 4
    %s21 = sphi 0, %s23
    %s24 = sphi 0, %s21
    %s25 = sphi 0, %s24
    %s41 = sphi 0, %s25
    %s45 = sphi 0, %s45
    %s47 = sphi 0, %s45
    %s48 = sphi 0, %s47
    %s62 = sphi 0, %s48
    %s66 = sphi 0, %s66
    %s68 = sphi 0, %s66
    %s69 = sphi 0, %s68
    %s83 = sphi 0, %s69
    %s87 = sphi 0, %s87
    %s89 = sphi 0, %s87
    %s90 = sphi 0, %s89
    %s104 = sphi 0, %s90
    %s110 = sphi 0, %s112
    %s113 = sphi 0, %s110
    %s114 = sphi 0, %s113
    %s130 = sphi 0, %s114
    %s136 = sphi 0, %s138
    %s139 = sphi 0, %s136
    %s140 = sphi 0, %s139
    %s156 = sphi 0, %s140
  $region4: #{_lambda_.12} parent=0 // loop_header_branch
    %14 = sbr.rel (%p12) target = $region8
  $region5: #{_lambda_.12} parent=0 // loop_body
    %s16 = ssub.s32 %s11, 1
    %s17 = ssub.s32 %s11, 2
    %s18 = sadd.s32 %s11, 1
    %s19 = ssub.s32 %s11, %s18
    %p20 = scmp.eq.s32.totalorder %s19, 0
    %s22 = sadd.s32 %s21, 1
    %s23 = scalar_select %p20, %s21, %s22
    %p26 = pneg %p20
    %p27 = scmp.eq.s32.totalorder %s11, 1
    %p28 = por %p26, %p27
    %p29 = scmp.ne.s32.totalorder %s21, %s24
    %p30 = scmp.eq.s32.totalorder %s11, 0
    %p31 = por %p29, %p30
    %p32 = scmp.ne.s32.totalorder %s21, %s24
    %p33 = scmp.eq.s32.totalorder %s16, 1
    %p34 = por %p32, %p33
    %p35 = scmp.ne.s32.totalorder %s24, %s25
    %p36 = scmp.eq.s32.totalorder %s16, 0
    %p37 = por %p35, %p36
    %p38 = scmp.ne.s32.totalorder %s24, %s25
    %p39 = scmp.eq.s32.totalorder %s17, 1
    %p40 = por %p38, %p39
    %p42 = scmp.ne.s32.totalorder %s25, %s41
    %p43 = scmp.eq.s32.totalorder %s17, 0
    %p44 = por %p42, %p43
    %s46 = sadd.s32 %s45, 1
    %p49 = scmp.eq.s32.totalorder %s11, 1
    %p50 = scmp.ne.s32.totalorder %s45, %s47
    %p51 = scmp.eq.s32.totalorder %s11, 0
    %p52 = por %p50, %p51
    %p53 = scmp.ne.s32.totalorder %s45, %s47
    %p54 = scmp.eq.s32.totalorder %s16, 1
    %p55 = por %p53, %p54
    %p56 = scmp.ne.s32.totalorder %s47, %s48
    %p57 = scmp.eq.s32.totalorder %s16, 0
    %p58 = por %p56, %p57
    %p59 = scmp.ne.s32.totalorder %s47, %s48
    %p60 = scmp.eq.s32.totalorder %s17, 1
    %p61 = por %p59, %p60
    %p63 = scmp.ne.s32.totalorder %s48, %s62
    %p64 = scmp.eq.s32.totalorder %s17, 0
    %p65 = por %p63, %p64
    %s67 = sadd.s32 %s66, 1
    %p70 = scmp.eq.s32.totalorder %s11, 1
    %p71 = scmp.ne.s32.totalorder %s66, %s68
    %p72 = scmp.eq.s32.totalorder %s11, 0
    %p73 = por %p71, %p72
    %p74 = scmp.ne.s32.totalorder %s66, %s68
    %p75 = scmp.eq.s32.totalorder %s16, 1
    %p76 = por %p74, %p75
    %p77 = scmp.ne.s32.totalorder %s68, %s69
    %p78 = scmp.eq.s32.totalorder %s16, 0
    %p79 = por %p77, %p78
    %p80 = scmp.ne.s32.totalorder %s68, %s69
    %p81 = scmp.eq.s32.totalorder %s17, 1
    %p82 = por %p80, %p81
    %p84 = scmp.ne.s32.totalorder %s69, %s83
    %p85 = scmp.eq.s32.totalorder %s17, 0
    %p86 = por %p84, %p85
    %s88 = sadd.s32 %s87, 1
    %p91 = scmp.eq.s32.totalorder %s11, 1
    %p92 = scmp.ne.s32.totalorder %s87, %s89
    %p93 = scmp.eq.s32.totalorder %s11, 0
    %p94 = por %p92, %p93
    %p95 = scmp.ne.s32.totalorder %s87, %s89
    %p96 = scmp.eq.s32.totalorder %s16, 1
    %p97 = por %p95, %p96
    %p98 = scmp.ne.s32.totalorder %s89, %s90
    %p99 = scmp.eq.s32.totalorder %s16, 0
    %p100 = por %p98, %p99
    %p101 = scmp.ne.s32.totalorder %s89, %s90
    %p102 = scmp.eq.s32.totalorder %s17, 1
    %p103 = por %p101, %p102
    %p105 = scmp.ne.s32.totalorder %s90, %s104
    %p106 = scmp.eq.s32.totalorder %s17, 0
    %p107 = por %p105, %p106
    %s108 = ssub.s32 %s11, %s18
    %p109 = scmp.eq.s32.totalorder %s108, 0
    %s111 = sadd.s32 %s110, 1
    %s112 = scalar_select %p109, %s110, %s111
    %p115 = pneg %p109
    %p116 = scmp.eq.s32.totalorder %s11, 1
    %p117 = por %p115, %p116
    %p118 = scmp.ne.s32.totalorder %s110, %s113
    %p119 = scmp.eq.s32.totalorder %s11, 0
    %p120 = por %p118, %p119
    %p121 = scmp.ne.s32.totalorder %s110, %s113
    %p122 = scmp.eq.s32.totalorder %s16, 1
    %p123 = por %p121, %p122
    %p124 = scmp.ne.s32.totalorder %s113, %s114
    %p125 = scmp.eq.s32.totalorder %s16, 0
    %p126 = por %p124, %p125
    %p127 = scmp.ne.s32.totalorder %s113, %s114
    %p128 = scmp.eq.s32.totalorder %s17, 1
    %p129 = por %p127, %p128
    %p131 = scmp.ne.s32.totalorder %s114, %s130
    %p132 = scmp.eq.s32.totalorder %s17, 0
    %p133 = por %p131, %p132
    %s134 = ssub.s32 %s11, %s18
    %p135 = scmp.eq.s32.totalorder %s134, 0
    %s137 = sadd.s32 %s136, 1
    %s138 = scalar_select %p135, %s136, %s137
    %p141 = pneg %p135
    %p142 = scmp.eq.s32.totalorder %s11, 1
    %p143 = por %p141, %p142
    %p144 = scmp.ne.s32.totalorder %s136, %s139
    %p145 = scmp.eq.s32.totalorder %s11, 0
    %p146 = por %p144, %p145
    %p147 = scmp.ne.s32.totalorder %s136, %s139
    %p148 = scmp.eq.s32.totalorder %s16, 1
    %p149 = por %p147, %p148
    %p150 = scmp.ne.s32.totalorder %s139, %s140
    %p151 = scmp.eq.s32.totalorder %s16, 0
    %p152 = por %p150, %p151
    %p153 = scmp.ne.s32.totalorder %s139, %s140
    %p154 = scmp.eq.s32.totalorder %s17, 1
    %p155 = por %p153, %p154
    %p157 = scmp.ne.s32.totalorder %s140, %s156
    %p158 = scmp.eq.s32.totalorder %s17, 0
    %p159 = por %p157, %p158
    %p160 = scmp.le.s32.totalorder 1, %s11
    %p161 = scmp.lt.s32.totalorder %s11, 3
    %p162 = pnand %p160, %p161
    %p163 = pneg %p162
    // Predicated region
    $region9: #{_lambda_.12} parent=5 // pred_check
      _
    $region10: #{_lambda_.12} parent=5 // pred_check_branch
      %165 = sbr.rel (%p162) target = $region12
    $region11: #{_lambda_.12} parent=5 // pred_region
      %s166 = ssub.s32 %s11, 1
      // Predicated region
      $region13: #{_lambda_.12} parent=11 // pred_check
        %p167 = pneg %p58
      $region14: #{_lambda_.12} parent=11 // pred_check_branch
        %169 = sbr.rel (%p167) target = $region16
      $region15: #{_lambda_.12} parent=11 // pred_region
        _
      $region16: #{_lambda_.12} parent=11 // pred_fallthru
        _
      // Predicated region
      $region17: #{_lambda_.12} parent=11 // pred_check
        %p170 = pneg %p79
      $region18: #{_lambda_.12} parent=11 // pred_check_branch
        %172 = sbr.rel (%p170) target = $region20
      $region19: #{_lambda_.12} parent=11 // pred_region
        _
      $region20: #{_lambda_.12} parent=11 // pred_fallthru
        _
      // Predicated region
      $region21: #{_lambda_.12} parent=11 // pred_check
        %p173 = pneg %p100
      $region22: #{_lambda_.12} parent=11 // pred_check_branch
        %175 = sbr.rel (%p173) target = $region24
      $region23: #{_lambda_.12} parent=11 // pred_region
        _
      $region24: #{_lambda_.12} parent=11 // pred_fallthru
        _
    $region12: #{_lambda_.12} parent=5 // pred_fallthru
      _
    %p176 = scmp.lt.s32.totalorder %s11, 2
    // Predicated region
    $region25: #{_lambda_.12} parent=5 // pred_check
      %p177 = pneg %p176
    $region26: #{_lambda_.12} parent=5 // pred_check_branch
      %179 = sbr.rel (%p177) target = $region28
    $region27: #{_lambda_.12} parent=5 // pred_region
      // Predicated region
      $region29: #{_lambda_.12} parent=27 // pred_check
        %p180 = pneg %p31
      $region30: #{_lambda_.12} parent=27 // pred_check_branch
        %182 = sbr.rel (%p180) target = $region32
      $region31: #{_lambda_.12} parent=27 // pred_region
        %p183 = scmp.lt.s32.totalorder %s11, 1
        %s184 = scalar_select %p183, %s11, 1
        %s185 = smul.addr %s184, 18
        %s186 = smul.addr %s185, 4
        %s187 = scalar_lea.vmem %s0, %s186
      $region32: #{_lambda_.12} parent=27 // pred_fallthru
        _
      // Predicated region
      $region33: #{_lambda_.12} parent=27 // pred_check
        %p188 = pneg %p120
      $region34: #{_lambda_.12} parent=27 // pred_check_branch
        %190 = sbr.rel (%p188) target = $region36
      $region35: #{_lambda_.12} parent=27 // pred_region
        %p191 = scmp.lt.s32.totalorder %s11, 1
        %s192 = scalar_select %p191, %s11, 1
        %s193 = smul.addr %s192, 6
        %s194 = smul.addr %s193, 4
        %s195 = scalar_lea.vmem %s4, %s194
      $region36: #{_lambda_.12} parent=27 // pred_fallthru
        _
    $region28: #{_lambda_.12} parent=5 // pred_fallthru
      _
    %p196 = scmp.le.s32.totalorder 1, %s11
    %p197 = scmp.lt.s32.totalorder %s11, 3
    %p198 = pnand %p196, %p197
    %p199 = pneg %p198
    // Predicated region
    $region37: #{_lambda_.12} parent=5 // pred_check
      _
    $region38: #{_lambda_.12} parent=5 // pred_check_branch
      %201 = sbr.rel (%p198) target = $region40
    $region39: #{_lambda_.12} parent=5 // pred_region
      %s202 = ssub.s32 %s11, 1
      %p203 = scmp.lt.s32.totalorder %s16, 1
      %s204 = scalar_select %p203, %s16, 1
      %s205 = smul.addr %s204, 18
      %s206 = smul.addr %s205, 4
      %s207 = scalar_lea.vmem %s0, %s206
      %p208 = pneg %p37
      %p209 = pneg %p34
      %p210 = pneg %p58
      %p211 = pneg %p55
      %p212 = pneg %p79
      %p213 = pneg %p76
      %p214 = pneg %p100
      %p215 = pneg %p97
      %p216 = scmp.lt.s32.totalorder %s16, 1
      %s217 = scalar_select %p216, %s16, 1
      %s218 = smul.addr %s217, 6
      %s219 = smul.addr %s218, 4
      %s220 = scalar_lea.vmem %s4, %s219
      %p221 = pneg %p126
      %p222 = pneg %p123
      %p223 = pneg %p152
      %p224 = pneg %p149
      %p225 = scmp.lt.s32.totalorder %s16, 1
      %s226 = scalar_select %p225, %s16, 1
      %s227 = smul.addr %s226, 6
      %s228 = smul.addr %s227, 4
      %s229 = scalar_lea.vmem %s5, %s228
      %p230 = scmp.lt.s32.totalorder %s16, 1
      %s231 = scalar_select %p230, %s16, 1
      %s232 = smul.addr %s231, 18
      %s233 = smul.addr %s232, 4
      %s234 = scalar_lea.vmem %s0, %s233
      %p235 = scmp.lt.s32.totalorder %s16, 1
      %s236 = scalar_select %p235, %s16, 1
      %s237 = smul.addr %s236, 6
      %s238 = smul.addr %s237, 4
      %s239 = scalar_lea.vmem %s4, %s238
      %p240 = scmp.lt.s32.totalorder %s16, 1
      %s241 = scalar_select %p240, %s16, 1
      %s242 = smul.addr %s241, 6
      %s243 = smul.addr %s242, 4
      %s244 = scalar_lea.vmem %s5, %s243
      %v246 = vld [vmem:[%s1] sm:$0x1]
      %v247 = vld [vmem:[%s234] sm:$0xf]
      %v248 = vld [vmem:[%s234 + $0x18] sm:$0xf]
      %v249 = vld [vmem:[%s234 + $0x30] sm:$0x1]
      %v250 = vld [vmem:[%s234 + $0x8] sm:$0xf]
      %v251 = vld [vmem:[%s234 + $0x20] sm:$0xf]
      %v252 = vld [vmem:[%s234 + $0x38] sm:$0x1]
      %v253 = vld [vmem:[%s234 + $0x10] sm:$0xf]
      %v254 = vld [vmem:[%s234 + $0x28] sm:$0xf]
      %v255 = vld [vmem:[%s234 + $0x40] sm:$0x1]
      %v257 = vlaneseq
      %v258 = vshrl.u32 %v257, 7
      %v259 = vsub.s32 0, %v258
      %v260 = vrot.slane %v246, %v259
      %v265 = vunpack.c.l.b16 %v247
      %v266 = vunpack.c.l.b16 %v248
      %v267 = vunpack.c.l.b16 %v249
      %v268 = vpack.c.b16 %v266, %v265
      %v269 = vpack.c.b16 %v267, %v267
      %v275 = vunpack.c.l.b16 %v250
      %v276 = vunpack.c.l.b16 %v251
      %v277 = vunpack.c.l.b16 %v252
      %v278 = vpack.c.b16 %v276, %v275
      %v279 = vpack.c.b16 %v277, %v277
      %282 = vmatprep.subr.bf16.mxu0 0
      %283 = vmatpush1.bf16.xpose.msra.mxu0 0
      %284 = vmatprep.subr.bf16.mxu0 0
      %285 = vmatpush1.bf16.xpose.msra.mxu0 0
      %286 = vmatprep.subr.bf16.mxu0 0
      %287 = vmatpush1.bf16.xpose.msra.mxu0 0
      %288 = vmatprep.subr.bf16.mxu0 0
      %289 = vmatpush1.bf16.xpose.msra.mxu0 0
      %290 = vmatprep.subr.bf16.mxu0 0
      %291 = vmatpush1.bf16.xpose.msra.mxu0 0
      %292 = vmatprep.subr.bf16.mxu0 0
      %293 = vmatpush1.bf16.xpose.msra.mxu0 0
      %294 = vmatprep.subr.bf16.mxu0 0
      %295 = vmatpush1.bf16.xpose.msra.mxu0 %v279
      %296 = vmatprep.subr.bf16.mxu0 0
      %297 = vmatpush1.bf16.xpose.msra.mxu0 %v278
      %298 = vmatprep.subr.bf16.mxu0 0
      %299 = vmatpush2.bf16.xpose.msra.mxu0 0
      %300 = vmatprep.subr.bf16.mxu0 0
      %301 = vmatpush2.bf16.xpose.msra.mxu0 0
      %302 = vmatprep.subr.bf16.mxu0 0
      %303 = vmatpush2.bf16.xpose.msra.mxu0 0
      %304 = vmatprep.subr.bf16.mxu0 0
      %305 = vmatpush2.bf16.xpose.msra.mxu0 0
      %306 = vmatprep.subr.bf16.mxu0 0
      %307 = vmatpush2.bf16.xpose.msra.mxu0 0
      %308 = vmatprep.subr.bf16.mxu0 0
      %309 = vmatpush2.bf16.xpose.msra.mxu0 0
      %310 = vmatprep.subr.bf16.mxu0 0
      %311 = vmatpush2.bf16.xpose.msra.mxu0 0
      %312 = vmatprep.subr.bf16.mxu0 0
      %313 = vmatpush2.bf16.xpose.msra.mxu0 0
      %314 = vmatprep.mubr.bf16.mxu0 0
      %315 = vmatmul.mubr.bf16.gmra.mxu0 %v268
      %v316 = vpop.f32.mrf.mxu0
      %v317 = vadd.f32 %v260, %v316
      %v318 = vpop.f32.mrf.mxu0
      %v319 = vpop.f32.mrf.mxu0
      %v320 = vadd.f32 %v260, %v319
      %v321 = vpop.f32.mrf.mxu0
      %322 = vmatprep.mubr.bf16.mxu0 0
      %323 = vmatmul.mubr.bf16.gmra.mxu0 %v269
      %v324 = vpop.f32.mrf.mxu0
      %v325 = vadd.f32 %v260, %v324
      %v326 = vpop.f32.mrf.mxu0
      %v327 = vpop.f32.mrf.mxu0
      %v328 = vpop.f32.mrf.mxu0
      %329 = vdwg.mxu0
      %vm330 = vcmask 138240
      %v331 = vsel %vm330, %v317, -inf
      %332 = vmax.xlane.f32.xlu0 %v331
      %v333 = vpop.xlane.xlu0 %332
      %v334 = vsel %vm330, %v320, -inf
      %335 = vmax.xlane.f32.xlu0 %v334
      %v336 = vpop.xlane.xlu0 %335
      %vm337 = vcmask 131072
      %v338 = vsel %vm337, %v325, -inf
      %339 = vmax.xlane.f32.xlu0 %v338
      %v340 = vpop.xlane.xlu0 %339
      %v341 = vsub.f32 %v317, %v333
      %v342 = vsub.f32 %v320, %v336
      %v343 = vsub.f32 %v325, %v340
      %v344 = vmul.f32 %v341, 1.442695
      %v345 = vpow.pop %v344
      %v346 = vmul.f32 %v342, 1.442695
      %v347 = vpow.pop %v346
      %v348 = vmul.f32 %v343, 1.442695
      %v349 = vpow.pop %v348
      %v350 = vsel %vm330, %v345, 0.0
      %351 = vadd.xlane.f32.xlu0 %v350
      %v352 = vpop.xlane.xlu0 %351
      %v353 = vsel %vm330, %v347, 0.0
      %354 = vadd.xlane.f32.xlu0 %v353
      %v355 = vpop.xlane.xlu0 %354
      %v356 = vsel %vm337, %v349, 0.0
      %357 = vadd.xlane.f32.xlu0 %v356
      %v358 = vpop.xlane.xlu0 %357
      %v359 = vrcp.pop %v352
      %v360 = vrcp.pop %v355
      %v361 = vrcp.pop %v358
      %v362 = vmul.f32 %v345, %v359
      %v363 = vmul.f32 %v347, %v360
      %v364 = vmul.f32 %v349, %v361
      %v365 = vpack.c.bf16 %v363, %v362
      %v366 = vpack.c.bf16 %v364, %v364
      %v370 = vunpack.c.l.b16 %v253
      %v371 = vunpack.c.l.b16 %v254
      %v372 = vunpack.c.l.b16 %v255
      %v373 = vpack.c.b16 %v371, %v370
      %v374 = vpack.c.b16 %v372, %v372
      %v377 = vsel %vm330, %v365, 0
      %v380 = vsel %vm330, %v366, 0
      %vm382 = vcmask 1040384
      %v383 = vsel 0, 4294967295, 65535
      %v384 = vsel %vm382, %v383, 0
      %v386 = vand.u32 %v374, %v384
      %388 = vmatprep.subr.bf16.mxu0 0
      %389 = vmatpush1.bf16.msra.mxu0 0
      %390 = vmatprep.subr.bf16.mxu0 0
      %391 = vmatpush1.bf16.msra.mxu0 0
      %392 = vmatprep.subr.bf16.mxu0 0
      %393 = vmatpush1.bf16.msra.mxu0 0
      %394 = vmatprep.subr.bf16.mxu0 0
      %395 = vmatpush1.bf16.msra.mxu0 0
      %396 = vmatprep.subr.bf16.mxu0 0
      %397 = vmatpush1.bf16.msra.mxu0 0
      %398 = vmatprep.subr.bf16.mxu0 0
      %399 = vmatpush1.bf16.msra.mxu0 0
      %400 = vmatprep.subr.bf16.mxu0 0
      %401 = vmatpush1.bf16.msra.mxu0 %v386
      %402 = vmatprep.subr.bf16.mxu0 0
      %403 = vmatpush1.bf16.msra.mxu0 %v373
      %404 = vmatprep.subr.bf16.mxu0 0
      %405 = vmatpush2.bf16.msra.mxu0 0
      %406 = vmatprep.subr.bf16.mxu0 0
      %407 = vmatpush2.bf16.msra.mxu0 0
      %408 = vmatprep.subr.bf16.mxu0 0
      %409 = vmatpush2.bf16.msra.mxu0 0
      %410 = vmatprep.subr.bf16.mxu0 0
      %411 = vmatpush2.bf16.msra.mxu0 0
      %412 = vmatprep.subr.bf16.mxu0 0
      %413 = vmatpush2.bf16.msra.mxu0 0
      %414 = vmatprep.subr.bf16.mxu0 0
      %415 = vmatpush2.bf16.msra.mxu0 0
      %416 = vmatprep.subr.bf16.mxu0 0
      %417 = vmatpush2.bf16.msra.mxu0 0
      %418 = vmatprep.subr.bf16.mxu0 0
      %419 = vmatpush2.bf16.msra.mxu0 0
      %420 = vmatprep.mubr.bf16.mxu0 0
      %421 = vmatmul.mubr.bf16.gmra.mxu0 %v377
      %v422 = vpop.f32.mrf.mxu0
      %v423 = vadd.f32 0.0, %v422
      %v424 = vpop.f32.mrf.mxu0
      %v425 = vpop.f32.mrf.mxu0
      %v426 = vadd.f32 0.0, %v425
      %v427 = vpop.f32.mrf.mxu0
      %428 = vmatprep.mubr.bf16.mxu0 0
      %429 = vmatmul.mubr.bf16.gmra.mxu0 %v380
      %v430 = vpop.f32.mrf.mxu0
      %v431 = vadd.f32 0.0, %v430
      %v432 = vpop.f32.mrf.mxu0
      %v433 = vpop.f32.mrf.mxu0
      %v434 = vpop.f32.mrf.mxu0
      %435 = vdwg.mxu0
      %436 = vst [vmem:[#allocation2] sm:$0xff] %v423
      %437 = vst [vmem:[#allocation2 + $0x10] sm:$0xff] %v426
      %438 = vst [vmem:[#allocation2 + $0x20] sm:$0x1] %v431
      %v439 = vld [vmem:[%s234 + $0x4] sm:$0xf]
      %v440 = vld [vmem:[%s234 + $0x1c] sm:$0xf]
      %v441 = vld [vmem:[%s234 + $0x34] sm:$0x1]
      %v442 = vld [vmem:[%s234 + $0xc] sm:$0xf]
      %v443 = vld [vmem:[%s234 + $0x24] sm:$0xf]
      %v444 = vld [vmem:[%s234 + $0x3c] sm:$0x1]
      %v445 = vld [vmem:[%s234 + $0x14] sm:$0xf]
      %v446 = vld [vmem:[%s234 + $0x2c] sm:$0xf]
      %v447 = vld [vmem:[%s234 + $0x44] sm:$0x1]
      %v451 = vunpack.c.l.b16 %v439
      %v452 = vunpack.c.l.b16 %v440
      %v453 = vunpack.c.l.b16 %v441
      %v454 = vpack.c.b16 %v452, %v451
      %v455 = vpack.c.b16 %v453, %v453
      %v461 = vunpack.c.l.b16 %v442
      %v462 = vunpack.c.l.b16 %v443
      %v463 = vunpack.c.l.b16 %v444
      %v464 = vpack.c.b16 %v462, %v461
      %v465 = vpack.c.b16 %v463, %v463
      %468 = vmatprep.subr.bf16.mxu0 0
      %469 = vmatpush1.bf16.xpose.msra.mxu0 0
      %470 = vmatprep.subr.bf16.mxu0 0
      %471 = vmatpush1.bf16.xpose.msra.mxu0 0
      %472 = vmatprep.subr.bf16.mxu0 0
      %473 = vmatpush1.bf16.xpose.msra.mxu0 0
      %474 = vmatprep.subr.bf16.mxu0 0
      %475 = vmatpush1.bf16.xpose.msra.mxu0 0
      %476 = vmatprep.subr.bf16.mxu0 0
      %477 = vmatpush1.bf16.xpose.msra.mxu0 0
      %478 = vmatprep.subr.bf16.mxu0 0
      %479 = vmatpush1.bf16.xpose.msra.mxu0 0
      %480 = vmatprep.subr.bf16.mxu0 0
      %481 = vmatpush1.bf16.xpose.msra.mxu0 %v465
      %482 = vmatprep.subr.bf16.mxu0 0
      %483 = vmatpush1.bf16.xpose.msra.mxu0 %v464
      %484 = vmatprep.subr.bf16.mxu0 0
      %485 = vmatpush2.bf16.xpose.msra.mxu0 0
      %486 = vmatprep.subr.bf16.mxu0 0
      %487 = vmatpush2.bf16.xpose.msra.mxu0 0
      %488 = vmatprep.subr.bf16.mxu0 0
      %489 = vmatpush2.bf16.xpose.msra.mxu0 0
      %490 = vmatprep.subr.bf16.mxu0 0
      %491 = vmatpush2.bf16.xpose.msra.mxu0 0
      %492 = vmatprep.subr.bf16.mxu0 0
      %493 = vmatpush2.bf16.xpose.msra.mxu0 0
      %494 = vmatprep.subr.bf16.mxu0 0
      %495 = vmatpush2.bf16.xpose.msra.mxu0 0
      %496 = vmatprep.subr.bf16.mxu0 0
      %497 = vmatpush2.bf16.xpose.msra.mxu0 0
      %498 = vmatprep.subr.bf16.mxu0 0
      %499 = vmatpush2.bf16.xpose.msra.mxu0 0
      %500 = vmatprep.mubr.bf16.mxu0 0
      %501 = vmatmul.mubr.bf16.gmra.mxu0 %v454
      %v502 = vpop.f32.mrf.mxu0
      %v503 = vadd.f32 %v260, %v502
      %v504 = vpop.f32.mrf.mxu0
      %v505 = vpop.f32.mrf.mxu0
      %v506 = vadd.f32 %v260, %v505
      %v507 = vpop.f32.mrf.mxu0
      %508 = vmatprep.mubr.bf16.mxu0 0
      %509 = vmatmul.mubr.bf16.gmra.mxu0 %v455
      %v510 = vpop.f32.mrf.mxu0
      %v511 = vadd.f32 %v260, %v510
      %v512 = vpop.f32.mrf.mxu0
      %v513 = vpop.f32.mrf.mxu0
      %v514 = vpop.f32.mrf.mxu0
      %515 = vdwg.mxu0
      %v516 = vsel %vm330, %v503, -inf
      %517 = vmax.xlane.f32.xlu0 %v516
      %v518 = vpop.xlane.xlu0 %517
      %v519 = vsel %vm330, %v506, -inf
      %520 = vmax.xlane.f32.xlu0 %v519
      %v521 = vpop.xlane.xlu0 %520
      %v522 = vsel %vm337, %v511, -inf
      %523 = vmax.xlane.f32.xlu0 %v522
      %v524 = vpop.xlane.xlu0 %523
      %v525 = vsub.f32 %v503, %v518
      %v526 = vsub.f32 %v506, %v521
      %v527 = vsub.f32 %v511, %v524
      %v528 = vmul.f32 %v525, 1.442695
      %v529 = vpow.pop %v528
      %v530 = vmul.f32 %v526, 1.442695
      %v531 = vpow.pop %v530
      %v532 = vmul.f32 %v527, 1.442695
      %v533 = vpow.pop %v532
      %v534 = vsel %vm330, %v529, 0.0
      %535 = vadd.xlane.f32.xlu0 %v534
      %v536 = vpop.xlane.xlu0 %535
      %v537 = vsel %vm330, %v531, 0.0
      %538 = vadd.xlane.f32.xlu0 %v537
      %v539 = vpop.xlane.xlu0 %538
      %v540 = vsel %vm337, %v533, 0.0
      %541 = vadd.xlane.f32.xlu0 %v540
      %v542 = vpop.xlane.xlu0 %541
      %v543 = vrcp.pop %v536
      %v544 = vrcp.pop %v539
      %v545 = vrcp.pop %v542
      %v546 = vmul.f32 %v529, %v543
      %v547 = vmul.f32 %v531, %v544
      %v548 = vmul.f32 %v533, %v545
      %v549 = vpack.c.bf16 %v547, %v546
      %v550 = vpack.c.bf16 %v548, %v548
      %v554 = vunpack.c.l.b16 %v445
      %v555 = vunpack.c.l.b16 %v446
      %v556 = vunpack.c.l.b16 %v447
      %v557 = vpack.c.b16 %v555, %v554
      %v558 = vpack.c.b16 %v556, %v556
      %v561 = vsel %vm330, %v549, 0
      %v564 = vsel %vm330, %v550, 0
      %v567 = vand.u32 %v558, %v384
      %569 = vmatprep.subr.bf16.mxu0 0
      %570 = vmatpush1.bf16.msra.mxu0 0
      %571 = vmatprep.subr.bf16.mxu0 0
      %572 = vmatpush1.bf16.msra.mxu0 0
      %573 = vmatprep.subr.bf16.mxu0 0
      %574 = vmatpush1.bf16.msra.mxu0 0
      %575 = vmatprep.subr.bf16.mxu0 0
      %576 = vmatpush1.bf16.msra.mxu0 0
      %577 = vmatprep.subr.bf16.mxu0 0
      %578 = vmatpush1.bf16.msra.mxu0 0
      %579 = vmatprep.subr.bf16.mxu0 0
      %580 = vmatpush1.bf16.msra.mxu0 0
      %581 = vmatprep.subr.bf16.mxu0 0
      %582 = vmatpush1.bf16.msra.mxu0 %v567
      %583 = vmatprep.subr.bf16.mxu0 0
      %584 = vmatpush1.bf16.msra.mxu0 %v557
      %585 = vmatprep.subr.bf16.mxu0 0
      %586 = vmatpush2.bf16.msra.mxu0 0
      %587 = vmatprep.subr.bf16.mxu0 0
      %588 = vmatpush2.bf16.msra.mxu0 0
      %589 = vmatprep.subr.bf16.mxu0 0
      %590 = vmatpush2.bf16.msra.mxu0 0
      %591 = vmatprep.subr.bf16.mxu0 0
      %592 = vmatpush2.bf16.msra.mxu0 0
      %593 = vmatprep.subr.bf16.mxu0 0
      %594 = vmatpush2.bf16.msra.mxu0 0
      %595 = vmatprep.subr.bf16.mxu0 0
      %596 = vmatpush2.bf16.msra.mxu0 0
      %597 = vmatprep.subr.bf16.mxu0 0
      %598 = vmatpush2.bf16.msra.mxu0 0
      %599 = vmatprep.subr.bf16.mxu0 0
      %600 = vmatpush2.bf16.msra.mxu0 0
      %601 = vmatprep.mubr.bf16.mxu0 0
      %602 = vmatmul.mubr.bf16.gmra.mxu0 %v561
      %v603 = vpop.f32.mrf.mxu0
      %v604 = vadd.f32 0.0, %v603
      %v605 = vpop.f32.mrf.mxu0
      %v606 = vpop.f32.mrf.mxu0
      %v607 = vadd.f32 0.0, %v606
      %v608 = vpop.f32.mrf.mxu0
      %609 = vmatprep.mubr.bf16.mxu0 0
      %610 = vmatmul.mubr.bf16.gmra.mxu0 %v564
      %v611 = vpop.f32.mrf.mxu0
      %v612 = vadd.f32 0.0, %v611
      %v613 = vpop.f32.mrf.mxu0
      %v614 = vpop.f32.mrf.mxu0
      %v615 = vpop.f32.mrf.mxu0
      %616 = vdwg.mxu0
      %617 = vst [vmem:[#allocation2 + $0x8] sm:$0xff] %v604
      %618 = vst [vmem:[#allocation2 + $0x18] sm:$0xff] %v607
      %619 = vst [vmem:[#allocation2 + $0x28] sm:$0x1] %v612
      %v620 = vld [vmem:[#allocation2] sm:$0xff]
      %v621 = vld [vmem:[#allocation2 + $0x8] sm:$0xff]
      %v622 = vld [vmem:[#allocation2 + $0x10] sm:$0xff]
      %v623 = vld [vmem:[#allocation2 + $0x18] sm:$0xff]
      %v624 = vld [vmem:[#allocation2 + $0x20] sm:$0x1]
      %v625 = vld [vmem:[#allocation2 + $0x28] sm:$0x1]
      %v626 = vpack.c.bf16 %v622, %v620
      %v627 = vpack.c.bf16 %v623, %v621
      %v628 = vpack.c.bf16 %v624, %v624
      %v629 = vpack.c.bf16 %v625, %v625
      %v630 = vld [vmem:[%s2] sm:$0xff]
      %v631 = vld [vmem:[%s2 + $0x8] sm:$0xff]
      %v632 = vld [vmem:[%s2 + $0x10] sm:$0xff]
      %v633 = vld [vmem:[%s2 + $0x18] sm:$0xff]
      %v634 = vld [vmem:[%s2 + $0x20] sm:$0xff]
      %v635 = vld [vmem:[%s2 + $0x28] sm:$0xff]
      %v636 = vld [vmem:[%s2 + $0x30] sm:$0xff]
      %v637 = vld [vmem:[%s2 + $0x38] sm:$0xff]
      %v638 = vld [vmem:[%s2 + $0x40] sm:$0xff]
      %v639 = vld [vmem:[%s2 + $0x48] sm:$0xff]
      %v640 = vld [vmem:[%s2 + $0x50] sm:$0xff]
      %v641 = vld [vmem:[%s2 + $0x58] sm:$0xff]
      %v642 = vld [vmem:[%s2 + $0x60] sm:$0xff]
      %v643 = vld [vmem:[%s2 + $0x68] sm:$0xff]
      %v644 = vld [vmem:[%s2 + $0x70] sm:$0xff]
      %v645 = vld [vmem:[%s2 + $0x78] sm:$0xff]
      %v646 = vld [vmem:[%s2 + $0x80] sm:$0xff]
      %v647 = vld [vmem:[%s2 + $0x88] sm:$0xff]
      %v648 = vld [vmem:[%s2 + $0x90] sm:$0xff]
      %v649 = vld [vmem:[%s2 + $0x98] sm:$0xff]
      %v650 = vld [vmem:[%s2 + $0xa0] sm:$0xff]
      %v651 = vld [vmem:[%s2 + $0xa8] sm:$0xff]
      %v652 = vld [vmem:[%s2 + $0xb0] sm:$0xff]
      %v653 = vld [vmem:[%s2 + $0xb8] sm:$0xff]
      %v654 = vld [vmem:[%s2 + $0xc0] sm:$0xff]
      %v655 = vld [vmem:[%s2 + $0xc8] sm:$0xff]
      %v656 = vld [vmem:[%s2 + $0xd0] sm:$0xff]
      %v657 = vld [vmem:[%s2 + $0xd8] sm:$0xff]
      %v658 = vld [vmem:[%s2 + $0xe0] sm:$0xff]
      %v659 = vld [vmem:[%s2 + $0xe8] sm:$0xff]
      %v660 = vld [vmem:[%s2 + $0xf0] sm:$0xff]
      %v661 = vld [vmem:[%s2 + $0xf8] sm:$0xff]
      %v662 = vld [vmem:[%s3] sm:$0x3]
      %v664 = vlaneseq
      %v665 = vshrl.u32 %v664, 7
      %v666 = vsub.s32 0, %v665
      %v667 = vrot.slane %v662, %v666
      %v668 = vlaneseq
      %v669 = vshrl.u32 %v668, 7
      %v670 = vsub.s32 1, %v669
      %v671 = vrot.slane %v662, %v670
      %v706 = vunpack.c.l.b16 %v630
      %v707 = vunpack.c.h.b16 %v630
      %v708 = vunpack.c.l.b16 %v631
      %v709 = vunpack.c.h.b16 %v631
      %v710 = vunpack.c.l.b16 %v632
      %v711 = vunpack.c.h.b16 %v632
      %v712 = vunpack.c.l.b16 %v633
      %v713 = vunpack.c.h.b16 %v633
      %v714 = vunpack.c.l.b16 %v634
      %v715 = vunpack.c.h.b16 %v634
      %v716 = vunpack.c.l.b16 %v635
      %v717 = vunpack.c.h.b16 %v635
      %v718 = vunpack.c.l.b16 %v636
      %v719 = vunpack.c.h.b16 %v636
      %v720 = vunpack.c.l.b16 %v637
      %v721 = vunpack.c.h.b16 %v637
      %v722 = vunpack.c.l.b16 %v638
      %v723 = vunpack.c.h.b16 %v638
      %v724 = vunpack.c.l.b16 %v639
      %v725 = vunpack.c.h.b16 %v639
      %v726 = vunpack.c.l.b16 %v640
      %v727 = vunpack.c.h.b16 %v640
      %v728 = vunpack.c.l.b16 %v641
      %v729 = vunpack.c.h.b16 %v641
      %v730 = vunpack.c.l.b16 %v642
      %v731 = vunpack.c.h.b16 %v642
      %v732 = vunpack.c.l.b16 %v643
      %v733 = vunpack.c.h.b16 %v643
      %v734 = vunpack.c.l.b16 %v644
      %v735 = vunpack.c.h.b16 %v644
      %v736 = vunpack.c.l.b16 %v645
      %v737 = vunpack.c.h.b16 %v645
      %v738 = vunpack.c.l.b16 %v646
      %v739 = vunpack.c.h.b16 %v646
      %v740 = vunpack.c.l.b16 %v647
      %v741 = vunpack.c.h.b16 %v647
      %v742 = vunpack.c.l.b16 %v648
      %v743 = vunpack.c.h.b16 %v648
      %v744 = vunpack.c.l.b16 %v649
      %v745 = vunpack.c.h.b16 %v649
      %v746 = vunpack.c.l.b16 %v650
      %v747 = vunpack.c.h.b16 %v650
      %v748 = vunpack.c.l.b16 %v651
      %v749 = vunpack.c.h.b16 %v651
      %v750 = vunpack.c.l.b16 %v652
      %v751 = vunpack.c.h.b16 %v652
      %v752 = vunpack.c.l.b16 %v653
      %v753 = vunpack.c.h.b16 %v653
      %v754 = vunpack.c.l.b16 %v654
      %v755 = vunpack.c.h.b16 %v654
      %v756 = vunpack.c.l.b16 %v655
      %v757 = vunpack.c.h.b16 %v655
      %v758 = vunpack.c.l.b16 %v656
      %v759 = vunpack.c.h.b16 %v656
      %v760 = vunpack.c.l.b16 %v657
      %v761 = vunpack.c.h.b16 %v657
      %v762 = vunpack.c.l.b16 %v658
      %v763 = vunpack.c.h.b16 %v658
      %v764 = vunpack.c.l.b16 %v659
      %v765 = vunpack.c.h.b16 %v659
      %v766 = vunpack.c.l.b16 %v660
      %v767 = vunpack.c.h.b16 %v660
      %v768 = vunpack.c.l.b16 %v661
      %v769 = vunpack.c.h.b16 %v661
      %v770 = vpack.c.b16 %v708, %v706
      %v771 = vpack.c.b16 %v709, %v707
      %v772 = vpack.c.b16 %v712, %v710
      %v773 = vpack.c.b16 %v713, %v711
      %v774 = vpack.c.b16 %v716, %v714
      %v775 = vpack.c.b16 %v717, %v715
      %v776 = vpack.c.b16 %v720, %v718
      %v777 = vpack.c.b16 %v721, %v719
      %v778 = vpack.c.b16 %v724, %v722
      %v779 = vpack.c.b16 %v725, %v723
      %v780 = vpack.c.b16 %v728, %v726
      %v781 = vpack.c.b16 %v729, %v727
      %v782 = vpack.c.b16 %v732, %v730
      %v783 = vpack.c.b16 %v733, %v731
      %v784 = vpack.c.b16 %v736, %v734
      %v785 = vpack.c.b16 %v737, %v735
      %v786 = vpack.c.b16 %v740, %v738
      %v787 = vpack.c.b16 %v741, %v739
      %v788 = vpack.c.b16 %v744, %v742
      %v789 = vpack.c.b16 %v745, %v743
      %v790 = vpack.c.b16 %v748, %v746
      %v791 = vpack.c.b16 %v749, %v747
      %v792 = vpack.c.b16 %v752, %v750
      %v793 = vpack.c.b16 %v753, %v751
      %v794 = vpack.c.b16 %v756, %v754
      %v795 = vpack.c.b16 %v757, %v755
      %v796 = vpack.c.b16 %v760, %v758
      %v797 = vpack.c.b16 %v761, %v759
      %v798 = vpack.c.b16 %v764, %v762
      %v799 = vpack.c.b16 %v765, %v763
      %v800 = vpack.c.b16 %v768, %v766
      %v801 = vpack.c.b16 %v769, %v767
      %834 = vmatprep.subr.bf16.mxu0 %v785
      %835 = vmatpush1.bf16.msra.mxu0 %v784
      %836 = vmatprep.subr.bf16.mxu0 %v783
      %837 = vmatpush1.bf16.msra.mxu0 %v782
      %838 = vmatprep.subr.bf16.mxu0 %v781
      %839 = vmatpush1.bf16.msra.mxu0 %v780
      %840 = vmatprep.subr.bf16.mxu0 %v779
      %841 = vmatpush1.bf16.msra.mxu0 %v778
      %842 = vmatprep.subr.bf16.mxu0 %v777
      %843 = vmatpush1.bf16.msra.mxu0 %v776
      %844 = vmatprep.subr.bf16.mxu0 %v775
      %845 = vmatpush1.bf16.msra.mxu0 %v774
      %846 = vmatprep.subr.bf16.mxu0 %v773
      %847 = vmatpush1.bf16.msra.mxu0 %v772
      %848 = vmatprep.subr.bf16.mxu0 %v771
      %849 = vmatpush1.bf16.msra.mxu0 %v770
      %850 = vmatprep.subr.bf16.mxu0 %v801
      %851 = vmatpush2.bf16.msra.mxu0 %v800
      %852 = vmatprep.subr.bf16.mxu0 %v799
      %853 = vmatpush2.bf16.msra.mxu0 %v798
      %854 = vmatprep.subr.bf16.mxu0 %v797
      %855 = vmatpush2.bf16.msra.mxu0 %v796
      %856 = vmatprep.subr.bf16.mxu0 %v795
      %857 = vmatpush2.bf16.msra.mxu0 %v794
      %858 = vmatprep.subr.bf16.mxu0 %v793
      %859 = vmatpush2.bf16.msra.mxu0 %v792
      %860 = vmatprep.subr.bf16.mxu0 %v791
      %861 = vmatpush2.bf16.msra.mxu0 %v790
      %862 = vmatprep.subr.bf16.mxu0 %v789
      %863 = vmatpush2.bf16.msra.mxu0 %v788
      %864 = vmatprep.subr.bf16.mxu0 %v787
      %865 = vmatpush2.bf16.msra.mxu0 %v786
      %866 = vmatprep.mubr.bf16.mxu0 %v627
      %867 = vmatmul.mubr.bf16.gmra.mxu0 %v626
      %v868 = vpop.f32.mrf.mxu0
      %v869 = vadd.f32 %v667, %v868
      %v870 = vpop.f32.mrf.mxu0
      %v871 = vadd.f32 %v671, %v870
      %v872 = vpop.f32.mrf.mxu0
      %v873 = vadd.f32 %v667, %v872
      %v874 = vpop.f32.mrf.mxu0
      %v875 = vadd.f32 %v671, %v874
      %876 = vmatprep.mubr.bf16.mxu0 %v629
      %877 = vmatmul.mubr.bf16.gmra.mxu0 %v628
      %v878 = vpop.f32.mrf.mxu0
      %v879 = vadd.f32 %v667, %v878
      %v880 = vpop.f32.mrf.mxu0
      %v881 = vadd.f32 %v671, %v880
      %v882 = vpop.f32.mrf.mxu0
      %v883 = vpop.f32.mrf.mxu0
      %884 = vdwg.mxu0
      %v885 = vld [vmem:[%s239] sm:$0xff]
      %v886 = vld [vmem:[%s239 + $0x8] sm:$0xff]
      %v887 = vld [vmem:[%s239 + $0x10] sm:$0x11]
      %v888 = vunpack.c.l.bf16 %v885
      %v889 = vunpack.c.h.bf16 %v885
      %v890 = vunpack.c.l.bf16 %v886
      %v891 = vunpack.c.h.bf16 %v886
      %v892 = vunpack.c.l.bf16 %v887
      %v893 = vunpack.c.h.bf16 %v887
      %v894 = vadd.f32 %v869, %v888
      %v895 = vadd.f32 %v871, %v889
      %v896 = vadd.f32 %v873, %v890
      %v897 = vadd.f32 %v875, %v891
      %v898 = vadd.f32 %v879, %v892
      %v899 = vadd.f32 %v881, %v893
      %v900 = vpack.c.bf16 %v896, %v894
      %v901 = vpack.c.bf16 %v897, %v895
      %v902 = vpack.c.bf16 %v898, %v898
      %v903 = vpack.c.bf16 %v899, %v899
      %v908 = vunpack.c.l.b16 %v900
      %v909 = vunpack.c.l.b16 %v901
      %v910 = vunpack.c.h.b16 %v900
      %v911 = vunpack.c.h.b16 %v901
      %v912 = vunpack.c.l.b16 %v902
      %v913 = vunpack.c.l.b16 %v903
      %v914 = vpack.c.b16 %v909, %v908
      %v915 = vpack.c.b16 %v911, %v910
      %v916 = vpack.c.b16 %v913, %v912
      %920 = vst [vmem:[%s244] sm:$0xff] %v914
      %921 = vst [vmem:[%s244 + $0x8] sm:$0xff] %v915
      %vm922 = vcmask 1040384
      %vm923 = vsmask.f32 256
      %vm924 = vmand %vm922, %vm923
      %vm925 = vcmask 1044484
      %vm926 = vsmask.f32 4352
      %vm927 = vmand %vm925, %vm926
      %vm928 = vmor %vm927, %vm924
      %v929 = vld [vmem:[%s244 + $0x10] sm:$0x11]
      %v930 = vsel %vm928, %v916, %v929
      %931 = vst [vmem:[%s244 + $0x10] sm:$0x11] %v930
      %p932 = scmp.lt.s32.totalorder %s16, 1
      %s933 = scalar_select %p932, %s16, 1
      %s934 = smul.addr %s933, 6
      %s935 = smul.addr %s934, 4
      %s936 = scalar_lea.vmem %s5, %s935
      // Predicated region
      $region41: #{_lambda_.12} parent=39 // pred_check
        %p937 = pneg %p149
      $region42: #{_lambda_.12} parent=39 // pred_check_branch
        %939 = sbr.rel (%p937) target = $region44
      $region43: #{_lambda_.12} parent=39 // pred_region
        _
      $region44: #{_lambda_.12} parent=39 // pred_fallthru
        _
    $region40: #{_lambda_.12} parent=5 // pred_fallthru
      _
    %p940 = scmp.le.s32.totalorder 2, %s11
    // Predicated region
    $region45: #{_lambda_.12} parent=5 // pred_check
      %p941 = pneg %p940
    $region46: #{_lambda_.12} parent=5 // pred_check_branch
      %943 = sbr.rel (%p941) target = $region48
    $region47: #{_lambda_.12} parent=5 // pred_region
      %s944 = ssub.s32 %s11, 2
      // Predicated region
      $region49: #{_lambda_.12} parent=47 // pred_check
        %p945 = pneg %p155
      $region50: #{_lambda_.12} parent=47 // pred_check_branch
        %947 = sbr.rel (%p945) target = $region52
      $region51: #{_lambda_.12} parent=47 // pred_region
        %p948 = scmp.lt.s32.totalorder %s17, 1
        %s949 = scalar_select %p948, %s17, 1
        %s950 = smul.addr %s949, 6
        %s951 = smul.addr %s950, 4
        %s952 = scalar_lea.vmem %s5, %s951
      $region52: #{_lambda_.12} parent=47 // pred_fallthru
        _
    $region48: #{_lambda_.12} parent=5 // pred_fallthru
      _
  $region6: #{_lambda_.12} parent=0 // loop_footer
    %s15 = sadd.s32 1, %s11
  $region7: #{_lambda_.12} parent=0 // loop_footer_branch
    %10 = sbr.rel target = $region3
  $region8: #{_lambda_.12} parent=0 // loop_exit
    _

// kernel: _lambda_.11
$region0: #{_lambda_.11}
  #allocation0 [shape = 'u32[]', space=smem, size = 0x4, offset = 0x4, fixed_abs, tag = 'smem constant byte address 0x4 - core index']
  #allocation1 [shape = 'u32[144,128]{1,0:T(1,128)}', space=vmem, size = 0x12000, scoped, tag = 'internal scratch']
  %s0 = inlined_call_operand.vmem [shape: bf16[34,256], index: 0, kind: input, shape index: {}]
  %s1 = inlined_call_operand.vmem [shape: f32[1,256], index: 1, kind: input, shape index: {}]
  %s2 = inlined_call_operand.vmem [shape: f32[1,256], index: 2, kind: input, shape index: {}]
  %s3 = inlined_call_operand.vmem [shape: bf16[256,768], index: 3, kind: input, shape index: {}]
  %s4 = inlined_call_operand.vmem [shape: f32[1,768], index: 4, kind: input, shape index: {}]
  %s5 = inlined_call_operand.vmem [shape: bf16[34,768], index: 5, kind: output, shape index: {}]
  %s6 = sld [smem:[#allocation0]]
  $region30: #{_lambda_.11} parent=0
    _
  %s8 = ssub.s32 1, %s6
  %s9 = scalar_select 0, %s8, %s6
  // Predicated region
  $region2: #{_lambda_.11} parent=0 // pred_check
    _
  $region3: #{_lambda_.11} parent=0 // pred_check_branch
    %11 = sbr.rel (0) target = $region5
  $region4: #{_lambda_.11} parent=0 // pred_region
    _
  $region5: #{_lambda_.11} parent=0 // pred_fallthru
    _
  // Predicated region
  $region6: #{_lambda_.11} parent=0 // pred_check
    _
  $region7: #{_lambda_.11} parent=0 // pred_check_branch
    %13 = sbr.rel (0) target = $region9
  $region8: #{_lambda_.11} parent=0 // pred_region
    _
  $region9: #{_lambda_.11} parent=0 // pred_fallthru
    _
  // Predicated region
  $region10: #{_lambda_.11} parent=0 // pred_check
    _
  $region11: #{_lambda_.11} parent=0 // pred_check_branch
    %15 = sbr.rel (0) target = $region13
  $region12: #{_lambda_.11} parent=0 // pred_region
    _
  $region13: #{_lambda_.11} parent=0 // pred_fallthru
    _
  // Predicated region
  $region14: #{_lambda_.11} parent=0 // pred_check
    _
  $region15: #{_lambda_.11} parent=0 // pred_check_branch
    %17 = sbr.rel (0) target = $region17
  $region16: #{_lambda_.11} parent=0 // pred_region
    _
  $region17: #{_lambda_.11} parent=0 // pred_fallthru
    _
  // Predicated region
  $region18: #{_lambda_.11} parent=0 // pred_check
    _
  $region19: #{_lambda_.11} parent=0 // pred_check_branch
    %19 = sbr.rel (0) target = $region21
  $region20: #{_lambda_.11} parent=0 // pred_region
    _
  $region21: #{_lambda_.11} parent=0 // pred_fallthru
    _
  %v20 = vld [vmem:[%s0] sm:$0xff]
  %v21 = vld [vmem:[%s0 + $0x8] sm:$0xff]
  %v22 = vld [vmem:[%s0 + $0x10] sm:$0xff]
  %v23 = vld [vmem:[%s0 + $0x18] sm:$0xff]
  %v24 = vld [vmem:[%s0 + $0x20] sm:$0x11]
  %v25 = vunpack.c.l.bf16 %v20
  %v26 = vunpack.c.h.bf16 %v20
  %v27 = vunpack.c.l.bf16 %v21
  %v28 = vunpack.c.h.bf16 %v21
  %v29 = vunpack.c.l.bf16 %v22
  %v30 = vunpack.c.h.bf16 %v22
  %v31 = vunpack.c.l.bf16 %v23
  %v32 = vunpack.c.h.bf16 %v23
  %v33 = vunpack.c.l.bf16 %v24
  %v34 = vunpack.c.h.bf16 %v24
  %v35 = vld [vmem:[%s1] sm:$0x3]
  %v36 = vld [vmem:[%s2] sm:$0x3]
  %v37 = vadd.f32 %v25, %v26
  %38 = vadd.xlane.f32.xlu0 %v37
  %v39 = vpop.xlane.xlu0 %38
  %v40 = vadd.f32 %v27, %v28
  %41 = vadd.xlane.f32.xlu0 %v40
  %v42 = vpop.xlane.xlu0 %41
  %v43 = vadd.f32 %v29, %v30
  %44 = vadd.xlane.f32.xlu0 %v43
  %v45 = vpop.xlane.xlu0 %44
  %v46 = vadd.f32 %v31, %v32
  %47 = vadd.xlane.f32.xlu0 %v46
  %v48 = vpop.xlane.xlu0 %47
  %vm49 = vcmask 1041408
  %v50 = vsel %vm49, %v33, 0.0
  %v51 = vsel %vm49, %v34, 0.0
  %v52 = vadd.f32 %v50, %v51
  %53 = vadd.xlane.f32.xlu0 %v52
  %v54 = vpop.xlane.xlu0 %53
  %v55 = vrcp.pop 256.0
  %v56 = vmul.f32 %v39, %v55
  %v57 = vmul.f32 %v42, %v55
  %v58 = vmul.f32 %v45, %v55
  %v59 = vmul.f32 %v48, %v55
  %v60 = vmul.f32 %v54, %v55
  %v61 = vsub.f32 %v25, %v56
  %v62 = vsub.f32 %v26, %v56
  %v63 = vsub.f32 %v27, %v57
  %v64 = vsub.f32 %v28, %v57
  %v65 = vsub.f32 %v29, %v58
  %v66 = vsub.f32 %v30, %v58
  %v67 = vsub.f32 %v31, %v59
  %v68 = vsub.f32 %v32, %v59
  %v69 = vsub.f32 %v33, %v60
  %v70 = vsub.f32 %v34, %v60
  %v71 = vmul.f32 %v61, %v61
  %v72 = vmul.f32 %v62, %v62
  %v73 = vmul.f32 %v63, %v63
  %v74 = vmul.f32 %v64, %v64
  %v75 = vmul.f32 %v65, %v65
  %v76 = vmul.f32 %v66, %v66
  %v77 = vmul.f32 %v67, %v67
  %v78 = vmul.f32 %v68, %v68
  %v79 = vmul.f32 %v69, %v69
  %v80 = vmul.f32 %v70, %v70
  %v81 = vadd.f32 %v71, %v72
  %82 = vadd.xlane.f32.xlu0 %v81
  %v83 = vpop.xlane.xlu0 %82
  %v84 = vadd.f32 %v73, %v74
  %85 = vadd.xlane.f32.xlu0 %v84
  %v86 = vpop.xlane.xlu0 %85
  %v87 = vadd.f32 %v75, %v76
  %88 = vadd.xlane.f32.xlu0 %v87
  %v89 = vpop.xlane.xlu0 %88
  %v90 = vadd.f32 %v77, %v78
  %91 = vadd.xlane.f32.xlu0 %v90
  %v92 = vpop.xlane.xlu0 %91
  %v93 = vsel %vm49, %v79, 0.0
  %v94 = vsel %vm49, %v80, 0.0
  %v95 = vadd.f32 %v93, %v94
  %96 = vadd.xlane.f32.xlu0 %v95
  %v97 = vpop.xlane.xlu0 %96
  %v98 = vmul.f32 %v83, %v55
  %v99 = vmul.f32 %v86, %v55
  %v100 = vmul.f32 %v89, %v55
  %v101 = vmul.f32 %v92, %v55
  %v102 = vmul.f32 %v97, %v55
  %v103 = vadd.f32 %v98, 1e-05
  %v104 = vadd.f32 %v99, 1e-05
  %v105 = vadd.f32 %v100, 1e-05
  %v106 = vadd.f32 %v101, 1e-05
  %v107 = vadd.f32 %v102, 1e-05
  %v108 = vrsqrt.pop %v103
  %v109 = vrsqrt.pop %v104
  %v110 = vrsqrt.pop %v105
  %v111 = vrsqrt.pop %v106
  %v112 = vrsqrt.pop %v107
  %v113 = vmul.f32 %v61, %v108
  %v114 = vmul.f32 %v62, %v108
  %v115 = vmul.f32 %v63, %v109
  %v116 = vmul.f32 %v64, %v109
  %v117 = vmul.f32 %v65, %v110
  %v118 = vmul.f32 %v66, %v110
  %v119 = vmul.f32 %v67, %v111
  %v120 = vmul.f32 %v68, %v111
  %v121 = vmul.f32 %v69, %v112
  %v122 = vmul.f32 %v70, %v112
  %v124 = vlaneseq
  %v125 = vshrl.u32 %v124, 7
  %v126 = vsub.s32 0, %v125
  %v127 = vrot.slane %v35, %v126
  %v128 = vlaneseq
  %v129 = vshrl.u32 %v128, 7
  %v130 = vsub.s32 1, %v129
  %v131 = vrot.slane %v35, %v130
  %v134 = vmul.f32 %v113, %v127
  %v135 = vmul.f32 %v114, %v131
  %v136 = vmul.f32 %v115, %v127
  %v137 = vmul.f32 %v116, %v131
  %v138 = vmul.f32 %v117, %v127
  %v139 = vmul.f32 %v118, %v131
  %v140 = vmul.f32 %v119, %v127
  %v141 = vmul.f32 %v120, %v131
  %v142 = vmul.f32 %v121, %v127
  %v143 = vmul.f32 %v122, %v131
  %v145 = vlaneseq
  %v146 = vshrl.u32 %v145, 7
  %v147 = vsub.s32 0, %v146
  %v148 = vrot.slane %v36, %v147
  %v149 = vlaneseq
  %v150 = vshrl.u32 %v149, 7
  %v151 = vsub.s32 1, %v150
  %v152 = vrot.slane %v36, %v151
  %v155 = vadd.f32 %v134, %v148
  %v156 = vadd.f32 %v135, %v152
  %v157 = vadd.f32 %v136, %v148
  %v158 = vadd.f32 %v137, %v152
  %v159 = vadd.f32 %v138, %v148
  %v160 = vadd.f32 %v139, %v152
  %v161 = vadd.f32 %v140, %v148
  %v162 = vadd.f32 %v141, %v152
  %v163 = vadd.f32 %v142, %v148
  %v164 = vadd.f32 %v143, %v152
  %v165 = vpack.c.bf16 %v157, %v155
  %v166 = vpack.c.bf16 %v158, %v156
  %v167 = vpack.c.bf16 %v161, %v159
  %v168 = vpack.c.bf16 %v162, %v160
  %v169 = vpack.c.bf16 %v163, %v163
  %v170 = vpack.c.bf16 %v164, %v164
  %v171 = vld [vmem:[%s3] sm:$0xff]
  %v172 = vld [vmem:[%s3 + $0x8] sm:$0xff]
  %v173 = vld [vmem:[%s3 + $0x10] sm:$0xff]
  %v174 = vld [vmem:[%s3 + $0x18] sm:$0xff]
  %v175 = vld [vmem:[%s3 + $0x20] sm:$0xff]
  %v176 = vld [vmem:[%s3 + $0x28] sm:$0xff]
  %v177 = vld [vmem:[%s3 + $0x30] sm:$0xff]
  %v178 = vld [vmem:[%s3 + $0x38] sm:$0xff]
  %v179 = vld [vmem:[%s3 + $0x40] sm:$0xff]
  %v180 = vld [vmem:[%s3 + $0x48] sm:$0xff]
  %v181 = vld [vmem:[%s3 + $0x50] sm:$0xff]
  %v182 = vld [vmem:[%s3 + $0x58] sm:$0xff]
  %v183 = vld [vmem:[%s3 + $0x60] sm:$0xff]
  %v184 = vld [vmem:[%s3 + $0x68] sm:$0xff]
  %v185 = vld [vmem:[%s3 + $0x70] sm:$0xff]
  %v186 = vld [vmem:[%s3 + $0x78] sm:$0xff]
  %v187 = vld [vmem:[%s3 + $0x80] sm:$0xff]
  %v188 = vld [vmem:[%s3 + $0x88] sm:$0xff]
  %v189 = vld [vmem:[%s3 + $0x90] sm:$0xff]
  %v190 = vld [vmem:[%s3 + $0x98] sm:$0xff]
  %v191 = vld [vmem:[%s3 + $0xa0] sm:$0xff]
  %v192 = vld [vmem:[%s3 + $0xa8] sm:$0xff]
  %v193 = vld [vmem:[%s3 + $0xb0] sm:$0xff]
  %v194 = vld [vmem:[%s3 + $0xb8] sm:$0xff]
  %v195 = vld [vmem:[%s3 + $0xc0] sm:$0xff]
  %v196 = vld [vmem:[%s3 + $0xc8] sm:$0xff]
  %v197 = vld [vmem:[%s3 + $0xd0] sm:$0xff]
  %v198 = vld [vmem:[%s3 + $0xd8] sm:$0xff]
  %v199 = vld [vmem:[%s3 + $0xe0] sm:$0xff]
  %v200 = vld [vmem:[%s3 + $0xe8] sm:$0xff]
  %v201 = vld [vmem:[%s3 + $0xf0] sm:$0xff]
  %v202 = vld [vmem:[%s3 + $0xf8] sm:$0xff]
  %v203 = vld [vmem:[%s3 + $0x100] sm:$0xff]
  %v204 = vld [vmem:[%s3 + $0x108] sm:$0xff]
  %v205 = vld [vmem:[%s3 + $0x110] sm:$0xff]
  %v206 = vld [vmem:[%s3 + $0x118] sm:$0xff]
  %v207 = vld [vmem:[%s3 + $0x120] sm:$0xff]
  %v208 = vld [vmem:[%s3 + $0x128] sm:$0xff]
  %v209 = vld [vmem:[%s3 + $0x130] sm:$0xff]
  %v210 = vld [vmem:[%s3 + $0x138] sm:$0xff]
  %v211 = vld [vmem:[%s3 + $0x140] sm:$0xff]
  %v212 = vld [vmem:[%s3 + $0x148] sm:$0xff]
  %v213 = vld [vmem:[%s3 + $0x150] sm:$0xff]
  %v214 = vld [vmem:[%s3 + $0x158] sm:$0xff]
  %v215 = vld [vmem:[%s3 + $0x160] sm:$0xff]
  %v216 = vld [vmem:[%s3 + $0x168] sm:$0xff]
  %v217 = vld [vmem:[%s3 + $0x170] sm:$0xff]
  %v218 = vld [vmem:[%s3 + $0x178] sm:$0xff]
  %v219 = vld [vmem:[%s3 + $0x180] sm:$0xff]
  %v220 = vld [vmem:[%s3 + $0x188] sm:$0xff]
  %v221 = vld [vmem:[%s3 + $0x190] sm:$0xff]
  %v222 = vld [vmem:[%s3 + $0x198] sm:$0xff]
  %v223 = vld [vmem:[%s3 + $0x1a0] sm:$0xff]
  %v224 = vld [vmem:[%s3 + $0x1a8] sm:$0xff]
  %v225 = vld [vmem:[%s3 + $0x1b0] sm:$0xff]
  %v226 = vld [vmem:[%s3 + $0x1b8] sm:$0xff]
  %v227 = vld [vmem:[%s3 + $0x1c0] sm:$0xff]
  %v228 = vld [vmem:[%s3 + $0x1c8] sm:$0xff]
  %v229 = vld [vmem:[%s3 + $0x1d0] sm:$0xff]
  %v230 = vld [vmem:[%s3 + $0x1d8] sm:$0xff]
  %v231 = vld [vmem:[%s3 + $0x1e0] sm:$0xff]
  %v232 = vld [vmem:[%s3 + $0x1e8] sm:$0xff]
  %v233 = vld [vmem:[%s3 + $0x1f0] sm:$0xff]
  %v234 = vld [vmem:[%s3 + $0x1f8] sm:$0xff]
  %v235 = vld [vmem:[%s3 + $0x200] sm:$0xff]
  %v236 = vld [vmem:[%s3 + $0x208] sm:$0xff]
  %v237 = vld [vmem:[%s3 + $0x210] sm:$0xff]
  %v238 = vld [vmem:[%s3 + $0x218] sm:$0xff]
  %v239 = vld [vmem:[%s3 + $0x220] sm:$0xff]
  %v240 = vld [vmem:[%s3 + $0x228] sm:$0xff]
  %v241 = vld [vmem:[%s3 + $0x230] sm:$0xff]
  %v242 = vld [vmem:[%s3 + $0x238] sm:$0xff]
  %v243 = vld [vmem:[%s3 + $0x240] sm:$0xff]
  %v244 = vld [vmem:[%s3 + $0x248] sm:$0xff]
  %v245 = vld [vmem:[%s3 + $0x250] sm:$0xff]
  %v246 = vld [vmem:[%s3 + $0x258] sm:$0xff]
  %v247 = vld [vmem:[%s3 + $0x260] sm:$0xff]
  %v248 = vld [vmem:[%s3 + $0x268] sm:$0xff]
  %v249 = vld [vmem:[%s3 + $0x270] sm:$0xff]
  %v250 = vld [vmem:[%s3 + $0x278] sm:$0xff]
  %v251 = vld [vmem:[%s3 + $0x280] sm:$0xff]
  %v252 = vld [vmem:[%s3 + $0x288] sm:$0xff]
  %v253 = vld [vmem:[%s3 + $0x290] sm:$0xff]
  %v254 = vld [vmem:[%s3 + $0x298] sm:$0xff]
  %v255 = vld [vmem:[%s3 + $0x2a0] sm:$0xff]
  %v256 = vld [vmem:[%s3 + $0x2a8] sm:$0xff]
  %v257 = vld [vmem:[%s3 + $0x2b0] sm:$0xff]
  %v258 = vld [vmem:[%s3 + $0x2b8] sm:$0xff]
  %v259 = vld [vmem:[%s3 + $0x2c0] sm:$0xff]
  %v260 = vld [vmem:[%s3 + $0x2c8] sm:$0xff]
  %v261 = vld [vmem:[%s3 + $0x2d0] sm:$0xff]
  %v262 = vld [vmem:[%s3 + $0x2d8] sm:$0xff]
  %v263 = vld [vmem:[%s3 + $0x2e0] sm:$0xff]
  %v264 = vld [vmem:[%s3 + $0x2e8] sm:$0xff]
  %v265 = vld [vmem:[%s3 + $0x2f0] sm:$0xff]
  %v266 = vld [vmem:[%s3 + $0x2f8] sm:$0xff]
  %v267 = vld [vmem:[%s4] sm:$0x3f]
  %v269 = vlaneseq
  %v270 = vshrl.u32 %v269, 7
  %v271 = vsub.s32 0, %v270
  %v272 = vrot.slane %v267, %v271
  %v273 = vlaneseq
  %v274 = vshrl.u32 %v273, 7
  %v275 = vsub.s32 1, %v274
  %v276 = vrot.slane %v267, %v275
  %v277 = vlaneseq
  %v278 = vshrl.u32 %v277, 7
  %v279 = vsub.s32 2, %v278
  %v280 = vrot.slane %v267, %v279
  %v281 = vlaneseq
  %v282 = vshrl.u32 %v281, 7
  %v283 = vsub.s32 3, %v282
  %v284 = vrot.slane %v267, %v283
  %v285 = vlaneseq
  %v286 = vshrl.u32 %v285, 7
  %v287 = vsub.s32 4, %v286
  %v288 = vrot.slane %v267, %v287
  %v289 = vlaneseq
  %v290 = vshrl.u32 %v289, 7
  %v291 = vsub.s32 5, %v290
  %v292 = vrot.slane %v267, %v291
  %v395 = vunpack.c.l.b16 %v171
  %v396 = vunpack.c.h.b16 %v171
  %v397 = vunpack.c.l.b16 %v172
  %v398 = vunpack.c.h.b16 %v172
  %v399 = vunpack.c.l.b16 %v173
  %v400 = vunpack.c.h.b16 %v173
  %v401 = vunpack.c.l.b16 %v174
  %v402 = vunpack.c.h.b16 %v174
  %v403 = vunpack.c.l.b16 %v175
  %v404 = vunpack.c.h.b16 %v175
  %v405 = vunpack.c.l.b16 %v176
  %v406 = vunpack.c.h.b16 %v176
  %v407 = vunpack.c.l.b16 %v177
  %v408 = vunpack.c.h.b16 %v177
  %v409 = vunpack.c.l.b16 %v178
  %v410 = vunpack.c.h.b16 %v178
  %v411 = vunpack.c.l.b16 %v179
  %v412 = vunpack.c.h.b16 %v179
  %v413 = vunpack.c.l.b16 %v180
  %v414 = vunpack.c.h.b16 %v180
  %v415 = vunpack.c.l.b16 %v181
  %v416 = vunpack.c.h.b16 %v181
  %v417 = vunpack.c.l.b16 %v182
  %v418 = vunpack.c.h.b16 %v182
  %v419 = vunpack.c.l.b16 %v183
  %v420 = vunpack.c.h.b16 %v183
  %v421 = vunpack.c.l.b16 %v184
  %v422 = vunpack.c.h.b16 %v184
  %v423 = vunpack.c.l.b16 %v185
  %v424 = vunpack.c.h.b16 %v185
  %v425 = vunpack.c.l.b16 %v186
  %v426 = vunpack.c.h.b16 %v186
  %v427 = vunpack.c.l.b16 %v187
  %v428 = vunpack.c.h.b16 %v187
  %v429 = vunpack.c.l.b16 %v188
  %v430 = vunpack.c.h.b16 %v188
  %v431 = vunpack.c.l.b16 %v189
  %v432 = vunpack.c.h.b16 %v189
  %v433 = vunpack.c.l.b16 %v190
  %v434 = vunpack.c.h.b16 %v190
  %v435 = vunpack.c.l.b16 %v191
  %v436 = vunpack.c.h.b16 %v191
  %v437 = vunpack.c.l.b16 %v192
  %v438 = vunpack.c.h.b16 %v192
  %v439 = vunpack.c.l.b16 %v193
  %v440 = vunpack.c.h.b16 %v193
  %v441 = vunpack.c.l.b16 %v194
  %v442 = vunpack.c.h.b16 %v194
  %v443 = vunpack.c.l.b16 %v195
  %v444 = vunpack.c.h.b16 %v195
  %v445 = vunpack.c.l.b16 %v196
  %v446 = vunpack.c.h.b16 %v196
  %v447 = vunpack.c.l.b16 %v197
  %v448 = vunpack.c.h.b16 %v197
  %v449 = vunpack.c.l.b16 %v198
  %v450 = vunpack.c.h.b16 %v198
  %v451 = vunpack.c.l.b16 %v199
  %v452 = vunpack.c.h.b16 %v199
  %v453 = vunpack.c.l.b16 %v200
  %v454 = vunpack.c.h.b16 %v200
  %v455 = vunpack.c.l.b16 %v201
  %v456 = vunpack.c.h.b16 %v201
  %v457 = vunpack.c.l.b16 %v202
  %v458 = vunpack.c.h.b16 %v202
  %v459 = vunpack.c.l.b16 %v203
  %v460 = vunpack.c.h.b16 %v203
  %v461 = vunpack.c.l.b16 %v204
  %v462 = vunpack.c.h.b16 %v204
  %v463 = vunpack.c.l.b16 %v205
  %v464 = vunpack.c.h.b16 %v205
  %v465 = vunpack.c.l.b16 %v206
  %v466 = vunpack.c.h.b16 %v206
  %v467 = vunpack.c.l.b16 %v207
  %v468 = vunpack.c.h.b16 %v207
  %v469 = vunpack.c.l.b16 %v208
  %v470 = vunpack.c.h.b16 %v208
  %v471 = vunpack.c.l.b16 %v209
  %v472 = vunpack.c.h.b16 %v209
  %v473 = vunpack.c.l.b16 %v210
  %v474 = vunpack.c.h.b16 %v210
  %v475 = vunpack.c.l.b16 %v211
  %v476 = vunpack.c.h.b16 %v211
  %v477 = vunpack.c.l.b16 %v212
  %v478 = vunpack.c.h.b16 %v212
  %v479 = vunpack.c.l.b16 %v213
  %v480 = vunpack.c.h.b16 %v213
  %v481 = vunpack.c.l.b16 %v214
  %v482 = vunpack.c.h.b16 %v214
  %v483 = vunpack.c.l.b16 %v215
  %v484 = vunpack.c.h.b16 %v215
  %v485 = vunpack.c.l.b16 %v216
  %v486 = vunpack.c.h.b16 %v216
  %v487 = vunpack.c.l.b16 %v217
  %v488 = vunpack.c.h.b16 %v217
  %v489 = vunpack.c.l.b16 %v218
  %v490 = vunpack.c.h.b16 %v218
  %v491 = vunpack.c.l.b16 %v219
  %v492 = vunpack.c.h.b16 %v219
  %v493 = vunpack.c.l.b16 %v220
  %v494 = vunpack.c.h.b16 %v220
  %v495 = vunpack.c.l.b16 %v221
  %v496 = vunpack.c.h.b16 %v221
  %v497 = vunpack.c.l.b16 %v222
  %v498 = vunpack.c.h.b16 %v222
  %v499 = vunpack.c.l.b16 %v223
  %v500 = vunpack.c.h.b16 %v223
  %v501 = vunpack.c.l.b16 %v224
  %v502 = vunpack.c.h.b16 %v224
  %v503 = vunpack.c.l.b16 %v225
  %v504 = vunpack.c.h.b16 %v225
  %v505 = vunpack.c.l.b16 %v226
  %v506 = vunpack.c.h.b16 %v226
  %v507 = vunpack.c.l.b16 %v227
  %v508 = vunpack.c.h.b16 %v227
  %v509 = vunpack.c.l.b16 %v228
  %v510 = vunpack.c.h.b16 %v228
  %v511 = vunpack.c.l.b16 %v229
  %v512 = vunpack.c.h.b16 %v229
  %v513 = vunpack.c.l.b16 %v230
  %v514 = vunpack.c.h.b16 %v230
  %v515 = vunpack.c.l.b16 %v231
  %v516 = vunpack.c.h.b16 %v231
  %v517 = vunpack.c.l.b16 %v232
  %v518 = vunpack.c.h.b16 %v232
  %v519 = vunpack.c.l.b16 %v233
  %v520 = vunpack.c.h.b16 %v233
  %v521 = vunpack.c.l.b16 %v234
  %v522 = vunpack.c.h.b16 %v234
  %v523 = vunpack.c.l.b16 %v235
  %v524 = vunpack.c.h.b16 %v235
  %v525 = vunpack.c.l.b16 %v236
  %v526 = vunpack.c.h.b16 %v236
  %v527 = vunpack.c.l.b16 %v237
  %v528 = vunpack.c.h.b16 %v237
  %v529 = vunpack.c.l.b16 %v238
  %v530 = vunpack.c.h.b16 %v238
  %v531 = vunpack.c.l.b16 %v239
  %v532 = vunpack.c.h.b16 %v239
  %v533 = vunpack.c.l.b16 %v240
  %v534 = vunpack.c.h.b16 %v240
  %v535 = vunpack.c.l.b16 %v241
  %v536 = vunpack.c.h.b16 %v241
  %v537 = vunpack.c.l.b16 %v242
  %v538 = vunpack.c.h.b16 %v242
  %v539 = vunpack.c.l.b16 %v243
  %v540 = vunpack.c.h.b16 %v243
  %v541 = vunpack.c.l.b16 %v244
  %v542 = vunpack.c.h.b16 %v244
  %v543 = vunpack.c.l.b16 %v245
  %v544 = vunpack.c.h.b16 %v245
  %v545 = vunpack.c.l.b16 %v246
  %v546 = vunpack.c.h.b16 %v246
  %v547 = vunpack.c.l.b16 %v247
  %v548 = vunpack.c.h.b16 %v247
  %v549 = vunpack.c.l.b16 %v248
  %v550 = vunpack.c.h.b16 %v248
  %v551 = vunpack.c.l.b16 %v249
  %v552 = vunpack.c.h.b16 %v249
  %v553 = vunpack.c.l.b16 %v250
  %v554 = vunpack.c.h.b16 %v250
  %v555 = vunpack.c.l.b16 %v251
  %v556 = vunpack.c.h.b16 %v251
  %v557 = vunpack.c.l.b16 %v252
  %v558 = vunpack.c.h.b16 %v252
  %v559 = vunpack.c.l.b16 %v253
  %v560 = vunpack.c.h.b16 %v253
  %v561 = vunpack.c.l.b16 %v254
  %v562 = vunpack.c.h.b16 %v254
  %v563 = vunpack.c.l.b16 %v255
  %v564 = vunpack.c.h.b16 %v255
  %v565 = vunpack.c.l.b16 %v256
  %v566 = vunpack.c.h.b16 %v256
  %v567 = vunpack.c.l.b16 %v257
  %v568 = vunpack.c.h.b16 %v257
  %v569 = vunpack.c.l.b16 %v258
  %v570 = vunpack.c.h.b16 %v258
  %v571 = vunpack.c.l.b16 %v259
  %v572 = vunpack.c.h.b16 %v259
  %v573 = vunpack.c.l.b16 %v260
  %v574 = vunpack.c.h.b16 %v260
  %v575 = vunpack.c.l.b16 %v261
  %v576 = vunpack.c.h.b16 %v261
  %v577 = vunpack.c.l.b16 %v262
  %v578 = vunpack.c.h.b16 %v262
  %v579 = vunpack.c.l.b16 %v263
  %v580 = vunpack.c.h.b16 %v263
  %v581 = vunpack.c.l.b16 %v264
  %v582 = vunpack.c.h.b16 %v264
  %v583 = vunpack.c.l.b16 %v265
  %v584 = vunpack.c.h.b16 %v265
  %v585 = vunpack.c.l.b16 %v266
  %v586 = vunpack.c.h.b16 %v266
  %v587 = vpack.c.b16 %v401, %v395
  %v588 = vpack.c.b16 %v402, %v396
  %v589 = vpack.c.b16 %v403, %v397
  %v590 = vpack.c.b16 %v404, %v398
  %v591 = vpack.c.b16 %v405, %v399
  %v592 = vpack.c.b16 %v406, %v400
  %v593 = vpack.c.b16 %v413, %v407
  %v594 = vpack.c.b16 %v414, %v408
  %v595 = vpack.c.b16 %v415, %v409
  %v596 = vpack.c.b16 %v416, %v410
  %v597 = vpack.c.b16 %v417, %v411
  %v598 = vpack.c.b16 %v418, %v412
  %v599 = vpack.c.b16 %v425, %v419
  %v600 = vpack.c.b16 %v426, %v420
  %v601 = vpack.c.b16 %v427, %v421
  %v602 = vpack.c.b16 %v428, %v422
  %v603 = vpack.c.b16 %v429, %v423
  %v604 = vpack.c.b16 %v430, %v424
  %v605 = vpack.c.b16 %v437, %v431
  %v606 = vpack.c.b16 %v438, %v432
  %v607 = vpack.c.b16 %v439, %v433
  %v608 = vpack.c.b16 %v440, %v434
  %v609 = vpack.c.b16 %v441, %v435
  %v610 = vpack.c.b16 %v442, %v436
  %v611 = vpack.c.b16 %v449, %v443
  %v612 = vpack.c.b16 %v450, %v444
  %v613 = vpack.c.b16 %v451, %v445
  %v614 = vpack.c.b16 %v452, %v446
  %v615 = vpack.c.b16 %v453, %v447
  %v616 = vpack.c.b16 %v454, %v448
  %v617 = vpack.c.b16 %v461, %v455
  %v618 = vpack.c.b16 %v462, %v456
  %v619 = vpack.c.b16 %v463, %v457
  %v620 = vpack.c.b16 %v464, %v458
  %v621 = vpack.c.b16 %v465, %v459
  %v622 = vpack.c.b16 %v466, %v460
  %v623 = vpack.c.b16 %v473, %v467
  %v624 = vpack.c.b16 %v474, %v468
  %v625 = vpack.c.b16 %v475, %v469
  %v626 = vpack.c.b16 %v476, %v470
  %v627 = vpack.c.b16 %v477, %v471
  %v628 = vpack.c.b16 %v478, %v472
  %v629 = vpack.c.b16 %v485, %v479
  %v630 = vpack.c.b16 %v486, %v480
  %v631 = vpack.c.b16 %v487, %v481
  %v632 = vpack.c.b16 %v488, %v482
  %v633 = vpack.c.b16 %v489, %v483
  %v634 = vpack.c.b16 %v490, %v484
  %v635 = vpack.c.b16 %v497, %v491
  %v636 = vpack.c.b16 %v498, %v492
  %v637 = vpack.c.b16 %v499, %v493
  %v638 = vpack.c.b16 %v500, %v494
  %v639 = vpack.c.b16 %v501, %v495
  %v640 = vpack.c.b16 %v502, %v496
  %v641 = vpack.c.b16 %v509, %v503
  %v642 = vpack.c.b16 %v510, %v504
  %v643 = vpack.c.b16 %v511, %v505
  %v644 = vpack.c.b16 %v512, %v506
  %v645 = vpack.c.b16 %v513, %v507
  %v646 = vpack.c.b16 %v514, %v508
  %v647 = vpack.c.b16 %v521, %v515
  %v648 = vpack.c.b16 %v522, %v516
  %v649 = vpack.c.b16 %v523, %v517
  %v650 = vpack.c.b16 %v524, %v518
  %v651 = vpack.c.b16 %v525, %v519
  %v652 = vpack.c.b16 %v526, %v520
  %v653 = vpack.c.b16 %v533, %v527
  %v654 = vpack.c.b16 %v534, %v528
  %v655 = vpack.c.b16 %v535, %v529
  %v656 = vpack.c.b16 %v536, %v530
  %v657 = vpack.c.b16 %v537, %v531
  %v658 = vpack.c.b16 %v538, %v532
  %v659 = vpack.c.b16 %v545, %v539
  %v660 = vpack.c.b16 %v546, %v540
  %v661 = vpack.c.b16 %v547, %v541
  %v662 = vpack.c.b16 %v548, %v542
  %v663 = vpack.c.b16 %v549, %v543
  %v664 = vpack.c.b16 %v550, %v544
  %v665 = vpack.c.b16 %v557, %v551
  %v666 = vpack.c.b16 %v558, %v552
  %v667 = vpack.c.b16 %v559, %v553
  %v668 = vpack.c.b16 %v560, %v554
  %v669 = vpack.c.b16 %v561, %v555
  %v670 = vpack.c.b16 %v562, %v556
  %v671 = vpack.c.b16 %v569, %v563
  %v672 = vpack.c.b16 %v570, %v564
  %v673 = vpack.c.b16 %v571, %v565
  %v674 = vpack.c.b16 %v572, %v566
  %v675 = vpack.c.b16 %v573, %v567
  %v676 = vpack.c.b16 %v574, %v568
  %v677 = vpack.c.b16 %v581, %v575
  %v678 = vpack.c.b16 %v582, %v576
  %v679 = vpack.c.b16 %v583, %v577
  %v680 = vpack.c.b16 %v584, %v578
  %v681 = vpack.c.b16 %v585, %v579
  %v682 = vpack.c.b16 %v586, %v580
  %779 = vmatprep.subr.bf16.mxu0 %v630
  %780 = vmatpush1.bf16.msra.mxu0 %v629
  %781 = vmatprep.subr.bf16.mxu0 %v624
  %782 = vmatpush1.bf16.msra.mxu0 %v623
  %783 = vmatprep.subr.bf16.mxu0 %v618
  %784 = vmatpush1.bf16.msra.mxu0 %v617
  %785 = vmatprep.subr.bf16.mxu0 %v612
  %786 = vmatpush1.bf16.msra.mxu0 %v611
  %787 = vmatprep.subr.bf16.mxu0 %v606
  %788 = vmatpush1.bf16.msra.mxu0 %v605
  %789 = vmatprep.subr.bf16.mxu0 %v600
  %790 = vmatpush1.bf16.msra.mxu0 %v599
  %791 = vmatprep.subr.bf16.mxu0 %v594
  %792 = vmatpush1.bf16.msra.mxu0 %v593
  %793 = vmatprep.subr.bf16.mxu0 %v588
  %794 = vmatpush1.bf16.msra.mxu0 %v587
  %795 = vmatprep.subr.bf16.mxu0 %v678
  %796 = vmatpush2.bf16.msra.mxu0 %v677
  %797 = vmatprep.subr.bf16.mxu0 %v672
  %798 = vmatpush2.bf16.msra.mxu0 %v671
  %799 = vmatprep.subr.bf16.mxu0 %v666
  %800 = vmatpush2.bf16.msra.mxu0 %v665
  %801 = vmatprep.subr.bf16.mxu0 %v660
  %802 = vmatpush2.bf16.msra.mxu0 %v659
  %803 = vmatprep.subr.bf16.mxu0 %v654
  %804 = vmatpush2.bf16.msra.mxu0 %v653
  %805 = vmatprep.subr.bf16.mxu0 %v648
  %806 = vmatpush2.bf16.msra.mxu0 %v647
  %807 = vmatprep.subr.bf16.mxu0 %v642
  %808 = vmatpush2.bf16.msra.mxu0 %v641
  %809 = vmatprep.subr.bf16.mxu0 %v636
  %810 = vmatpush2.bf16.msra.mxu0 %v635
  %811 = vmatprep.mubr.bf16.mxu0 %v166
  %812 = vmatmul.mubr.bf16.gmra.mxu0 %v165
  %v813 = vpop.f32.mrf.mxu0
  %v814 = vadd.f32 %v272, %v813
  %v815 = vpop.f32.mrf.mxu0
  %v816 = vadd.f32 %v276, %v815
  %v817 = vpop.f32.mrf.mxu0
  %v818 = vadd.f32 %v272, %v817
  %v819 = vpop.f32.mrf.mxu0
  %v820 = vadd.f32 %v276, %v819
  %821 = vmatprep.mubr.bf16.mxu0 %v168
  %822 = vmatmul.mubr.bf16.gmra.mxu0 %v167
  %v823 = vpop.f32.mrf.mxu0
  %v824 = vadd.f32 %v272, %v823
  %v825 = vpop.f32.mrf.mxu0
  %v826 = vadd.f32 %v276, %v825
  %v827 = vpop.f32.mrf.mxu0
  %v828 = vadd.f32 %v272, %v827
  %v829 = vpop.f32.mrf.mxu0
  %v830 = vadd.f32 %v276, %v829
  %831 = vmatprep.mubr.bf16.mxu0 %v170
  %832 = vmatmul.mubr.bf16.gmra.mxu0 %v169
  %v833 = vpop.f32.mrf.mxu0
  %v834 = vadd.f32 %v272, %v833
  %v835 = vpop.f32.mrf.mxu0
  %v836 = vadd.f32 %v276, %v835
  %v837 = vpop.f32.mrf.mxu0
  %v838 = vpop.f32.mrf.mxu0
  %839 = vdwg.mxu0
  %840 = vmatprep.subr.bf16.mxu0 %v632
  %841 = vmatpush1.bf16.msra.mxu0 %v631
  %842 = vmatprep.subr.bf16.mxu0 %v626
  %843 = vmatpush1.bf16.msra.mxu0 %v625
  %844 = vmatprep.subr.bf16.mxu0 %v620
  %845 = vmatpush1.bf16.msra.mxu0 %v619
  %846 = vmatprep.subr.bf16.mxu0 %v614
  %847 = vmatpush1.bf16.msra.mxu0 %v613
  %848 = vmatprep.subr.bf16.mxu0 %v608
  %849 = vmatpush1.bf16.msra.mxu0 %v607
  %850 = vmatprep.subr.bf16.mxu0 %v602
  %851 = vmatpush1.bf16.msra.mxu0 %v601
  %852 = vmatprep.subr.bf16.mxu0 %v596
  %853 = vmatpush1.bf16.msra.mxu0 %v595
  %854 = vmatprep.subr.bf16.mxu0 %v590
  %855 = vmatpush1.bf16.msra.mxu0 %v589
  %856 = vmatprep.subr.bf16.mxu0 %v680
  %857 = vmatpush2.bf16.msra.mxu0 %v679
  %858 = vmatprep.subr.bf16.mxu0 %v674
  %859 = vmatpush2.bf16.msra.mxu0 %v673
  %860 = vmatprep.subr.bf16.mxu0 %v668
  %861 = vmatpush2.bf16.msra.mxu0 %v667
  %862 = vmatprep.subr.bf16.mxu0 %v662
  %863 = vmatpush2.bf16.msra.mxu0 %v661
  %864 = vmatprep.subr.bf16.mxu0 %v656
  %865 = vmatpush2.bf16.msra.mxu0 %v655
  %866 = vmatprep.subr.bf16.mxu0 %v650
  %867 = vmatpush2.bf16.msra.mxu0 %v649
  %868 = vmatprep.subr.bf16.mxu0 %v644
  %869 = vmatpush2.bf16.msra.mxu0 %v643
  %870 = vmatprep.subr.bf16.mxu0 %v638
  %871 = vmatpush2.bf16.msra.mxu0 %v637
  %872 = vmatprep.mubr.bf16.mxu0 %v166
  %873 = vmatmul.mubr.bf16.gmra.mxu0 %v165
  %v874 = vpop.f32.mrf.mxu0
  %v875 = vadd.f32 %v280, %v874
  %v876 = vpop.f32.mrf.mxu0
  %v877 = vadd.f32 %v284, %v876
  %v878 = vpop.f32.mrf.mxu0
  %v879 = vadd.f32 %v280, %v878
  %v880 = vpop.f32.mrf.mxu0
  %v881 = vadd.f32 %v284, %v880
  %882 = vmatprep.mubr.bf16.mxu0 %v168
  %883 = vmatmul.mubr.bf16.gmra.mxu0 %v167
  %v884 = vpop.f32.mrf.mxu0
  %v885 = vadd.f32 %v280, %v884
  %v886 = vpop.f32.mrf.mxu0
  %v887 = vadd.f32 %v284, %v886
  %v888 = vpop.f32.mrf.mxu0
  %v889 = vadd.f32 %v280, %v888
  %v890 = vpop.f32.mrf.mxu0
  %v891 = vadd.f32 %v284, %v890
  %892 = vmatprep.mubr.bf16.mxu0 %v170
  %893 = vmatmul.mubr.bf16.gmra.mxu0 %v169
  %v894 = vpop.f32.mrf.mxu0
  %v895 = vadd.f32 %v280, %v894
  %v896 = vpop.f32.mrf.mxu0
  %v897 = vadd.f32 %v284, %v896
  %v898 = vpop.f32.mrf.mxu0
  %v899 = vpop.f32.mrf.mxu0
  %900 = vdwg.mxu0
  %901 = vmatprep.subr.bf16.mxu0 %v634
  %902 = vmatpush1.bf16.msra.mxu0 %v633
  %903 = vmatprep.subr.bf16.mxu0 %v628
  %904 = vmatpush1.bf16.msra.mxu0 %v627
  %905 = vmatprep.subr.bf16.mxu0 %v622
  %906 = vmatpush1.bf16.msra.mxu0 %v621
  %907 = vmatprep.subr.bf16.mxu0 %v616
  %908 = vmatpush1.bf16.msra.mxu0 %v615
  %909 = vmatprep.subr.bf16.mxu0 %v610
  %910 = vmatpush1.bf16.msra.mxu0 %v609
  %911 = vmatprep.subr.bf16.mxu0 %v604
  %912 = vmatpush1.bf16.msra.mxu0 %v603
  %913 = vmatprep.subr.bf16.mxu0 %v598
  %914 = vmatpush1.bf16.msra.mxu0 %v597
  %915 = vmatprep.subr.bf16.mxu0 %v592
  %916 = vmatpush1.bf16.msra.mxu0 %v591
  %917 = vmatprep.subr.bf16.mxu0 %v682
  %918 = vmatpush2.bf16.msra.mxu0 %v681
  %919 = vmatprep.subr.bf16.mxu0 %v676
  %920 = vmatpush2.bf16.msra.mxu0 %v675
  %921 = vmatprep.subr.bf16.mxu0 %v670
  %922 = vmatpush2.bf16.msra.mxu0 %v669
  %923 = vmatprep.subr.bf16.mxu0 %v664
  %924 = vmatpush2.bf16.msra.mxu0 %v663
  %925 = vmatprep.subr.bf16.mxu0 %v658
  %926 = vmatpush2.bf16.msra.mxu0 %v657
  %927 = vmatprep.subr.bf16.mxu0 %v652
  %928 = vmatpush2.bf16.msra.mxu0 %v651
  %929 = vmatprep.subr.bf16.mxu0 %v646
  %930 = vmatpush2.bf16.msra.mxu0 %v645
  %931 = vmatprep.subr.bf16.mxu0 %v640
  %932 = vmatpush2.bf16.msra.mxu0 %v639
  %933 = vmatprep.mubr.bf16.mxu0 %v166
  %934 = vmatmul.mubr.bf16.gmra.mxu0 %v165
  %v935 = vpop.f32.mrf.mxu0
  %v936 = vadd.f32 %v288, %v935
  %v937 = vpop.f32.mrf.mxu0
  %v938 = vadd.f32 %v292, %v937
  %v939 = vpop.f32.mrf.mxu0
  %v940 = vadd.f32 %v288, %v939
  %v941 = vpop.f32.mrf.mxu0
  %v942 = vadd.f32 %v292, %v941
  %943 = vmatprep.mubr.bf16.mxu0 %v168
  %944 = vmatmul.mubr.bf16.gmra.mxu0 %v167
  %v945 = vpop.f32.mrf.mxu0
  %v946 = vadd.f32 %v288, %v945
  %v947 = vpop.f32.mrf.mxu0
  %v948 = vadd.f32 %v292, %v947
  %v949 = vpop.f32.mrf.mxu0
  %v950 = vadd.f32 %v288, %v949
  %v951 = vpop.f32.mrf.mxu0
  %v952 = vadd.f32 %v292, %v951
  %953 = vmatprep.mubr.bf16.mxu0 %v170
  %954 = vmatmul.mubr.bf16.gmra.mxu0 %v169
  %v955 = vpop.f32.mrf.mxu0
  %v956 = vadd.f32 %v288, %v955
  %v957 = vpop.f32.mrf.mxu0
  %v958 = vadd.f32 %v292, %v957
  %v959 = vpop.f32.mrf.mxu0
  %v960 = vpop.f32.mrf.mxu0
  %961 = vdwg.mxu0
  %v962 = vpack.c.bf16 %v818, %v814
  %v963 = vpack.c.bf16 %v820, %v816
  %v964 = vpack.c.bf16 %v879, %v875
  %v965 = vpack.c.bf16 %v881, %v877
  %v966 = vpack.c.bf16 %v940, %v936
  %v967 = vpack.c.bf16 %v942, %v938
  %v968 = vpack.c.bf16 %v828, %v824
  %v969 = vpack.c.bf16 %v830, %v826
  %v970 = vpack.c.bf16 %v889, %v885
  %v971 = vpack.c.bf16 %v891, %v887
  %v972 = vpack.c.bf16 %v950, %v946
  %v973 = vpack.c.bf16 %v952, %v948
  %v974 = vpack.c.bf16 %v834, %v834
  %v975 = vpack.c.bf16 %v836, %v836
  %v976 = vpack.c.bf16 %v895, %v895
  %v977 = vpack.c.bf16 %v897, %v897
  %v978 = vpack.c.bf16 %v956, %v956
  %v979 = vpack.c.bf16 %v958, %v958
  %v998 = vunpack.c.l.b16 %v962
  %v999 = vunpack.c.l.b16 %v963
  %v1000 = vunpack.c.l.b16 %v964
  %v1001 = vunpack.c.l.b16 %v965
  %v1002 = vunpack.c.l.b16 %v966
  %v1003 = vunpack.c.l.b16 %v967
  %v1004 = vunpack.c.h.b16 %v962
  %v1005 = vunpack.c.h.b16 %v963
  %v1006 = vunpack.c.h.b16 %v964
  %v1007 = vunpack.c.h.b16 %v965
  %v1008 = vunpack.c.h.b16 %v966
  %v1009 = vunpack.c.h.b16 %v967
  %v1010 = vunpack.c.l.b16 %v968
  %v1011 = vunpack.c.l.b16 %v969
  %v1012 = vunpack.c.l.b16 %v970
  %v1013 = vunpack.c.l.b16 %v971
  %v1014 = vunpack.c.l.b16 %v972
  %v1015 = vunpack.c.l.b16 %v973
  %v1016 = vunpack.c.h.b16 %v968
  %v1017 = vunpack.c.h.b16 %v969
  %v1018 = vunpack.c.h.b16 %v970
  %v1019 = vunpack.c.h.b16 %v971
  %v1020 = vunpack.c.h.b16 %v972
  %v1021 = vunpack.c.h.b16 %v973
  %v1022 = vunpack.c.l.b16 %v974
  %v1023 = vunpack.c.l.b16 %v975
  %v1024 = vunpack.c.l.b16 %v976
  %v1025 = vunpack.c.l.b16 %v977
  %v1026 = vunpack.c.l.b16 %v978
  %v1027 = vunpack.c.l.b16 %v979
  %v1028 = vpack.c.b16 %v999, %v998
  %v1029 = vpack.c.b16 %v1001, %v1000
  %v1030 = vpack.c.b16 %v1003, %v1002
  %v1031 = vpack.c.b16 %v1005, %v1004
  %v1032 = vpack.c.b16 %v1007, %v1006
  %v1033 = vpack.c.b16 %v1009, %v1008
  %v1034 = vpack.c.b16 %v1011, %v1010
  %v1035 = vpack.c.b16 %v1013, %v1012
  %v1036 = vpack.c.b16 %v1015, %v1014
  %v1037 = vpack.c.b16 %v1017, %v1016
  %v1038 = vpack.c.b16 %v1019, %v1018
  %v1039 = vpack.c.b16 %v1021, %v1020
  %v1040 = vpack.c.b16 %v1023, %v1022
  %v1041 = vpack.c.b16 %v1025, %v1024
  %v1042 = vpack.c.b16 %v1027, %v1026
  %1058 = vst [vmem:[%s5] sm:$0xff] %v1028
  %1059 = vst [vmem:[%s5 + $0x8] sm:$0xff] %v1029
  %1060 = vst [vmem:[%s5 + $0x10] sm:$0xff] %v1030
  %1061 = vst [vmem:[%s5 + $0x18] sm:$0xff] %v1031
  %1062 = vst [vmem:[%s5 + $0x20] sm:$0xff] %v1032
  %1063 = vst [vmem:[%s5 + $0x28] sm:$0xff] %v1033
  %1064 = vst [vmem:[%s5 + $0x30] sm:$0xff] %v1034
  %1065 = vst [vmem:[%s5 + $0x38] sm:$0xff] %v1035
  %1066 = vst [vmem:[%s5 + $0x40] sm:$0xff] %v1036
  %1067 = vst [vmem:[%s5 + $0x48] sm:$0xff] %v1037
  %1068 = vst [vmem:[%s5 + $0x50] sm:$0xff] %v1038
  %1069 = vst [vmem:[%s5 + $0x58] sm:$0xff] %v1039
  %1070 = vst [vmem:[%s5 + $0x60] sm:$0x11] %v1040
  %1071 = vst [vmem:[%s5 + $0x68] sm:$0x11] %v1041
  %1072 = vst [vmem:[%s5 + $0x70] sm:$0x11] %v1042
  // Predicated region
  $region22: #{_lambda_.11} parent=0 // pred_check
    _
  $region23: #{_lambda_.11} parent=0 // pred_check_branch
    %1074 = sbr.rel (0) target = $region25
  $region24: #{_lambda_.11} parent=0 // pred_region
    _
  $region25: #{_lambda_.11} parent=0 // pred_fallthru
    _
  // Predicated region
  $region26: #{_lambda_.11} parent=0 // pred_check
    _
  $region27: #{_lambda_.11} parent=0 // pred_check_branch
    %1076 = sbr.rel (0) target = $region29
  $region28: #{_lambda_.11} parent=0 // pred_region
    _
  $region29: #{_lambda_.11} parent=0 // pred_fallthru
    _

// kernel: _lambda_.13
$region0: #{_lambda_.13}
  #allocation0 [shape = 'u32[]', space=smem, size = 0x4, offset = 0x4, fixed_abs, tag = 'smem constant byte address 0x4 - core index']
  #allocation1 [shape = 'u32[144,128]{1,0:T(1,128)}', space=vmem, size = 0x12000, scoped, tag = 'internal scratch']
  #allocation2 [shape = 'f32[34,256]{1,0:T(8,128)}', space=vmem, size = 0xa000, scoped, tag = 'scratch operand']
  %s0 = inlined_call_operand.vmem [shape: bf16[34,256], index: 0, kind: input, shape index: {}]
  %s1 = inlined_call_operand.vmem [shape: f32[1,256], index: 1, kind: input, shape index: {}]
  %s2 = inlined_call_operand.vmem [shape: f32[1,256], index: 2, kind: input, shape index: {}]
  %s3 = inlined_call_operand.vmem [shape: bf16[256,512], index: 3, kind: input, shape index: {}]
  %s4 = inlined_call_operand.vmem [shape: f32[1,512], index: 4, kind: input, shape index: {}]
  %s5 = inlined_call_operand.vmem [shape: bf16[512,256], index: 5, kind: input, shape index: {}]
  %s6 = inlined_call_operand.vmem [shape: f32[1,256], index: 6, kind: input, shape index: {}]
  %s7 = inlined_call_operand.vmem [shape: bf16[34,256], index: 7, kind: output, shape index: {}]
  %s8 = sld [smem:[#allocation0]]
  $region38: #{_lambda_.13} parent=0
    _
  %s10 = ssub.s32 1, %s8
  %s11 = scalar_select 0, %s10, %s8
  // Predicated region
  $region2: #{_lambda_.13} parent=0 // pred_check
    _
  $region3: #{_lambda_.13} parent=0 // pred_check_branch
    %13 = sbr.rel (0) target = $region5
  $region4: #{_lambda_.13} parent=0 // pred_region
    _
  $region5: #{_lambda_.13} parent=0 // pred_fallthru
    _
  // Predicated region
  $region6: #{_lambda_.13} parent=0 // pred_check
    _
  $region7: #{_lambda_.13} parent=0 // pred_check_branch
    %15 = sbr.rel (0) target = $region9
  $region8: #{_lambda_.13} parent=0 // pred_region
    _
  $region9: #{_lambda_.13} parent=0 // pred_fallthru
    _
  // Predicated region
  $region10: #{_lambda_.13} parent=0 // pred_check
    _
  $region11: #{_lambda_.13} parent=0 // pred_check_branch
    %17 = sbr.rel (0) target = $region13
  $region12: #{_lambda_.13} parent=0 // pred_region
    _
  $region13: #{_lambda_.13} parent=0 // pred_fallthru
    _
  // Predicated region
  $region14: #{_lambda_.13} parent=0 // pred_check
    _
  $region15: #{_lambda_.13} parent=0 // pred_check_branch
    %19 = sbr.rel (0) target = $region17
  $region16: #{_lambda_.13} parent=0 // pred_region
    _
  $region17: #{_lambda_.13} parent=0 // pred_fallthru
    _
  // Predicated region
  $region18: #{_lambda_.13} parent=0 // pred_check
    _
  $region19: #{_lambda_.13} parent=0 // pred_check_branch
    %21 = sbr.rel (0) target = $region21
  $region20: #{_lambda_.13} parent=0 // pred_region
    _
  $region21: #{_lambda_.13} parent=0 // pred_fallthru
    _
  // Predicated region
  $region22: #{_lambda_.13} parent=0 // pred_check
    _
  $region23: #{_lambda_.13} parent=0 // pred_check_branch
    %23 = sbr.rel (0) target = $region25
  $region24: #{_lambda_.13} parent=0 // pred_region
    _
  $region25: #{_lambda_.13} parent=0 // pred_fallthru
    _
  // Predicated region
  $region26: #{_lambda_.13} parent=0 // pred_check
    _
  $region27: #{_lambda_.13} parent=0 // pred_check_branch
    %25 = sbr.rel (0) target = $region29
  $region28: #{_lambda_.13} parent=0 // pred_region
    _
  $region29: #{_lambda_.13} parent=0 // pred_fallthru
    _
  %v26 = vld [vmem:[%s0] sm:$0xff]
  %v27 = vld [vmem:[%s0 + $0x8] sm:$0xff]
  %v28 = vld [vmem:[%s0 + $0x10] sm:$0xff]
  %v29 = vld [vmem:[%s0 + $0x18] sm:$0xff]
  %v30 = vld [vmem:[%s0 + $0x20] sm:$0x11]
  %v31 = vunpack.c.l.bf16 %v26
  %v32 = vunpack.c.h.bf16 %v26
  %v33 = vunpack.c.l.bf16 %v27
  %v34 = vunpack.c.h.bf16 %v27
  %v35 = vunpack.c.l.bf16 %v28
  %v36 = vunpack.c.h.bf16 %v28
  %v37 = vunpack.c.l.bf16 %v29
  %v38 = vunpack.c.h.bf16 %v29
  %v39 = vunpack.c.l.bf16 %v30
  %v40 = vunpack.c.h.bf16 %v30
  %v41 = vld [vmem:[%s1] sm:$0x3]
  %v42 = vld [vmem:[%s2] sm:$0x3]
  %v43 = vadd.f32 %v31, %v32
  %44 = vadd.xlane.f32.xlu0 %v43
  %v45 = vpop.xlane.xlu0 %44
  %v46 = vadd.f32 %v33, %v34
  %47 = vadd.xlane.f32.xlu0 %v46
  %v48 = vpop.xlane.xlu0 %47
  %v49 = vadd.f32 %v35, %v36
  %50 = vadd.xlane.f32.xlu0 %v49
  %v51 = vpop.xlane.xlu0 %50
  %v52 = vadd.f32 %v37, %v38
  %53 = vadd.xlane.f32.xlu0 %v52
  %v54 = vpop.xlane.xlu0 %53
  %vm55 = vcmask 1041408
  %v56 = vsel %vm55, %v39, 0.0
  %v57 = vsel %vm55, %v40, 0.0
  %v58 = vadd.f32 %v56, %v57
  %59 = vadd.xlane.f32.xlu0 %v58
  %v60 = vpop.xlane.xlu0 %59
  %v61 = vrcp.pop 256.0
  %v62 = vmul.f32 %v45, %v61
  %v63 = vmul.f32 %v48, %v61
  %v64 = vmul.f32 %v51, %v61
  %v65 = vmul.f32 %v54, %v61
  %v66 = vmul.f32 %v60, %v61
  %v67 = vsub.f32 %v31, %v62
  %v68 = vsub.f32 %v32, %v62
  %v69 = vsub.f32 %v33, %v63
  %v70 = vsub.f32 %v34, %v63
  %v71 = vsub.f32 %v35, %v64
  %v72 = vsub.f32 %v36, %v64
  %v73 = vsub.f32 %v37, %v65
  %v74 = vsub.f32 %v38, %v65
  %v75 = vsub.f32 %v39, %v66
  %v76 = vsub.f32 %v40, %v66
  %v77 = vmul.f32 %v67, %v67
  %v78 = vmul.f32 %v68, %v68
  %v79 = vmul.f32 %v69, %v69
  %v80 = vmul.f32 %v70, %v70
  %v81 = vmul.f32 %v71, %v71
  %v82 = vmul.f32 %v72, %v72
  %v83 = vmul.f32 %v73, %v73
  %v84 = vmul.f32 %v74, %v74
  %v85 = vmul.f32 %v75, %v75
  %v86 = vmul.f32 %v76, %v76
  %v87 = vadd.f32 %v77, %v78
  %88 = vadd.xlane.f32.xlu0 %v87
  %v89 = vpop.xlane.xlu0 %88
  %v90 = vadd.f32 %v79, %v80
  %91 = vadd.xlane.f32.xlu0 %v90
  %v92 = vpop.xlane.xlu0 %91
  %v93 = vadd.f32 %v81, %v82
  %94 = vadd.xlane.f32.xlu0 %v93
  %v95 = vpop.xlane.xlu0 %94
  %v96 = vadd.f32 %v83, %v84
  %97 = vadd.xlane.f32.xlu0 %v96
  %v98 = vpop.xlane.xlu0 %97
  %v99 = vsel %vm55, %v85, 0.0
  %v100 = vsel %vm55, %v86, 0.0
  %v101 = vadd.f32 %v99, %v100
  %102 = vadd.xlane.f32.xlu0 %v101
  %v103 = vpop.xlane.xlu0 %102
  %v104 = vmul.f32 %v89, %v61
  %v105 = vmul.f32 %v92, %v61
  %v106 = vmul.f32 %v95, %v61
  %v107 = vmul.f32 %v98, %v61
  %v108 = vmul.f32 %v103, %v61
  %v109 = vadd.f32 %v104, 1e-05
  %v110 = vadd.f32 %v105, 1e-05
  %v111 = vadd.f32 %v106, 1e-05
  %v112 = vadd.f32 %v107, 1e-05
  %v113 = vadd.f32 %v108, 1e-05
  %v114 = vrsqrt.pop %v109
  %v115 = vrsqrt.pop %v110
  %v116 = vrsqrt.pop %v111
  %v117 = vrsqrt.pop %v112
  %v118 = vrsqrt.pop %v113
  %v119 = vmul.f32 %v67, %v114
  %v120 = vmul.f32 %v68, %v114
  %v121 = vmul.f32 %v69, %v115
  %v122 = vmul.f32 %v70, %v115
  %v123 = vmul.f32 %v71, %v116
  %v124 = vmul.f32 %v72, %v116
  %v125 = vmul.f32 %v73, %v117
  %v126 = vmul.f32 %v74, %v117
  %v127 = vmul.f32 %v75, %v118
  %v128 = vmul.f32 %v76, %v118
  %v130 = vlaneseq
  %v131 = vshrl.u32 %v130, 7
  %v132 = vsub.s32 0, %v131
  %v133 = vrot.slane %v41, %v132
  %v134 = vlaneseq
  %v135 = vshrl.u32 %v134, 7
  %v136 = vsub.s32 1, %v135
  %v137 = vrot.slane %v41, %v136
  %v140 = vmul.f32 %v119, %v133
  %v141 = vmul.f32 %v120, %v137
  %v142 = vmul.f32 %v121, %v133
  %v143 = vmul.f32 %v122, %v137
  %v144 = vmul.f32 %v123, %v133
  %v145 = vmul.f32 %v124, %v137
  %v146 = vmul.f32 %v125, %v133
  %v147 = vmul.f32 %v126, %v137
  %v148 = vmul.f32 %v127, %v133
  %v149 = vmul.f32 %v128, %v137
  %v151 = vlaneseq
  %v152 = vshrl.u32 %v151, 7
  %v153 = vsub.s32 0, %v152
  %v154 = vrot.slane %v42, %v153
  %v155 = vlaneseq
  %v156 = vshrl.u32 %v155, 7
  %v157 = vsub.s32 1, %v156
  %v158 = vrot.slane %v42, %v157
  %v161 = vadd.f32 %v140, %v154
  %v162 = vadd.f32 %v141, %v158
  %v163 = vadd.f32 %v142, %v154
  %v164 = vadd.f32 %v143, %v158
  %v165 = vadd.f32 %v144, %v154
  %v166 = vadd.f32 %v145, %v158
  %v167 = vadd.f32 %v146, %v154
  %v168 = vadd.f32 %v147, %v158
  %v169 = vadd.f32 %v148, %v154
  %v170 = vadd.f32 %v149, %v158
  %v171 = vpack.c.bf16 %v163, %v161
  %v172 = vpack.c.bf16 %v164, %v162
  %v173 = vpack.c.bf16 %v167, %v165
  %v174 = vpack.c.bf16 %v168, %v166
  %v175 = vpack.c.bf16 %v169, %v169
  %v176 = vpack.c.bf16 %v170, %v170
  %v177 = vld [vmem:[%s6] sm:$0x3]
  %v179 = vlaneseq
  %v180 = vshrl.u32 %v179, 7
  %v181 = vsub.s32 0, %v180
  %v182 = vrot.slane %v177, %v181
  %v183 = vlaneseq
  %v184 = vshrl.u32 %v183, 7
  %v185 = vsub.s32 1, %v184
  %v186 = vrot.slane %v177, %v185
  %v189 = vadd.f32 %v31, %v182
  %v190 = vadd.f32 %v32, %v186
  %v191 = vadd.f32 %v33, %v182
  %v192 = vadd.f32 %v34, %v186
  %v193 = vadd.f32 %v35, %v182
  %v194 = vadd.f32 %v36, %v186
  %v195 = vadd.f32 %v37, %v182
  %v196 = vadd.f32 %v38, %v186
  %v197 = vadd.f32 %v39, %v182
  %v198 = vadd.f32 %v40, %v186
  %199 = vst [vmem:[#allocation2] sm:$0xff] %v189
  %200 = vst [vmem:[#allocation2 + $0x8] sm:$0xff] %v190
  %201 = vst [vmem:[#allocation2 + $0x10] sm:$0xff] %v191
  %202 = vst [vmem:[#allocation2 + $0x18] sm:$0xff] %v192
  %203 = vst [vmem:[#allocation2 + $0x20] sm:$0xff] %v193
  %204 = vst [vmem:[#allocation2 + $0x28] sm:$0xff] %v194
  %205 = vst [vmem:[#allocation2 + $0x30] sm:$0xff] %v195
  %206 = vst [vmem:[#allocation2 + $0x38] sm:$0xff] %v196
  %207 = vst [vmem:[#allocation2 + $0x40] sm:$0x3] %v197
  %208 = vst [vmem:[#allocation2 + $0x48] sm:$0x3] %v198
  %v209 = vld [vmem:[%s3] sm:$0xff]
  %v210 = vld [vmem:[%s3 + $0x8] sm:$0xff]
  %v211 = vld [vmem:[%s3 + $0x10] sm:$0xff]
  %v212 = vld [vmem:[%s3 + $0x18] sm:$0xff]
  %v213 = vld [vmem:[%s3 + $0x20] sm:$0xff]
  %v214 = vld [vmem:[%s3 + $0x28] sm:$0xff]
  %v215 = vld [vmem:[%s3 + $0x30] sm:$0xff]
  %v216 = vld [vmem:[%s3 + $0x38] sm:$0xff]
  %v217 = vld [vmem:[%s3 + $0x40] sm:$0xff]
  %v218 = vld [vmem:[%s3 + $0x48] sm:$0xff]
  %v219 = vld [vmem:[%s3 + $0x50] sm:$0xff]
  %v220 = vld [vmem:[%s3 + $0x58] sm:$0xff]
  %v221 = vld [vmem:[%s3 + $0x60] sm:$0xff]
  %v222 = vld [vmem:[%s3 + $0x68] sm:$0xff]
  %v223 = vld [vmem:[%s3 + $0x70] sm:$0xff]
  %v224 = vld [vmem:[%s3 + $0x78] sm:$0xff]
  %v225 = vld [vmem:[%s3 + $0x80] sm:$0xff]
  %v226 = vld [vmem:[%s3 + $0x88] sm:$0xff]
  %v227 = vld [vmem:[%s3 + $0x90] sm:$0xff]
  %v228 = vld [vmem:[%s3 + $0x98] sm:$0xff]
  %v229 = vld [vmem:[%s3 + $0xa0] sm:$0xff]
  %v230 = vld [vmem:[%s3 + $0xa8] sm:$0xff]
  %v231 = vld [vmem:[%s3 + $0xb0] sm:$0xff]
  %v232 = vld [vmem:[%s3 + $0xb8] sm:$0xff]
  %v233 = vld [vmem:[%s3 + $0xc0] sm:$0xff]
  %v234 = vld [vmem:[%s3 + $0xc8] sm:$0xff]
  %v235 = vld [vmem:[%s3 + $0xd0] sm:$0xff]
  %v236 = vld [vmem:[%s3 + $0xd8] sm:$0xff]
  %v237 = vld [vmem:[%s3 + $0xe0] sm:$0xff]
  %v238 = vld [vmem:[%s3 + $0xe8] sm:$0xff]
  %v239 = vld [vmem:[%s3 + $0xf0] sm:$0xff]
  %v240 = vld [vmem:[%s3 + $0xf8] sm:$0xff]
  %v241 = vld [vmem:[%s3 + $0x100] sm:$0xff]
  %v242 = vld [vmem:[%s3 + $0x108] sm:$0xff]
  %v243 = vld [vmem:[%s3 + $0x110] sm:$0xff]
  %v244 = vld [vmem:[%s3 + $0x118] sm:$0xff]
  %v245 = vld [vmem:[%s3 + $0x120] sm:$0xff]
  %v246 = vld [vmem:[%s3 + $0x128] sm:$0xff]
  %v247 = vld [vmem:[%s3 + $0x130] sm:$0xff]
  %v248 = vld [vmem:[%s3 + $0x138] sm:$0xff]
  %v249 = vld [vmem:[%s3 + $0x140] sm:$0xff]
  %v250 = vld [vmem:[%s3 + $0x148] sm:$0xff]
  %v251 = vld [vmem:[%s3 + $0x150] sm:$0xff]
  %v252 = vld [vmem:[%s3 + $0x158] sm:$0xff]
  %v253 = vld [vmem:[%s3 + $0x160] sm:$0xff]
  %v254 = vld [vmem:[%s3 + $0x168] sm:$0xff]
  %v255 = vld [vmem:[%s3 + $0x170] sm:$0xff]
  %v256 = vld [vmem:[%s3 + $0x178] sm:$0xff]
  %v257 = vld [vmem:[%s3 + $0x180] sm:$0xff]
  %v258 = vld [vmem:[%s3 + $0x188] sm:$0xff]
  %v259 = vld [vmem:[%s3 + $0x190] sm:$0xff]
  %v260 = vld [vmem:[%s3 + $0x198] sm:$0xff]
  %v261 = vld [vmem:[%s3 + $0x1a0] sm:$0xff]
  %v262 = vld [vmem:[%s3 + $0x1a8] sm:$0xff]
  %v263 = vld [vmem:[%s3 + $0x1b0] sm:$0xff]
  %v264 = vld [vmem:[%s3 + $0x1b8] sm:$0xff]
  %v265 = vld [vmem:[%s3 + $0x1c0] sm:$0xff]
  %v266 = vld [vmem:[%s3 + $0x1c8] sm:$0xff]
  %v267 = vld [vmem:[%s3 + $0x1d0] sm:$0xff]
  %v268 = vld [vmem:[%s3 + $0x1d8] sm:$0xff]
  %v269 = vld [vmem:[%s3 + $0x1e0] sm:$0xff]
  %v270 = vld [vmem:[%s3 + $0x1e8] sm:$0xff]
  %v271 = vld [vmem:[%s3 + $0x1f0] sm:$0xff]
  %v272 = vld [vmem:[%s3 + $0x1f8] sm:$0xff]
  %v273 = vld [vmem:[%s4] sm:$0xf]
  %v275 = vlaneseq
  %v276 = vshrl.u32 %v275, 7
  %v277 = vsub.s32 0, %v276
  %v278 = vrot.slane %v273, %v277
  %v279 = vlaneseq
  %v280 = vshrl.u32 %v279, 7
  %v281 = vsub.s32 1, %v280
  %v282 = vrot.slane %v273, %v281
  %v283 = vlaneseq
  %v284 = vshrl.u32 %v283, 7
  %v285 = vsub.s32 2, %v284
  %v286 = vrot.slane %v273, %v285
  %v287 = vlaneseq
  %v288 = vshrl.u32 %v287, 7
  %v289 = vsub.s32 3, %v288
  %v290 = vrot.slane %v273, %v289
  %v359 = vunpack.c.l.b16 %v209
  %v360 = vunpack.c.h.b16 %v209
  %v361 = vunpack.c.l.b16 %v210
  %v362 = vunpack.c.h.b16 %v210
  %v363 = vunpack.c.l.b16 %v211
  %v364 = vunpack.c.h.b16 %v211
  %v365 = vunpack.c.l.b16 %v212
  %v366 = vunpack.c.h.b16 %v212
  %v367 = vunpack.c.l.b16 %v213
  %v368 = vunpack.c.h.b16 %v213
  %v369 = vunpack.c.l.b16 %v214
  %v370 = vunpack.c.h.b16 %v214
  %v371 = vunpack.c.l.b16 %v215
  %v372 = vunpack.c.h.b16 %v215
  %v373 = vunpack.c.l.b16 %v216
  %v374 = vunpack.c.h.b16 %v216
  %v375 = vunpack.c.l.b16 %v217
  %v376 = vunpack.c.h.b16 %v217
  %v377 = vunpack.c.l.b16 %v218
  %v378 = vunpack.c.h.b16 %v218
  %v379 = vunpack.c.l.b16 %v219
  %v380 = vunpack.c.h.b16 %v219
  %v381 = vunpack.c.l.b16 %v220
  %v382 = vunpack.c.h.b16 %v220
  %v383 = vunpack.c.l.b16 %v221
  %v384 = vunpack.c.h.b16 %v221
  %v385 = vunpack.c.l.b16 %v222
  %v386 = vunpack.c.h.b16 %v222
  %v387 = vunpack.c.l.b16 %v223
  %v388 = vunpack.c.h.b16 %v223
  %v389 = vunpack.c.l.b16 %v224
  %v390 = vunpack.c.h.b16 %v224
  %v391 = vunpack.c.l.b16 %v225
  %v392 = vunpack.c.h.b16 %v225
  %v393 = vunpack.c.l.b16 %v226
  %v394 = vunpack.c.h.b16 %v226
  %v395 = vunpack.c.l.b16 %v227
  %v396 = vunpack.c.h.b16 %v227
  %v397 = vunpack.c.l.b16 %v228
  %v398 = vunpack.c.h.b16 %v228
  %v399 = vunpack.c.l.b16 %v229
  %v400 = vunpack.c.h.b16 %v229
  %v401 = vunpack.c.l.b16 %v230
  %v402 = vunpack.c.h.b16 %v230
  %v403 = vunpack.c.l.b16 %v231
  %v404 = vunpack.c.h.b16 %v231
  %v405 = vunpack.c.l.b16 %v232
  %v406 = vunpack.c.h.b16 %v232
  %v407 = vunpack.c.l.b16 %v233
  %v408 = vunpack.c.h.b16 %v233
  %v409 = vunpack.c.l.b16 %v234
  %v410 = vunpack.c.h.b16 %v234
  %v411 = vunpack.c.l.b16 %v235
  %v412 = vunpack.c.h.b16 %v235
  %v413 = vunpack.c.l.b16 %v236
  %v414 = vunpack.c.h.b16 %v236
  %v415 = vunpack.c.l.b16 %v237
  %v416 = vunpack.c.h.b16 %v237
  %v417 = vunpack.c.l.b16 %v238
  %v418 = vunpack.c.h.b16 %v238
  %v419 = vunpack.c.l.b16 %v239
  %v420 = vunpack.c.h.b16 %v239
  %v421 = vunpack.c.l.b16 %v240
  %v422 = vunpack.c.h.b16 %v240
  %v423 = vunpack.c.l.b16 %v241
  %v424 = vunpack.c.h.b16 %v241
  %v425 = vunpack.c.l.b16 %v242
  %v426 = vunpack.c.h.b16 %v242
  %v427 = vunpack.c.l.b16 %v243
  %v428 = vunpack.c.h.b16 %v243
  %v429 = vunpack.c.l.b16 %v244
  %v430 = vunpack.c.h.b16 %v244
  %v431 = vunpack.c.l.b16 %v245
  %v432 = vunpack.c.h.b16 %v245
  %v433 = vunpack.c.l.b16 %v246
  %v434 = vunpack.c.h.b16 %v246
  %v435 = vunpack.c.l.b16 %v247
  %v436 = vunpack.c.h.b16 %v247
  %v437 = vunpack.c.l.b16 %v248
  %v438 = vunpack.c.h.b16 %v248
  %v439 = vunpack.c.l.b16 %v249
  %v440 = vunpack.c.h.b16 %v249
  %v441 = vunpack.c.l.b16 %v250
  %v442 = vunpack.c.h.b16 %v250
  %v443 = vunpack.c.l.b16 %v251
  %v444 = vunpack.c.h.b16 %v251
  %v445 = vunpack.c.l.b16 %v252
  %v446 = vunpack.c.h.b16 %v252
  %v447 = vunpack.c.l.b16 %v253
  %v448 = vunpack.c.h.b16 %v253
  %v449 = vunpack.c.l.b16 %v254
  %v450 = vunpack.c.h.b16 %v254
  %v451 = vunpack.c.l.b16 %v255
  %v452 = vunpack.c.h.b16 %v255
  %v453 = vunpack.c.l.b16 %v256
  %v454 = vunpack.c.h.b16 %v256
  %v455 = vunpack.c.l.b16 %v257
  %v456 = vunpack.c.h.b16 %v257
  %v457 = vunpack.c.l.b16 %v258
  %v458 = vunpack.c.h.b16 %v258
  %v459 = vunpack.c.l.b16 %v259
  %v460 = vunpack.c.h.b16 %v259
  %v461 = vunpack.c.l.b16 %v260
  %v462 = vunpack.c.h.b16 %v260
  %v463 = vunpack.c.l.b16 %v261
  %v464 = vunpack.c.h.b16 %v261
  %v465 = vunpack.c.l.b16 %v262
  %v466 = vunpack.c.h.b16 %v262
  %v467 = vunpack.c.l.b16 %v263
  %v468 = vunpack.c.h.b16 %v263
  %v469 = vunpack.c.l.b16 %v264
  %v470 = vunpack.c.h.b16 %v264
  %v471 = vunpack.c.l.b16 %v265
  %v472 = vunpack.c.h.b16 %v265
  %v473 = vunpack.c.l.b16 %v266
  %v474 = vunpack.c.h.b16 %v266
  %v475 = vunpack.c.l.b16 %v267
  %v476 = vunpack.c.h.b16 %v267
  %v477 = vunpack.c.l.b16 %v268
  %v478 = vunpack.c.h.b16 %v268
  %v479 = vunpack.c.l.b16 %v269
  %v480 = vunpack.c.h.b16 %v269
  %v481 = vunpack.c.l.b16 %v270
  %v482 = vunpack.c.h.b16 %v270
  %v483 = vunpack.c.l.b16 %v271
  %v484 = vunpack.c.h.b16 %v271
  %v485 = vunpack.c.l.b16 %v272
  %v486 = vunpack.c.h.b16 %v272
  %v487 = vpack.c.b16 %v363, %v359
  %v488 = vpack.c.b16 %v364, %v360
  %v489 = vpack.c.b16 %v365, %v361
  %v490 = vpack.c.b16 %v366, %v362
  %v491 = vpack.c.b16 %v371, %v367
  %v492 = vpack.c.b16 %v372, %v368
  %v493 = vpack.c.b16 %v373, %v369
  %v494 = vpack.c.b16 %v374, %v370
  %v495 = vpack.c.b16 %v379, %v375
  %v496 = vpack.c.b16 %v380, %v376
  %v497 = vpack.c.b16 %v381, %v377
  %v498 = vpack.c.b16 %v382, %v378
  %v499 = vpack.c.b16 %v387, %v383
  %v500 = vpack.c.b16 %v388, %v384
  %v501 = vpack.c.b16 %v389, %v385
  %v502 = vpack.c.b16 %v390, %v386
  %v503 = vpack.c.b16 %v395, %v391
  %v504 = vpack.c.b16 %v396, %v392
  %v505 = vpack.c.b16 %v397, %v393
  %v506 = vpack.c.b16 %v398, %v394
  %v507 = vpack.c.b16 %v403, %v399
  %v508 = vpack.c.b16 %v404, %v400
  %v509 = vpack.c.b16 %v405, %v401
  %v510 = vpack.c.b16 %v406, %v402
  %v511 = vpack.c.b16 %v411, %v407
  %v512 = vpack.c.b16 %v412, %v408
  %v513 = vpack.c.b16 %v413, %v409
  %v514 = vpack.c.b16 %v414, %v410
  %v515 = vpack.c.b16 %v419, %v415
  %v516 = vpack.c.b16 %v420, %v416
  %v517 = vpack.c.b16 %v421, %v417
  %v518 = vpack.c.b16 %v422, %v418
  %v519 = vpack.c.b16 %v427, %v423
  %v520 = vpack.c.b16 %v428, %v424
  %v521 = vpack.c.b16 %v429, %v425
  %v522 = vpack.c.b16 %v430, %v426
  %v523 = vpack.c.b16 %v435, %v431
  %v524 = vpack.c.b16 %v436, %v432
  %v525 = vpack.c.b16 %v437, %v433
  %v526 = vpack.c.b16 %v438, %v434
  %v527 = vpack.c.b16 %v443, %v439
  %v528 = vpack.c.b16 %v444, %v440
  %v529 = vpack.c.b16 %v445, %v441
  %v530 = vpack.c.b16 %v446, %v442
  %v531 = vpack.c.b16 %v451, %v447
  %v532 = vpack.c.b16 %v452, %v448
  %v533 = vpack.c.b16 %v453, %v449
  %v534 = vpack.c.b16 %v454, %v450
  %v535 = vpack.c.b16 %v459, %v455
  %v536 = vpack.c.b16 %v460, %v456
  %v537 = vpack.c.b16 %v461, %v457
  %v538 = vpack.c.b16 %v462, %v458
  %v539 = vpack.c.b16 %v467, %v463
  %v540 = vpack.c.b16 %v468, %v464
  %v541 = vpack.c.b16 %v469, %v465
  %v542 = vpack.c.b16 %v470, %v466
  %v543 = vpack.c.b16 %v475, %v471
  %v544 = vpack.c.b16 %v476, %v472
  %v545 = vpack.c.b16 %v477, %v473
  %v546 = vpack.c.b16 %v478, %v474
  %v547 = vpack.c.b16 %v483, %v479
  %v548 = vpack.c.b16 %v484, %v480
  %v549 = vpack.c.b16 %v485, %v481
  %v550 = vpack.c.b16 %v486, %v482
  %615 = vmatprep.subr.bf16.mxu0 %v516
  %616 = vmatpush1.bf16.msra.mxu0 %v515
  %617 = vmatprep.subr.bf16.mxu0 %v512
  %618 = vmatpush1.bf16.msra.mxu0 %v511
  %619 = vmatprep.subr.bf16.mxu0 %v508
  %620 = vmatpush1.bf16.msra.mxu0 %v507
  %621 = vmatprep.subr.bf16.mxu0 %v504
  %622 = vmatpush1.bf16.msra.mxu0 %v503
  %623 = vmatprep.subr.bf16.mxu0 %v500
  %624 = vmatpush1.bf16.msra.mxu0 %v499
  %625 = vmatprep.subr.bf16.mxu0 %v496
  %626 = vmatpush1.bf16.msra.mxu0 %v495
  %627 = vmatprep.subr.bf16.mxu0 %v492
  %628 = vmatpush1.bf16.msra.mxu0 %v491
  %629 = vmatprep.subr.bf16.mxu0 %v488
  %630 = vmatpush1.bf16.msra.mxu0 %v487
  %631 = vmatprep.subr.bf16.mxu0 %v548
  %632 = vmatpush2.bf16.msra.mxu0 %v547
  %633 = vmatprep.subr.bf16.mxu0 %v544
  %634 = vmatpush2.bf16.msra.mxu0 %v543
  %635 = vmatprep.subr.bf16.mxu0 %v540
  %636 = vmatpush2.bf16.msra.mxu0 %v539
  %637 = vmatprep.subr.bf16.mxu0 %v536
  %638 = vmatpush2.bf16.msra.mxu0 %v535
  %639 = vmatprep.subr.bf16.mxu0 %v532
  %640 = vmatpush2.bf16.msra.mxu0 %v531
  %641 = vmatprep.subr.bf16.mxu0 %v528
  %642 = vmatpush2.bf16.msra.mxu0 %v527
  %643 = vmatprep.subr.bf16.mxu0 %v524
  %644 = vmatpush2.bf16.msra.mxu0 %v523
  %645 = vmatprep.subr.bf16.mxu0 %v520
  %646 = vmatpush2.bf16.msra.mxu0 %v519
  %647 = vmatprep.mubr.bf16.mxu0 %v172
  %648 = vmatmul.mubr.bf16.gmra.mxu0 %v171
  %v649 = vpop.f32.mrf.mxu0
  %v650 = vadd.f32 %v278, %v649
  %v651 = vpop.f32.mrf.mxu0
  %v652 = vadd.f32 %v282, %v651
  %v653 = vpop.f32.mrf.mxu0
  %v654 = vadd.f32 %v278, %v653
  %v655 = vpop.f32.mrf.mxu0
  %v656 = vadd.f32 %v282, %v655
  %657 = vmatprep.mubr.bf16.mxu0 %v174
  %658 = vmatmul.mubr.bf16.gmra.mxu0 %v173
  %v659 = vpop.f32.mrf.mxu0
  %v660 = vadd.f32 %v278, %v659
  %v661 = vpop.f32.mrf.mxu0
  %v662 = vadd.f32 %v282, %v661
  %v663 = vpop.f32.mrf.mxu0
  %v664 = vadd.f32 %v278, %v663
  %v665 = vpop.f32.mrf.mxu0
  %v666 = vadd.f32 %v282, %v665
  %667 = vmatprep.mubr.bf16.mxu0 %v176
  %668 = vmatmul.mubr.bf16.gmra.mxu0 %v175
  %v669 = vpop.f32.mrf.mxu0
  %v670 = vadd.f32 %v278, %v669
  %v671 = vpop.f32.mrf.mxu0
  %v672 = vadd.f32 %v282, %v671
  %v673 = vpop.f32.mrf.mxu0
  %v674 = vpop.f32.mrf.mxu0
  %675 = vdwg.mxu0
  %676 = vmatprep.subr.bf16.mxu0 %v518
  %677 = vmatpush1.bf16.msra.mxu0 %v517
  %678 = vmatprep.subr.bf16.mxu0 %v514
  %679 = vmatpush1.bf16.msra.mxu0 %v513
  %680 = vmatprep.subr.bf16.mxu0 %v510
  %681 = vmatpush1.bf16.msra.mxu0 %v509
  %682 = vmatprep.subr.bf16.mxu0 %v506
  %683 = vmatpush1.bf16.msra.mxu0 %v505
  %684 = vmatprep.subr.bf16.mxu0 %v502
  %685 = vmatpush1.bf16.msra.mxu0 %v501
  %686 = vmatprep.subr.bf16.mxu0 %v498
  %687 = vmatpush1.bf16.msra.mxu0 %v497
  %688 = vmatprep.subr.bf16.mxu0 %v494
  %689 = vmatpush1.bf16.msra.mxu0 %v493
  %690 = vmatprep.subr.bf16.mxu0 %v490
  %691 = vmatpush1.bf16.msra.mxu0 %v489
  %692 = vmatprep.subr.bf16.mxu0 %v550
  %693 = vmatpush2.bf16.msra.mxu0 %v549
  %694 = vmatprep.subr.bf16.mxu0 %v546
  %695 = vmatpush2.bf16.msra.mxu0 %v545
  %696 = vmatprep.subr.bf16.mxu0 %v542
  %697 = vmatpush2.bf16.msra.mxu0 %v541
  %698 = vmatprep.subr.bf16.mxu0 %v538
  %699 = vmatpush2.bf16.msra.mxu0 %v537
  %700 = vmatprep.subr.bf16.mxu0 %v534
  %701 = vmatpush2.bf16.msra.mxu0 %v533
  %702 = vmatprep.subr.bf16.mxu0 %v530
  %703 = vmatpush2.bf16.msra.mxu0 %v529
  %704 = vmatprep.subr.bf16.mxu0 %v526
  %705 = vmatpush2.bf16.msra.mxu0 %v525
  %706 = vmatprep.subr.bf16.mxu0 %v522
  %707 = vmatpush2.bf16.msra.mxu0 %v521
  %708 = vmatprep.mubr.bf16.mxu0 %v172
  %709 = vmatmul.mubr.bf16.gmra.mxu0 %v171
  %v710 = vpop.f32.mrf.mxu0
  %v711 = vadd.f32 %v286, %v710
  %v712 = vpop.f32.mrf.mxu0
  %v713 = vadd.f32 %v290, %v712
  %v714 = vpop.f32.mrf.mxu0
  %v715 = vadd.f32 %v286, %v714
  %v716 = vpop.f32.mrf.mxu0
  %v717 = vadd.f32 %v290, %v716
  %718 = vmatprep.mubr.bf16.mxu0 %v174
  %719 = vmatmul.mubr.bf16.gmra.mxu0 %v173
  %v720 = vpop.f32.mrf.mxu0
  %v721 = vadd.f32 %v286, %v720
  %v722 = vpop.f32.mrf.mxu0
  %v723 = vadd.f32 %v290, %v722
  %v724 = vpop.f32.mrf.mxu0
  %v725 = vadd.f32 %v286, %v724
  %v726 = vpop.f32.mrf.mxu0
  %v727 = vadd.f32 %v290, %v726
  %728 = vmatprep.mubr.bf16.mxu0 %v176
  %729 = vmatmul.mubr.bf16.gmra.mxu0 %v175
  %v730 = vpop.f32.mrf.mxu0
  %v731 = vadd.f32 %v286, %v730
  %v732 = vpop.f32.mrf.mxu0
  %v733 = vadd.f32 %v290, %v732
  %v734 = vpop.f32.mrf.mxu0
  %v735 = vpop.f32.mrf.mxu0
  %736 = vdwg.mxu0
  %v737 = vmul.f32 %v650, 0.5
  %v738 = vmul.f32 %v652, 0.5
  %v739 = vmul.f32 %v711, 0.5
  %v740 = vmul.f32 %v713, 0.5
  %v741 = vmul.f32 %v654, 0.5
  %v742 = vmul.f32 %v656, 0.5
  %v743 = vmul.f32 %v715, 0.5
  %v744 = vmul.f32 %v717, 0.5
  %v745 = vmul.f32 %v660, 0.5
  %v746 = vmul.f32 %v662, 0.5
  %v747 = vmul.f32 %v721, 0.5
  %v748 = vmul.f32 %v723, 0.5
  %v749 = vmul.f32 %v664, 0.5
  %v750 = vmul.f32 %v666, 0.5
  %v751 = vmul.f32 %v725, 0.5
  %v752 = vmul.f32 %v727, 0.5
  %v753 = vmul.f32 %v670, 0.5
  %v754 = vmul.f32 %v672, 0.5
  %v755 = vmul.f32 %v731, 0.5
  %v756 = vmul.f32 %v733, 0.5
  %v757 = vmul.f32 %v650, 0.044715
  %v758 = vmul.f32 %v652, 0.044715
  %v759 = vmul.f32 %v711, 0.044715
  %v760 = vmul.f32 %v713, 0.044715
  %v761 = vmul.f32 %v654, 0.044715
  %v762 = vmul.f32 %v656, 0.044715
  %v763 = vmul.f32 %v715, 0.044715
  %v764 = vmul.f32 %v717, 0.044715
  %v765 = vmul.f32 %v660, 0.044715
  %v766 = vmul.f32 %v662, 0.044715
  %v767 = vmul.f32 %v721, 0.044715
  %v768 = vmul.f32 %v723, 0.044715
  %v769 = vmul.f32 %v664, 0.044715
  %v770 = vmul.f32 %v666, 0.044715
  %v771 = vmul.f32 %v725, 0.044715
  %v772 = vmul.f32 %v727, 0.044715
  %v773 = vmul.f32 %v670, 0.044715
  %v774 = vmul.f32 %v672, 0.044715
  %v775 = vmul.f32 %v731, 0.044715
  %v776 = vmul.f32 %v733, 0.044715
  %v777 = vmul.f32 %v757, %v650
  %v778 = vmul.f32 %v758, %v652
  %v779 = vmul.f32 %v759, %v711
  %v780 = vmul.f32 %v760, %v713
  %v781 = vmul.f32 %v761, %v654
  %v782 = vmul.f32 %v762, %v656
  %v783 = vmul.f32 %v763, %v715
  %v784 = vmul.f32 %v764, %v717
  %v785 = vmul.f32 %v765, %v660
  %v786 = vmul.f32 %v766, %v662
  %v787 = vmul.f32 %v767, %v721
  %v788 = vmul.f32 %v768, %v723
  %v789 = vmul.f32 %v769, %v664
  %v790 = vmul.f32 %v770, %v666
  %v791 = vmul.f32 %v771, %v725
  %v792 = vmul.f32 %v772, %v727
  %v793 = vmul.f32 %v773, %v670
  %v794 = vmul.f32 %v774, %v672
  %v795 = vmul.f32 %v775, %v731
  %v796 = vmul.f32 %v776, %v733
  %v797 = vmul.f32 %v777, %v650
  %v798 = vmul.f32 %v778, %v652
  %v799 = vmul.f32 %v779, %v711
  %v800 = vmul.f32 %v780, %v713
  %v801 = vmul.f32 %v781, %v654
  %v802 = vmul.f32 %v782, %v656
  %v803 = vmul.f32 %v783, %v715
  %v804 = vmul.f32 %v784, %v717
  %v805 = vmul.f32 %v785, %v660
  %v806 = vmul.f32 %v786, %v662
  %v807 = vmul.f32 %v787, %v721
  %v808 = vmul.f32 %v788, %v723
  %v809 = vmul.f32 %v789, %v664
  %v810 = vmul.f32 %v790, %v666
  %v811 = vmul.f32 %v791, %v725
  %v812 = vmul.f32 %v792, %v727
  %v813 = vmul.f32 %v793, %v670
  %v814 = vmul.f32 %v794, %v672
  %v815 = vmul.f32 %v795, %v731
  %v816 = vmul.f32 %v796, %v733
  %v817 = vadd.f32 %v650, %v797
  %v818 = vadd.f32 %v652, %v798
  %v819 = vadd.f32 %v711, %v799
  %v820 = vadd.f32 %v713, %v800
  %v821 = vadd.f32 %v654, %v801
  %v822 = vadd.f32 %v656, %v802
  %v823 = vadd.f32 %v715, %v803
  %v824 = vadd.f32 %v717, %v804
  %v825 = vadd.f32 %v660, %v805
  %v826 = vadd.f32 %v662, %v806
  %v827 = vadd.f32 %v721, %v807
  %v828 = vadd.f32 %v723, %v808
  %v829 = vadd.f32 %v664, %v809
  %v830 = vadd.f32 %v666, %v810
  %v831 = vadd.f32 %v725, %v811
  %v832 = vadd.f32 %v727, %v812
  %v833 = vadd.f32 %v670, %v813
  %v834 = vadd.f32 %v672, %v814
  %v835 = vadd.f32 %v731, %v815
  %v836 = vadd.f32 %v733, %v816
  %v837 = vmul.f32 %v817, 0.7978846
  %v838 = vmul.f32 %v818, 0.7978846
  %v839 = vmul.f32 %v819, 0.7978846
  %v840 = vmul.f32 %v820, 0.7978846
  %v841 = vmul.f32 %v821, 0.7978846
  %v842 = vmul.f32 %v822, 0.7978846
  %v843 = vmul.f32 %v823, 0.7978846
  %v844 = vmul.f32 %v824, 0.7978846
  %v845 = vmul.f32 %v825, 0.7978846
  %v846 = vmul.f32 %v826, 0.7978846
  %v847 = vmul.f32 %v827, 0.7978846
  %v848 = vmul.f32 %v828, 0.7978846
  %v849 = vmul.f32 %v829, 0.7978846
  %v850 = vmul.f32 %v830, 0.7978846
  %v851 = vmul.f32 %v831, 0.7978846
  %v852 = vmul.f32 %v832, 0.7978846
  %v853 = vmul.f32 %v833, 0.7978846
  %v854 = vmul.f32 %v834, 0.7978846
  %v855 = vmul.f32 %v835, 0.7978846
  %v856 = vmul.f32 %v836, 0.7978846
  %v857 = vtanh.pop %v837
  %v858 = vtanh.pop %v838
  %v859 = vtanh.pop %v839
  %v860 = vtanh.pop %v840
  %v861 = vtanh.pop %v841
  %v862 = vtanh.pop %v842
  %v863 = vtanh.pop %v843
  %v864 = vtanh.pop %v844
  %v865 = vtanh.pop %v845
  %v866 = vtanh.pop %v846
  %v867 = vtanh.pop %v847
  %v868 = vtanh.pop %v848
  %v869 = vtanh.pop %v849
  %v870 = vtanh.pop %v850
  %v871 = vtanh.pop %v851
  %v872 = vtanh.pop %v852
  %v873 = vtanh.pop %v853
  %v874 = vtanh.pop %v854
  %v875 = vtanh.pop %v855
  %v876 = vtanh.pop %v856
  %v877 = vadd.f32 %v857, 1.0
  %v878 = vadd.f32 %v858, 1.0
  %v879 = vadd.f32 %v859, 1.0
  %v880 = vadd.f32 %v860, 1.0
  %v881 = vadd.f32 %v861, 1.0
  %v882 = vadd.f32 %v862, 1.0
  %v883 = vadd.f32 %v863, 1.0
  %v884 = vadd.f32 %v864, 1.0
  %v885 = vadd.f32 %v865, 1.0
  %v886 = vadd.f32 %v866, 1.0
  %v887 = vadd.f32 %v867, 1.0
  %v888 = vadd.f32 %v868, 1.0
  %v889 = vadd.f32 %v869, 1.0
  %v890 = vadd.f32 %v870, 1.0
  %v891 = vadd.f32 %v871, 1.0
  %v892 = vadd.f32 %v872, 1.0
  %v893 = vadd.f32 %v873, 1.0
  %v894 = vadd.f32 %v874, 1.0
  %v895 = vadd.f32 %v875, 1.0
  %v896 = vadd.f32 %v876, 1.0
  %v897 = vmul.f32 %v737, %v877
  %v898 = vmul.f32 %v738, %v878
  %v899 = vmul.f32 %v739, %v879
  %v900 = vmul.f32 %v740, %v880
  %v901 = vmul.f32 %v741, %v881
  %v902 = vmul.f32 %v742, %v882
  %v903 = vmul.f32 %v743, %v883
  %v904 = vmul.f32 %v744, %v884
  %v905 = vmul.f32 %v745, %v885
  %v906 = vmul.f32 %v746, %v886
  %v907 = vmul.f32 %v747, %v887
  %v908 = vmul.f32 %v748, %v888
  %v909 = vmul.f32 %v749, %v889
  %v910 = vmul.f32 %v750, %v890
  %v911 = vmul.f32 %v751, %v891
  %v912 = vmul.f32 %v752, %v892
  %v913 = vmul.f32 %v753, %v893
  %v914 = vmul.f32 %v754, %v894
  %v915 = vmul.f32 %v755, %v895
  %v916 = vmul.f32 %v756, %v896
  %v917 = vld [vmem:[#allocation2] sm:$0xff]
  %v918 = vld [vmem:[#allocation2 + $0x8] sm:$0xff]
  %v919 = vld [vmem:[#allocation2 + $0x10] sm:$0xff]
  %v920 = vld [vmem:[#allocation2 + $0x18] sm:$0xff]
  %v921 = vld [vmem:[#allocation2 + $0x20] sm:$0xff]
  %v922 = vld [vmem:[#allocation2 + $0x28] sm:$0xff]
  %v923 = vld [vmem:[#allocation2 + $0x30] sm:$0xff]
  %v924 = vld [vmem:[#allocation2 + $0x38] sm:$0xff]
  %v925 = vld [vmem:[#allocation2 + $0x40] sm:$0x3]
  %v926 = vld [vmem:[#allocation2 + $0x48] sm:$0x3]
  %v927 = vpack.c.bf16 %v901, %v897
  %v928 = vpack.c.bf16 %v902, %v898
  %v929 = vpack.c.bf16 %v903, %v899
  %v930 = vpack.c.bf16 %v904, %v900
  %v931 = vpack.c.bf16 %v909, %v905
  %v932 = vpack.c.bf16 %v910, %v906
  %v933 = vpack.c.bf16 %v911, %v907
  %v934 = vpack.c.bf16 %v912, %v908
  %v935 = vpack.c.bf16 %v913, %v913
  %v936 = vpack.c.bf16 %v914, %v914
  %v937 = vpack.c.bf16 %v915, %v915
  %v938 = vpack.c.bf16 %v916, %v916
  %v939 = vld [vmem:[%s5] sm:$0xff]
  %v940 = vld [vmem:[%s5 + $0x8] sm:$0xff]
  %v941 = vld [vmem:[%s5 + $0x10] sm:$0xff]
  %v942 = vld [vmem:[%s5 + $0x18] sm:$0xff]
  %v943 = vld [vmem:[%s5 + $0x20] sm:$0xff]
  %v944 = vld [vmem:[%s5 + $0x28] sm:$0xff]
  %v945 = vld [vmem:[%s5 + $0x30] sm:$0xff]
  %v946 = vld [vmem:[%s5 + $0x38] sm:$0xff]
  %v947 = vld [vmem:[%s5 + $0x40] sm:$0xff]
  %v948 = vld [vmem:[%s5 + $0x48] sm:$0xff]
  %v949 = vld [vmem:[%s5 + $0x50] sm:$0xff]
  %v950 = vld [vmem:[%s5 + $0x58] sm:$0xff]
  %v951 = vld [vmem:[%s5 + $0x60] sm:$0xff]
  %v952 = vld [vmem:[%s5 + $0x68] sm:$0xff]
  %v953 = vld [vmem:[%s5 + $0x70] sm:$0xff]
  %v954 = vld [vmem:[%s5 + $0x78] sm:$0xff]
  %v955 = vld [vmem:[%s5 + $0x80] sm:$0xff]
  %v956 = vld [vmem:[%s5 + $0x88] sm:$0xff]
  %v957 = vld [vmem:[%s5 + $0x90] sm:$0xff]
  %v958 = vld [vmem:[%s5 + $0x98] sm:$0xff]
  %v959 = vld [vmem:[%s5 + $0xa0] sm:$0xff]
  %v960 = vld [vmem:[%s5 + $0xa8] sm:$0xff]
  %v961 = vld [vmem:[%s5 + $0xb0] sm:$0xff]
  %v962 = vld [vmem:[%s5 + $0xb8] sm:$0xff]
  %v963 = vld [vmem:[%s5 + $0xc0] sm:$0xff]
  %v964 = vld [vmem:[%s5 + $0xc8] sm:$0xff]
  %v965 = vld [vmem:[%s5 + $0xd0] sm:$0xff]
  %v966 = vld [vmem:[%s5 + $0xd8] sm:$0xff]
  %v967 = vld [vmem:[%s5 + $0xe0] sm:$0xff]
  %v968 = vld [vmem:[%s5 + $0xe8] sm:$0xff]
  %v969 = vld [vmem:[%s5 + $0xf0] sm:$0xff]
  %v970 = vld [vmem:[%s5 + $0xf8] sm:$0xff]
  %v971 = vld [vmem:[%s5 + $0x100] sm:$0xff]
  %v972 = vld [vmem:[%s5 + $0x108] sm:$0xff]
  %v973 = vld [vmem:[%s5 + $0x110] sm:$0xff]
  %v974 = vld [vmem:[%s5 + $0x118] sm:$0xff]
  %v975 = vld [vmem:[%s5 + $0x120] sm:$0xff]
  %v976 = vld [vmem:[%s5 + $0x128] sm:$0xff]
  %v977 = vld [vmem:[%s5 + $0x130] sm:$0xff]
  %v978 = vld [vmem:[%s5 + $0x138] sm:$0xff]
  %v979 = vld [vmem:[%s5 + $0x140] sm:$0xff]
  %v980 = vld [vmem:[%s5 + $0x148] sm:$0xff]
  %v981 = vld [vmem:[%s5 + $0x150] sm:$0xff]
  %v982 = vld [vmem:[%s5 + $0x158] sm:$0xff]
  %v983 = vld [vmem:[%s5 + $0x160] sm:$0xff]
  %v984 = vld [vmem:[%s5 + $0x168] sm:$0xff]
  %v985 = vld [vmem:[%s5 + $0x170] sm:$0xff]
  %v986 = vld [vmem:[%s5 + $0x178] sm:$0xff]
  %v987 = vld [vmem:[%s5 + $0x180] sm:$0xff]
  %v988 = vld [vmem:[%s5 + $0x188] sm:$0xff]
  %v989 = vld [vmem:[%s5 + $0x190] sm:$0xff]
  %v990 = vld [vmem:[%s5 + $0x198] sm:$0xff]
  %v991 = vld [vmem:[%s5 + $0x1a0] sm:$0xff]
  %v992 = vld [vmem:[%s5 + $0x1a8] sm:$0xff]
  %v993 = vld [vmem:[%s5 + $0x1b0] sm:$0xff]
  %v994 = vld [vmem:[%s5 + $0x1b8] sm:$0xff]
  %v995 = vld [vmem:[%s5 + $0x1c0] sm:$0xff]
  %v996 = vld [vmem:[%s5 + $0x1c8] sm:$0xff]
  %v997 = vld [vmem:[%s5 + $0x1d0] sm:$0xff]
  %v998 = vld [vmem:[%s5 + $0x1d8] sm:$0xff]
  %v999 = vld [vmem:[%s5 + $0x1e0] sm:$0xff]
  %v1000 = vld [vmem:[%s5 + $0x1e8] sm:$0xff]
  %v1001 = vld [vmem:[%s5 + $0x1f0] sm:$0xff]
  %v1002 = vld [vmem:[%s5 + $0x1f8] sm:$0xff]
  %v1067 = vunpack.c.l.b16 %v939
  %v1068 = vunpack.c.h.b16 %v939
  %v1069 = vunpack.c.l.b16 %v940
  %v1070 = vunpack.c.h.b16 %v940
  %v1071 = vunpack.c.l.b16 %v941
  %v1072 = vunpack.c.h.b16 %v941
  %v1073 = vunpack.c.l.b16 %v942
  %v1074 = vunpack.c.h.b16 %v942
  %v1075 = vunpack.c.l.b16 %v943
  %v1076 = vunpack.c.h.b16 %v943
  %v1077 = vunpack.c.l.b16 %v944
  %v1078 = vunpack.c.h.b16 %v944
  %v1079 = vunpack.c.l.b16 %v945
  %v1080 = vunpack.c.h.b16 %v945
  %v1081 = vunpack.c.l.b16 %v946
  %v1082 = vunpack.c.h.b16 %v946
  %v1083 = vunpack.c.l.b16 %v947
  %v1084 = vunpack.c.h.b16 %v947
  %v1085 = vunpack.c.l.b16 %v948
  %v1086 = vunpack.c.h.b16 %v948
  %v1087 = vunpack.c.l.b16 %v949
  %v1088 = vunpack.c.h.b16 %v949
  %v1089 = vunpack.c.l.b16 %v950
  %v1090 = vunpack.c.h.b16 %v950
  %v1091 = vunpack.c.l.b16 %v951
  %v1092 = vunpack.c.h.b16 %v951
  %v1093 = vunpack.c.l.b16 %v952
  %v1094 = vunpack.c.h.b16 %v952
  %v1095 = vunpack.c.l.b16 %v953
  %v1096 = vunpack.c.h.b16 %v953
  %v1097 = vunpack.c.l.b16 %v954
  %v1098 = vunpack.c.h.b16 %v954
  %v1099 = vunpack.c.l.b16 %v955
  %v1100 = vunpack.c.h.b16 %v955
  %v1101 = vunpack.c.l.b16 %v956
  %v1102 = vunpack.c.h.b16 %v956
  %v1103 = vunpack.c.l.b16 %v957
  %v1104 = vunpack.c.h.b16 %v957
  %v1105 = vunpack.c.l.b16 %v958
  %v1106 = vunpack.c.h.b16 %v958
  %v1107 = vunpack.c.l.b16 %v959
  %v1108 = vunpack.c.h.b16 %v959
  %v1109 = vunpack.c.l.b16 %v960
  %v1110 = vunpack.c.h.b16 %v960
  %v1111 = vunpack.c.l.b16 %v961
  %v1112 = vunpack.c.h.b16 %v961
  %v1113 = vunpack.c.l.b16 %v962
  %v1114 = vunpack.c.h.b16 %v962
  %v1115 = vunpack.c.l.b16 %v963
  %v1116 = vunpack.c.h.b16 %v963
  %v1117 = vunpack.c.l.b16 %v964
  %v1118 = vunpack.c.h.b16 %v964
  %v1119 = vunpack.c.l.b16 %v965
  %v1120 = vunpack.c.h.b16 %v965
  %v1121 = vunpack.c.l.b16 %v966
  %v1122 = vunpack.c.h.b16 %v966
  %v1123 = vunpack.c.l.b16 %v967
  %v1124 = vunpack.c.h.b16 %v967
  %v1125 = vunpack.c.l.b16 %v968
  %v1126 = vunpack.c.h.b16 %v968
  %v1127 = vunpack.c.l.b16 %v969
  %v1128 = vunpack.c.h.b16 %v969
  %v1129 = vunpack.c.l.b16 %v970
  %v1130 = vunpack.c.h.b16 %v970
  %v1131 = vunpack.c.l.b16 %v971
  %v1132 = vunpack.c.h.b16 %v971
  %v1133 = vunpack.c.l.b16 %v972
  %v1134 = vunpack.c.h.b16 %v972
  %v1135 = vunpack.c.l.b16 %v973
  %v1136 = vunpack.c.h.b16 %v973
  %v1137 = vunpack.c.l.b16 %v974
  %v1138 = vunpack.c.h.b16 %v974
  %v1139 = vunpack.c.l.b16 %v975
  %v1140 = vunpack.c.h.b16 %v975
  %v1141 = vunpack.c.l.b16 %v976
  %v1142 = vunpack.c.h.b16 %v976
  %v1143 = vunpack.c.l.b16 %v977
  %v1144 = vunpack.c.h.b16 %v977
  %v1145 = vunpack.c.l.b16 %v978
  %v1146 = vunpack.c.h.b16 %v978
  %v1147 = vunpack.c.l.b16 %v979
  %v1148 = vunpack.c.h.b16 %v979
  %v1149 = vunpack.c.l.b16 %v980
  %v1150 = vunpack.c.h.b16 %v980
  %v1151 = vunpack.c.l.b16 %v981
  %v1152 = vunpack.c.h.b16 %v981
  %v1153 = vunpack.c.l.b16 %v982
  %v1154 = vunpack.c.h.b16 %v982
  %v1155 = vunpack.c.l.b16 %v983
  %v1156 = vunpack.c.h.b16 %v983
  %v1157 = vunpack.c.l.b16 %v984
  %v1158 = vunpack.c.h.b16 %v984
  %v1159 = vunpack.c.l.b16 %v985
  %v1160 = vunpack.c.h.b16 %v985
  %v1161 = vunpack.c.l.b16 %v986
  %v1162 = vunpack.c.h.b16 %v986
  %v1163 = vunpack.c.l.b16 %v987
  %v1164 = vunpack.c.h.b16 %v987
  %v1165 = vunpack.c.l.b16 %v988
  %v1166 = vunpack.c.h.b16 %v988
  %v1167 = vunpack.c.l.b16 %v989
  %v1168 = vunpack.c.h.b16 %v989
  %v1169 = vunpack.c.l.b16 %v990
  %v1170 = vunpack.c.h.b16 %v990
  %v1171 = vunpack.c.l.b16 %v991
  %v1172 = vunpack.c.h.b16 %v991
  %v1173 = vunpack.c.l.b16 %v992
  %v1174 = vunpack.c.h.b16 %v992
  %v1175 = vunpack.c.l.b16 %v993
  %v1176 = vunpack.c.h.b16 %v993
  %v1177 = vunpack.c.l.b16 %v994
  %v1178 = vunpack.c.h.b16 %v994
  %v1179 = vunpack.c.l.b16 %v995
  %v1180 = vunpack.c.h.b16 %v995
  %v1181 = vunpack.c.l.b16 %v996
  %v1182 = vunpack.c.h.b16 %v996
  %v1183 = vunpack.c.l.b16 %v997
  %v1184 = vunpack.c.h.b16 %v997
  %v1185 = vunpack.c.l.b16 %v998
  %v1186 = vunpack.c.h.b16 %v998
  %v1187 = vunpack.c.l.b16 %v999
  %v1188 = vunpack.c.h.b16 %v999
  %v1189 = vunpack.c.l.b16 %v1000
  %v1190 = vunpack.c.h.b16 %v1000
  %v1191 = vunpack.c.l.b16 %v1001
  %v1192 = vunpack.c.h.b16 %v1001
  %v1193 = vunpack.c.l.b16 %v1002
  %v1194 = vunpack.c.h.b16 %v1002
  %v1195 = vpack.c.b16 %v1069, %v1067
  %v1196 = vpack.c.b16 %v1070, %v1068
  %v1197 = vpack.c.b16 %v1073, %v1071
  %v1198 = vpack.c.b16 %v1074, %v1072
  %v1199 = vpack.c.b16 %v1077, %v1075
  %v1200 = vpack.c.b16 %v1078, %v1076
  %v1201 = vpack.c.b16 %v1081, %v1079
  %v1202 = vpack.c.b16 %v1082, %v1080
  %v1203 = vpack.c.b16 %v1085, %v1083
  %v1204 = vpack.c.b16 %v1086, %v1084
  %v1205 = vpack.c.b16 %v1089, %v1087
  %v1206 = vpack.c.b16 %v1090, %v1088
  %v1207 = vpack.c.b16 %v1093, %v1091
  %v1208 = vpack.c.b16 %v1094, %v1092
  %v1209 = vpack.c.b16 %v1097, %v1095
  %v1210 = vpack.c.b16 %v1098, %v1096
  %v1211 = vpack.c.b16 %v1101, %v1099
  %v1212 = vpack.c.b16 %v1102, %v1100
  %v1213 = vpack.c.b16 %v1105, %v1103
  %v1214 = vpack.c.b16 %v1106, %v1104
  %v1215 = vpack.c.b16 %v1109, %v1107
  %v1216 = vpack.c.b16 %v1110, %v1108
  %v1217 = vpack.c.b16 %v1113, %v1111
  %v1218 = vpack.c.b16 %v1114, %v1112
  %v1219 = vpack.c.b16 %v1117, %v1115
  %v1220 = vpack.c.b16 %v1118, %v1116
  %v1221 = vpack.c.b16 %v1121, %v1119
  %v1222 = vpack.c.b16 %v1122, %v1120
  %v1223 = vpack.c.b16 %v1125, %v1123
  %v1224 = vpack.c.b16 %v1126, %v1124
  %v1225 = vpack.c.b16 %v1129, %v1127
  %v1226 = vpack.c.b16 %v1130, %v1128
  %v1227 = vpack.c.b16 %v1133, %v1131
  %v1228 = vpack.c.b16 %v1134, %v1132
  %v1229 = vpack.c.b16 %v1137, %v1135
  %v1230 = vpack.c.b16 %v1138, %v1136
  %v1231 = vpack.c.b16 %v1141, %v1139
  %v1232 = vpack.c.b16 %v1142, %v1140
  %v1233 = vpack.c.b16 %v1145, %v1143
  %v1234 = vpack.c.b16 %v1146, %v1144
  %v1235 = vpack.c.b16 %v1149, %v1147
  %v1236 = vpack.c.b16 %v1150, %v1148
  %v1237 = vpack.c.b16 %v1153, %v1151
  %v1238 = vpack.c.b16 %v1154, %v1152
  %v1239 = vpack.c.b16 %v1157, %v1155
  %v1240 = vpack.c.b16 %v1158, %v1156
  %v1241 = vpack.c.b16 %v1161, %v1159
  %v1242 = vpack.c.b16 %v1162, %v1160
  %v1243 = vpack.c.b16 %v1165, %v1163
  %v1244 = vpack.c.b16 %v1166, %v1164
  %v1245 = vpack.c.b16 %v1169, %v1167
  %v1246 = vpack.c.b16 %v1170, %v1168
  %v1247 = vpack.c.b16 %v1173, %v1171
  %v1248 = vpack.c.b16 %v1174, %v1172
  %v1249 = vpack.c.b16 %v1177, %v1175
  %v1250 = vpack.c.b16 %v1178, %v1176
  %v1251 = vpack.c.b16 %v1181, %v1179
  %v1252 = vpack.c.b16 %v1182, %v1180
  %v1253 = vpack.c.b16 %v1185, %v1183
  %v1254 = vpack.c.b16 %v1186, %v1184
  %v1255 = vpack.c.b16 %v1189, %v1187
  %v1256 = vpack.c.b16 %v1190, %v1188
  %v1257 = vpack.c.b16 %v1193, %v1191
  %v1258 = vpack.c.b16 %v1194, %v1192
  %1323 = vmatprep.subr.bf16.mxu0 %v1210
  %1324 = vmatpush1.bf16.msra.mxu0 %v1209
  %1325 = vmatprep.subr.bf16.mxu0 %v1208
  %1326 = vmatpush1.bf16.msra.mxu0 %v1207
  %1327 = vmatprep.subr.bf16.mxu0 %v1206
  %1328 = vmatpush1.bf16.msra.mxu0 %v1205
  %1329 = vmatprep.subr.bf16.mxu0 %v1204
  %1330 = vmatpush1.bf16.msra.mxu0 %v1203
  %1331 = vmatprep.subr.bf16.mxu0 %v1202
  %1332 = vmatpush1.bf16.msra.mxu0 %v1201
  %1333 = vmatprep.subr.bf16.mxu0 %v1200
  %1334 = vmatpush1.bf16.msra.mxu0 %v1199
  %1335 = vmatprep.subr.bf16.mxu0 %v1198
  %1336 = vmatpush1.bf16.msra.mxu0 %v1197
  %1337 = vmatprep.subr.bf16.mxu0 %v1196
  %1338 = vmatpush1.bf16.msra.mxu0 %v1195
  %1339 = vmatprep.subr.bf16.mxu0 %v1226
  %1340 = vmatpush2.bf16.msra.mxu0 %v1225
  %1341 = vmatprep.subr.bf16.mxu0 %v1224
  %1342 = vmatpush2.bf16.msra.mxu0 %v1223
  %1343 = vmatprep.subr.bf16.mxu0 %v1222
  %1344 = vmatpush2.bf16.msra.mxu0 %v1221
  %1345 = vmatprep.subr.bf16.mxu0 %v1220
  %1346 = vmatpush2.bf16.msra.mxu0 %v1219
  %1347 = vmatprep.subr.bf16.mxu0 %v1218
  %1348 = vmatpush2.bf16.msra.mxu0 %v1217
  %1349 = vmatprep.subr.bf16.mxu0 %v1216
  %1350 = vmatpush2.bf16.msra.mxu0 %v1215
  %1351 = vmatprep.subr.bf16.mxu0 %v1214
  %1352 = vmatpush2.bf16.msra.mxu0 %v1213
  %1353 = vmatprep.subr.bf16.mxu0 %v1212
  %1354 = vmatpush2.bf16.msra.mxu0 %v1211
  %1355 = vmatprep.mubr.bf16.mxu0 %v928
  %1356 = vmatmul.mubr.bf16.gmra.mxu0 %v927
  %v1357 = vpop.f32.mrf.mxu0
  %v1358 = vadd.f32 0.0, %v1357
  %v1359 = vpop.f32.mrf.mxu0
  %v1360 = vadd.f32 0.0, %v1359
  %v1361 = vpop.f32.mrf.mxu0
  %v1362 = vadd.f32 0.0, %v1361
  %v1363 = vpop.f32.mrf.mxu0
  %v1364 = vadd.f32 0.0, %v1363
  %1365 = vmatprep.mubr.bf16.mxu0 %v932
  %1366 = vmatmul.mubr.bf16.gmra.mxu0 %v931
  %v1367 = vpop.f32.mrf.mxu0
  %v1368 = vadd.f32 0.0, %v1367
  %v1369 = vpop.f32.mrf.mxu0
  %v1370 = vadd.f32 0.0, %v1369
  %v1371 = vpop.f32.mrf.mxu0
  %v1372 = vadd.f32 0.0, %v1371
  %v1373 = vpop.f32.mrf.mxu0
  %v1374 = vadd.f32 0.0, %v1373
  %1375 = vmatprep.mubr.bf16.mxu0 %v936
  %1376 = vmatmul.mubr.bf16.gmra.mxu0 %v935
  %v1377 = vpop.f32.mrf.mxu0
  %v1378 = vadd.f32 0.0, %v1377
  %v1379 = vpop.f32.mrf.mxu0
  %v1380 = vadd.f32 0.0, %v1379
  %v1381 = vpop.f32.mrf.mxu0
  %v1382 = vpop.f32.mrf.mxu0
  %1383 = vdwg.mxu0
  %1384 = vmatprep.subr.bf16.mxu0 %v1242
  %1385 = vmatpush1.bf16.msra.mxu0 %v1241
  %1386 = vmatprep.subr.bf16.mxu0 %v1240
  %1387 = vmatpush1.bf16.msra.mxu0 %v1239
  %1388 = vmatprep.subr.bf16.mxu0 %v1238
  %1389 = vmatpush1.bf16.msra.mxu0 %v1237
  %1390 = vmatprep.subr.bf16.mxu0 %v1236
  %1391 = vmatpush1.bf16.msra.mxu0 %v1235
  %1392 = vmatprep.subr.bf16.mxu0 %v1234
  %1393 = vmatpush1.bf16.msra.mxu0 %v1233
  %1394 = vmatprep.subr.bf16.mxu0 %v1232
  %1395 = vmatpush1.bf16.msra.mxu0 %v1231
  %1396 = vmatprep.subr.bf16.mxu0 %v1230
  %1397 = vmatpush1.bf16.msra.mxu0 %v1229
  %1398 = vmatprep.subr.bf16.mxu0 %v1228
  %1399 = vmatpush1.bf16.msra.mxu0 %v1227
  %1400 = vmatprep.subr.bf16.mxu0 %v1258
  %1401 = vmatpush2.bf16.msra.mxu0 %v1257
  %1402 = vmatprep.subr.bf16.mxu0 %v1256
  %1403 = vmatpush2.bf16.msra.mxu0 %v1255
  %1404 = vmatprep.subr.bf16.mxu0 %v1254
  %1405 = vmatpush2.bf16.msra.mxu0 %v1253
  %1406 = vmatprep.subr.bf16.mxu0 %v1252
  %1407 = vmatpush2.bf16.msra.mxu0 %v1251
  %1408 = vmatprep.subr.bf16.mxu0 %v1250
  %1409 = vmatpush2.bf16.msra.mxu0 %v1249
  %1410 = vmatprep.subr.bf16.mxu0 %v1248
  %1411 = vmatpush2.bf16.msra.mxu0 %v1247
  %1412 = vmatprep.subr.bf16.mxu0 %v1246
  %1413 = vmatpush2.bf16.msra.mxu0 %v1245
  %1414 = vmatprep.subr.bf16.mxu0 %v1244
  %1415 = vmatpush2.bf16.msra.mxu0 %v1243
  %1416 = vmatprep.mubr.bf16.mxu0 %v930
  %1417 = vmatmul.mubr.bf16.gmra.mxu0 %v929
  %v1418 = vpop.f32.mrf.mxu0
  %v1419 = vadd.f32 %v1358, %v1418
  %v1420 = vpop.f32.mrf.mxu0
  %v1421 = vadd.f32 %v1360, %v1420
  %v1422 = vpop.f32.mrf.mxu0
  %v1423 = vadd.f32 %v1362, %v1422
  %v1424 = vpop.f32.mrf.mxu0
  %v1425 = vadd.f32 %v1364, %v1424
  %1426 = vmatprep.mubr.bf16.mxu0 %v934
  %1427 = vmatmul.mubr.bf16.gmra.mxu0 %v933
  %v1428 = vpop.f32.mrf.mxu0
  %v1429 = vadd.f32 %v1368, %v1428
  %v1430 = vpop.f32.mrf.mxu0
  %v1431 = vadd.f32 %v1370, %v1430
  %v1432 = vpop.f32.mrf.mxu0
  %v1433 = vadd.f32 %v1372, %v1432
  %v1434 = vpop.f32.mrf.mxu0
  %v1435 = vadd.f32 %v1374, %v1434
  %1436 = vmatprep.mubr.bf16.mxu0 %v938
  %1437 = vmatmul.mubr.bf16.gmra.mxu0 %v937
  %v1438 = vpop.f32.mrf.mxu0
  %v1439 = vadd.f32 %v1378, %v1438
  %v1440 = vpop.f32.mrf.mxu0
  %v1441 = vadd.f32 %v1380, %v1440
  %v1442 = vpop.f32.mrf.mxu0
  %v1443 = vpop.f32.mrf.mxu0
  %1444 = vdwg.mxu0
  %v1445 = vadd.f32 %v917, %v1419
  %v1446 = vadd.f32 %v918, %v1421
  %v1447 = vadd.f32 %v919, %v1423
  %v1448 = vadd.f32 %v920, %v1425
  %v1449 = vadd.f32 %v921, %v1429
  %v1450 = vadd.f32 %v922, %v1431
  %v1451 = vadd.f32 %v923, %v1433
  %v1452 = vadd.f32 %v924, %v1435
  %v1453 = vadd.f32 %v925, %v1439
  %v1454 = vadd.f32 %v926, %v1441
  %1455 = vst [vmem:[#allocation2] sm:$0xff] %v1445
  %1456 = vst [vmem:[#allocation2 + $0x8] sm:$0xff] %v1446
  %1457 = vst [vmem:[#allocation2 + $0x10] sm:$0xff] %v1447
  %1458 = vst [vmem:[#allocation2 + $0x18] sm:$0xff] %v1448
  %1459 = vst [vmem:[#allocation2 + $0x20] sm:$0xff] %v1449
  %1460 = vst [vmem:[#allocation2 + $0x28] sm:$0xff] %v1450
  %1461 = vst [vmem:[#allocation2 + $0x30] sm:$0xff] %v1451
  %1462 = vst [vmem:[#allocation2 + $0x38] sm:$0xff] %v1452
  %1463 = vst [vmem:[#allocation2 + $0x40] sm:$0x3] %v1453
  %1464 = vst [vmem:[#allocation2 + $0x48] sm:$0x3] %v1454
  %v1465 = vld [vmem:[#allocation2] sm:$0xff]
  %v1466 = vld [vmem:[#allocation2 + $0x8] sm:$0xff]
  %v1467 = vld [vmem:[#allocation2 + $0x10] sm:$0xff]
  %v1468 = vld [vmem:[#allocation2 + $0x18] sm:$0xff]
  %v1469 = vld [vmem:[#allocation2 + $0x20] sm:$0xff]
  %v1470 = vld [vmem:[#allocation2 + $0x28] sm:$0xff]
  %v1471 = vld [vmem:[#allocation2 + $0x30] sm:$0xff]
  %v1472 = vld [vmem:[#allocation2 + $0x38] sm:$0xff]
  %v1473 = vld [vmem:[#allocation2 + $0x40] sm:$0x3]
  %v1474 = vld [vmem:[#allocation2 + $0x48] sm:$0x3]
  %v1475 = vpack.c.bf16 %v1467, %v1465
  %v1476 = vpack.c.bf16 %v1468, %v1466
  %v1477 = vpack.c.bf16 %v1471, %v1469
  %v1478 = vpack.c.bf16 %v1472, %v1470
  %v1479 = vpack.c.bf16 %v1473, %v1473
  %v1480 = vpack.c.bf16 %v1474, %v1474
  %v1487 = vunpack.c.l.b16 %v1475
  %v1488 = vunpack.c.l.b16 %v1476
  %v1489 = vunpack.c.h.b16 %v1475
  %v1490 = vunpack.c.h.b16 %v1476
  %v1491 = vunpack.c.l.b16 %v1477
  %v1492 = vunpack.c.l.b16 %v1478
  %v1493 = vunpack.c.h.b16 %v1477
  %v1494 = vunpack.c.h.b16 %v1478
  %v1495 = vunpack.c.l.b16 %v1479
  %v1496 = vunpack.c.l.b16 %v1480
  %v1497 = vpack.c.b16 %v1488, %v1487
  %v1498 = vpack.c.b16 %v1490, %v1489
  %v1499 = vpack.c.b16 %v1492, %v1491
  %v1500 = vpack.c.b16 %v1494, %v1493
  %v1501 = vpack.c.b16 %v1496, %v1495
  %1507 = vst [vmem:[%s7] sm:$0xff] %v1497
  %1508 = vst [vmem:[%s7 + $0x8] sm:$0xff] %v1498
  %1509 = vst [vmem:[%s7 + $0x10] sm:$0xff] %v1499
  %1510 = vst [vmem:[%s7 + $0x18] sm:$0xff] %v1500
  %1511 = vst [vmem:[%s7 + $0x20] sm:$0x11] %v1501
  // Predicated region
  $region30: #{_lambda_.13} parent=0 // pred_check
    _
  $region31: #{_lambda_.13} parent=0 // pred_check_branch
    %1513 = sbr.rel (0) target = $region33
  $region32: #{_lambda_.13} parent=0 // pred_region
    _
  $region33: #{_lambda_.13} parent=0 // pred_fallthru
    _
  // Predicated region
  $region34: #{_lambda_.13} parent=0 // pred_check
    _
  $region35: #{_lambda_.13} parent=0 // pred_check_branch
    %1515 = sbr.rel (0) target = $region37
  $region36: #{_lambda_.13} parent=0 // pred_region
    _
  $region37: #{_lambda_.13} parent=0 // pred_fallthru
    _

// kernel: sub.13
$region0: #{sub.13}
  #allocation0 [shape = 's32[1]{0}', space=sflag, size = 0x4, scoped, tag = 'scoped memory for sub.13']
  %s0 = inlined_call_operand.vmem [shape: f32[2,17], index: 0, kind: input, shape index: {}]
  %s1 = inlined_call_operand.vmem [shape: f32[2,17], index: 1, kind: input, shape index: {}]
  %s2 = inlined_call_operand.vmem [shape: f32[2,17], index: 2, kind: output, shape index: {}]
  %v3 = vld [vmem:[%s0] sm:$0x3]
  %v4 = vld [vmem:[%s1] sm:$0x3]
  %5 = xla_tuple %v3, %v4
  %6 = xla_tuple %5
  %v7 = vsub.f32 %v3, %v4
  %8 = xla_tuple %v7
  %9 = vst [vmem:[%s2] sm:$0x3] %v7

// kernel: _lambda_.14
$region0: #{_lambda_.14}
  #allocation0 [shape = 'u32[]', space=smem, size = 0x4, offset = 0x4, fixed_abs, tag = 'smem constant byte address 0x4 - core index']
  #allocation1 [shape = 'u32[144,128]{1,0:T(1,128)}', space=vmem, size = 0x12000, scoped, tag = 'internal scratch']
  #allocation2 [shape = 'f32[1,1]{1,0:T(1,128)S(1)}', space=vmem, size = 0x200, scoped, tag = 'scoped memory for _lambda_.14']
  %s0 = inlined_call_operand.vmem [shape: bf16[34,256], index: 0, kind: input, shape index: {}]
  %s1 = inlined_call_operand.vmem [shape: bf16[256,512], index: 1, kind: input, shape index: {}]
  %s2 = inlined_call_operand.vmem [shape: f32[1,512], index: 2, kind: input, shape index: {}]
  %s3 = inlined_call_operand.vmem [shape: f32[1,512], index: 3, kind: input, shape index: {}]
  %s4 = inlined_call_operand.<no memory space> [shape: f32[1,1], index: 4, kind: input, shape index: {}]
  %s5 = inlined_call_operand.vmem [shape: f32[34,1], index: 5, kind: output, shape index: {}]
  %s6 = sld [smem:[#allocation0]]
  $region30: #{_lambda_.14} parent=0
    _
  %s8 = ssub.s32 1, %s6
  %s9 = scalar_select 0, %s8, %s6
  %v10 = vstv %s4
  %11 = vst [vmem:[#allocation2] sm:$0x1] %v10
  // Predicated region
  $region2: #{_lambda_.14} parent=0 // pred_check
    _
  $region3: #{_lambda_.14} parent=0 // pred_check_branch
    %13 = sbr.rel (0) target = $region5
  $region4: #{_lambda_.14} parent=0 // pred_region
    _
  $region5: #{_lambda_.14} parent=0 // pred_fallthru
    _
  // Predicated region
  $region6: #{_lambda_.14} parent=0 // pred_check
    _
  $region7: #{_lambda_.14} parent=0 // pred_check_branch
    %15 = sbr.rel (0) target = $region9
  $region8: #{_lambda_.14} parent=0 // pred_region
    _
  $region9: #{_lambda_.14} parent=0 // pred_fallthru
    _
  // Predicated region
  $region10: #{_lambda_.14} parent=0 // pred_check
    _
  $region11: #{_lambda_.14} parent=0 // pred_check_branch
    %17 = sbr.rel (0) target = $region13
  $region12: #{_lambda_.14} parent=0 // pred_region
    _
  $region13: #{_lambda_.14} parent=0 // pred_fallthru
    _
  // Predicated region
  $region14: #{_lambda_.14} parent=0 // pred_check
    _
  $region15: #{_lambda_.14} parent=0 // pred_check_branch
    %19 = sbr.rel (0) target = $region17
  $region16: #{_lambda_.14} parent=0 // pred_region
    _
  $region17: #{_lambda_.14} parent=0 // pred_fallthru
    _
  // Predicated region
  $region18: #{_lambda_.14} parent=0 // pred_check
    _
  $region19: #{_lambda_.14} parent=0 // pred_check_branch
    %21 = sbr.rel (0) target = $region21
  $region20: #{_lambda_.14} parent=0 // pred_region
    _
  $region21: #{_lambda_.14} parent=0 // pred_fallthru
    _
  %v22 = vld [vmem:[%s0] sm:$0xff]
  %v23 = vld [vmem:[%s0 + $0x8] sm:$0xff]
  %v24 = vld [vmem:[%s0 + $0x10] sm:$0xff]
  %v25 = vld [vmem:[%s0 + $0x18] sm:$0xff]
  %v26 = vld [vmem:[%s0 + $0x20] sm:$0x11]
  %v27 = vld [vmem:[%s1] sm:$0xff]
  %v28 = vld [vmem:[%s1 + $0x8] sm:$0xff]
  %v29 = vld [vmem:[%s1 + $0x10] sm:$0xff]
  %v30 = vld [vmem:[%s1 + $0x18] sm:$0xff]
  %v31 = vld [vmem:[%s1 + $0x20] sm:$0xff]
  %v32 = vld [vmem:[%s1 + $0x28] sm:$0xff]
  %v33 = vld [vmem:[%s1 + $0x30] sm:$0xff]
  %v34 = vld [vmem:[%s1 + $0x38] sm:$0xff]
  %v35 = vld [vmem:[%s1 + $0x40] sm:$0xff]
  %v36 = vld [vmem:[%s1 + $0x48] sm:$0xff]
  %v37 = vld [vmem:[%s1 + $0x50] sm:$0xff]
  %v38 = vld [vmem:[%s1 + $0x58] sm:$0xff]
  %v39 = vld [vmem:[%s1 + $0x60] sm:$0xff]
  %v40 = vld [vmem:[%s1 + $0x68] sm:$0xff]
  %v41 = vld [vmem:[%s1 + $0x70] sm:$0xff]
  %v42 = vld [vmem:[%s1 + $0x78] sm:$0xff]
  %v43 = vld [vmem:[%s1 + $0x80] sm:$0xff]
  %v44 = vld [vmem:[%s1 + $0x88] sm:$0xff]
  %v45 = vld [vmem:[%s1 + $0x90] sm:$0xff]
  %v46 = vld [vmem:[%s1 + $0x98] sm:$0xff]
  %v47 = vld [vmem:[%s1 + $0xa0] sm:$0xff]
  %v48 = vld [vmem:[%s1 + $0xa8] sm:$0xff]
  %v49 = vld [vmem:[%s1 + $0xb0] sm:$0xff]
  %v50 = vld [vmem:[%s1 + $0xb8] sm:$0xff]
  %v51 = vld [vmem:[%s1 + $0xc0] sm:$0xff]
  %v52 = vld [vmem:[%s1 + $0xc8] sm:$0xff]
  %v53 = vld [vmem:[%s1 + $0xd0] sm:$0xff]
  %v54 = vld [vmem:[%s1 + $0xd8] sm:$0xff]
  %v55 = vld [vmem:[%s1 + $0xe0] sm:$0xff]
  %v56 = vld [vmem:[%s1 + $0xe8] sm:$0xff]
  %v57 = vld [vmem:[%s1 + $0xf0] sm:$0xff]
  %v58 = vld [vmem:[%s1 + $0xf8] sm:$0xff]
  %v59 = vld [vmem:[%s1 + $0x100] sm:$0xff]
  %v60 = vld [vmem:[%s1 + $0x108] sm:$0xff]
  %v61 = vld [vmem:[%s1 + $0x110] sm:$0xff]
  %v62 = vld [vmem:[%s1 + $0x118] sm:$0xff]
  %v63 = vld [vmem:[%s1 + $0x120] sm:$0xff]
  %v64 = vld [vmem:[%s1 + $0x128] sm:$0xff]
  %v65 = vld [vmem:[%s1 + $0x130] sm:$0xff]
  %v66 = vld [vmem:[%s1 + $0x138] sm:$0xff]
  %v67 = vld [vmem:[%s1 + $0x140] sm:$0xff]
  %v68 = vld [vmem:[%s1 + $0x148] sm:$0xff]
  %v69 = vld [vmem:[%s1 + $0x150] sm:$0xff]
  %v70 = vld [vmem:[%s1 + $0x158] sm:$0xff]
  %v71 = vld [vmem:[%s1 + $0x160] sm:$0xff]
  %v72 = vld [vmem:[%s1 + $0x168] sm:$0xff]
  %v73 = vld [vmem:[%s1 + $0x170] sm:$0xff]
  %v74 = vld [vmem:[%s1 + $0x178] sm:$0xff]
  %v75 = vld [vmem:[%s1 + $0x180] sm:$0xff]
  %v76 = vld [vmem:[%s1 + $0x188] sm:$0xff]
  %v77 = vld [vmem:[%s1 + $0x190] sm:$0xff]
  %v78 = vld [vmem:[%s1 + $0x198] sm:$0xff]
  %v79 = vld [vmem:[%s1 + $0x1a0] sm:$0xff]
  %v80 = vld [vmem:[%s1 + $0x1a8] sm:$0xff]
  %v81 = vld [vmem:[%s1 + $0x1b0] sm:$0xff]
  %v82 = vld [vmem:[%s1 + $0x1b8] sm:$0xff]
  %v83 = vld [vmem:[%s1 + $0x1c0] sm:$0xff]
  %v84 = vld [vmem:[%s1 + $0x1c8] sm:$0xff]
  %v85 = vld [vmem:[%s1 + $0x1d0] sm:$0xff]
  %v86 = vld [vmem:[%s1 + $0x1d8] sm:$0xff]
  %v87 = vld [vmem:[%s1 + $0x1e0] sm:$0xff]
  %v88 = vld [vmem:[%s1 + $0x1e8] sm:$0xff]
  %v89 = vld [vmem:[%s1 + $0x1f0] sm:$0xff]
  %v90 = vld [vmem:[%s1 + $0x1f8] sm:$0xff]
  %v91 = vld [vmem:[%s2] sm:$0xf]
  %v93 = vlaneseq
  %v94 = vshrl.u32 %v93, 7
  %v95 = vsub.s32 0, %v94
  %v96 = vrot.slane %v91, %v95
  %v97 = vlaneseq
  %v98 = vshrl.u32 %v97, 7
  %v99 = vsub.s32 1, %v98
  %v100 = vrot.slane %v91, %v99
  %v101 = vlaneseq
  %v102 = vshrl.u32 %v101, 7
  %v103 = vsub.s32 2, %v102
  %v104 = vrot.slane %v91, %v103
  %v105 = vlaneseq
  %v106 = vshrl.u32 %v105, 7
  %v107 = vsub.s32 3, %v106
  %v108 = vrot.slane %v91, %v107
  %v118 = vunpack.c.l.b16 %v22
  %v119 = vunpack.c.h.b16 %v22
  %v120 = vunpack.c.l.b16 %v23
  %v121 = vunpack.c.h.b16 %v23
  %v122 = vunpack.c.l.b16 %v24
  %v123 = vunpack.c.h.b16 %v24
  %v124 = vunpack.c.l.b16 %v25
  %v125 = vunpack.c.h.b16 %v25
  %v126 = vunpack.c.l.b16 %v26
  %v127 = vunpack.c.h.b16 %v26
  %v128 = vpack.c.b16 %v120, %v118
  %v129 = vpack.c.b16 %v121, %v119
  %v130 = vpack.c.b16 %v124, %v122
  %v131 = vpack.c.b16 %v125, %v123
  %v132 = vpack.c.b16 %v126, %v126
  %v133 = vpack.c.b16 %v127, %v127
  %v204 = vunpack.c.l.b16 %v27
  %v205 = vunpack.c.h.b16 %v27
  %v206 = vunpack.c.l.b16 %v28
  %v207 = vunpack.c.h.b16 %v28
  %v208 = vunpack.c.l.b16 %v29
  %v209 = vunpack.c.h.b16 %v29
  %v210 = vunpack.c.l.b16 %v30
  %v211 = vunpack.c.h.b16 %v30
  %v212 = vunpack.c.l.b16 %v31
  %v213 = vunpack.c.h.b16 %v31
  %v214 = vunpack.c.l.b16 %v32
  %v215 = vunpack.c.h.b16 %v32
  %v216 = vunpack.c.l.b16 %v33
  %v217 = vunpack.c.h.b16 %v33
  %v218 = vunpack.c.l.b16 %v34
  %v219 = vunpack.c.h.b16 %v34
  %v220 = vunpack.c.l.b16 %v35
  %v221 = vunpack.c.h.b16 %v35
  %v222 = vunpack.c.l.b16 %v36
  %v223 = vunpack.c.h.b16 %v36
  %v224 = vunpack.c.l.b16 %v37
  %v225 = vunpack.c.h.b16 %v37
  %v226 = vunpack.c.l.b16 %v38
  %v227 = vunpack.c.h.b16 %v38
  %v228 = vunpack.c.l.b16 %v39
  %v229 = vunpack.c.h.b16 %v39
  %v230 = vunpack.c.l.b16 %v40
  %v231 = vunpack.c.h.b16 %v40
  %v232 = vunpack.c.l.b16 %v41
  %v233 = vunpack.c.h.b16 %v41
  %v234 = vunpack.c.l.b16 %v42
  %v235 = vunpack.c.h.b16 %v42
  %v236 = vunpack.c.l.b16 %v43
  %v237 = vunpack.c.h.b16 %v43
  %v238 = vunpack.c.l.b16 %v44
  %v239 = vunpack.c.h.b16 %v44
  %v240 = vunpack.c.l.b16 %v45
  %v241 = vunpack.c.h.b16 %v45
  %v242 = vunpack.c.l.b16 %v46
  %v243 = vunpack.c.h.b16 %v46
  %v244 = vunpack.c.l.b16 %v47
  %v245 = vunpack.c.h.b16 %v47
  %v246 = vunpack.c.l.b16 %v48
  %v247 = vunpack.c.h.b16 %v48
  %v248 = vunpack.c.l.b16 %v49
  %v249 = vunpack.c.h.b16 %v49
  %v250 = vunpack.c.l.b16 %v50
  %v251 = vunpack.c.h.b16 %v50
  %v252 = vunpack.c.l.b16 %v51
  %v253 = vunpack.c.h.b16 %v51
  %v254 = vunpack.c.l.b16 %v52
  %v255 = vunpack.c.h.b16 %v52
  %v256 = vunpack.c.l.b16 %v53
  %v257 = vunpack.c.h.b16 %v53
  %v258 = vunpack.c.l.b16 %v54
  %v259 = vunpack.c.h.b16 %v54
  %v260 = vunpack.c.l.b16 %v55
  %v261 = vunpack.c.h.b16 %v55
  %v262 = vunpack.c.l.b16 %v56
  %v263 = vunpack.c.h.b16 %v56
  %v264 = vunpack.c.l.b16 %v57
  %v265 = vunpack.c.h.b16 %v57
  %v266 = vunpack.c.l.b16 %v58
  %v267 = vunpack.c.h.b16 %v58
  %v268 = vunpack.c.l.b16 %v59
  %v269 = vunpack.c.h.b16 %v59
  %v270 = vunpack.c.l.b16 %v60
  %v271 = vunpack.c.h.b16 %v60
  %v272 = vunpack.c.l.b16 %v61
  %v273 = vunpack.c.h.b16 %v61
  %v274 = vunpack.c.l.b16 %v62
  %v275 = vunpack.c.h.b16 %v62
  %v276 = vunpack.c.l.b16 %v63
  %v277 = vunpack.c.h.b16 %v63
  %v278 = vunpack.c.l.b16 %v64
  %v279 = vunpack.c.h.b16 %v64
  %v280 = vunpack.c.l.b16 %v65
  %v281 = vunpack.c.h.b16 %v65
  %v282 = vunpack.c.l.b16 %v66
  %v283 = vunpack.c.h.b16 %v66
  %v284 = vunpack.c.l.b16 %v67
  %v285 = vunpack.c.h.b16 %v67
  %v286 = vunpack.c.l.b16 %v68
  %v287 = vunpack.c.h.b16 %v68
  %v288 = vunpack.c.l.b16 %v69
  %v289 = vunpack.c.h.b16 %v69
  %v290 = vunpack.c.l.b16 %v70
  %v291 = vunpack.c.h.b16 %v70
  %v292 = vunpack.c.l.b16 %v71
  %v293 = vunpack.c.h.b16 %v71
  %v294 = vunpack.c.l.b16 %v72
  %v295 = vunpack.c.h.b16 %v72
  %v296 = vunpack.c.l.b16 %v73
  %v297 = vunpack.c.h.b16 %v73
  %v298 = vunpack.c.l.b16 %v74
  %v299 = vunpack.c.h.b16 %v74
  %v300 = vunpack.c.l.b16 %v75
  %v301 = vunpack.c.h.b16 %v75
  %v302 = vunpack.c.l.b16 %v76
  %v303 = vunpack.c.h.b16 %v76
  %v304 = vunpack.c.l.b16 %v77
  %v305 = vunpack.c.h.b16 %v77
  %v306 = vunpack.c.l.b16 %v78
  %v307 = vunpack.c.h.b16 %v78
  %v308 = vunpack.c.l.b16 %v79
  %v309 = vunpack.c.h.b16 %v79
  %v310 = vunpack.c.l.b16 %v80
  %v311 = vunpack.c.h.b16 %v80
  %v312 = vunpack.c.l.b16 %v81
  %v313 = vunpack.c.h.b16 %v81
  %v314 = vunpack.c.l.b16 %v82
  %v315 = vunpack.c.h.b16 %v82
  %v316 = vunpack.c.l.b16 %v83
  %v317 = vunpack.c.h.b16 %v83
  %v318 = vunpack.c.l.b16 %v84
  %v319 = vunpack.c.h.b16 %v84
  %v320 = vunpack.c.l.b16 %v85
  %v321 = vunpack.c.h.b16 %v85
  %v322 = vunpack.c.l.b16 %v86
  %v323 = vunpack.c.h.b16 %v86
  %v324 = vunpack.c.l.b16 %v87
  %v325 = vunpack.c.h.b16 %v87
  %v326 = vunpack.c.l.b16 %v88
  %v327 = vunpack.c.h.b16 %v88
  %v328 = vunpack.c.l.b16 %v89
  %v329 = vunpack.c.h.b16 %v89
  %v330 = vunpack.c.l.b16 %v90
  %v331 = vunpack.c.h.b16 %v90
  %v332 = vpack.c.b16 %v208, %v204
  %v333 = vpack.c.b16 %v209, %v205
  %v334 = vpack.c.b16 %v210, %v206
  %v335 = vpack.c.b16 %v211, %v207
  %v336 = vpack.c.b16 %v216, %v212
  %v337 = vpack.c.b16 %v217, %v213
  %v338 = vpack.c.b16 %v218, %v214
  %v339 = vpack.c.b16 %v219, %v215
  %v340 = vpack.c.b16 %v224, %v220
  %v341 = vpack.c.b16 %v225, %v221
  %v342 = vpack.c.b16 %v226, %v222
  %v343 = vpack.c.b16 %v227, %v223
  %v344 = vpack.c.b16 %v232, %v228
  %v345 = vpack.c.b16 %v233, %v229
  %v346 = vpack.c.b16 %v234, %v230
  %v347 = vpack.c.b16 %v235, %v231
  %v348 = vpack.c.b16 %v240, %v236
  %v349 = vpack.c.b16 %v241, %v237
  %v350 = vpack.c.b16 %v242, %v238
  %v351 = vpack.c.b16 %v243, %v239
  %v352 = vpack.c.b16 %v248, %v244
  %v353 = vpack.c.b16 %v249, %v245
  %v354 = vpack.c.b16 %v250, %v246
  %v355 = vpack.c.b16 %v251, %v247
  %v356 = vpack.c.b16 %v256, %v252
  %v357 = vpack.c.b16 %v257, %v253
  %v358 = vpack.c.b16 %v258, %v254
  %v359 = vpack.c.b16 %v259, %v255
  %v360 = vpack.c.b16 %v264, %v260
  %v361 = vpack.c.b16 %v265, %v261
  %v362 = vpack.c.b16 %v266, %v262
  %v363 = vpack.c.b16 %v267, %v263
  %v364 = vpack.c.b16 %v272, %v268
  %v365 = vpack.c.b16 %v273, %v269
  %v366 = vpack.c.b16 %v274, %v270
  %v367 = vpack.c.b16 %v275, %v271
  %v368 = vpack.c.b16 %v280, %v276
  %v369 = vpack.c.b16 %v281, %v277
  %v370 = vpack.c.b16 %v282, %v278
  %v371 = vpack.c.b16 %v283, %v279
  %v372 = vpack.c.b16 %v288, %v284
  %v373 = vpack.c.b16 %v289, %v285
  %v374 = vpack.c.b16 %v290, %v286
  %v375 = vpack.c.b16 %v291, %v287
  %v376 = vpack.c.b16 %v296, %v292
  %v377 = vpack.c.b16 %v297, %v293
  %v378 = vpack.c.b16 %v298, %v294
  %v379 = vpack.c.b16 %v299, %v295
  %v380 = vpack.c.b16 %v304, %v300
  %v381 = vpack.c.b16 %v305, %v301
  %v382 = vpack.c.b16 %v306, %v302
  %v383 = vpack.c.b16 %v307, %v303
  %v384 = vpack.c.b16 %v312, %v308
  %v385 = vpack.c.b16 %v313, %v309
  %v386 = vpack.c.b16 %v314, %v310
  %v387 = vpack.c.b16 %v315, %v311
  %v388 = vpack.c.b16 %v320, %v316
  %v389 = vpack.c.b16 %v321, %v317
  %v390 = vpack.c.b16 %v322, %v318
  %v391 = vpack.c.b16 %v323, %v319
  %v392 = vpack.c.b16 %v328, %v324
  %v393 = vpack.c.b16 %v329, %v325
  %v394 = vpack.c.b16 %v330, %v326
  %v395 = vpack.c.b16 %v331, %v327
  %460 = vmatprep.subr.bf16.mxu0 %v361
  %461 = vmatpush1.bf16.msra.mxu0 %v360
  %462 = vmatprep.subr.bf16.mxu0 %v357
  %463 = vmatpush1.bf16.msra.mxu0 %v356
  %464 = vmatprep.subr.bf16.mxu0 %v353
  %465 = vmatpush1.bf16.msra.mxu0 %v352
  %466 = vmatprep.subr.bf16.mxu0 %v349
  %467 = vmatpush1.bf16.msra.mxu0 %v348
  %468 = vmatprep.subr.bf16.mxu0 %v345
  %469 = vmatpush1.bf16.msra.mxu0 %v344
  %470 = vmatprep.subr.bf16.mxu0 %v341
  %471 = vmatpush1.bf16.msra.mxu0 %v340
  %472 = vmatprep.subr.bf16.mxu0 %v337
  %473 = vmatpush1.bf16.msra.mxu0 %v336
  %474 = vmatprep.subr.bf16.mxu0 %v333
  %475 = vmatpush1.bf16.msra.mxu0 %v332
  %476 = vmatprep.subr.bf16.mxu0 %v393
  %477 = vmatpush2.bf16.msra.mxu0 %v392
  %478 = vmatprep.subr.bf16.mxu0 %v389
  %479 = vmatpush2.bf16.msra.mxu0 %v388
  %480 = vmatprep.subr.bf16.mxu0 %v385
  %481 = vmatpush2.bf16.msra.mxu0 %v384
  %482 = vmatprep.subr.bf16.mxu0 %v381
  %483 = vmatpush2.bf16.msra.mxu0 %v380
  %484 = vmatprep.subr.bf16.mxu0 %v377
  %485 = vmatpush2.bf16.msra.mxu0 %v376
  %486 = vmatprep.subr.bf16.mxu0 %v373
  %487 = vmatpush2.bf16.msra.mxu0 %v372
  %488 = vmatprep.subr.bf16.mxu0 %v369
  %489 = vmatpush2.bf16.msra.mxu0 %v368
  %490 = vmatprep.subr.bf16.mxu0 %v365
  %491 = vmatpush2.bf16.msra.mxu0 %v364
  %492 = vmatprep.mubr.bf16.mxu0 %v129
  %493 = vmatmul.mubr.bf16.gmra.mxu0 %v128
  %v494 = vpop.f32.mrf.mxu0
  %v495 = vadd.f32 %v96, %v494
  %v496 = vpop.f32.mrf.mxu0
  %v497 = vadd.f32 %v100, %v496
  %v498 = vpop.f32.mrf.mxu0
  %v499 = vadd.f32 %v96, %v498
  %v500 = vpop.f32.mrf.mxu0
  %v501 = vadd.f32 %v100, %v500
  %502 = vmatprep.mubr.bf16.mxu0 %v131
  %503 = vmatmul.mubr.bf16.gmra.mxu0 %v130
  %v504 = vpop.f32.mrf.mxu0
  %v505 = vadd.f32 %v96, %v504
  %v506 = vpop.f32.mrf.mxu0
  %v507 = vadd.f32 %v100, %v506
  %v508 = vpop.f32.mrf.mxu0
  %v509 = vadd.f32 %v96, %v508
  %v510 = vpop.f32.mrf.mxu0
  %v511 = vadd.f32 %v100, %v510
  %512 = vmatprep.mubr.bf16.mxu0 %v133
  %513 = vmatmul.mubr.bf16.gmra.mxu0 %v132
  %v514 = vpop.f32.mrf.mxu0
  %v515 = vadd.f32 %v96, %v514
  %v516 = vpop.f32.mrf.mxu0
  %v517 = vadd.f32 %v100, %v516
  %v518 = vpop.f32.mrf.mxu0
  %v519 = vpop.f32.mrf.mxu0
  %520 = vdwg.mxu0
  %521 = vmatprep.subr.bf16.mxu0 %v363
  %522 = vmatpush1.bf16.msra.mxu0 %v362
  %523 = vmatprep.subr.bf16.mxu0 %v359
  %524 = vmatpush1.bf16.msra.mxu0 %v358
  %525 = vmatprep.subr.bf16.mxu0 %v355
  %526 = vmatpush1.bf16.msra.mxu0 %v354
  %527 = vmatprep.subr.bf16.mxu0 %v351
  %528 = vmatpush1.bf16.msra.mxu0 %v350
  %529 = vmatprep.subr.bf16.mxu0 %v347
  %530 = vmatpush1.bf16.msra.mxu0 %v346
  %531 = vmatprep.subr.bf16.mxu0 %v343
  %532 = vmatpush1.bf16.msra.mxu0 %v342
  %533 = vmatprep.subr.bf16.mxu0 %v339
  %534 = vmatpush1.bf16.msra.mxu0 %v338
  %535 = vmatprep.subr.bf16.mxu0 %v335
  %536 = vmatpush1.bf16.msra.mxu0 %v334
  %537 = vmatprep.subr.bf16.mxu0 %v395
  %538 = vmatpush2.bf16.msra.mxu0 %v394
  %539 = vmatprep.subr.bf16.mxu0 %v391
  %540 = vmatpush2.bf16.msra.mxu0 %v390
  %541 = vmatprep.subr.bf16.mxu0 %v387
  %542 = vmatpush2.bf16.msra.mxu0 %v386
  %543 = vmatprep.subr.bf16.mxu0 %v383
  %544 = vmatpush2.bf16.msra.mxu0 %v382
  %545 = vmatprep.subr.bf16.mxu0 %v379
  %546 = vmatpush2.bf16.msra.mxu0 %v378
  %547 = vmatprep.subr.bf16.mxu0 %v375
  %548 = vmatpush2.bf16.msra.mxu0 %v374
  %549 = vmatprep.subr.bf16.mxu0 %v371
  %550 = vmatpush2.bf16.msra.mxu0 %v370
  %551 = vmatprep.subr.bf16.mxu0 %v367
  %552 = vmatpush2.bf16.msra.mxu0 %v366
  %553 = vmatprep.mubr.bf16.mxu0 %v129
  %554 = vmatmul.mubr.bf16.gmra.mxu0 %v128
  %v555 = vpop.f32.mrf.mxu0
  %v556 = vadd.f32 %v104, %v555
  %v557 = vpop.f32.mrf.mxu0
  %v558 = vadd.f32 %v108, %v557
  %v559 = vpop.f32.mrf.mxu0
  %v560 = vadd.f32 %v104, %v559
  %v561 = vpop.f32.mrf.mxu0
  %v562 = vadd.f32 %v108, %v561
  %563 = vmatprep.mubr.bf16.mxu0 %v131
  %564 = vmatmul.mubr.bf16.gmra.mxu0 %v130
  %v565 = vpop.f32.mrf.mxu0
  %v566 = vadd.f32 %v104, %v565
  %v567 = vpop.f32.mrf.mxu0
  %v568 = vadd.f32 %v108, %v567
  %v569 = vpop.f32.mrf.mxu0
  %v570 = vadd.f32 %v104, %v569
  %v571 = vpop.f32.mrf.mxu0
  %v572 = vadd.f32 %v108, %v571
  %573 = vmatprep.mubr.bf16.mxu0 %v133
  %574 = vmatmul.mubr.bf16.gmra.mxu0 %v132
  %v575 = vpop.f32.mrf.mxu0
  %v576 = vadd.f32 %v104, %v575
  %v577 = vpop.f32.mrf.mxu0
  %v578 = vadd.f32 %v108, %v577
  %v579 = vpop.f32.mrf.mxu0
  %v580 = vpop.f32.mrf.mxu0
  %581 = vdwg.mxu0
  %v582 = vmul.f32 %v495, 0.5
  %v583 = vmul.f32 %v497, 0.5
  %v584 = vmul.f32 %v556, 0.5
  %v585 = vmul.f32 %v558, 0.5
  %v586 = vmul.f32 %v499, 0.5
  %v587 = vmul.f32 %v501, 0.5
  %v588 = vmul.f32 %v560, 0.5
  %v589 = vmul.f32 %v562, 0.5
  %v590 = vmul.f32 %v505, 0.5
  %v591 = vmul.f32 %v507, 0.5
  %v592 = vmul.f32 %v566, 0.5
  %v593 = vmul.f32 %v568, 0.5
  %v594 = vmul.f32 %v509, 0.5
  %v595 = vmul.f32 %v511, 0.5
  %v596 = vmul.f32 %v570, 0.5
  %v597 = vmul.f32 %v572, 0.5
  %v598 = vmul.f32 %v515, 0.5
  %v599 = vmul.f32 %v517, 0.5
  %v600 = vmul.f32 %v576, 0.5
  %v601 = vmul.f32 %v578, 0.5
  %v602 = vmul.f32 %v495, 0.044715
  %v603 = vmul.f32 %v497, 0.044715
  %v604 = vmul.f32 %v556, 0.044715
  %v605 = vmul.f32 %v558, 0.044715
  %v606 = vmul.f32 %v499, 0.044715
  %v607 = vmul.f32 %v501, 0.044715
  %v608 = vmul.f32 %v560, 0.044715
  %v609 = vmul.f32 %v562, 0.044715
  %v610 = vmul.f32 %v505, 0.044715
  %v611 = vmul.f32 %v507, 0.044715
  %v612 = vmul.f32 %v566, 0.044715
  %v613 = vmul.f32 %v568, 0.044715
  %v614 = vmul.f32 %v509, 0.044715
  %v615 = vmul.f32 %v511, 0.044715
  %v616 = vmul.f32 %v570, 0.044715
  %v617 = vmul.f32 %v572, 0.044715
  %v618 = vmul.f32 %v515, 0.044715
  %v619 = vmul.f32 %v517, 0.044715
  %v620 = vmul.f32 %v576, 0.044715
  %v621 = vmul.f32 %v578, 0.044715
  %v622 = vmul.f32 %v602, %v495
  %v623 = vmul.f32 %v603, %v497
  %v624 = vmul.f32 %v604, %v556
  %v625 = vmul.f32 %v605, %v558
  %v626 = vmul.f32 %v606, %v499
  %v627 = vmul.f32 %v607, %v501
  %v628 = vmul.f32 %v608, %v560
  %v629 = vmul.f32 %v609, %v562
  %v630 = vmul.f32 %v610, %v505
  %v631 = vmul.f32 %v611, %v507
  %v632 = vmul.f32 %v612, %v566
  %v633 = vmul.f32 %v613, %v568
  %v634 = vmul.f32 %v614, %v509
  %v635 = vmul.f32 %v615, %v511
  %v636 = vmul.f32 %v616, %v570
  %v637 = vmul.f32 %v617, %v572
  %v638 = vmul.f32 %v618, %v515
  %v639 = vmul.f32 %v619, %v517
  %v640 = vmul.f32 %v620, %v576
  %v641 = vmul.f32 %v621, %v578
  %v642 = vmul.f32 %v622, %v495
  %v643 = vmul.f32 %v623, %v497
  %v644 = vmul.f32 %v624, %v556
  %v645 = vmul.f32 %v625, %v558
  %v646 = vmul.f32 %v626, %v499
  %v647 = vmul.f32 %v627, %v501
  %v648 = vmul.f32 %v628, %v560
  %v649 = vmul.f32 %v629, %v562
  %v650 = vmul.f32 %v630, %v505
  %v651 = vmul.f32 %v631, %v507
  %v652 = vmul.f32 %v632, %v566
  %v653 = vmul.f32 %v633, %v568
  %v654 = vmul.f32 %v634, %v509
  %v655 = vmul.f32 %v635, %v511
  %v656 = vmul.f32 %v636, %v570
  %v657 = vmul.f32 %v637, %v572
  %v658 = vmul.f32 %v638, %v515
  %v659 = vmul.f32 %v639, %v517
  %v660 = vmul.f32 %v640, %v576
  %v661 = vmul.f32 %v641, %v578
  %v662 = vadd.f32 %v495, %v642
  %v663 = vadd.f32 %v497, %v643
  %v664 = vadd.f32 %v556, %v644
  %v665 = vadd.f32 %v558, %v645
  %v666 = vadd.f32 %v499, %v646
  %v667 = vadd.f32 %v501, %v647
  %v668 = vadd.f32 %v560, %v648
  %v669 = vadd.f32 %v562, %v649
  %v670 = vadd.f32 %v505, %v650
  %v671 = vadd.f32 %v507, %v651
  %v672 = vadd.f32 %v566, %v652
  %v673 = vadd.f32 %v568, %v653
  %v674 = vadd.f32 %v509, %v654
  %v675 = vadd.f32 %v511, %v655
  %v676 = vadd.f32 %v570, %v656
  %v677 = vadd.f32 %v572, %v657
  %v678 = vadd.f32 %v515, %v658
  %v679 = vadd.f32 %v517, %v659
  %v680 = vadd.f32 %v576, %v660
  %v681 = vadd.f32 %v578, %v661
  %v682 = vmul.f32 %v662, 0.7978846
  %v683 = vmul.f32 %v663, 0.7978846
  %v684 = vmul.f32 %v664, 0.7978846
  %v685 = vmul.f32 %v665, 0.7978846
  %v686 = vmul.f32 %v666, 0.7978846
  %v687 = vmul.f32 %v667, 0.7978846
  %v688 = vmul.f32 %v668, 0.7978846
  %v689 = vmul.f32 %v669, 0.7978846
  %v690 = vmul.f32 %v670, 0.7978846
  %v691 = vmul.f32 %v671, 0.7978846
  %v692 = vmul.f32 %v672, 0.7978846
  %v693 = vmul.f32 %v673, 0.7978846
  %v694 = vmul.f32 %v674, 0.7978846
  %v695 = vmul.f32 %v675, 0.7978846
  %v696 = vmul.f32 %v676, 0.7978846
  %v697 = vmul.f32 %v677, 0.7978846
  %v698 = vmul.f32 %v678, 0.7978846
  %v699 = vmul.f32 %v679, 0.7978846
  %v700 = vmul.f32 %v680, 0.7978846
  %v701 = vmul.f32 %v681, 0.7978846
  %v702 = vtanh.pop %v682
  %v703 = vtanh.pop %v683
  %v704 = vtanh.pop %v684
  %v705 = vtanh.pop %v685
  %v706 = vtanh.pop %v686
  %v707 = vtanh.pop %v687
  %v708 = vtanh.pop %v688
  %v709 = vtanh.pop %v689
  %v710 = vtanh.pop %v690
  %v711 = vtanh.pop %v691
  %v712 = vtanh.pop %v692
  %v713 = vtanh.pop %v693
  %v714 = vtanh.pop %v694
  %v715 = vtanh.pop %v695
  %v716 = vtanh.pop %v696
  %v717 = vtanh.pop %v697
  %v718 = vtanh.pop %v698
  %v719 = vtanh.pop %v699
  %v720 = vtanh.pop %v700
  %v721 = vtanh.pop %v701
  %v722 = vadd.f32 %v702, 1.0
  %v723 = vadd.f32 %v703, 1.0
  %v724 = vadd.f32 %v704, 1.0
  %v725 = vadd.f32 %v705, 1.0
  %v726 = vadd.f32 %v706, 1.0
  %v727 = vadd.f32 %v707, 1.0
  %v728 = vadd.f32 %v708, 1.0
  %v729 = vadd.f32 %v709, 1.0
  %v730 = vadd.f32 %v710, 1.0
  %v731 = vadd.f32 %v711, 1.0
  %v732 = vadd.f32 %v712, 1.0
  %v733 = vadd.f32 %v713, 1.0
  %v734 = vadd.f32 %v714, 1.0
  %v735 = vadd.f32 %v715, 1.0
  %v736 = vadd.f32 %v716, 1.0
  %v737 = vadd.f32 %v717, 1.0
  %v738 = vadd.f32 %v718, 1.0
  %v739 = vadd.f32 %v719, 1.0
  %v740 = vadd.f32 %v720, 1.0
  %v741 = vadd.f32 %v721, 1.0
  %v742 = vmul.f32 %v582, %v722
  %v743 = vmul.f32 %v583, %v723
  %v744 = vmul.f32 %v584, %v724
  %v745 = vmul.f32 %v585, %v725
  %v746 = vmul.f32 %v586, %v726
  %v747 = vmul.f32 %v587, %v727
  %v748 = vmul.f32 %v588, %v728
  %v749 = vmul.f32 %v589, %v729
  %v750 = vmul.f32 %v590, %v730
  %v751 = vmul.f32 %v591, %v731
  %v752 = vmul.f32 %v592, %v732
  %v753 = vmul.f32 %v593, %v733
  %v754 = vmul.f32 %v594, %v734
  %v755 = vmul.f32 %v595, %v735
  %v756 = vmul.f32 %v596, %v736
  %v757 = vmul.f32 %v597, %v737
  %v758 = vmul.f32 %v598, %v738
  %v759 = vmul.f32 %v599, %v739
  %v760 = vmul.f32 %v600, %v740
  %v761 = vmul.f32 %v601, %v741
  %v762 = vld [vmem:[%s3] sm:$0xf]
  %v764 = vlaneseq
  %v765 = vshrl.u32 %v764, 7
  %v766 = vsub.s32 0, %v765
  %v767 = vrot.slane %v762, %v766
  %v768 = vlaneseq
  %v769 = vshrl.u32 %v768, 7
  %v770 = vsub.s32 1, %v769
  %v771 = vrot.slane %v762, %v770
  %v772 = vlaneseq
  %v773 = vshrl.u32 %v772, 7
  %v774 = vsub.s32 2, %v773
  %v775 = vrot.slane %v762, %v774
  %v776 = vlaneseq
  %v777 = vshrl.u32 %v776, 7
  %v778 = vsub.s32 3, %v777
  %v779 = vrot.slane %v762, %v778
  %v784 = vmul.f32 %v742, %v767
  %v785 = vmul.f32 %v743, %v771
  %v786 = vmul.f32 %v744, %v775
  %v787 = vmul.f32 %v745, %v779
  %v788 = vmul.f32 %v746, %v767
  %v789 = vmul.f32 %v747, %v771
  %v790 = vmul.f32 %v748, %v775
  %v791 = vmul.f32 %v749, %v779
  %v792 = vmul.f32 %v750, %v767
  %v793 = vmul.f32 %v751, %v771
  %v794 = vmul.f32 %v752, %v775
  %v795 = vmul.f32 %v753, %v779
  %v796 = vmul.f32 %v754, %v767
  %v797 = vmul.f32 %v755, %v771
  %v798 = vmul.f32 %v756, %v775
  %v799 = vmul.f32 %v757, %v779
  %v800 = vmul.f32 %v758, %v767
  %v801 = vmul.f32 %v759, %v771
  %v802 = vmul.f32 %v760, %v775
  %v803 = vmul.f32 %v761, %v779
  %v804 = vadd.f32 %v784, %v785
  %v805 = vadd.f32 %v804, %v786
  %v806 = vadd.f32 %v805, %v787
  %807 = vadd.xlane.f32.xlu0 %v806
  %v808 = vpop.xlane.xlu0 %807
  %v809 = vadd.f32 %v788, %v789
  %v810 = vadd.f32 %v809, %v790
  %v811 = vadd.f32 %v810, %v791
  %812 = vadd.xlane.f32.xlu0 %v811
  %v813 = vpop.xlane.xlu0 %812
  %v814 = vadd.f32 %v792, %v793
  %v815 = vadd.f32 %v814, %v794
  %v816 = vadd.f32 %v815, %v795
  %817 = vadd.xlane.f32.xlu0 %v816
  %v818 = vpop.xlane.xlu0 %817
  %v819 = vadd.f32 %v796, %v797
  %v820 = vadd.f32 %v819, %v798
  %v821 = vadd.f32 %v820, %v799
  %822 = vadd.xlane.f32.xlu0 %v821
  %v823 = vpop.xlane.xlu0 %822
  %vm824 = vcmask 1041408
  %v825 = vsel %vm824, %v800, 0.0
  %v826 = vsel %vm824, %v801, 0.0
  %v827 = vadd.f32 %v825, %v826
  %v828 = vsel %vm824, %v802, 0.0
  %v829 = vadd.f32 %v827, %v828
  %v830 = vsel %vm824, %v803, 0.0
  %v831 = vadd.f32 %v829, %v830
  %832 = vadd.xlane.f32.xlu0 %v831
  %v833 = vpop.xlane.xlu0 %832
  %v834 = vld [vmem:[#allocation2] sm:$0x1]
  %v836 = vlaneseq
  %v837 = vshrl.u32 %v836, 7
  %v838 = vsub.s32 0, %v837
  %v839 = vrot.slane %v834, %v838
  %v841 = vadd.f32 %v808, %v839
  %v842 = vadd.f32 %v813, %v839
  %v843 = vadd.f32 %v818, %v839
  %v844 = vadd.f32 %v823, %v839
  %v845 = vadd.f32 %v833, %v839
  %vm846 = vcmask 7168
  %847 = vst.msk [vmem:[%s5] sm:$0xff] %vm846, %v841
  %848 = vst.msk [vmem:[%s5 + $0x8] sm:$0xff] %vm846, %v842
  %849 = vst.msk [vmem:[%s5 + $0x10] sm:$0xff] %vm846, %v843
  %850 = vst.msk [vmem:[%s5 + $0x18] sm:$0xff] %vm846, %v844
  %vm851 = vcmask 1024
  %852 = vst.msk [vmem:[%s5 + $0x20] sm:$0x3] %vm851, %v845
  // Predicated region
  $region22: #{_lambda_.14} parent=0 // pred_check
    _
  $region23: #{_lambda_.14} parent=0 // pred_check_branch
    %854 = sbr.rel (0) target = $region25
  $region24: #{_lambda_.14} parent=0 // pred_region
    _
  $region25: #{_lambda_.14} parent=0 // pred_fallthru
    _
  // Predicated region
  $region26: #{_lambda_.14} parent=0 // pred_check
    _
  $region27: #{_lambda_.14} parent=0 // pred_check_branch
    %856 = sbr.rel (0) target = $region29
  $region28: #{_lambda_.14} parent=0 // pred_region
    _
  $region29: #{_lambda_.14} parent=0 // pred_fallthru
    _

// kernel: _lambda_.16
$region0: #{_lambda_.16}
  #allocation0 [shape = 'u32[]', space=smem, size = 0x4, offset = 0x4, fixed_abs, tag = 'smem constant byte address 0x4 - core index']
  #allocation1 [shape = 'u32[144,128]{1,0:T(1,128)}', space=vmem, size = 0x12000, scoped, tag = 'internal scratch']
  %s0 = inlined_call_operand.vmem [shape: bf16[36,256], index: 0, kind: input, shape index: {}]
  %s1 = inlined_call_operand.vmem [shape: f32[1,256], index: 1, kind: input, shape index: {}]
  %s2 = inlined_call_operand.vmem [shape: f32[1,256], index: 2, kind: input, shape index: {}]
  %s3 = inlined_call_operand.vmem [shape: bf16[36,256], index: 3, kind: output, shape index: {}]
  %s4 = sld [smem:[#allocation0]]
  $region22: #{_lambda_.16} parent=0
    _
  %s6 = ssub.s32 1, %s4
  %s7 = scalar_select 0, %s6, %s4
  // Predicated region
  $region2: #{_lambda_.16} parent=0 // pred_check
    _
  $region3: #{_lambda_.16} parent=0 // pred_check_branch
    %9 = sbr.rel (0) target = $region5
  $region4: #{_lambda_.16} parent=0 // pred_region
    _
  $region5: #{_lambda_.16} parent=0 // pred_fallthru
    _
  // Predicated region
  $region6: #{_lambda_.16} parent=0 // pred_check
    _
  $region7: #{_lambda_.16} parent=0 // pred_check_branch
    %11 = sbr.rel (0) target = $region9
  $region8: #{_lambda_.16} parent=0 // pred_region
    _
  $region9: #{_lambda_.16} parent=0 // pred_fallthru
    _
  // Predicated region
  $region10: #{_lambda_.16} parent=0 // pred_check
    _
  $region11: #{_lambda_.16} parent=0 // pred_check_branch
    %13 = sbr.rel (0) target = $region13
  $region12: #{_lambda_.16} parent=0 // pred_region
    _
  $region13: #{_lambda_.16} parent=0 // pred_fallthru
    _
  %v14 = vld [vmem:[%s0] sm:$0xff]
  %v15 = vld [vmem:[%s0 + $0x8] sm:$0xff]
  %v16 = vld [vmem:[%s0 + $0x10] sm:$0xff]
  %v17 = vld [vmem:[%s0 + $0x18] sm:$0xff]
  %v18 = vld [vmem:[%s0 + $0x20] sm:$0x33]
  %v19 = vunpack.c.l.bf16 %v14
  %v20 = vunpack.c.h.bf16 %v14
  %v21 = vunpack.c.l.bf16 %v15
  %v22 = vunpack.c.h.bf16 %v15
  %v23 = vunpack.c.l.bf16 %v16
  %v24 = vunpack.c.h.bf16 %v16
  %v25 = vunpack.c.l.bf16 %v17
  %v26 = vunpack.c.h.bf16 %v17
  %v27 = vunpack.c.l.bf16 %v18
  %v28 = vunpack.c.h.bf16 %v18
  %v29 = vld [vmem:[%s1] sm:$0x3]
  %v30 = vld [vmem:[%s2] sm:$0x3]
  %v31 = vadd.f32 %v19, %v20
  %32 = vadd.xlane.f32.xlu0 %v31
  %v33 = vpop.xlane.xlu0 %32
  %v34 = vadd.f32 %v21, %v22
  %35 = vadd.xlane.f32.xlu0 %v34
  %v36 = vpop.xlane.xlu0 %35
  %v37 = vadd.f32 %v23, %v24
  %38 = vadd.xlane.f32.xlu0 %v37
  %v39 = vpop.xlane.xlu0 %38
  %v40 = vadd.f32 %v25, %v26
  %41 = vadd.xlane.f32.xlu0 %v40
  %v42 = vpop.xlane.xlu0 %41
  %vm43 = vcmask 1043456
  %v44 = vsel %vm43, %v27, 0.0
  %v45 = vsel %vm43, %v28, 0.0
  %v46 = vadd.f32 %v44, %v45
  %47 = vadd.xlane.f32.xlu0 %v46
  %v48 = vpop.xlane.xlu0 %47
  %v49 = vrcp.pop 256.0
  %v50 = vmul.f32 %v33, %v49
  %v51 = vmul.f32 %v36, %v49
  %v52 = vmul.f32 %v39, %v49
  %v53 = vmul.f32 %v42, %v49
  %v54 = vmul.f32 %v48, %v49
  %v55 = vsub.f32 %v19, %v50
  %v56 = vsub.f32 %v20, %v50
  %v57 = vsub.f32 %v21, %v51
  %v58 = vsub.f32 %v22, %v51
  %v59 = vsub.f32 %v23, %v52
  %v60 = vsub.f32 %v24, %v52
  %v61 = vsub.f32 %v25, %v53
  %v62 = vsub.f32 %v26, %v53
  %v63 = vsub.f32 %v27, %v54
  %v64 = vsub.f32 %v28, %v54
  %v65 = vmul.f32 %v55, %v55
  %v66 = vmul.f32 %v56, %v56
  %v67 = vmul.f32 %v57, %v57
  %v68 = vmul.f32 %v58, %v58
  %v69 = vmul.f32 %v59, %v59
  %v70 = vmul.f32 %v60, %v60
  %v71 = vmul.f32 %v61, %v61
  %v72 = vmul.f32 %v62, %v62
  %v73 = vmul.f32 %v63, %v63
  %v74 = vmul.f32 %v64, %v64
  %v75 = vadd.f32 %v65, %v66
  %76 = vadd.xlane.f32.xlu0 %v75
  %v77 = vpop.xlane.xlu0 %76
  %v78 = vadd.f32 %v67, %v68
  %79 = vadd.xlane.f32.xlu0 %v78
  %v80 = vpop.xlane.xlu0 %79
  %v81 = vadd.f32 %v69, %v70
  %82 = vadd.xlane.f32.xlu0 %v81
  %v83 = vpop.xlane.xlu0 %82
  %v84 = vadd.f32 %v71, %v72
  %85 = vadd.xlane.f32.xlu0 %v84
  %v86 = vpop.xlane.xlu0 %85
  %v87 = vsel %vm43, %v73, 0.0
  %v88 = vsel %vm43, %v74, 0.0
  %v89 = vadd.f32 %v87, %v88
  %90 = vadd.xlane.f32.xlu0 %v89
  %v91 = vpop.xlane.xlu0 %90
  %v92 = vmul.f32 %v77, %v49
  %v93 = vmul.f32 %v80, %v49
  %v94 = vmul.f32 %v83, %v49
  %v95 = vmul.f32 %v86, %v49
  %v96 = vmul.f32 %v91, %v49
  %v97 = vadd.f32 %v92, 1e-05
  %v98 = vadd.f32 %v93, 1e-05
  %v99 = vadd.f32 %v94, 1e-05
  %v100 = vadd.f32 %v95, 1e-05
  %v101 = vadd.f32 %v96, 1e-05
  %v102 = vrsqrt.pop %v97
  %v103 = vrsqrt.pop %v98
  %v104 = vrsqrt.pop %v99
  %v105 = vrsqrt.pop %v100
  %v106 = vrsqrt.pop %v101
  %v107 = vmul.f32 %v55, %v102
  %v108 = vmul.f32 %v56, %v102
  %v109 = vmul.f32 %v57, %v103
  %v110 = vmul.f32 %v58, %v103
  %v111 = vmul.f32 %v59, %v104
  %v112 = vmul.f32 %v60, %v104
  %v113 = vmul.f32 %v61, %v105
  %v114 = vmul.f32 %v62, %v105
  %v115 = vmul.f32 %v63, %v106
  %v116 = vmul.f32 %v64, %v106
  %v118 = vlaneseq
  %v119 = vshrl.u32 %v118, 7
  %v120 = vsub.s32 0, %v119
  %v121 = vrot.slane %v29, %v120
  %v122 = vlaneseq
  %v123 = vshrl.u32 %v122, 7
  %v124 = vsub.s32 1, %v123
  %v125 = vrot.slane %v29, %v124
  %v128 = vmul.f32 %v107, %v121
  %v129 = vmul.f32 %v108, %v125
  %v130 = vmul.f32 %v109, %v121
  %v131 = vmul.f32 %v110, %v125
  %v132 = vmul.f32 %v111, %v121
  %v133 = vmul.f32 %v112, %v125
  %v134 = vmul.f32 %v113, %v121
  %v135 = vmul.f32 %v114, %v125
  %v136 = vmul.f32 %v115, %v121
  %v137 = vmul.f32 %v116, %v125
  %v139 = vlaneseq
  %v140 = vshrl.u32 %v139, 7
  %v141 = vsub.s32 0, %v140
  %v142 = vrot.slane %v30, %v141
  %v143 = vlaneseq
  %v144 = vshrl.u32 %v143, 7
  %v145 = vsub.s32 1, %v144
  %v146 = vrot.slane %v30, %v145
  %v149 = vadd.f32 %v128, %v142
  %v150 = vadd.f32 %v129, %v146
  %v151 = vadd.f32 %v130, %v142
  %v152 = vadd.f32 %v131, %v146
  %v153 = vadd.f32 %v132, %v142
  %v154 = vadd.f32 %v133, %v146
  %v155 = vadd.f32 %v134, %v142
  %v156 = vadd.f32 %v135, %v146
  %v157 = vadd.f32 %v136, %v142
  %v158 = vadd.f32 %v137, %v146
  %v159 = vpack.c.bf16 %v151, %v149
  %v160 = vpack.c.bf16 %v152, %v150
  %v161 = vpack.c.bf16 %v155, %v153
  %v162 = vpack.c.bf16 %v156, %v154
  %v163 = vpack.c.bf16 %v157, %v157
  %v164 = vpack.c.bf16 %v158, %v158
  %v171 = vunpack.c.l.b16 %v159
  %v172 = vunpack.c.l.b16 %v160
  %v173 = vunpack.c.h.b16 %v159
  %v174 = vunpack.c.h.b16 %v160
  %v175 = vunpack.c.l.b16 %v161
  %v176 = vunpack.c.l.b16 %v162
  %v177 = vunpack.c.h.b16 %v161
  %v178 = vunpack.c.h.b16 %v162
  %v179 = vunpack.c.l.b16 %v163
  %v180 = vunpack.c.l.b16 %v164
  %v181 = vpack.c.b16 %v172, %v171
  %v182 = vpack.c.b16 %v174, %v173
  %v183 = vpack.c.b16 %v176, %v175
  %v184 = vpack.c.b16 %v178, %v177
  %v185 = vpack.c.b16 %v180, %v179
  %191 = vst [vmem:[%s3] sm:$0xff] %v181
  %192 = vst [vmem:[%s3 + $0x8] sm:$0xff] %v182
  %193 = vst [vmem:[%s3 + $0x10] sm:$0xff] %v183
  %194 = vst [vmem:[%s3 + $0x18] sm:$0xff] %v184
  %195 = vst [vmem:[%s3 + $0x20] sm:$0x33] %v185
  // Predicated region
  $region14: #{_lambda_.16} parent=0 // pred_check
    _
  $region15: #{_lambda_.16} parent=0 // pred_check_branch
    %197 = sbr.rel (0) target = $region17
  $region16: #{_lambda_.16} parent=0 // pred_region
    _
  $region17: #{_lambda_.16} parent=0 // pred_fallthru
    _
  // Predicated region
  $region18: #{_lambda_.16} parent=0 // pred_check
    _
  $region19: #{_lambda_.16} parent=0 // pred_check_branch
    %199 = sbr.rel (0) target = $region21
  $region20: #{_lambda_.16} parent=0 // pred_region
    _
  $region21: #{_lambda_.16} parent=0 // pred_fallthru
    _

// kernel: _lambda_.15
$region0: #{_lambda_.15}
  #allocation0 [shape = 'u32[]', space=smem, size = 0x4, offset = 0x4, fixed_abs, tag = 'smem constant byte address 0x4 - core index']
  #allocation1 [shape = 'u32[144,128]{1,0:T(1,128)}', space=vmem, size = 0x12000, scoped, tag = 'internal scratch']
  %s0 = inlined_call_operand.vmem [shape: bf16[2,17,17], index: 0, kind: input, shape index: {}]
  %s1 = inlined_call_operand.vmem [shape: bf16[2,17,256], index: 1, kind: input, shape index: {}]
  %s2 = inlined_call_operand.vmem [shape: bf16[2,17,256], index: 2, kind: output, shape index: {}]
  %s3 = sld [smem:[#allocation0]]
  $region41: #{_lambda_.15} parent=0
    _
  %s5 = ssub.s32 1, %s3
  %s6 = scalar_select 0, %s5, %s3
  loop: start=0, step=1, limit=4
  $region2: #{_lambda_.15} parent=0 // loop_pre_header
    _
  $region3: #{_lambda_.15} parent=0 // loop_header
    %s8 = sphi 0, %s12
    %p9 = scmp.ge.s32.totalorder %s8, 4
    %s18 = sphi 0, %s20
    %s21 = sphi 0, %s18
    %s22 = sphi 0, %s21
    %s38 = sphi 0, %s22
    %s44 = sphi 0, %s46
    %s47 = sphi 0, %s44
    %s48 = sphi 0, %s47
    %s64 = sphi 0, %s48
    %s70 = sphi 0, %s72
    %s73 = sphi 0, %s70
    %s74 = sphi 0, %s73
    %s90 = sphi 0, %s74
  $region4: #{_lambda_.15} parent=0 // loop_header_branch
    %11 = sbr.rel (%p9) target = $region8
  $region5: #{_lambda_.15} parent=0 // loop_body
    %s13 = ssub.s32 %s8, 1
    %s14 = ssub.s32 %s8, 2
    %s15 = sadd.s32 %s8, 1
    %s16 = ssub.s32 %s8, %s15
    %p17 = scmp.eq.s32.totalorder %s16, 0
    %s19 = sadd.s32 %s18, 1
    %s20 = scalar_select %p17, %s18, %s19
    %p23 = pneg %p17
    %p24 = scmp.eq.s32.totalorder %s8, 1
    %p25 = por %p23, %p24
    %p26 = scmp.ne.s32.totalorder %s18, %s21
    %p27 = scmp.eq.s32.totalorder %s8, 0
    %p28 = por %p26, %p27
    %p29 = scmp.ne.s32.totalorder %s18, %s21
    %p30 = scmp.eq.s32.totalorder %s13, 1
    %p31 = por %p29, %p30
    %p32 = scmp.ne.s32.totalorder %s21, %s22
    %p33 = scmp.eq.s32.totalorder %s13, 0
    %p34 = por %p32, %p33
    %p35 = scmp.ne.s32.totalorder %s21, %s22
    %p36 = scmp.eq.s32.totalorder %s14, 1
    %p37 = por %p35, %p36
    %p39 = scmp.ne.s32.totalorder %s22, %s38
    %p40 = scmp.eq.s32.totalorder %s14, 0
    %p41 = por %p39, %p40
    %s42 = ssub.s32 %s8, %s15
    %p43 = scmp.eq.s32.totalorder %s42, 0
    %s45 = sadd.s32 %s44, 1
    %s46 = scalar_select %p43, %s44, %s45
    %p49 = pneg %p43
    %p50 = scmp.eq.s32.totalorder %s8, 1
    %p51 = por %p49, %p50
    %p52 = scmp.ne.s32.totalorder %s44, %s47
    %p53 = scmp.eq.s32.totalorder %s8, 0
    %p54 = por %p52, %p53
    %p55 = scmp.ne.s32.totalorder %s44, %s47
    %p56 = scmp.eq.s32.totalorder %s13, 1
    %p57 = por %p55, %p56
    %p58 = scmp.ne.s32.totalorder %s47, %s48
    %p59 = scmp.eq.s32.totalorder %s13, 0
    %p60 = por %p58, %p59
    %p61 = scmp.ne.s32.totalorder %s47, %s48
    %p62 = scmp.eq.s32.totalorder %s14, 1
    %p63 = por %p61, %p62
    %p65 = scmp.ne.s32.totalorder %s48, %s64
    %p66 = scmp.eq.s32.totalorder %s14, 0
    %p67 = por %p65, %p66
    %s68 = ssub.s32 %s8, %s15
    %p69 = scmp.eq.s32.totalorder %s68, 0
    %s71 = sadd.s32 %s70, 1
    %s72 = scalar_select %p69, %s70, %s71
    %p75 = pneg %p69
    %p76 = scmp.eq.s32.totalorder %s8, 1
    %p77 = por %p75, %p76
    %p78 = scmp.ne.s32.totalorder %s70, %s73
    %p79 = scmp.eq.s32.totalorder %s8, 0
    %p80 = por %p78, %p79
    %p81 = scmp.ne.s32.totalorder %s70, %s73
    %p82 = scmp.eq.s32.totalorder %s13, 1
    %p83 = por %p81, %p82
    %p84 = scmp.ne.s32.totalorder %s73, %s74
    %p85 = scmp.eq.s32.totalorder %s13, 0
    %p86 = por %p84, %p85
    %p87 = scmp.ne.s32.totalorder %s73, %s74
    %p88 = scmp.eq.s32.totalorder %s14, 1
    %p89 = por %p87, %p88
    %p91 = scmp.ne.s32.totalorder %s74, %s90
    %p92 = scmp.eq.s32.totalorder %s14, 0
    %p93 = por %p91, %p92
    %p94 = scmp.le.s32.totalorder 1, %s8
    %p95 = scmp.lt.s32.totalorder %s8, 3
    %p96 = pnand %p94, %p95
    %p97 = pneg %p96
    // Predicated region
    $region9: #{_lambda_.15} parent=5 // pred_check
      _
    $region10: #{_lambda_.15} parent=5 // pred_check_branch
      %99 = sbr.rel (%p96) target = $region12
    $region11: #{_lambda_.15} parent=5 // pred_region
      %s100 = ssub.s32 %s8, 1
    $region12: #{_lambda_.15} parent=5 // pred_fallthru
      _
    %p101 = scmp.lt.s32.totalorder %s8, 2
    // Predicated region
    $region13: #{_lambda_.15} parent=5 // pred_check
      %p102 = pneg %p101
    $region14: #{_lambda_.15} parent=5 // pred_check_branch
      %104 = sbr.rel (%p102) target = $region16
    $region15: #{_lambda_.15} parent=5 // pred_region
      // Predicated region
      $region17: #{_lambda_.15} parent=15 // pred_check
        %p105 = pneg %p28
      $region18: #{_lambda_.15} parent=15 // pred_check_branch
        %107 = sbr.rel (%p105) target = $region20
      $region19: #{_lambda_.15} parent=15 // pred_region
        %p108 = scmp.lt.s32.totalorder %s8, 1
        %s109 = scalar_select %p108, %s8, 1
        %s110 = smul.addr %s109, 3
        %s111 = smul.addr %s110, 4
        %s112 = scalar_lea.vmem %s0, %s111
      $region20: #{_lambda_.15} parent=15 // pred_fallthru
        _
      // Predicated region
      $region21: #{_lambda_.15} parent=15 // pred_check
        %p113 = pneg %p54
      $region22: #{_lambda_.15} parent=15 // pred_check_branch
        %115 = sbr.rel (%p113) target = $region24
      $region23: #{_lambda_.15} parent=15 // pred_region
        %p116 = scmp.lt.s32.totalorder %s8, 1
        %s117 = scalar_select %p116, %s8, 1
        %s118 = smul.addr %s117, 6
        %s119 = smul.addr %s118, 4
        %s120 = scalar_lea.vmem %s1, %s119
      $region24: #{_lambda_.15} parent=15 // pred_fallthru
        _
    $region16: #{_lambda_.15} parent=5 // pred_fallthru
      _
    %p121 = scmp.le.s32.totalorder 1, %s8
    %p122 = scmp.lt.s32.totalorder %s8, 3
    %p123 = pnand %p121, %p122
    %p124 = pneg %p123
    // Predicated region
    $region25: #{_lambda_.15} parent=5 // pred_check
      _
    $region26: #{_lambda_.15} parent=5 // pred_check_branch
      %126 = sbr.rel (%p123) target = $region28
    $region27: #{_lambda_.15} parent=5 // pred_region
      %s127 = ssub.s32 %s8, 1
      %p128 = scmp.lt.s32.totalorder %s13, 1
      %s129 = scalar_select %p128, %s13, 1
      %s130 = smul.addr %s129, 3
      %s131 = smul.addr %s130, 4
      %s132 = scalar_lea.vmem %s0, %s131
      %p133 = pneg %p34
      %p134 = pneg %p31
      %p135 = scmp.lt.s32.totalorder %s13, 1
      %s136 = scalar_select %p135, %s13, 1
      %s137 = smul.addr %s136, 6
      %s138 = smul.addr %s137, 4
      %s139 = scalar_lea.vmem %s1, %s138
      %p140 = pneg %p60
      %p141 = pneg %p57
      %p142 = pneg %p86
      %p143 = pneg %p83
      %p144 = scmp.lt.s32.totalorder %s13, 1
      %s145 = scalar_select %p144, %s13, 1
      %s146 = smul.addr %s145, 6
      %s147 = smul.addr %s146, 4
      %s148 = scalar_lea.vmem %s2, %s147
      %p149 = scmp.lt.s32.totalorder %s13, 1
      %s150 = scalar_select %p149, %s13, 1
      %s151 = smul.addr %s150, 3
      %s152 = smul.addr %s151, 4
      %s153 = scalar_lea.vmem %s0, %s152
      %p154 = scmp.lt.s32.totalorder %s13, 1
      %s155 = scalar_select %p154, %s13, 1
      %s156 = smul.addr %s155, 6
      %s157 = smul.addr %s156, 4
      %s158 = scalar_lea.vmem %s1, %s157
      %p159 = scmp.lt.s32.totalorder %s13, 1
      %s160 = scalar_select %p159, %s13, 1
      %s161 = smul.addr %s160, 6
      %s162 = smul.addr %s161, 4
      %s163 = scalar_lea.vmem %s2, %s162
      %v165 = vld [vmem:[%s153] sm:$0xf]
      %v166 = vld [vmem:[%s153 + $0x4] sm:$0xf]
      %v167 = vld [vmem:[%s153 + $0x8] sm:$0x1]
      %v168 = vld [vmem:[%s158] sm:$0xff]
      %v169 = vld [vmem:[%s158 + $0x8] sm:$0xff]
      %v170 = vld [vmem:[%s158 + $0x10] sm:$0x11]
      %v174 = vunpack.c.l.b16 %v165
      %v175 = vunpack.c.l.b16 %v166
      %v176 = vunpack.c.l.b16 %v167
      %v177 = vpack.c.b16 %v175, %v174
      %v178 = vpack.c.b16 %v176, %v176
      %v182 = vunpack.c.l.b16 %v168
      %v183 = vunpack.c.h.b16 %v168
      %v184 = vunpack.c.l.b16 %v169
      %v185 = vunpack.c.h.b16 %v169
      %v186 = vunpack.c.l.b16 %v170
      %v187 = vunpack.c.h.b16 %v170
      %v188 = vpack.c.b16 %v184, %v182
      %v189 = vpack.c.b16 %v185, %v183
      %v190 = vpack.c.b16 %v186, %v186
      %v191 = vpack.c.b16 %v187, %v187
      %vm194 = vcmask 138240
      %v196 = vsel %vm194, %v177, 0
      %v199 = vsel %vm194, %v178, 0
      %vm201 = vcmask 1040384
      %v202 = vsel 0, 4294967295, 65535
      %v203 = vsel %vm201, %v202, 0
      %v205 = vand.u32 %v190, %v203
      %v208 = vand.u32 %v191, %v203
      %210 = vmatprep.subr.bf16.mxu0 0
      %211 = vmatpush1.bf16.msra.mxu0 0
      %212 = vmatprep.subr.bf16.mxu0 0
      %213 = vmatpush1.bf16.msra.mxu0 0
      %214 = vmatprep.subr.bf16.mxu0 0
      %215 = vmatpush1.bf16.msra.mxu0 0
      %216 = vmatprep.subr.bf16.mxu0 0
      %217 = vmatpush1.bf16.msra.mxu0 0
      %218 = vmatprep.subr.bf16.mxu0 0
      %219 = vmatpush1.bf16.msra.mxu0 0
      %220 = vmatprep.subr.bf16.mxu0 0
      %221 = vmatpush1.bf16.msra.mxu0 0
      %222 = vmatprep.subr.bf16.mxu0 %v208
      %223 = vmatpush1.bf16.msra.mxu0 %v205
      %224 = vmatprep.subr.bf16.mxu0 %v189
      %225 = vmatpush1.bf16.msra.mxu0 %v188
      %226 = vmatprep.subr.bf16.mxu0 0
      %227 = vmatpush2.bf16.msra.mxu0 0
      %228 = vmatprep.subr.bf16.mxu0 0
      %229 = vmatpush2.bf16.msra.mxu0 0
      %230 = vmatprep.subr.bf16.mxu0 0
      %231 = vmatpush2.bf16.msra.mxu0 0
      %232 = vmatprep.subr.bf16.mxu0 0
      %233 = vmatpush2.bf16.msra.mxu0 0
      %234 = vmatprep.subr.bf16.mxu0 0
      %235 = vmatpush2.bf16.msra.mxu0 0
      %236 = vmatprep.subr.bf16.mxu0 0
      %237 = vmatpush2.bf16.msra.mxu0 0
      %238 = vmatprep.subr.bf16.mxu0 0
      %239 = vmatpush2.bf16.msra.mxu0 0
      %240 = vmatprep.subr.bf16.mxu0 0
      %241 = vmatpush2.bf16.msra.mxu0 0
      %242 = vmatprep.mubr.bf16.mxu0 0
      %243 = vmatmul.mubr.bf16.gmra.mxu0 %v196
      %v244 = vpop.f32.mrf.mxu0
      %v245 = vadd.f32 0.0, %v244
      %v246 = vpop.f32.mrf.mxu0
      %v247 = vadd.f32 0.0, %v246
      %v248 = vpop.f32.mrf.mxu0
      %v249 = vadd.f32 0.0, %v248
      %v250 = vpop.f32.mrf.mxu0
      %v251 = vadd.f32 0.0, %v250
      %252 = vmatprep.mubr.bf16.mxu0 0
      %253 = vmatmul.mubr.bf16.gmra.mxu0 %v199
      %v254 = vpop.f32.mrf.mxu0
      %v255 = vadd.f32 0.0, %v254
      %v256 = vpop.f32.mrf.mxu0
      %v257 = vadd.f32 0.0, %v256
      %v258 = vpop.f32.mrf.mxu0
      %v259 = vpop.f32.mrf.mxu0
      %260 = vdwg.mxu0
      %v261 = vpack.c.bf16 %v249, %v245
      %v262 = vpack.c.bf16 %v251, %v247
      %v263 = vpack.c.bf16 %v255, %v255
      %v264 = vpack.c.bf16 %v257, %v257
      %v269 = vunpack.c.l.b16 %v261
      %v270 = vunpack.c.l.b16 %v262
      %v271 = vunpack.c.h.b16 %v261
      %v272 = vunpack.c.h.b16 %v262
      %v273 = vunpack.c.l.b16 %v263
      %v274 = vunpack.c.l.b16 %v264
      %v275 = vpack.c.b16 %v270, %v269
      %v276 = vpack.c.b16 %v272, %v271
      %v277 = vpack.c.b16 %v274, %v273
      %281 = vst [vmem:[%s163] sm:$0xff] %v275
      %282 = vst [vmem:[%s163 + $0x8] sm:$0xff] %v276
      %vm283 = vcmask 1040384
      %vm284 = vsmask.f32 256
      %vm285 = vmand %vm283, %vm284
      %vm286 = vcmask 1044484
      %vm287 = vsmask.f32 4352
      %vm288 = vmand %vm286, %vm287
      %vm289 = vmor %vm288, %vm285
      %v290 = vld [vmem:[%s163 + $0x10] sm:$0x11]
      %v291 = vsel %vm289, %v277, %v290
      %292 = vst [vmem:[%s163 + $0x10] sm:$0x11] %v291
      %p293 = scmp.lt.s32.totalorder %s13, 1
      %s294 = scalar_select %p293, %s13, 1
      %s295 = smul.addr %s294, 6
      %s296 = smul.addr %s295, 4
      %s297 = scalar_lea.vmem %s2, %s296
      // Predicated region
      $region29: #{_lambda_.15} parent=27 // pred_check
        %p298 = pneg %p83
      $region30: #{_lambda_.15} parent=27 // pred_check_branch
        %300 = sbr.rel (%p298) target = $region32
      $region31: #{_lambda_.15} parent=27 // pred_region
        _
      $region32: #{_lambda_.15} parent=27 // pred_fallthru
        _
    $region28: #{_lambda_.15} parent=5 // pred_fallthru
      _
    %p301 = scmp.le.s32.totalorder 2, %s8
    // Predicated region
    $region33: #{_lambda_.15} parent=5 // pred_check
      %p302 = pneg %p301
    $region34: #{_lambda_.15} parent=5 // pred_check_branch
      %304 = sbr.rel (%p302) target = $region36
    $region35: #{_lambda_.15} parent=5 // pred_region
      %s305 = ssub.s32 %s8, 2
      // Predicated region
      $region37: #{_lambda_.15} parent=35 // pred_check
        %p306 = pneg %p89
      $region38: #{_lambda_.15} parent=35 // pred_check_branch
        %308 = sbr.rel (%p306) target = $region40
      $region39: #{_lambda_.15} parent=35 // pred_region
        %p309 = scmp.lt.s32.totalorder %s14, 1
        %s310 = scalar_select %p309, %s14, 1
        %s311 = smul.addr %s310, 6
        %s312 = smul.addr %s311, 4
        %s313 = scalar_lea.vmem %s2, %s312
      $region40: #{_lambda_.15} parent=35 // pred_fallthru
        _
    $region36: #{_lambda_.15} parent=5 // pred_fallthru
      _
  $region6: #{_lambda_.15} parent=0 // loop_footer
    %s12 = sadd.s32 1, %s8
  $region7: #{_lambda_.15} parent=0 // loop_footer_branch
    %7 = sbr.rel target = $region3
  $region8: #{_lambda_.15} parent=0 // loop_exit
    _

// kernel: _lambda_.17
$region0: #{_lambda_.17}
  #allocation0 [shape = 'u32[]', space=smem, size = 0x4, offset = 0x4, fixed_abs, tag = 'smem constant byte address 0x4 - core index']
  #allocation1 [shape = 'u32[144,128]{1,0:T(1,128)}', space=vmem, size = 0x12000, scoped, tag = 'internal scratch']
  %s0 = inlined_call_operand.vmem [shape: bf16[36,256], index: 0, kind: input, shape index: {}]
  %s1 = inlined_call_operand.vmem [shape: f32[1,256], index: 1, kind: input, shape index: {}]
  %s2 = inlined_call_operand.vmem [shape: f32[1,256], index: 2, kind: input, shape index: {}]
  %s3 = inlined_call_operand.vmem [shape: bf16[256,768], index: 3, kind: input, shape index: {}]
  %s4 = inlined_call_operand.vmem [shape: f32[1,768], index: 4, kind: input, shape index: {}]
  %s5 = inlined_call_operand.vmem [shape: bf16[36,768], index: 5, kind: output, shape index: {}]
  %s6 = sld [smem:[#allocation0]]
  $region30: #{_lambda_.17} parent=0
    _
  %s8 = ssub.s32 1, %s6
  %s9 = scalar_select 0, %s8, %s6
  // Predicated region
  $region2: #{_lambda_.17} parent=0 // pred_check
    _
  $region3: #{_lambda_.17} parent=0 // pred_check_branch
    %11 = sbr.rel (0) target = $region5
  $region4: #{_lambda_.17} parent=0 // pred_region
    _
  $region5: #{_lambda_.17} parent=0 // pred_fallthru
    _
  // Predicated region
  $region6: #{_lambda_.17} parent=0 // pred_check
    _
  $region7: #{_lambda_.17} parent=0 // pred_check_branch
    %13 = sbr.rel (0) target = $region9
  $region8: #{_lambda_.17} parent=0 // pred_region
    _
  $region9: #{_lambda_.17} parent=0 // pred_fallthru
    _
  // Predicated region
  $region10: #{_lambda_.17} parent=0 // pred_check
    _
  $region11: #{_lambda_.17} parent=0 // pred_check_branch
    %15 = sbr.rel (0) target = $region13
  $region12: #{_lambda_.17} parent=0 // pred_region
    _
  $region13: #{_lambda_.17} parent=0 // pred_fallthru
    _
  // Predicated region
  $region14: #{_lambda_.17} parent=0 // pred_check
    _
  $region15: #{_lambda_.17} parent=0 // pred_check_branch
    %17 = sbr.rel (0) target = $region17
  $region16: #{_lambda_.17} parent=0 // pred_region
    _
  $region17: #{_lambda_.17} parent=0 // pred_fallthru
    _
  // Predicated region
  $region18: #{_lambda_.17} parent=0 // pred_check
    _
  $region19: #{_lambda_.17} parent=0 // pred_check_branch
    %19 = sbr.rel (0) target = $region21
  $region20: #{_lambda_.17} parent=0 // pred_region
    _
  $region21: #{_lambda_.17} parent=0 // pred_fallthru
    _
  %v20 = vld [vmem:[%s0] sm:$0xff]
  %v21 = vld [vmem:[%s0 + $0x8] sm:$0xff]
  %v22 = vld [vmem:[%s0 + $0x10] sm:$0xff]
  %v23 = vld [vmem:[%s0 + $0x18] sm:$0xff]
  %v24 = vld [vmem:[%s0 + $0x20] sm:$0x33]
  %v25 = vunpack.c.l.bf16 %v20
  %v26 = vunpack.c.h.bf16 %v20
  %v27 = vunpack.c.l.bf16 %v21
  %v28 = vunpack.c.h.bf16 %v21
  %v29 = vunpack.c.l.bf16 %v22
  %v30 = vunpack.c.h.bf16 %v22
  %v31 = vunpack.c.l.bf16 %v23
  %v32 = vunpack.c.h.bf16 %v23
  %v33 = vunpack.c.l.bf16 %v24
  %v34 = vunpack.c.h.bf16 %v24
  %v35 = vld [vmem:[%s1] sm:$0x3]
  %v36 = vld [vmem:[%s2] sm:$0x3]
  %v37 = vadd.f32 %v25, %v26
  %38 = vadd.xlane.f32.xlu0 %v37
  %v39 = vpop.xlane.xlu0 %38
  %v40 = vadd.f32 %v27, %v28
  %41 = vadd.xlane.f32.xlu0 %v40
  %v42 = vpop.xlane.xlu0 %41
  %v43 = vadd.f32 %v29, %v30
  %44 = vadd.xlane.f32.xlu0 %v43
  %v45 = vpop.xlane.xlu0 %44
  %v46 = vadd.f32 %v31, %v32
  %47 = vadd.xlane.f32.xlu0 %v46
  %v48 = vpop.xlane.xlu0 %47
  %vm49 = vcmask 1043456
  %v50 = vsel %vm49, %v33, 0.0
  %v51 = vsel %vm49, %v34, 0.0
  %v52 = vadd.f32 %v50, %v51
  %53 = vadd.xlane.f32.xlu0 %v52
  %v54 = vpop.xlane.xlu0 %53
  %v55 = vrcp.pop 256.0
  %v56 = vmul.f32 %v39, %v55
  %v57 = vmul.f32 %v42, %v55
  %v58 = vmul.f32 %v45, %v55
  %v59 = vmul.f32 %v48, %v55
  %v60 = vmul.f32 %v54, %v55
  %v61 = vsub.f32 %v25, %v56
  %v62 = vsub.f32 %v26, %v56
  %v63 = vsub.f32 %v27, %v57
  %v64 = vsub.f32 %v28, %v57
  %v65 = vsub.f32 %v29, %v58
  %v66 = vsub.f32 %v30, %v58
  %v67 = vsub.f32 %v31, %v59
  %v68 = vsub.f32 %v32, %v59
  %v69 = vsub.f32 %v33, %v60
  %v70 = vsub.f32 %v34, %v60
  %v71 = vmul.f32 %v61, %v61
  %v72 = vmul.f32 %v62, %v62
  %v73 = vmul.f32 %v63, %v63
  %v74 = vmul.f32 %v64, %v64
  %v75 = vmul.f32 %v65, %v65
  %v76 = vmul.f32 %v66, %v66
  %v77 = vmul.f32 %v67, %v67
  %v78 = vmul.f32 %v68, %v68
  %v79 = vmul.f32 %v69, %v69
  %v80 = vmul.f32 %v70, %v70
  %v81 = vadd.f32 %v71, %v72
  %82 = vadd.xlane.f32.xlu0 %v81
  %v83 = vpop.xlane.xlu0 %82
  %v84 = vadd.f32 %v73, %v74
  %85 = vadd.xlane.f32.xlu0 %v84
  %v86 = vpop.xlane.xlu0 %85
  %v87 = vadd.f32 %v75, %v76
  %88 = vadd.xlane.f32.xlu0 %v87
  %v89 = vpop.xlane.xlu0 %88
  %v90 = vadd.f32 %v77, %v78
  %91 = vadd.xlane.f32.xlu0 %v90
  %v92 = vpop.xlane.xlu0 %91
  %v93 = vsel %vm49, %v79, 0.0
  %v94 = vsel %vm49, %v80, 0.0
  %v95 = vadd.f32 %v93, %v94
  %96 = vadd.xlane.f32.xlu0 %v95
  %v97 = vpop.xlane.xlu0 %96
  %v98 = vmul.f32 %v83, %v55
  %v99 = vmul.f32 %v86, %v55
  %v100 = vmul.f32 %v89, %v55
  %v101 = vmul.f32 %v92, %v55
  %v102 = vmul.f32 %v97, %v55
  %v103 = vadd.f32 %v98, 1e-05
  %v104 = vadd.f32 %v99, 1e-05
  %v105 = vadd.f32 %v100, 1e-05
  %v106 = vadd.f32 %v101, 1e-05
  %v107 = vadd.f32 %v102, 1e-05
  %v108 = vrsqrt.pop %v103
  %v109 = vrsqrt.pop %v104
  %v110 = vrsqrt.pop %v105
  %v111 = vrsqrt.pop %v106
  %v112 = vrsqrt.pop %v107
  %v113 = vmul.f32 %v61, %v108
  %v114 = vmul.f32 %v62, %v108
  %v115 = vmul.f32 %v63, %v109
  %v116 = vmul.f32 %v64, %v109
  %v117 = vmul.f32 %v65, %v110
  %v118 = vmul.f32 %v66, %v110
  %v119 = vmul.f32 %v67, %v111
  %v120 = vmul.f32 %v68, %v111
  %v121 = vmul.f32 %v69, %v112
  %v122 = vmul.f32 %v70, %v112
  %v124 = vlaneseq
  %v125 = vshrl.u32 %v124, 7
  %v126 = vsub.s32 0, %v125
  %v127 = vrot.slane %v35, %v126
  %v128 = vlaneseq
  %v129 = vshrl.u32 %v128, 7
  %v130 = vsub.s32 1, %v129
  %v131 = vrot.slane %v35, %v130
  %v134 = vmul.f32 %v113, %v127
  %v135 = vmul.f32 %v114, %v131
  %v136 = vmul.f32 %v115, %v127
  %v137 = vmul.f32 %v116, %v131
  %v138 = vmul.f32 %v117, %v127
  %v139 = vmul.f32 %v118, %v131
  %v140 = vmul.f32 %v119, %v127
  %v141 = vmul.f32 %v120, %v131
  %v142 = vmul.f32 %v121, %v127
  %v143 = vmul.f32 %v122, %v131
  %v145 = vlaneseq
  %v146 = vshrl.u32 %v145, 7
  %v147 = vsub.s32 0, %v146
  %v148 = vrot.slane %v36, %v147
  %v149 = vlaneseq
  %v150 = vshrl.u32 %v149, 7
  %v151 = vsub.s32 1, %v150
  %v152 = vrot.slane %v36, %v151
  %v155 = vadd.f32 %v134, %v148
  %v156 = vadd.f32 %v135, %v152
  %v157 = vadd.f32 %v136, %v148
  %v158 = vadd.f32 %v137, %v152
  %v159 = vadd.f32 %v138, %v148
  %v160 = vadd.f32 %v139, %v152
  %v161 = vadd.f32 %v140, %v148
  %v162 = vadd.f32 %v141, %v152
  %v163 = vadd.f32 %v142, %v148
  %v164 = vadd.f32 %v143, %v152
  %v165 = vpack.c.bf16 %v157, %v155
  %v166 = vpack.c.bf16 %v158, %v156
  %v167 = vpack.c.bf16 %v161, %v159
  %v168 = vpack.c.bf16 %v162, %v160
  %v169 = vpack.c.bf16 %v163, %v163
  %v170 = vpack.c.bf16 %v164, %v164
  %v171 = vld [vmem:[%s3] sm:$0xff]
  %v172 = vld [vmem:[%s3 + $0x8] sm:$0xff]
  %v173 = vld [vmem:[%s3 + $0x10] sm:$0xff]
  %v174 = vld [vmem:[%s3 + $0x18] sm:$0xff]
  %v175 = vld [vmem:[%s3 + $0x20] sm:$0xff]
  %v176 = vld [vmem:[%s3 + $0x28] sm:$0xff]
  %v177 = vld [vmem:[%s3 + $0x30] sm:$0xff]
  %v178 = vld [vmem:[%s3 + $0x38] sm:$0xff]
  %v179 = vld [vmem:[%s3 + $0x40] sm:$0xff]
  %v180 = vld [vmem:[%s3 + $0x48] sm:$0xff]
  %v181 = vld [vmem:[%s3 + $0x50] sm:$0xff]
  %v182 = vld [vmem:[%s3 + $0x58] sm:$0xff]
  %v183 = vld [vmem:[%s3 + $0x60] sm:$0xff]
  %v184 = vld [vmem:[%s3 + $0x68] sm:$0xff]
  %v185 = vld [vmem:[%s3 + $0x70] sm:$0xff]
  %v186 = vld [vmem:[%s3 + $0x78] sm:$0xff]
  %v187 = vld [vmem:[%s3 + $0x80] sm:$0xff]
  %v188 = vld [vmem:[%s3 + $0x88] sm:$0xff]
  %v189 = vld [vmem:[%s3 + $0x90] sm:$0xff]
  %v190 = vld [vmem:[%s3 + $0x98] sm:$0xff]
  %v191 = vld [vmem:[%s3 + $0xa0] sm:$0xff]
  %v192 = vld [vmem:[%s3 + $0xa8] sm:$0xff]
  %v193 = vld [vmem:[%s3 + $0xb0] sm:$0xff]
  %v194 = vld [vmem:[%s3 + $0xb8] sm:$0xff]
  %v195 = vld [vmem:[%s3 + $0xc0] sm:$0xff]
  %v196 = vld [vmem:[%s3 + $0xc8] sm:$0xff]
  %v197 = vld [vmem:[%s3 + $0xd0] sm:$0xff]
  %v198 = vld [vmem:[%s3 + $0xd8] sm:$0xff]
  %v199 = vld [vmem:[%s3 + $0xe0] sm:$0xff]
  %v200 = vld [vmem:[%s3 + $0xe8] sm:$0xff]
  %v201 = vld [vmem:[%s3 + $0xf0] sm:$0xff]
  %v202 = vld [vmem:[%s3 + $0xf8] sm:$0xff]
  %v203 = vld [vmem:[%s3 + $0x100] sm:$0xff]
  %v204 = vld [vmem:[%s3 + $0x108] sm:$0xff]
  %v205 = vld [vmem:[%s3 + $0x110] sm:$0xff]
  %v206 = vld [vmem:[%s3 + $0x118] sm:$0xff]
  %v207 = vld [vmem:[%s3 + $0x120] sm:$0xff]
  %v208 = vld [vmem:[%s3 + $0x128] sm:$0xff]
  %v209 = vld [vmem:[%s3 + $0x130] sm:$0xff]
  %v210 = vld [vmem:[%s3 + $0x138] sm:$0xff]
  %v211 = vld [vmem:[%s3 + $0x140] sm:$0xff]
  %v212 = vld [vmem:[%s3 + $0x148] sm:$0xff]
  %v213 = vld [vmem:[%s3 + $0x150] sm:$0xff]
  %v214 = vld [vmem:[%s3 + $0x158] sm:$0xff]
  %v215 = vld [vmem:[%s3 + $0x160] sm:$0xff]
  %v216 = vld [vmem:[%s3 + $0x168] sm:$0xff]
  %v217 = vld [vmem:[%s3 + $0x170] sm:$0xff]
  %v218 = vld [vmem:[%s3 + $0x178] sm:$0xff]
  %v219 = vld [vmem:[%s3 + $0x180] sm:$0xff]
  %v220 = vld [vmem:[%s3 + $0x188] sm:$0xff]
  %v221 = vld [vmem:[%s3 + $0x190] sm:$0xff]
  %v222 = vld [vmem:[%s3 + $0x198] sm:$0xff]
  %v223 = vld [vmem:[%s3 + $0x1a0] sm:$0xff]
  %v224 = vld [vmem:[%s3 + $0x1a8] sm:$0xff]
  %v225 = vld [vmem:[%s3 + $0x1b0] sm:$0xff]
  %v226 = vld [vmem:[%s3 + $0x1b8] sm:$0xff]
  %v227 = vld [vmem:[%s3 + $0x1c0] sm:$0xff]
  %v228 = vld [vmem:[%s3 + $0x1c8] sm:$0xff]
  %v229 = vld [vmem:[%s3 + $0x1d0] sm:$0xff]
  %v230 = vld [vmem:[%s3 + $0x1d8] sm:$0xff]
  %v231 = vld [vmem:[%s3 + $0x1e0] sm:$0xff]
  %v232 = vld [vmem:[%s3 + $0x1e8] sm:$0xff]
  %v233 = vld [vmem:[%s3 + $0x1f0] sm:$0xff]
  %v234 = vld [vmem:[%s3 + $0x1f8] sm:$0xff]
  %v235 = vld [vmem:[%s3 + $0x200] sm:$0xff]
  %v236 = vld [vmem:[%s3 + $0x208] sm:$0xff]
  %v237 = vld [vmem:[%s3 + $0x210] sm:$0xff]
  %v238 = vld [vmem:[%s3 + $0x218] sm:$0xff]
  %v239 = vld [vmem:[%s3 + $0x220] sm:$0xff]
  %v240 = vld [vmem:[%s3 + $0x228] sm:$0xff]
  %v241 = vld [vmem:[%s3 + $0x230] sm:$0xff]
  %v242 = vld [vmem:[%s3 + $0x238] sm:$0xff]
  %v243 = vld [vmem:[%s3 + $0x240] sm:$0xff]
  %v244 = vld [vmem:[%s3 + $0x248] sm:$0xff]
  %v245 = vld [vmem:[%s3 + $0x250] sm:$0xff]
  %v246 = vld [vmem:[%s3 + $0x258] sm:$0xff]
  %v247 = vld [vmem:[%s3 + $0x260] sm:$0xff]
  %v248 = vld [vmem:[%s3 + $0x268] sm:$0xff]
  %v249 = vld [vmem:[%s3 + $0x270] sm:$0xff]
  %v250 = vld [vmem:[%s3 + $0x278] sm:$0xff]
  %v251 = vld [vmem:[%s3 + $0x280] sm:$0xff]
  %v252 = vld [vmem:[%s3 + $0x288] sm:$0xff]
  %v253 = vld [vmem:[%s3 + $0x290] sm:$0xff]
  %v254 = vld [vmem:[%s3 + $0x298] sm:$0xff]
  %v255 = vld [vmem:[%s3 + $0x2a0] sm:$0xff]
  %v256 = vld [vmem:[%s3 + $0x2a8] sm:$0xff]
  %v257 = vld [vmem:[%s3 + $0x2b0] sm:$0xff]
  %v258 = vld [vmem:[%s3 + $0x2b8] sm:$0xff]
  %v259 = vld [vmem:[%s3 + $0x2c0] sm:$0xff]
  %v260 = vld [vmem:[%s3 + $0x2c8] sm:$0xff]
  %v261 = vld [vmem:[%s3 + $0x2d0] sm:$0xff]
  %v262 = vld [vmem:[%s3 + $0x2d8] sm:$0xff]
  %v263 = vld [vmem:[%s3 + $0x2e0] sm:$0xff]
  %v264 = vld [vmem:[%s3 + $0x2e8] sm:$0xff]
  %v265 = vld [vmem:[%s3 + $0x2f0] sm:$0xff]
  %v266 = vld [vmem:[%s3 + $0x2f8] sm:$0xff]
  %v267 = vld [vmem:[%s4] sm:$0x3f]
  %v269 = vlaneseq
  %v270 = vshrl.u32 %v269, 7
  %v271 = vsub.s32 0, %v270
  %v272 = vrot.slane %v267, %v271
  %v273 = vlaneseq
  %v274 = vshrl.u32 %v273, 7
  %v275 = vsub.s32 1, %v274
  %v276 = vrot.slane %v267, %v275
  %v277 = vlaneseq
  %v278 = vshrl.u32 %v277, 7
  %v279 = vsub.s32 2, %v278
  %v280 = vrot.slane %v267, %v279
  %v281 = vlaneseq
  %v282 = vshrl.u32 %v281, 7
  %v283 = vsub.s32 3, %v282
  %v284 = vrot.slane %v267, %v283
  %v285 = vlaneseq
  %v286 = vshrl.u32 %v285, 7
  %v287 = vsub.s32 4, %v286
  %v288 = vrot.slane %v267, %v287
  %v289 = vlaneseq
  %v290 = vshrl.u32 %v289, 7
  %v291 = vsub.s32 5, %v290
  %v292 = vrot.slane %v267, %v291
  %v395 = vunpack.c.l.b16 %v171
  %v396 = vunpack.c.h.b16 %v171
  %v397 = vunpack.c.l.b16 %v172
  %v398 = vunpack.c.h.b16 %v172
  %v399 = vunpack.c.l.b16 %v173
  %v400 = vunpack.c.h.b16 %v173
  %v401 = vunpack.c.l.b16 %v174
  %v402 = vunpack.c.h.b16 %v174
  %v403 = vunpack.c.l.b16 %v175
  %v404 = vunpack.c.h.b16 %v175
  %v405 = vunpack.c.l.b16 %v176
  %v406 = vunpack.c.h.b16 %v176
  %v407 = vunpack.c.l.b16 %v177
  %v408 = vunpack.c.h.b16 %v177
  %v409 = vunpack.c.l.b16 %v178
  %v410 = vunpack.c.h.b16 %v178
  %v411 = vunpack.c.l.b16 %v179
  %v412 = vunpack.c.h.b16 %v179
  %v413 = vunpack.c.l.b16 %v180
  %v414 = vunpack.c.h.b16 %v180
  %v415 = vunpack.c.l.b16 %v181
  %v416 = vunpack.c.h.b16 %v181
  %v417 = vunpack.c.l.b16 %v182
  %v418 = vunpack.c.h.b16 %v182
  %v419 = vunpack.c.l.b16 %v183
  %v420 = vunpack.c.h.b16 %v183
  %v421 = vunpack.c.l.b16 %v184
  %v422 = vunpack.c.h.b16 %v184
  %v423 = vunpack.c.l.b16 %v185
  %v424 = vunpack.c.h.b16 %v185
  %v425 = vunpack.c.l.b16 %v186
  %v426 = vunpack.c.h.b16 %v186
  %v427 = vunpack.c.l.b16 %v187
  %v428 = vunpack.c.h.b16 %v187
  %v429 = vunpack.c.l.b16 %v188
  %v430 = vunpack.c.h.b16 %v188
  %v431 = vunpack.c.l.b16 %v189
  %v432 = vunpack.c.h.b16 %v189
  %v433 = vunpack.c.l.b16 %v190
  %v434 = vunpack.c.h.b16 %v190
  %v435 = vunpack.c.l.b16 %v191
  %v436 = vunpack.c.h.b16 %v191
  %v437 = vunpack.c.l.b16 %v192
  %v438 = vunpack.c.h.b16 %v192
  %v439 = vunpack.c.l.b16 %v193
  %v440 = vunpack.c.h.b16 %v193
  %v441 = vunpack.c.l.b16 %v194
  %v442 = vunpack.c.h.b16 %v194
  %v443 = vunpack.c.l.b16 %v195
  %v444 = vunpack.c.h.b16 %v195
  %v445 = vunpack.c.l.b16 %v196
  %v446 = vunpack.c.h.b16 %v196
  %v447 = vunpack.c.l.b16 %v197
  %v448 = vunpack.c.h.b16 %v197
  %v449 = vunpack.c.l.b16 %v198
  %v450 = vunpack.c.h.b16 %v198
  %v451 = vunpack.c.l.b16 %v199
  %v452 = vunpack.c.h.b16 %v199
  %v453 = vunpack.c.l.b16 %v200
  %v454 = vunpack.c.h.b16 %v200
  %v455 = vunpack.c.l.b16 %v201
  %v456 = vunpack.c.h.b16 %v201
  %v457 = vunpack.c.l.b16 %v202
  %v458 = vunpack.c.h.b16 %v202
  %v459 = vunpack.c.l.b16 %v203
  %v460 = vunpack.c.h.b16 %v203
  %v461 = vunpack.c.l.b16 %v204
  %v462 = vunpack.c.h.b16 %v204
  %v463 = vunpack.c.l.b16 %v205
  %v464 = vunpack.c.h.b16 %v205
  %v465 = vunpack.c.l.b16 %v206
  %v466 = vunpack.c.h.b16 %v206
  %v467 = vunpack.c.l.b16 %v207
  %v468 = vunpack.c.h.b16 %v207
  %v469 = vunpack.c.l.b16 %v208
  %v470 = vunpack.c.h.b16 %v208
  %v471 = vunpack.c.l.b16 %v209
  %v472 = vunpack.c.h.b16 %v209
  %v473 = vunpack.c.l.b16 %v210
  %v474 = vunpack.c.h.b16 %v210
  %v475 = vunpack.c.l.b16 %v211
  %v476 = vunpack.c.h.b16 %v211
  %v477 = vunpack.c.l.b16 %v212
  %v478 = vunpack.c.h.b16 %v212
  %v479 = vunpack.c.l.b16 %v213
  %v480 = vunpack.c.h.b16 %v213
  %v481 = vunpack.c.l.b16 %v214
  %v482 = vunpack.c.h.b16 %v214
  %v483 = vunpack.c.l.b16 %v215
  %v484 = vunpack.c.h.b16 %v215
  %v485 = vunpack.c.l.b16 %v216
  %v486 = vunpack.c.h.b16 %v216
  %v487 = vunpack.c.l.b16 %v217
  %v488 = vunpack.c.h.b16 %v217
  %v489 = vunpack.c.l.b16 %v218
  %v490 = vunpack.c.h.b16 %v218
  %v491 = vunpack.c.l.b16 %v219
  %v492 = vunpack.c.h.b16 %v219
  %v493 = vunpack.c.l.b16 %v220
  %v494 = vunpack.c.h.b16 %v220
  %v495 = vunpack.c.l.b16 %v221
  %v496 = vunpack.c.h.b16 %v221
  %v497 = vunpack.c.l.b16 %v222
  %v498 = vunpack.c.h.b16 %v222
  %v499 = vunpack.c.l.b16 %v223
  %v500 = vunpack.c.h.b16 %v223
  %v501 = vunpack.c.l.b16 %v224
  %v502 = vunpack.c.h.b16 %v224
  %v503 = vunpack.c.l.b16 %v225
  %v504 = vunpack.c.h.b16 %v225
  %v505 = vunpack.c.l.b16 %v226
  %v506 = vunpack.c.h.b16 %v226
  %v507 = vunpack.c.l.b16 %v227
  %v508 = vunpack.c.h.b16 %v227
  %v509 = vunpack.c.l.b16 %v228
  %v510 = vunpack.c.h.b16 %v228
  %v511 = vunpack.c.l.b16 %v229
  %v512 = vunpack.c.h.b16 %v229
  %v513 = vunpack.c.l.b16 %v230
  %v514 = vunpack.c.h.b16 %v230
  %v515 = vunpack.c.l.b16 %v231
  %v516 = vunpack.c.h.b16 %v231
  %v517 = vunpack.c.l.b16 %v232
  %v518 = vunpack.c.h.b16 %v232
  %v519 = vunpack.c.l.b16 %v233
  %v520 = vunpack.c.h.b16 %v233
  %v521 = vunpack.c.l.b16 %v234
  %v522 = vunpack.c.h.b16 %v234
  %v523 = vunpack.c.l.b16 %v235
  %v524 = vunpack.c.h.b16 %v235
  %v525 = vunpack.c.l.b16 %v236
  %v526 = vunpack.c.h.b16 %v236
  %v527 = vunpack.c.l.b16 %v237
  %v528 = vunpack.c.h.b16 %v237
  %v529 = vunpack.c.l.b16 %v238
  %v530 = vunpack.c.h.b16 %v238
  %v531 = vunpack.c.l.b16 %v239
  %v532 = vunpack.c.h.b16 %v239
  %v533 = vunpack.c.l.b16 %v240
  %v534 = vunpack.c.h.b16 %v240
  %v535 = vunpack.c.l.b16 %v241
  %v536 = vunpack.c.h.b16 %v241
  %v537 = vunpack.c.l.b16 %v242
  %v538 = vunpack.c.h.b16 %v242
  %v539 = vunpack.c.l.b16 %v243
  %v540 = vunpack.c.h.b16 %v243
  %v541 = vunpack.c.l.b16 %v244
  %v542 = vunpack.c.h.b16 %v244
  %v543 = vunpack.c.l.b16 %v245
  %v544 = vunpack.c.h.b16 %v245
  %v545 = vunpack.c.l.b16 %v246
  %v546 = vunpack.c.h.b16 %v246
  %v547 = vunpack.c.l.b16 %v247
  %v548 = vunpack.c.h.b16 %v247
  %v549 = vunpack.c.l.b16 %v248
  %v550 = vunpack.c.h.b16 %v248
  %v551 = vunpack.c.l.b16 %v249
  %v552 = vunpack.c.h.b16 %v249
  %v553 = vunpack.c.l.b16 %v250
  %v554 = vunpack.c.h.b16 %v250
  %v555 = vunpack.c.l.b16 %v251
  %v556 = vunpack.c.h.b16 %v251
  %v557 = vunpack.c.l.b16 %v252
  %v558 = vunpack.c.h.b16 %v252
  %v559 = vunpack.c.l.b16 %v253
  %v560 = vunpack.c.h.b16 %v253
  %v561 = vunpack.c.l.b16 %v254
  %v562 = vunpack.c.h.b16 %v254
  %v563 = vunpack.c.l.b16 %v255
  %v564 = vunpack.c.h.b16 %v255
  %v565 = vunpack.c.l.b16 %v256
  %v566 = vunpack.c.h.b16 %v256
  %v567 = vunpack.c.l.b16 %v257
  %v568 = vunpack.c.h.b16 %v257
  %v569 = vunpack.c.l.b16 %v258
  %v570 = vunpack.c.h.b16 %v258
  %v571 = vunpack.c.l.b16 %v259
  %v572 = vunpack.c.h.b16 %v259
  %v573 = vunpack.c.l.b16 %v260
  %v574 = vunpack.c.h.b16 %v260
  %v575 = vunpack.c.l.b16 %v261
  %v576 = vunpack.c.h.b16 %v261
  %v577 = vunpack.c.l.b16 %v262
  %v578 = vunpack.c.h.b16 %v262
  %v579 = vunpack.c.l.b16 %v263
  %v580 = vunpack.c.h.b16 %v263
  %v581 = vunpack.c.l.b16 %v264
  %v582 = vunpack.c.h.b16 %v264
  %v583 = vunpack.c.l.b16 %v265
  %v584 = vunpack.c.h.b16 %v265
  %v585 = vunpack.c.l.b16 %v266
  %v586 = vunpack.c.h.b16 %v266
  %v587 = vpack.c.b16 %v401, %v395
  %v588 = vpack.c.b16 %v402, %v396
  %v589 = vpack.c.b16 %v403, %v397
  %v590 = vpack.c.b16 %v404, %v398
  %v591 = vpack.c.b16 %v405, %v399
  %v592 = vpack.c.b16 %v406, %v400
  %v593 = vpack.c.b16 %v413, %v407
  %v594 = vpack.c.b16 %v414, %v408
  %v595 = vpack.c.b16 %v415, %v409
  %v596 = vpack.c.b16 %v416, %v410
  %v597 = vpack.c.b16 %v417, %v411
  %v598 = vpack.c.b16 %v418, %v412
  %v599 = vpack.c.b16 %v425, %v419
  %v600 = vpack.c.b16 %v426, %v420
  %v601 = vpack.c.b16 %v427, %v421
  %v602 = vpack.c.b16 %v428, %v422
  %v603 = vpack.c.b16 %v429, %v423
  %v604 = vpack.c.b16 %v430, %v424
  %v605 = vpack.c.b16 %v437, %v431
  %v606 = vpack.c.b16 %v438, %v432
  %v607 = vpack.c.b16 %v439, %v433
  %v608 = vpack.c.b16 %v440, %v434
  %v609 = vpack.c.b16 %v441, %v435
  %v610 = vpack.c.b16 %v442, %v436
  %v611 = vpack.c.b16 %v449, %v443
  %v612 = vpack.c.b16 %v450, %v444
  %v613 = vpack.c.b16 %v451, %v445
  %v614 = vpack.c.b16 %v452, %v446
  %v615 = vpack.c.b16 %v453, %v447
  %v616 = vpack.c.b16 %v454, %v448
  %v617 = vpack.c.b16 %v461, %v455
  %v618 = vpack.c.b16 %v462, %v456
  %v619 = vpack.c.b16 %v463, %v457
  %v620 = vpack.c.b16 %v464, %v458
  %v621 = vpack.c.b16 %v465, %v459
  %v622 = vpack.c.b16 %v466, %v460
  %v623 = vpack.c.b16 %v473, %v467
  %v624 = vpack.c.b16 %v474, %v468
  %v625 = vpack.c.b16 %v475, %v469
  %v626 = vpack.c.b16 %v476, %v470
  %v627 = vpack.c.b16 %v477, %v471
  %v628 = vpack.c.b16 %v478, %v472
  %v629 = vpack.c.b16 %v485, %v479
  %v630 = vpack.c.b16 %v486, %v480
  %v631 = vpack.c.b16 %v487, %v481
  %v632 = vpack.c.b16 %v488, %v482
  %v633 = vpack.c.b16 %v489, %v483
  %v634 = vpack.c.b16 %v490, %v484
  %v635 = vpack.c.b16 %v497, %v491
  %v636 = vpack.c.b16 %v498, %v492
  %v637 = vpack.c.b16 %v499, %v493
  %v638 = vpack.c.b16 %v500, %v494
  %v639 = vpack.c.b16 %v501, %v495
  %v640 = vpack.c.b16 %v502, %v496
  %v641 = vpack.c.b16 %v509, %v503
  %v642 = vpack.c.b16 %v510, %v504
  %v643 = vpack.c.b16 %v511, %v505
  %v644 = vpack.c.b16 %v512, %v506
  %v645 = vpack.c.b16 %v513, %v507
  %v646 = vpack.c.b16 %v514, %v508
  %v647 = vpack.c.b16 %v521, %v515
  %v648 = vpack.c.b16 %v522, %v516
  %v649 = vpack.c.b16 %v523, %v517
  %v650 = vpack.c.b16 %v524, %v518
  %v651 = vpack.c.b16 %v525, %v519
  %v652 = vpack.c.b16 %v526, %v520
  %v653 = vpack.c.b16 %v533, %v527
  %v654 = vpack.c.b16 %v534, %v528
  %v655 = vpack.c.b16 %v535, %v529
  %v656 = vpack.c.b16 %v536, %v530
  %v657 = vpack.c.b16 %v537, %v531
  %v658 = vpack.c.b16 %v538, %v532
  %v659 = vpack.c.b16 %v545, %v539
  %v660 = vpack.c.b16 %v546, %v540
  %v661 = vpack.c.b16 %v547, %v541
  %v662 = vpack.c.b16 %v548, %v542
  %v663 = vpack.c.b16 %v549, %v543
  %v664 = vpack.c.b16 %v550, %v544
  %v665 = vpack.c.b16 %v557, %v551
  %v666 = vpack.c.b16 %v558, %v552
  %v667 = vpack.c.b16 %v559, %v553
  %v668 = vpack.c.b16 %v560, %v554
  %v669 = vpack.c.b16 %v561, %v555
  %v670 = vpack.c.b16 %v562, %v556
  %v671 = vpack.c.b16 %v569, %v563
  %v672 = vpack.c.b16 %v570, %v564
  %v673 = vpack.c.b16 %v571, %v565
  %v674 = vpack.c.b16 %v572, %v566
  %v675 = vpack.c.b16 %v573, %v567
  %v676 = vpack.c.b16 %v574, %v568
  %v677 = vpack.c.b16 %v581, %v575
  %v678 = vpack.c.b16 %v582, %v576
  %v679 = vpack.c.b16 %v583, %v577
  %v680 = vpack.c.b16 %v584, %v578
  %v681 = vpack.c.b16 %v585, %v579
  %v682 = vpack.c.b16 %v586, %v580
  %779 = vmatprep.subr.bf16.mxu0 %v630
  %780 = vmatpush1.bf16.msra.mxu0 %v629
  %781 = vmatprep.subr.bf16.mxu0 %v624
  %782 = vmatpush1.bf16.msra.mxu0 %v623
  %783 = vmatprep.subr.bf16.mxu0 %v618
  %784 = vmatpush1.bf16.msra.mxu0 %v617
  %785 = vmatprep.subr.bf16.mxu0 %v612
  %786 = vmatpush1.bf16.msra.mxu0 %v611
  %787 = vmatprep.subr.bf16.mxu0 %v606
  %788 = vmatpush1.bf16.msra.mxu0 %v605
  %789 = vmatprep.subr.bf16.mxu0 %v600
  %790 = vmatpush1.bf16.msra.mxu0 %v599
  %791 = vmatprep.subr.bf16.mxu0 %v594
  %792 = vmatpush1.bf16.msra.mxu0 %v593
  %793 = vmatprep.subr.bf16.mxu0 %v588
  %794 = vmatpush1.bf16.msra.mxu0 %v587
  %795 = vmatprep.subr.bf16.mxu0 %v678
  %796 = vmatpush2.bf16.msra.mxu0 %v677
  %797 = vmatprep.subr.bf16.mxu0 %v672
  %798 = vmatpush2.bf16.msra.mxu0 %v671
  %799 = vmatprep.subr.bf16.mxu0 %v666
  %800 = vmatpush2.bf16.msra.mxu0 %v665
  %801 = vmatprep.subr.bf16.mxu0 %v660
  %802 = vmatpush2.bf16.msra.mxu0 %v659
  %803 = vmatprep.subr.bf16.mxu0 %v654
  %804 = vmatpush2.bf16.msra.mxu0 %v653
  %805 = vmatprep.subr.bf16.mxu0 %v648
  %806 = vmatpush2.bf16.msra.mxu0 %v647
  %807 = vmatprep.subr.bf16.mxu0 %v642
  %808 = vmatpush2.bf16.msra.mxu0 %v641
  %809 = vmatprep.subr.bf16.mxu0 %v636
  %810 = vmatpush2.bf16.msra.mxu0 %v635
  %811 = vmatprep.mubr.bf16.mxu0 %v166
  %812 = vmatmul.mubr.bf16.gmra.mxu0 %v165
  %v813 = vpop.f32.mrf.mxu0
  %v814 = vadd.f32 %v272, %v813
  %v815 = vpop.f32.mrf.mxu0
  %v816 = vadd.f32 %v276, %v815
  %v817 = vpop.f32.mrf.mxu0
  %v818 = vadd.f32 %v272, %v817
  %v819 = vpop.f32.mrf.mxu0
  %v820 = vadd.f32 %v276, %v819
  %821 = vmatprep.mubr.bf16.mxu0 %v168
  %822 = vmatmul.mubr.bf16.gmra.mxu0 %v167
  %v823 = vpop.f32.mrf.mxu0
  %v824 = vadd.f32 %v272, %v823
  %v825 = vpop.f32.mrf.mxu0
  %v826 = vadd.f32 %v276, %v825
  %v827 = vpop.f32.mrf.mxu0
  %v828 = vadd.f32 %v272, %v827
  %v829 = vpop.f32.mrf.mxu0
  %v830 = vadd.f32 %v276, %v829
  %831 = vmatprep.mubr.bf16.mxu0 %v170
  %832 = vmatmul.mubr.bf16.gmra.mxu0 %v169
  %v833 = vpop.f32.mrf.mxu0
  %v834 = vadd.f32 %v272, %v833
  %v835 = vpop.f32.mrf.mxu0
  %v836 = vadd.f32 %v276, %v835
  %v837 = vpop.f32.mrf.mxu0
  %v838 = vpop.f32.mrf.mxu0
  %839 = vdwg.mxu0
  %840 = vmatprep.subr.bf16.mxu0 %v632
  %841 = vmatpush1.bf16.msra.mxu0 %v631
  %842 = vmatprep.subr.bf16.mxu0 %v626
  %843 = vmatpush1.bf16.msra.mxu0 %v625
  %844 = vmatprep.subr.bf16.mxu0 %v620
  %845 = vmatpush1.bf16.msra.mxu0 %v619
  %846 = vmatprep.subr.bf16.mxu0 %v614
  %847 = vmatpush1.bf16.msra.mxu0 %v613
  %848 = vmatprep.subr.bf16.mxu0 %v608
  %849 = vmatpush1.bf16.msra.mxu0 %v607
  %850 = vmatprep.subr.bf16.mxu0 %v602
  %851 = vmatpush1.bf16.msra.mxu0 %v601
  %852 = vmatprep.subr.bf16.mxu0 %v596
  %853 = vmatpush1.bf16.msra.mxu0 %v595
  %854 = vmatprep.subr.bf16.mxu0 %v590
  %855 = vmatpush1.bf16.msra.mxu0 %v589
  %856 = vmatprep.subr.bf16.mxu0 %v680
  %857 = vmatpush2.bf16.msra.mxu0 %v679
  %858 = vmatprep.subr.bf16.mxu0 %v674
  %859 = vmatpush2.bf16.msra.mxu0 %v673
  %860 = vmatprep.subr.bf16.mxu0 %v668
  %861 = vmatpush2.bf16.msra.mxu0 %v667
  %862 = vmatprep.subr.bf16.mxu0 %v662
  %863 = vmatpush2.bf16.msra.mxu0 %v661
  %864 = vmatprep.subr.bf16.mxu0 %v656
  %865 = vmatpush2.bf16.msra.mxu0 %v655
  %866 = vmatprep.subr.bf16.mxu0 %v650
  %867 = vmatpush2.bf16.msra.mxu0 %v649
  %868 = vmatprep.subr.bf16.mxu0 %v644
  %869 = vmatpush2.bf16.msra.mxu0 %v643
  %870 = vmatprep.subr.bf16.mxu0 %v638
  %871 = vmatpush2.bf16.msra.mxu0 %v637
  %872 = vmatprep.mubr.bf16.mxu0 %v166
  %873 = vmatmul.mubr.bf16.gmra.mxu0 %v165
  %v874 = vpop.f32.mrf.mxu0
  %v875 = vadd.f32 %v280, %v874
  %v876 = vpop.f32.mrf.mxu0
  %v877 = vadd.f32 %v284, %v876
  %v878 = vpop.f32.mrf.mxu0
  %v879 = vadd.f32 %v280, %v878
  %v880 = vpop.f32.mrf.mxu0
  %v881 = vadd.f32 %v284, %v880
  %882 = vmatprep.mubr.bf16.mxu0 %v168
  %883 = vmatmul.mubr.bf16.gmra.mxu0 %v167
  %v884 = vpop.f32.mrf.mxu0
  %v885 = vadd.f32 %v280, %v884
  %v886 = vpop.f32.mrf.mxu0
  %v887 = vadd.f32 %v284, %v886
  %v888 = vpop.f32.mrf.mxu0
  %v889 = vadd.f32 %v280, %v888
  %v890 = vpop.f32.mrf.mxu0
  %v891 = vadd.f32 %v284, %v890
  %892 = vmatprep.mubr.bf16.mxu0 %v170
  %893 = vmatmul.mubr.bf16.gmra.mxu0 %v169
  %v894 = vpop.f32.mrf.mxu0
  %v895 = vadd.f32 %v280, %v894
  %v896 = vpop.f32.mrf.mxu0
  %v897 = vadd.f32 %v284, %v896
  %v898 = vpop.f32.mrf.mxu0
  %v899 = vpop.f32.mrf.mxu0
  %900 = vdwg.mxu0
  %901 = vmatprep.subr.bf16.mxu0 %v634
  %902 = vmatpush1.bf16.msra.mxu0 %v633
  %903 = vmatprep.subr.bf16.mxu0 %v628
  %904 = vmatpush1.bf16.msra.mxu0 %v627
  %905 = vmatprep.subr.bf16.mxu0 %v622
  %906 = vmatpush1.bf16.msra.mxu0 %v621
  %907 = vmatprep.subr.bf16.mxu0 %v616
  %908 = vmatpush1.bf16.msra.mxu0 %v615
  %909 = vmatprep.subr.bf16.mxu0 %v610
  %910 = vmatpush1.bf16.msra.mxu0 %v609
  %911 = vmatprep.subr.bf16.mxu0 %v604
  %912 = vmatpush1.bf16.msra.mxu0 %v603
  %913 = vmatprep.subr.bf16.mxu0 %v598
  %914 = vmatpush1.bf16.msra.mxu0 %v597
  %915 = vmatprep.subr.bf16.mxu0 %v592
  %916 = vmatpush1.bf16.msra.mxu0 %v591
  %917 = vmatprep.subr.bf16.mxu0 %v682
  %918 = vmatpush2.bf16.msra.mxu0 %v681
  %919 = vmatprep.subr.bf16.mxu0 %v676
  %920 = vmatpush2.bf16.msra.mxu0 %v675
  %921 = vmatprep.subr.bf16.mxu0 %v670
  %922 = vmatpush2.bf16.msra.mxu0 %v669
  %923 = vmatprep.subr.bf16.mxu0 %v664
  %924 = vmatpush2.bf16.msra.mxu0 %v663
  %925 = vmatprep.subr.bf16.mxu0 %v658
  %926 = vmatpush2.bf16.msra.mxu0 %v657
  %927 = vmatprep.subr.bf16.mxu0 %v652
  %928 = vmatpush2.bf16.msra.mxu0 %v651
  %929 = vmatprep.subr.bf16.mxu0 %v646
  %930 = vmatpush2.bf16.msra.mxu0 %v645
  %931 = vmatprep.subr.bf16.mxu0 %v640
  %932 = vmatpush2.bf16.msra.mxu0 %v639
  %933 = vmatprep.mubr.bf16.mxu0 %v166
  %934 = vmatmul.mubr.bf16.gmra.mxu0 %v165
  %v935 = vpop.f32.mrf.mxu0
  %v936 = vadd.f32 %v288, %v935
  %v937 = vpop.f32.mrf.mxu0
  %v938 = vadd.f32 %v292, %v937
  %v939 = vpop.f32.mrf.mxu0
  %v940 = vadd.f32 %v288, %v939
  %v941 = vpop.f32.mrf.mxu0
  %v942 = vadd.f32 %v292, %v941
  %943 = vmatprep.mubr.bf16.mxu0 %v168
  %944 = vmatmul.mubr.bf16.gmra.mxu0 %v167
  %v945 = vpop.f32.mrf.mxu0
  %v946 = vadd.f32 %v288, %v945
  %v947 = vpop.f32.mrf.mxu0
  %v948 = vadd.f32 %v292, %v947
  %v949 = vpop.f32.mrf.mxu0
  %v950 = vadd.f32 %v288, %v949
  %v951 = vpop.f32.mrf.mxu0
  %v952 = vadd.f32 %v292, %v951
  %953 = vmatprep.mubr.bf16.mxu0 %v170
  %954 = vmatmul.mubr.bf16.gmra.mxu0 %v169
  %v955 = vpop.f32.mrf.mxu0
  %v956 = vadd.f32 %v288, %v955
  %v957 = vpop.f32.mrf.mxu0
  %v958 = vadd.f32 %v292, %v957
  %v959 = vpop.f32.mrf.mxu0
  %v960 = vpop.f32.mrf.mxu0
  %961 = vdwg.mxu0
  %v962 = vpack.c.bf16 %v818, %v814
  %v963 = vpack.c.bf16 %v820, %v816
  %v964 = vpack.c.bf16 %v879, %v875
  %v965 = vpack.c.bf16 %v881, %v877
  %v966 = vpack.c.bf16 %v940, %v936
  %v967 = vpack.c.bf16 %v942, %v938
  %v968 = vpack.c.bf16 %v828, %v824
  %v969 = vpack.c.bf16 %v830, %v826
  %v970 = vpack.c.bf16 %v889, %v885
  %v971 = vpack.c.bf16 %v891, %v887
  %v972 = vpack.c.bf16 %v950, %v946
  %v973 = vpack.c.bf16 %v952, %v948
  %v974 = vpack.c.bf16 %v834, %v834
  %v975 = vpack.c.bf16 %v836, %v836
  %v976 = vpack.c.bf16 %v895, %v895
  %v977 = vpack.c.bf16 %v897, %v897
  %v978 = vpack.c.bf16 %v956, %v956
  %v979 = vpack.c.bf16 %v958, %v958
  %v998 = vunpack.c.l.b16 %v962
  %v999 = vunpack.c.l.b16 %v963
  %v1000 = vunpack.c.l.b16 %v964
  %v1001 = vunpack.c.l.b16 %v965
  %v1002 = vunpack.c.l.b16 %v966
  %v1003 = vunpack.c.l.b16 %v967
  %v1004 = vunpack.c.h.b16 %v962
  %v1005 = vunpack.c.h.b16 %v963
  %v1006 = vunpack.c.h.b16 %v964
  %v1007 = vunpack.c.h.b16 %v965
  %v1008 = vunpack.c.h.b16 %v966
  %v1009 = vunpack.c.h.b16 %v967
  %v1010 = vunpack.c.l.b16 %v968
  %v1011 = vunpack.c.l.b16 %v969
  %v1012 = vunpack.c.l.b16 %v970
  %v1013 = vunpack.c.l.b16 %v971
  %v1014 = vunpack.c.l.b16 %v972
  %v1015 = vunpack.c.l.b16 %v973
  %v1016 = vunpack.c.h.b16 %v968
  %v1017 = vunpack.c.h.b16 %v969
  %v1018 = vunpack.c.h.b16 %v970
  %v1019 = vunpack.c.h.b16 %v971
  %v1020 = vunpack.c.h.b16 %v972
  %v1021 = vunpack.c.h.b16 %v973
  %v1022 = vunpack.c.l.b16 %v974
  %v1023 = vunpack.c.l.b16 %v975
  %v1024 = vunpack.c.l.b16 %v976
  %v1025 = vunpack.c.l.b16 %v977
  %v1026 = vunpack.c.l.b16 %v978
  %v1027 = vunpack.c.l.b16 %v979
  %v1028 = vpack.c.b16 %v999, %v998
  %v1029 = vpack.c.b16 %v1001, %v1000
  %v1030 = vpack.c.b16 %v1003, %v1002
  %v1031 = vpack.c.b16 %v1005, %v1004
  %v1032 = vpack.c.b16 %v1007, %v1006
  %v1033 = vpack.c.b16 %v1009, %v1008
  %v1034 = vpack.c.b16 %v1011, %v1010
  %v1035 = vpack.c.b16 %v1013, %v1012
  %v1036 = vpack.c.b16 %v1015, %v1014
  %v1037 = vpack.c.b16 %v1017, %v1016
  %v1038 = vpack.c.b16 %v1019, %v1018
  %v1039 = vpack.c.b16 %v1021, %v1020
  %v1040 = vpack.c.b16 %v1023, %v1022
  %v1041 = vpack.c.b16 %v1025, %v1024
  %v1042 = vpack.c.b16 %v1027, %v1026
  %1058 = vst [vmem:[%s5] sm:$0xff] %v1028
  %1059 = vst [vmem:[%s5 + $0x8] sm:$0xff] %v1029
  %1060 = vst [vmem:[%s5 + $0x10] sm:$0xff] %v1030
  %1061 = vst [vmem:[%s5 + $0x18] sm:$0xff] %v1031
  %1062 = vst [vmem:[%s5 + $0x20] sm:$0xff] %v1032
  %1063 = vst [vmem:[%s5 + $0x28] sm:$0xff] %v1033
  %1064 = vst [vmem:[%s5 + $0x30] sm:$0xff] %v1034
  %1065 = vst [vmem:[%s5 + $0x38] sm:$0xff] %v1035
  %1066 = vst [vmem:[%s5 + $0x40] sm:$0xff] %v1036
  %1067 = vst [vmem:[%s5 + $0x48] sm:$0xff] %v1037
  %1068 = vst [vmem:[%s5 + $0x50] sm:$0xff] %v1038
  %1069 = vst [vmem:[%s5 + $0x58] sm:$0xff] %v1039
  %1070 = vst [vmem:[%s5 + $0x60] sm:$0x33] %v1040
  %1071 = vst [vmem:[%s5 + $0x68] sm:$0x33] %v1041
  %1072 = vst [vmem:[%s5 + $0x70] sm:$0x33] %v1042
  // Predicated region
  $region22: #{_lambda_.17} parent=0 // pred_check
    _
  $region23: #{_lambda_.17} parent=0 // pred_check_branch
    %1074 = sbr.rel (0) target = $region25
  $region24: #{_lambda_.17} parent=0 // pred_region
    _
  $region25: #{_lambda_.17} parent=0 // pred_fallthru
    _
  // Predicated region
  $region26: #{_lambda_.17} parent=0 // pred_check
    _
  $region27: #{_lambda_.17} parent=0 // pred_check_branch
    %1076 = sbr.rel (0) target = $region29
  $region28: #{_lambda_.17} parent=0 // pred_region
    _
  $region29: #{_lambda_.17} parent=0 // pred_fallthru
    _

// kernel: _lambda_.18
$region0: #{_lambda_.18}
  #allocation0 [shape = 'u32[]', space=smem, size = 0x4, offset = 0x4, fixed_abs, tag = 'smem constant byte address 0x4 - core index']
  #allocation1 [shape = 'u32[144,128]{1,0:T(1,128)}', space=vmem, size = 0x12000, scoped, tag = 'internal scratch']
  #allocation2 [shape = 'f32[18,256]{1,0:T(8,128)}', space=vmem, size = 0x6000, scoped, tag = 'scratch operand']
  %s0 = inlined_call_operand.vmem [shape: bf16[2,18,768], index: 0, kind: input, shape index: {}]
  %s1 = inlined_call_operand.vmem [shape: f32[1,18], index: 1, kind: input, shape index: {}]
  %s2 = inlined_call_operand.vmem [shape: bf16[256,256], index: 2, kind: input, shape index: {}]
  %s3 = inlined_call_operand.vmem [shape: f32[1,256], index: 3, kind: input, shape index: {}]
  %s4 = inlined_call_operand.vmem [shape: bf16[2,18,256], index: 4, kind: input, shape index: {}]
  %s5 = inlined_call_operand.vmem [shape: bf16[2,18,256], index: 5, kind: output, shape index: {}]
  %s6 = sld [smem:[#allocation0]]
  $region53: #{_lambda_.18} parent=0
    _
  %s8 = ssub.s32 1, %s6
  %s9 = scalar_select 0, %s8, %s6
  loop: start=0, step=1, limit=4
  $region2: #{_lambda_.18} parent=0 // loop_pre_header
    _
  $region3: #{_lambda_.18} parent=0 // loop_header
    %s11 = sphi 0, %s15
    %p12 = scmp.ge.s32.totalorder %s11, 4
    %s21 = sphi 0, %s23
    %s24 = sphi 0, %s21
    %s25 = sphi 0, %s24
    %s41 = sphi 0, %s25
    %s45 = sphi 0, %s45
    %s47 = sphi 0, %s45
    %s48 = sphi 0, %s47
    %s62 = sphi 0, %s48
    %s66 = sphi 0, %s66
    %s68 = sphi 0, %s66
    %s69 = sphi 0, %s68
    %s83 = sphi 0, %s69
    %s87 = sphi 0, %s87
    %s89 = sphi 0, %s87
    %s90 = sphi 0, %s89
    %s104 = sphi 0, %s90
    %s110 = sphi 0, %s112
    %s113 = sphi 0, %s110
    %s114 = sphi 0, %s113
    %s130 = sphi 0, %s114
    %s136 = sphi 0, %s138
    %s139 = sphi 0, %s136
    %s140 = sphi 0, %s139
    %s156 = sphi 0, %s140
  $region4: #{_lambda_.18} parent=0 // loop_header_branch
    %14 = sbr.rel (%p12) target = $region8
  $region5: #{_lambda_.18} parent=0 // loop_body
    %s16 = ssub.s32 %s11, 1
    %s17 = ssub.s32 %s11, 2
    %s18 = sadd.s32 %s11, 1
    %s19 = ssub.s32 %s11, %s18
    %p20 = scmp.eq.s32.totalorder %s19, 0
    %s22 = sadd.s32 %s21, 1
    %s23 = scalar_select %p20, %s21, %s22
    %p26 = pneg %p20
    %p27 = scmp.eq.s32.totalorder %s11, 1
    %p28 = por %p26, %p27
    %p29 = scmp.ne.s32.totalorder %s21, %s24
    %p30 = scmp.eq.s32.totalorder %s11, 0
    %p31 = por %p29, %p30
    %p32 = scmp.ne.s32.totalorder %s21, %s24
    %p33 = scmp.eq.s32.totalorder %s16, 1
    %p34 = por %p32, %p33
    %p35 = scmp.ne.s32.totalorder %s24, %s25
    %p36 = scmp.eq.s32.totalorder %s16, 0
    %p37 = por %p35, %p36
    %p38 = scmp.ne.s32.totalorder %s24, %s25
    %p39 = scmp.eq.s32.totalorder %s17, 1
    %p40 = por %p38, %p39
    %p42 = scmp.ne.s32.totalorder %s25, %s41
    %p43 = scmp.eq.s32.totalorder %s17, 0
    %p44 = por %p42, %p43
    %s46 = sadd.s32 %s45, 1
    %p49 = scmp.eq.s32.totalorder %s11, 1
    %p50 = scmp.ne.s32.totalorder %s45, %s47
    %p51 = scmp.eq.s32.totalorder %s11, 0
    %p52 = por %p50, %p51
    %p53 = scmp.ne.s32.totalorder %s45, %s47
    %p54 = scmp.eq.s32.totalorder %s16, 1
    %p55 = por %p53, %p54
    %p56 = scmp.ne.s32.totalorder %s47, %s48
    %p57 = scmp.eq.s32.totalorder %s16, 0
    %p58 = por %p56, %p57
    %p59 = scmp.ne.s32.totalorder %s47, %s48
    %p60 = scmp.eq.s32.totalorder %s17, 1
    %p61 = por %p59, %p60
    %p63 = scmp.ne.s32.totalorder %s48, %s62
    %p64 = scmp.eq.s32.totalorder %s17, 0
    %p65 = por %p63, %p64
    %s67 = sadd.s32 %s66, 1
    %p70 = scmp.eq.s32.totalorder %s11, 1
    %p71 = scmp.ne.s32.totalorder %s66, %s68
    %p72 = scmp.eq.s32.totalorder %s11, 0
    %p73 = por %p71, %p72
    %p74 = scmp.ne.s32.totalorder %s66, %s68
    %p75 = scmp.eq.s32.totalorder %s16, 1
    %p76 = por %p74, %p75
    %p77 = scmp.ne.s32.totalorder %s68, %s69
    %p78 = scmp.eq.s32.totalorder %s16, 0
    %p79 = por %p77, %p78
    %p80 = scmp.ne.s32.totalorder %s68, %s69
    %p81 = scmp.eq.s32.totalorder %s17, 1
    %p82 = por %p80, %p81
    %p84 = scmp.ne.s32.totalorder %s69, %s83
    %p85 = scmp.eq.s32.totalorder %s17, 0
    %p86 = por %p84, %p85
    %s88 = sadd.s32 %s87, 1
    %p91 = scmp.eq.s32.totalorder %s11, 1
    %p92 = scmp.ne.s32.totalorder %s87, %s89
    %p93 = scmp.eq.s32.totalorder %s11, 0
    %p94 = por %p92, %p93
    %p95 = scmp.ne.s32.totalorder %s87, %s89
    %p96 = scmp.eq.s32.totalorder %s16, 1
    %p97 = por %p95, %p96
    %p98 = scmp.ne.s32.totalorder %s89, %s90
    %p99 = scmp.eq.s32.totalorder %s16, 0
    %p100 = por %p98, %p99
    %p101 = scmp.ne.s32.totalorder %s89, %s90
    %p102 = scmp.eq.s32.totalorder %s17, 1
    %p103 = por %p101, %p102
    %p105 = scmp.ne.s32.totalorder %s90, %s104
    %p106 = scmp.eq.s32.totalorder %s17, 0
    %p107 = por %p105, %p106
    %s108 = ssub.s32 %s11, %s18
    %p109 = scmp.eq.s32.totalorder %s108, 0
    %s111 = sadd.s32 %s110, 1
    %s112 = scalar_select %p109, %s110, %s111
    %p115 = pneg %p109
    %p116 = scmp.eq.s32.totalorder %s11, 1
    %p117 = por %p115, %p116
    %p118 = scmp.ne.s32.totalorder %s110, %s113
    %p119 = scmp.eq.s32.totalorder %s11, 0
    %p120 = por %p118, %p119
    %p121 = scmp.ne.s32.totalorder %s110, %s113
    %p122 = scmp.eq.s32.totalorder %s16, 1
    %p123 = por %p121, %p122
    %p124 = scmp.ne.s32.totalorder %s113, %s114
    %p125 = scmp.eq.s32.totalorder %s16, 0
    %p126 = por %p124, %p125
    %p127 = scmp.ne.s32.totalorder %s113, %s114
    %p128 = scmp.eq.s32.totalorder %s17, 1
    %p129 = por %p127, %p128
    %p131 = scmp.ne.s32.totalorder %s114, %s130
    %p132 = scmp.eq.s32.totalorder %s17, 0
    %p133 = por %p131, %p132
    %s134 = ssub.s32 %s11, %s18
    %p135 = scmp.eq.s32.totalorder %s134, 0
    %s137 = sadd.s32 %s136, 1
    %s138 = scalar_select %p135, %s136, %s137
    %p141 = pneg %p135
    %p142 = scmp.eq.s32.totalorder %s11, 1
    %p143 = por %p141, %p142
    %p144 = scmp.ne.s32.totalorder %s136, %s139
    %p145 = scmp.eq.s32.totalorder %s11, 0
    %p146 = por %p144, %p145
    %p147 = scmp.ne.s32.totalorder %s136, %s139
    %p148 = scmp.eq.s32.totalorder %s16, 1
    %p149 = por %p147, %p148
    %p150 = scmp.ne.s32.totalorder %s139, %s140
    %p151 = scmp.eq.s32.totalorder %s16, 0
    %p152 = por %p150, %p151
    %p153 = scmp.ne.s32.totalorder %s139, %s140
    %p154 = scmp.eq.s32.totalorder %s17, 1
    %p155 = por %p153, %p154
    %p157 = scmp.ne.s32.totalorder %s140, %s156
    %p158 = scmp.eq.s32.totalorder %s17, 0
    %p159 = por %p157, %p158
    %p160 = scmp.le.s32.totalorder 1, %s11
    %p161 = scmp.lt.s32.totalorder %s11, 3
    %p162 = pnand %p160, %p161
    %p163 = pneg %p162
    // Predicated region
    $region9: #{_lambda_.18} parent=5 // pred_check
      _
    $region10: #{_lambda_.18} parent=5 // pred_check_branch
      %165 = sbr.rel (%p162) target = $region12
    $region11: #{_lambda_.18} parent=5 // pred_region
      %s166 = ssub.s32 %s11, 1
      // Predicated region
      $region13: #{_lambda_.18} parent=11 // pred_check
        %p167 = pneg %p58
      $region14: #{_lambda_.18} parent=11 // pred_check_branch
        %169 = sbr.rel (%p167) target = $region16
      $region15: #{_lambda_.18} parent=11 // pred_region
        _
      $region16: #{_lambda_.18} parent=11 // pred_fallthru
        _
      // Predicated region
      $region17: #{_lambda_.18} parent=11 // pred_check
        %p170 = pneg %p79
      $region18: #{_lambda_.18} parent=11 // pred_check_branch
        %172 = sbr.rel (%p170) target = $region20
      $region19: #{_lambda_.18} parent=11 // pred_region
        _
      $region20: #{_lambda_.18} parent=11 // pred_fallthru
        _
      // Predicated region
      $region21: #{_lambda_.18} parent=11 // pred_check
        %p173 = pneg %p100
      $region22: #{_lambda_.18} parent=11 // pred_check_branch
        %175 = sbr.rel (%p173) target = $region24
      $region23: #{_lambda_.18} parent=11 // pred_region
        _
      $region24: #{_lambda_.18} parent=11 // pred_fallthru
        _
    $region12: #{_lambda_.18} parent=5 // pred_fallthru
      _
    %p176 = scmp.lt.s32.totalorder %s11, 2
    // Predicated region
    $region25: #{_lambda_.18} parent=5 // pred_check
      %p177 = pneg %p176
    $region26: #{_lambda_.18} parent=5 // pred_check_branch
      %179 = sbr.rel (%p177) target = $region28
    $region27: #{_lambda_.18} parent=5 // pred_region
      // Predicated region
      $region29: #{_lambda_.18} parent=27 // pred_check
        %p180 = pneg %p31
      $region30: #{_lambda_.18} parent=27 // pred_check_branch
        %182 = sbr.rel (%p180) target = $region32
      $region31: #{_lambda_.18} parent=27 // pred_region
        %p183 = scmp.lt.s32.totalorder %s11, 1
        %s184 = scalar_select %p183, %s11, 1
        %s185 = smul.addr %s184, 18
        %s186 = smul.addr %s185, 4
        %s187 = scalar_lea.vmem %s0, %s186
      $region32: #{_lambda_.18} parent=27 // pred_fallthru
        _
      // Predicated region
      $region33: #{_lambda_.18} parent=27 // pred_check
        %p188 = pneg %p120
      $region34: #{_lambda_.18} parent=27 // pred_check_branch
        %190 = sbr.rel (%p188) target = $region36
      $region35: #{_lambda_.18} parent=27 // pred_region
        %p191 = scmp.lt.s32.totalorder %s11, 1
        %s192 = scalar_select %p191, %s11, 1
        %s193 = smul.addr %s192, 6
        %s194 = smul.addr %s193, 4
        %s195 = scalar_lea.vmem %s4, %s194
      $region36: #{_lambda_.18} parent=27 // pred_fallthru
        _
    $region28: #{_lambda_.18} parent=5 // pred_fallthru
      _
    %p196 = scmp.le.s32.totalorder 1, %s11
    %p197 = scmp.lt.s32.totalorder %s11, 3
    %p198 = pnand %p196, %p197
    %p199 = pneg %p198
    // Predicated region
    $region37: #{_lambda_.18} parent=5 // pred_check
      _
    $region38: #{_lambda_.18} parent=5 // pred_check_branch
      %201 = sbr.rel (%p198) target = $region40
    $region39: #{_lambda_.18} parent=5 // pred_region
      %s202 = ssub.s32 %s11, 1
      %p203 = scmp.lt.s32.totalorder %s16, 1
      %s204 = scalar_select %p203, %s16, 1
      %s205 = smul.addr %s204, 18
      %s206 = smul.addr %s205, 4
      %s207 = scalar_lea.vmem %s0, %s206
      %p208 = pneg %p37
      %p209 = pneg %p34
      %p210 = pneg %p58
      %p211 = pneg %p55
      %p212 = pneg %p79
      %p213 = pneg %p76
      %p214 = pneg %p100
      %p215 = pneg %p97
      %p216 = scmp.lt.s32.totalorder %s16, 1
      %s217 = scalar_select %p216, %s16, 1
      %s218 = smul.addr %s217, 6
      %s219 = smul.addr %s218, 4
      %s220 = scalar_lea.vmem %s4, %s219
      %p221 = pneg %p126
      %p222 = pneg %p123
      %p223 = pneg %p152
      %p224 = pneg %p149
      %p225 = scmp.lt.s32.totalorder %s16, 1
      %s226 = scalar_select %p225, %s16, 1
      %s227 = smul.addr %s226, 6
      %s228 = smul.addr %s227, 4
      %s229 = scalar_lea.vmem %s5, %s228
      %p230 = scmp.lt.s32.totalorder %s16, 1
      %s231 = scalar_select %p230, %s16, 1
      %s232 = smul.addr %s231, 18
      %s233 = smul.addr %s232, 4
      %s234 = scalar_lea.vmem %s0, %s233
      %p235 = scmp.lt.s32.totalorder %s16, 1
      %s236 = scalar_select %p235, %s16, 1
      %s237 = smul.addr %s236, 6
      %s238 = smul.addr %s237, 4
      %s239 = scalar_lea.vmem %s4, %s238
      %p240 = scmp.lt.s32.totalorder %s16, 1
      %s241 = scalar_select %p240, %s16, 1
      %s242 = smul.addr %s241, 6
      %s243 = smul.addr %s242, 4
      %s244 = scalar_lea.vmem %s5, %s243
      %v246 = vld [vmem:[%s1] sm:$0x1]
      %v247 = vld [vmem:[%s234] sm:$0xf]
      %v248 = vld [vmem:[%s234 + $0x18] sm:$0xf]
      %v249 = vld [vmem:[%s234 + $0x30] sm:$0x1]
      %v250 = vld [vmem:[%s234 + $0x8] sm:$0xf]
      %v251 = vld [vmem:[%s234 + $0x20] sm:$0xf]
      %v252 = vld [vmem:[%s234 + $0x38] sm:$0x1]
      %v253 = vld [vmem:[%s234 + $0x10] sm:$0xf]
      %v254 = vld [vmem:[%s234 + $0x28] sm:$0xf]
      %v255 = vld [vmem:[%s234 + $0x40] sm:$0x1]
      %v257 = vlaneseq
      %v258 = vshrl.u32 %v257, 7
      %v259 = vsub.s32 0, %v258
      %v260 = vrot.slane %v246, %v259
      %v265 = vunpack.c.l.b16 %v247
      %v266 = vunpack.c.l.b16 %v248
      %v267 = vunpack.c.l.b16 %v249
      %v268 = vpack.c.b16 %v266, %v265
      %v269 = vpack.c.b16 %v267, %v267
      %v275 = vunpack.c.l.b16 %v250
      %v276 = vunpack.c.l.b16 %v251
      %v277 = vunpack.c.l.b16 %v252
      %v278 = vpack.c.b16 %v276, %v275
      %v279 = vpack.c.b16 %v277, %v277
      %282 = vmatprep.subr.bf16.mxu0 0
      %283 = vmatpush1.bf16.xpose.msra.mxu0 0
      %284 = vmatprep.subr.bf16.mxu0 0
      %285 = vmatpush1.bf16.xpose.msra.mxu0 0
      %286 = vmatprep.subr.bf16.mxu0 0
      %287 = vmatpush1.bf16.xpose.msra.mxu0 0
      %288 = vmatprep.subr.bf16.mxu0 0
      %289 = vmatpush1.bf16.xpose.msra.mxu0 0
      %290 = vmatprep.subr.bf16.mxu0 0
      %291 = vmatpush1.bf16.xpose.msra.mxu0 0
      %292 = vmatprep.subr.bf16.mxu0 0
      %293 = vmatpush1.bf16.xpose.msra.mxu0 0
      %294 = vmatprep.subr.bf16.mxu0 0
      %295 = vmatpush1.bf16.xpose.msra.mxu0 %v279
      %296 = vmatprep.subr.bf16.mxu0 0
      %297 = vmatpush1.bf16.xpose.msra.mxu0 %v278
      %298 = vmatprep.subr.bf16.mxu0 0
      %299 = vmatpush2.bf16.xpose.msra.mxu0 0
      %300 = vmatprep.subr.bf16.mxu0 0
      %301 = vmatpush2.bf16.xpose.msra.mxu0 0
      %302 = vmatprep.subr.bf16.mxu0 0
      %303 = vmatpush2.bf16.xpose.msra.mxu0 0
      %304 = vmatprep.subr.bf16.mxu0 0
      %305 = vmatpush2.bf16.xpose.msra.mxu0 0
      %306 = vmatprep.subr.bf16.mxu0 0
      %307 = vmatpush2.bf16.xpose.msra.mxu0 0
      %308 = vmatprep.subr.bf16.mxu0 0
      %309 = vmatpush2.bf16.xpose.msra.mxu0 0
      %310 = vmatprep.subr.bf16.mxu0 0
      %311 = vmatpush2.bf16.xpose.msra.mxu0 0
      %312 = vmatprep.subr.bf16.mxu0 0
      %313 = vmatpush2.bf16.xpose.msra.mxu0 0
      %314 = vmatprep.mubr.bf16.mxu0 0
      %315 = vmatmul.mubr.bf16.gmra.mxu0 %v268
      %v316 = vpop.f32.mrf.mxu0
      %v317 = vadd.f32 %v260, %v316
      %v318 = vpop.f32.mrf.mxu0
      %v319 = vpop.f32.mrf.mxu0
      %v320 = vadd.f32 %v260, %v319
      %v321 = vpop.f32.mrf.mxu0
      %322 = vmatprep.mubr.bf16.mxu0 0
      %323 = vmatmul.mubr.bf16.gmra.mxu0 %v269
      %v324 = vpop.f32.mrf.mxu0
      %v325 = vadd.f32 %v260, %v324
      %v326 = vpop.f32.mrf.mxu0
      %v327 = vpop.f32.mrf.mxu0
      %v328 = vpop.f32.mrf.mxu0
      %329 = vdwg.mxu0
      %vm330 = vcmask 146432
      %v331 = vsel %vm330, %v317, -inf
      %332 = vmax.xlane.f32.xlu0 %v331
      %v333 = vpop.xlane.xlu0 %332
      %v334 = vsel %vm330, %v320, -inf
      %335 = vmax.xlane.f32.xlu0 %v334
      %v336 = vpop.xlane.xlu0 %335
      %vm337 = vcmask 140288
      %v338 = vsel %vm337, %v325, -inf
      %339 = vmax.xlane.f32.xlu0 %v338
      %v340 = vpop.xlane.xlu0 %339
      %v341 = vsub.f32 %v317, %v333
      %v342 = vsub.f32 %v320, %v336
      %v343 = vsub.f32 %v325, %v340
      %v344 = vmul.f32 %v341, 1.442695
      %v345 = vpow.pop %v344
      %v346 = vmul.f32 %v342, 1.442695
      %v347 = vpow.pop %v346
      %v348 = vmul.f32 %v343, 1.442695
      %v349 = vpow.pop %v348
      %v350 = vsel %vm330, %v345, 0.0
      %351 = vadd.xlane.f32.xlu0 %v350
      %v352 = vpop.xlane.xlu0 %351
      %v353 = vsel %vm330, %v347, 0.0
      %354 = vadd.xlane.f32.xlu0 %v353
      %v355 = vpop.xlane.xlu0 %354
      %v356 = vsel %vm337, %v349, 0.0
      %357 = vadd.xlane.f32.xlu0 %v356
      %v358 = vpop.xlane.xlu0 %357
      %v359 = vrcp.pop %v352
      %v360 = vrcp.pop %v355
      %v361 = vrcp.pop %v358
      %v362 = vmul.f32 %v345, %v359
      %v363 = vmul.f32 %v347, %v360
      %v364 = vmul.f32 %v349, %v361
      %v365 = vpack.c.bf16 %v363, %v362
      %v366 = vpack.c.bf16 %v364, %v364
      %v370 = vunpack.c.l.b16 %v253
      %v371 = vunpack.c.l.b16 %v254
      %v372 = vunpack.c.l.b16 %v255
      %v373 = vpack.c.b16 %v371, %v370
      %v374 = vpack.c.b16 %v372, %v372
      %v377 = vsel %vm330, %v365, 0
      %v380 = vsel %vm330, %v366, 0
      %vm382 = vcmask 1040384
      %v384 = vsel %vm382, %v374, 0
      %386 = vmatprep.subr.bf16.mxu0 0
      %387 = vmatpush1.bf16.msra.mxu0 0
      %388 = vmatprep.subr.bf16.mxu0 0
      %389 = vmatpush1.bf16.msra.mxu0 0
      %390 = vmatprep.subr.bf16.mxu0 0
      %391 = vmatpush1.bf16.msra.mxu0 0
      %392 = vmatprep.subr.bf16.mxu0 0
      %393 = vmatpush1.bf16.msra.mxu0 0
      %394 = vmatprep.subr.bf16.mxu0 0
      %395 = vmatpush1.bf16.msra.mxu0 0
      %396 = vmatprep.subr.bf16.mxu0 0
      %397 = vmatpush1.bf16.msra.mxu0 0
      %398 = vmatprep.subr.bf16.mxu0 0
      %399 = vmatpush1.bf16.msra.mxu0 %v384
      %400 = vmatprep.subr.bf16.mxu0 0
      %401 = vmatpush1.bf16.msra.mxu0 %v373
      %402 = vmatprep.subr.bf16.mxu0 0
      %403 = vmatpush2.bf16.msra.mxu0 0
      %404 = vmatprep.subr.bf16.mxu0 0
      %405 = vmatpush2.bf16.msra.mxu0 0
      %406 = vmatprep.subr.bf16.mxu0 0
      %407 = vmatpush2.bf16.msra.mxu0 0
      %408 = vmatprep.subr.bf16.mxu0 0
      %409 = vmatpush2.bf16.msra.mxu0 0
      %410 = vmatprep.subr.bf16.mxu0 0
      %411 = vmatpush2.bf16.msra.mxu0 0
      %412 = vmatprep.subr.bf16.mxu0 0
      %413 = vmatpush2.bf16.msra.mxu0 0
      %414 = vmatprep.subr.bf16.mxu0 0
      %415 = vmatpush2.bf16.msra.mxu0 0
      %416 = vmatprep.subr.bf16.mxu0 0
      %417 = vmatpush2.bf16.msra.mxu0 0
      %418 = vmatprep.mubr.bf16.mxu0 0
      %419 = vmatmul.mubr.bf16.gmra.mxu0 %v377
      %v420 = vpop.f32.mrf.mxu0
      %v421 = vadd.f32 0.0, %v420
      %v422 = vpop.f32.mrf.mxu0
      %v423 = vpop.f32.mrf.mxu0
      %v424 = vadd.f32 0.0, %v423
      %v425 = vpop.f32.mrf.mxu0
      %426 = vmatprep.mubr.bf16.mxu0 0
      %427 = vmatmul.mubr.bf16.gmra.mxu0 %v380
      %v428 = vpop.f32.mrf.mxu0
      %v429 = vadd.f32 0.0, %v428
      %v430 = vpop.f32.mrf.mxu0
      %v431 = vpop.f32.mrf.mxu0
      %v432 = vpop.f32.mrf.mxu0
      %433 = vdwg.mxu0
      %434 = vst [vmem:[#allocation2] sm:$0xff] %v421
      %435 = vst [vmem:[#allocation2 + $0x10] sm:$0xff] %v424
      %436 = vst [vmem:[#allocation2 + $0x20] sm:$0x3] %v429
      %v437 = vld [vmem:[%s234 + $0x4] sm:$0xf]
      %v438 = vld [vmem:[%s234 + $0x1c] sm:$0xf]
      %v439 = vld [vmem:[%s234 + $0x34] sm:$0x1]
      %v440 = vld [vmem:[%s234 + $0xc] sm:$0xf]
      %v441 = vld [vmem:[%s234 + $0x24] sm:$0xf]
      %v442 = vld [vmem:[%s234 + $0x3c] sm:$0x1]
      %v443 = vld [vmem:[%s234 + $0x14] sm:$0xf]
      %v444 = vld [vmem:[%s234 + $0x2c] sm:$0xf]
      %v445 = vld [vmem:[%s234 + $0x44] sm:$0x1]
      %v449 = vunpack.c.l.b16 %v437
      %v450 = vunpack.c.l.b16 %v438
      %v451 = vunpack.c.l.b16 %v439
      %v452 = vpack.c.b16 %v450, %v449
      %v453 = vpack.c.b16 %v451, %v451
      %v459 = vunpack.c.l.b16 %v440
      %v460 = vunpack.c.l.b16 %v441
      %v461 = vunpack.c.l.b16 %v442
      %v462 = vpack.c.b16 %v460, %v459
      %v463 = vpack.c.b16 %v461, %v461
      %466 = vmatprep.subr.bf16.mxu0 0
      %467 = vmatpush1.bf16.xpose.msra.mxu0 0
      %468 = vmatprep.subr.bf16.mxu0 0
      %469 = vmatpush1.bf16.xpose.msra.mxu0 0
      %470 = vmatprep.subr.bf16.mxu0 0
      %471 = vmatpush1.bf16.xpose.msra.mxu0 0
      %472 = vmatprep.subr.bf16.mxu0 0
      %473 = vmatpush1.bf16.xpose.msra.mxu0 0
      %474 = vmatprep.subr.bf16.mxu0 0
      %475 = vmatpush1.bf16.xpose.msra.mxu0 0
      %476 = vmatprep.subr.bf16.mxu0 0
      %477 = vmatpush1.bf16.xpose.msra.mxu0 0
      %478 = vmatprep.subr.bf16.mxu0 0
      %479 = vmatpush1.bf16.xpose.msra.mxu0 %v463
      %480 = vmatprep.subr.bf16.mxu0 0
      %481 = vmatpush1.bf16.xpose.msra.mxu0 %v462
      %482 = vmatprep.subr.bf16.mxu0 0
      %483 = vmatpush2.bf16.xpose.msra.mxu0 0
      %484 = vmatprep.subr.bf16.mxu0 0
      %485 = vmatpush2.bf16.xpose.msra.mxu0 0
      %486 = vmatprep.subr.bf16.mxu0 0
      %487 = vmatpush2.bf16.xpose.msra.mxu0 0
      %488 = vmatprep.subr.bf16.mxu0 0
      %489 = vmatpush2.bf16.xpose.msra.mxu0 0
      %490 = vmatprep.subr.bf16.mxu0 0
      %491 = vmatpush2.bf16.xpose.msra.mxu0 0
      %492 = vmatprep.subr.bf16.mxu0 0
      %493 = vmatpush2.bf16.xpose.msra.mxu0 0
      %494 = vmatprep.subr.bf16.mxu0 0
      %495 = vmatpush2.bf16.xpose.msra.mxu0 0
      %496 = vmatprep.subr.bf16.mxu0 0
      %497 = vmatpush2.bf16.xpose.msra.mxu0 0
      %498 = vmatprep.mubr.bf16.mxu0 0
      %499 = vmatmul.mubr.bf16.gmra.mxu0 %v452
      %v500 = vpop.f32.mrf.mxu0
      %v501 = vadd.f32 %v260, %v500
      %v502 = vpop.f32.mrf.mxu0
      %v503 = vpop.f32.mrf.mxu0
      %v504 = vadd.f32 %v260, %v503
      %v505 = vpop.f32.mrf.mxu0
      %506 = vmatprep.mubr.bf16.mxu0 0
      %507 = vmatmul.mubr.bf16.gmra.mxu0 %v453
      %v508 = vpop.f32.mrf.mxu0
      %v509 = vadd.f32 %v260, %v508
      %v510 = vpop.f32.mrf.mxu0
      %v511 = vpop.f32.mrf.mxu0
      %v512 = vpop.f32.mrf.mxu0
      %513 = vdwg.mxu0
      %v514 = vsel %vm330, %v501, -inf
      %515 = vmax.xlane.f32.xlu0 %v514
      %v516 = vpop.xlane.xlu0 %515
      %v517 = vsel %vm330, %v504, -inf
      %518 = vmax.xlane.f32.xlu0 %v517
      %v519 = vpop.xlane.xlu0 %518
      %v520 = vsel %vm337, %v509, -inf
      %521 = vmax.xlane.f32.xlu0 %v520
      %v522 = vpop.xlane.xlu0 %521
      %v523 = vsub.f32 %v501, %v516
      %v524 = vsub.f32 %v504, %v519
      %v525 = vsub.f32 %v509, %v522
      %v526 = vmul.f32 %v523, 1.442695
      %v527 = vpow.pop %v526
      %v528 = vmul.f32 %v524, 1.442695
      %v529 = vpow.pop %v528
      %v530 = vmul.f32 %v525, 1.442695
      %v531 = vpow.pop %v530
      %v532 = vsel %vm330, %v527, 0.0
      %533 = vadd.xlane.f32.xlu0 %v532
      %v534 = vpop.xlane.xlu0 %533
      %v535 = vsel %vm330, %v529, 0.0
      %536 = vadd.xlane.f32.xlu0 %v535
      %v537 = vpop.xlane.xlu0 %536
      %v538 = vsel %vm337, %v531, 0.0
      %539 = vadd.xlane.f32.xlu0 %v538
      %v540 = vpop.xlane.xlu0 %539
      %v541 = vrcp.pop %v534
      %v542 = vrcp.pop %v537
      %v543 = vrcp.pop %v540
      %v544 = vmul.f32 %v527, %v541
      %v545 = vmul.f32 %v529, %v542
      %v546 = vmul.f32 %v531, %v543
      %v547 = vpack.c.bf16 %v545, %v544
      %v548 = vpack.c.bf16 %v546, %v546
      %v552 = vunpack.c.l.b16 %v443
      %v553 = vunpack.c.l.b16 %v444
      %v554 = vunpack.c.l.b16 %v445
      %v555 = vpack.c.b16 %v553, %v552
      %v556 = vpack.c.b16 %v554, %v554
      %v559 = vsel %vm330, %v547, 0
      %v562 = vsel %vm330, %v548, 0
      %v565 = vsel %vm382, %v556, 0
      %567 = vmatprep.subr.bf16.mxu0 0
      %568 = vmatpush1.bf16.msra.mxu0 0
      %569 = vmatprep.subr.bf16.mxu0 0
      %570 = vmatpush1.bf16.msra.mxu0 0
      %571 = vmatprep.subr.bf16.mxu0 0
      %572 = vmatpush1.bf16.msra.mxu0 0
      %573 = vmatprep.subr.bf16.mxu0 0
      %574 = vmatpush1.bf16.msra.mxu0 0
      %575 = vmatprep.subr.bf16.mxu0 0
      %576 = vmatpush1.bf16.msra.mxu0 0
      %577 = vmatprep.subr.bf16.mxu0 0
      %578 = vmatpush1.bf16.msra.mxu0 0
      %579 = vmatprep.subr.bf16.mxu0 0
      %580 = vmatpush1.bf16.msra.mxu0 %v565
      %581 = vmatprep.subr.bf16.mxu0 0
      %582 = vmatpush1.bf16.msra.mxu0 %v555
      %583 = vmatprep.subr.bf16.mxu0 0
      %584 = vmatpush2.bf16.msra.mxu0 0
      %585 = vmatprep.subr.bf16.mxu0 0
      %586 = vmatpush2.bf16.msra.mxu0 0
      %587 = vmatprep.subr.bf16.mxu0 0
      %588 = vmatpush2.bf16.msra.mxu0 0
      %589 = vmatprep.subr.bf16.mxu0 0
      %590 = vmatpush2.bf16.msra.mxu0 0
      %591 = vmatprep.subr.bf16.mxu0 0
      %592 = vmatpush2.bf16.msra.mxu0 0
      %593 = vmatprep.subr.bf16.mxu0 0
      %594 = vmatpush2.bf16.msra.mxu0 0
      %595 = vmatprep.subr.bf16.mxu0 0
      %596 = vmatpush2.bf16.msra.mxu0 0
      %597 = vmatprep.subr.bf16.mxu0 0
      %598 = vmatpush2.bf16.msra.mxu0 0
      %599 = vmatprep.mubr.bf16.mxu0 0
      %600 = vmatmul.mubr.bf16.gmra.mxu0 %v559
      %v601 = vpop.f32.mrf.mxu0
      %v602 = vadd.f32 0.0, %v601
      %v603 = vpop.f32.mrf.mxu0
      %v604 = vpop.f32.mrf.mxu0
      %v605 = vadd.f32 0.0, %v604
      %v606 = vpop.f32.mrf.mxu0
      %607 = vmatprep.mubr.bf16.mxu0 0
      %608 = vmatmul.mubr.bf16.gmra.mxu0 %v562
      %v609 = vpop.f32.mrf.mxu0
      %v610 = vadd.f32 0.0, %v609
      %v611 = vpop.f32.mrf.mxu0
      %v612 = vpop.f32.mrf.mxu0
      %v613 = vpop.f32.mrf.mxu0
      %614 = vdwg.mxu0
      %615 = vst [vmem:[#allocation2 + $0x8] sm:$0xff] %v602
      %616 = vst [vmem:[#allocation2 + $0x18] sm:$0xff] %v605
      %617 = vst [vmem:[#allocation2 + $0x28] sm:$0x3] %v610
      %v618 = vld [vmem:[#allocation2] sm:$0xff]
      %v619 = vld [vmem:[#allocation2 + $0x8] sm:$0xff]
      %v620 = vld [vmem:[#allocation2 + $0x10] sm:$0xff]
      %v621 = vld [vmem:[#allocation2 + $0x18] sm:$0xff]
      %v622 = vld [vmem:[#allocation2 + $0x20] sm:$0x3]
      %v623 = vld [vmem:[#allocation2 + $0x28] sm:$0x3]
      %v624 = vpack.c.bf16 %v620, %v618
      %v625 = vpack.c.bf16 %v621, %v619
      %v626 = vpack.c.bf16 %v622, %v622
      %v627 = vpack.c.bf16 %v623, %v623
      %v628 = vld [vmem:[%s2] sm:$0xff]
      %v629 = vld [vmem:[%s2 + $0x8] sm:$0xff]
      %v630 = vld [vmem:[%s2 + $0x10] sm:$0xff]
      %v631 = vld [vmem:[%s2 + $0x18] sm:$0xff]
      %v632 = vld [vmem:[%s2 + $0x20] sm:$0xff]
      %v633 = vld [vmem:[%s2 + $0x28] sm:$0xff]
      %v634 = vld [vmem:[%s2 + $0x30] sm:$0xff]
      %v635 = vld [vmem:[%s2 + $0x38] sm:$0xff]
      %v636 = vld [vmem:[%s2 + $0x40] sm:$0xff]
      %v637 = vld [vmem:[%s2 + $0x48] sm:$0xff]
      %v638 = vld [vmem:[%s2 + $0x50] sm:$0xff]
      %v639 = vld [vmem:[%s2 + $0x58] sm:$0xff]
      %v640 = vld [vmem:[%s2 + $0x60] sm:$0xff]
      %v641 = vld [vmem:[%s2 + $0x68] sm:$0xff]
      %v642 = vld [vmem:[%s2 + $0x70] sm:$0xff]
      %v643 = vld [vmem:[%s2 + $0x78] sm:$0xff]
      %v644 = vld [vmem:[%s2 + $0x80] sm:$0xff]
      %v645 = vld [vmem:[%s2 + $0x88] sm:$0xff]
      %v646 = vld [vmem:[%s2 + $0x90] sm:$0xff]
      %v647 = vld [vmem:[%s2 + $0x98] sm:$0xff]
      %v648 = vld [vmem:[%s2 + $0xa0] sm:$0xff]
      %v649 = vld [vmem:[%s2 + $0xa8] sm:$0xff]
      %v650 = vld [vmem:[%s2 + $0xb0] sm:$0xff]
      %v651 = vld [vmem:[%s2 + $0xb8] sm:$0xff]
      %v652 = vld [vmem:[%s2 + $0xc0] sm:$0xff]
      %v653 = vld [vmem:[%s2 + $0xc8] sm:$0xff]
      %v654 = vld [vmem:[%s2 + $0xd0] sm:$0xff]
      %v655 = vld [vmem:[%s2 + $0xd8] sm:$0xff]
      %v656 = vld [vmem:[%s2 + $0xe0] sm:$0xff]
      %v657 = vld [vmem:[%s2 + $0xe8] sm:$0xff]
      %v658 = vld [vmem:[%s2 + $0xf0] sm:$0xff]
      %v659 = vld [vmem:[%s2 + $0xf8] sm:$0xff]
      %v660 = vld [vmem:[%s3] sm:$0x3]
      %v662 = vlaneseq
      %v663 = vshrl.u32 %v662, 7
      %v664 = vsub.s32 0, %v663
      %v665 = vrot.slane %v660, %v664
      %v666 = vlaneseq
      %v667 = vshrl.u32 %v666, 7
      %v668 = vsub.s32 1, %v667
      %v669 = vrot.slane %v660, %v668
      %v704 = vunpack.c.l.b16 %v628
      %v705 = vunpack.c.h.b16 %v628
      %v706 = vunpack.c.l.b16 %v629
      %v707 = vunpack.c.h.b16 %v629
      %v708 = vunpack.c.l.b16 %v630
      %v709 = vunpack.c.h.b16 %v630
      %v710 = vunpack.c.l.b16 %v631
      %v711 = vunpack.c.h.b16 %v631
      %v712 = vunpack.c.l.b16 %v632
      %v713 = vunpack.c.h.b16 %v632
      %v714 = vunpack.c.l.b16 %v633
      %v715 = vunpack.c.h.b16 %v633
      %v716 = vunpack.c.l.b16 %v634
      %v717 = vunpack.c.h.b16 %v634
      %v718 = vunpack.c.l.b16 %v635
      %v719 = vunpack.c.h.b16 %v635
      %v720 = vunpack.c.l.b16 %v636
      %v721 = vunpack.c.h.b16 %v636
      %v722 = vunpack.c.l.b16 %v637
      %v723 = vunpack.c.h.b16 %v637
      %v724 = vunpack.c.l.b16 %v638
      %v725 = vunpack.c.h.b16 %v638
      %v726 = vunpack.c.l.b16 %v639
      %v727 = vunpack.c.h.b16 %v639
      %v728 = vunpack.c.l.b16 %v640
      %v729 = vunpack.c.h.b16 %v640
      %v730 = vunpack.c.l.b16 %v641
      %v731 = vunpack.c.h.b16 %v641
      %v732 = vunpack.c.l.b16 %v642
      %v733 = vunpack.c.h.b16 %v642
      %v734 = vunpack.c.l.b16 %v643
      %v735 = vunpack.c.h.b16 %v643
      %v736 = vunpack.c.l.b16 %v644
      %v737 = vunpack.c.h.b16 %v644
      %v738 = vunpack.c.l.b16 %v645
      %v739 = vunpack.c.h.b16 %v645
      %v740 = vunpack.c.l.b16 %v646
      %v741 = vunpack.c.h.b16 %v646
      %v742 = vunpack.c.l.b16 %v647
      %v743 = vunpack.c.h.b16 %v647
      %v744 = vunpack.c.l.b16 %v648
      %v745 = vunpack.c.h.b16 %v648
      %v746 = vunpack.c.l.b16 %v649
      %v747 = vunpack.c.h.b16 %v649
      %v748 = vunpack.c.l.b16 %v650
      %v749 = vunpack.c.h.b16 %v650
      %v750 = vunpack.c.l.b16 %v651
      %v751 = vunpack.c.h.b16 %v651
      %v752 = vunpack.c.l.b16 %v652
      %v753 = vunpack.c.h.b16 %v652
      %v754 = vunpack.c.l.b16 %v653
      %v755 = vunpack.c.h.b16 %v653
      %v756 = vunpack.c.l.b16 %v654
      %v757 = vunpack.c.h.b16 %v654
      %v758 = vunpack.c.l.b16 %v655
      %v759 = vunpack.c.h.b16 %v655
      %v760 = vunpack.c.l.b16 %v656
      %v761 = vunpack.c.h.b16 %v656
      %v762 = vunpack.c.l.b16 %v657
      %v763 = vunpack.c.h.b16 %v657
      %v764 = vunpack.c.l.b16 %v658
      %v765 = vunpack.c.h.b16 %v658
      %v766 = vunpack.c.l.b16 %v659
      %v767 = vunpack.c.h.b16 %v659
      %v768 = vpack.c.b16 %v706, %v704
      %v769 = vpack.c.b16 %v707, %v705
      %v770 = vpack.c.b16 %v710, %v708
      %v771 = vpack.c.b16 %v711, %v709
      %v772 = vpack.c.b16 %v714, %v712
      %v773 = vpack.c.b16 %v715, %v713
      %v774 = vpack.c.b16 %v718, %v716
      %v775 = vpack.c.b16 %v719, %v717
      %v776 = vpack.c.b16 %v722, %v720
      %v777 = vpack.c.b16 %v723, %v721
      %v778 = vpack.c.b16 %v726, %v724
      %v779 = vpack.c.b16 %v727, %v725
      %v780 = vpack.c.b16 %v730, %v728
      %v781 = vpack.c.b16 %v731, %v729
      %v782 = vpack.c.b16 %v734, %v732
      %v783 = vpack.c.b16 %v735, %v733
      %v784 = vpack.c.b16 %v738, %v736
      %v785 = vpack.c.b16 %v739, %v737
      %v786 = vpack.c.b16 %v742, %v740
      %v787 = vpack.c.b16 %v743, %v741
      %v788 = vpack.c.b16 %v746, %v744
      %v789 = vpack.c.b16 %v747, %v745
      %v790 = vpack.c.b16 %v750, %v748
      %v791 = vpack.c.b16 %v751, %v749
      %v792 = vpack.c.b16 %v754, %v752
      %v793 = vpack.c.b16 %v755, %v753
      %v794 = vpack.c.b16 %v758, %v756
      %v795 = vpack.c.b16 %v759, %v757
      %v796 = vpack.c.b16 %v762, %v760
      %v797 = vpack.c.b16 %v763, %v761
      %v798 = vpack.c.b16 %v766, %v764
      %v799 = vpack.c.b16 %v767, %v765
      %832 = vmatprep.subr.bf16.mxu0 %v783
      %833 = vmatpush1.bf16.msra.mxu0 %v782
      %834 = vmatprep.subr.bf16.mxu0 %v781
      %835 = vmatpush1.bf16.msra.mxu0 %v780
      %836 = vmatprep.subr.bf16.mxu0 %v779
      %837 = vmatpush1.bf16.msra.mxu0 %v778
      %838 = vmatprep.subr.bf16.mxu0 %v777
      %839 = vmatpush1.bf16.msra.mxu0 %v776
      %840 = vmatprep.subr.bf16.mxu0 %v775
      %841 = vmatpush1.bf16.msra.mxu0 %v774
      %842 = vmatprep.subr.bf16.mxu0 %v773
      %843 = vmatpush1.bf16.msra.mxu0 %v772
      %844 = vmatprep.subr.bf16.mxu0 %v771
      %845 = vmatpush1.bf16.msra.mxu0 %v770
      %846 = vmatprep.subr.bf16.mxu0 %v769
      %847 = vmatpush1.bf16.msra.mxu0 %v768
      %848 = vmatprep.subr.bf16.mxu0 %v799
      %849 = vmatpush2.bf16.msra.mxu0 %v798
      %850 = vmatprep.subr.bf16.mxu0 %v797
      %851 = vmatpush2.bf16.msra.mxu0 %v796
      %852 = vmatprep.subr.bf16.mxu0 %v795
      %853 = vmatpush2.bf16.msra.mxu0 %v794
      %854 = vmatprep.subr.bf16.mxu0 %v793
      %855 = vmatpush2.bf16.msra.mxu0 %v792
      %856 = vmatprep.subr.bf16.mxu0 %v791
      %857 = vmatpush2.bf16.msra.mxu0 %v790
      %858 = vmatprep.subr.bf16.mxu0 %v789
      %859 = vmatpush2.bf16.msra.mxu0 %v788
      %860 = vmatprep.subr.bf16.mxu0 %v787
      %861 = vmatpush2.bf16.msra.mxu0 %v786
      %862 = vmatprep.subr.bf16.mxu0 %v785
      %863 = vmatpush2.bf16.msra.mxu0 %v784
      %864 = vmatprep.mubr.bf16.mxu0 %v625
      %865 = vmatmul.mubr.bf16.gmra.mxu0 %v624
      %v866 = vpop.f32.mrf.mxu0
      %v867 = vadd.f32 %v665, %v866
      %v868 = vpop.f32.mrf.mxu0
      %v869 = vadd.f32 %v669, %v868
      %v870 = vpop.f32.mrf.mxu0
      %v871 = vadd.f32 %v665, %v870
      %v872 = vpop.f32.mrf.mxu0
      %v873 = vadd.f32 %v669, %v872
      %874 = vmatprep.mubr.bf16.mxu0 %v627
      %875 = vmatmul.mubr.bf16.gmra.mxu0 %v626
      %v876 = vpop.f32.mrf.mxu0
      %v877 = vadd.f32 %v665, %v876
      %v878 = vpop.f32.mrf.mxu0
      %v879 = vadd.f32 %v669, %v878
      %v880 = vpop.f32.mrf.mxu0
      %v881 = vpop.f32.mrf.mxu0
      %882 = vdwg.mxu0
      %v883 = vld [vmem:[%s239] sm:$0xff]
      %v884 = vld [vmem:[%s239 + $0x8] sm:$0xff]
      %v885 = vld [vmem:[%s239 + $0x10] sm:$0x11]
      %v886 = vunpack.c.l.bf16 %v883
      %v887 = vunpack.c.h.bf16 %v883
      %v888 = vunpack.c.l.bf16 %v884
      %v889 = vunpack.c.h.bf16 %v884
      %v890 = vunpack.c.l.bf16 %v885
      %v891 = vunpack.c.h.bf16 %v885
      %v892 = vadd.f32 %v867, %v886
      %v893 = vadd.f32 %v869, %v887
      %v894 = vadd.f32 %v871, %v888
      %v895 = vadd.f32 %v873, %v889
      %v896 = vadd.f32 %v877, %v890
      %v897 = vadd.f32 %v879, %v891
      %v898 = vpack.c.bf16 %v894, %v892
      %v899 = vpack.c.bf16 %v895, %v893
      %v900 = vpack.c.bf16 %v896, %v896
      %v901 = vpack.c.bf16 %v897, %v897
      %v906 = vunpack.c.l.b16 %v898
      %v907 = vunpack.c.l.b16 %v899
      %v908 = vunpack.c.h.b16 %v898
      %v909 = vunpack.c.h.b16 %v899
      %v910 = vunpack.c.l.b16 %v900
      %v911 = vunpack.c.l.b16 %v901
      %v912 = vpack.c.b16 %v907, %v906
      %v913 = vpack.c.b16 %v909, %v908
      %v914 = vpack.c.b16 %v911, %v910
      %918 = vst [vmem:[%s244] sm:$0xff] %v912
      %919 = vst [vmem:[%s244 + $0x8] sm:$0xff] %v913
      %920 = vst [vmem:[%s244 + $0x10] sm:$0x11] %v914
      %p921 = scmp.lt.s32.totalorder %s16, 1
      %s922 = scalar_select %p921, %s16, 1
      %s923 = smul.addr %s922, 6
      %s924 = smul.addr %s923, 4
      %s925 = scalar_lea.vmem %s5, %s924
      // Predicated region
      $region41: #{_lambda_.18} parent=39 // pred_check
        %p926 = pneg %p149
      $region42: #{_lambda_.18} parent=39 // pred_check_branch
        %928 = sbr.rel (%p926) target = $region44
      $region43: #{_lambda_.18} parent=39 // pred_region
        _
      $region44: #{_lambda_.18} parent=39 // pred_fallthru
        _
    $region40: #{_lambda_.18} parent=5 // pred_fallthru
      _
    %p929 = scmp.le.s32.totalorder 2, %s11
    // Predicated region
    $region45: #{_lambda_.18} parent=5 // pred_check
      %p930 = pneg %p929
    $region46: #{_lambda_.18} parent=5 // pred_check_branch
      %932 = sbr.rel (%p930) target = $region48
    $region47: #{_lambda_.18} parent=5 // pred_region
      %s933 = ssub.s32 %s11, 2
      // Predicated region
      $region49: #{_lambda_.18} parent=47 // pred_check
        %p934 = pneg %p155
      $region50: #{_lambda_.18} parent=47 // pred_check_branch
        %936 = sbr.rel (%p934) target = $region52
      $region51: #{_lambda_.18} parent=47 // pred_region
        %p937 = scmp.lt.s32.totalorder %s17, 1
        %s938 = scalar_select %p937, %s17, 1
        %s939 = smul.addr %s938, 6
        %s940 = smul.addr %s939, 4
        %s941 = scalar_lea.vmem %s5, %s940
      $region52: #{_lambda_.18} parent=47 // pred_fallthru
        _
    $region48: #{_lambda_.18} parent=5 // pred_fallthru
      _
  $region6: #{_lambda_.18} parent=0 // loop_footer
    %s15 = sadd.s32 1, %s11
  $region7: #{_lambda_.18} parent=0 // loop_footer_branch
    %10 = sbr.rel target = $region3
  $region8: #{_lambda_.18} parent=0 // loop_exit
    _

// kernel: _lambda_.19
$region0: #{_lambda_.19}
  #allocation0 [shape = 'u32[]', space=smem, size = 0x4, offset = 0x4, fixed_abs, tag = 'smem constant byte address 0x4 - core index']
  #allocation1 [shape = 'u32[144,128]{1,0:T(1,128)}', space=vmem, size = 0x12000, scoped, tag = 'internal scratch']
  #allocation2 [shape = 'f32[36,256]{1,0:T(8,128)}', space=vmem, size = 0xa000, scoped, tag = 'scratch operand']
  %s0 = inlined_call_operand.vmem [shape: bf16[36,256], index: 0, kind: input, shape index: {}]
  %s1 = inlined_call_operand.vmem [shape: f32[1,256], index: 1, kind: input, shape index: {}]
  %s2 = inlined_call_operand.vmem [shape: f32[1,256], index: 2, kind: input, shape index: {}]
  %s3 = inlined_call_operand.vmem [shape: bf16[256,512], index: 3, kind: input, shape index: {}]
  %s4 = inlined_call_operand.vmem [shape: f32[1,512], index: 4, kind: input, shape index: {}]
  %s5 = inlined_call_operand.vmem [shape: bf16[512,256], index: 5, kind: input, shape index: {}]
  %s6 = inlined_call_operand.vmem [shape: f32[1,256], index: 6, kind: input, shape index: {}]
  %s7 = inlined_call_operand.vmem [shape: bf16[36,256], index: 7, kind: output, shape index: {}]
  %s8 = sld [smem:[#allocation0]]
  $region38: #{_lambda_.19} parent=0
    _
  %s10 = ssub.s32 1, %s8
  %s11 = scalar_select 0, %s10, %s8
  // Predicated region
  $region2: #{_lambda_.19} parent=0 // pred_check
    _
  $region3: #{_lambda_.19} parent=0 // pred_check_branch
    %13 = sbr.rel (0) target = $region5
  $region4: #{_lambda_.19} parent=0 // pred_region
    _
  $region5: #{_lambda_.19} parent=0 // pred_fallthru
    _
  // Predicated region
  $region6: #{_lambda_.19} parent=0 // pred_check
    _
  $region7: #{_lambda_.19} parent=0 // pred_check_branch
    %15 = sbr.rel (0) target = $region9
  $region8: #{_lambda_.19} parent=0 // pred_region
    _
  $region9: #{_lambda_.19} parent=0 // pred_fallthru
    _
  // Predicated region
  $region10: #{_lambda_.19} parent=0 // pred_check
    _
  $region11: #{_lambda_.19} parent=0 // pred_check_branch
    %17 = sbr.rel (0) target = $region13
  $region12: #{_lambda_.19} parent=0 // pred_region
    _
  $region13: #{_lambda_.19} parent=0 // pred_fallthru
    _
  // Predicated region
  $region14: #{_lambda_.19} parent=0 // pred_check
    _
  $region15: #{_lambda_.19} parent=0 // pred_check_branch
    %19 = sbr.rel (0) target = $region17
  $region16: #{_lambda_.19} parent=0 // pred_region
    _
  $region17: #{_lambda_.19} parent=0 // pred_fallthru
    _
  // Predicated region
  $region18: #{_lambda_.19} parent=0 // pred_check
    _
  $region19: #{_lambda_.19} parent=0 // pred_check_branch
    %21 = sbr.rel (0) target = $region21
  $region20: #{_lambda_.19} parent=0 // pred_region
    _
  $region21: #{_lambda_.19} parent=0 // pred_fallthru
    _
  // Predicated region
  $region22: #{_lambda_.19} parent=0 // pred_check
    _
  $region23: #{_lambda_.19} parent=0 // pred_check_branch
    %23 = sbr.rel (0) target = $region25
  $region24: #{_lambda_.19} parent=0 // pred_region
    _
  $region25: #{_lambda_.19} parent=0 // pred_fallthru
    _
  // Predicated region
  $region26: #{_lambda_.19} parent=0 // pred_check
    _
  $region27: #{_lambda_.19} parent=0 // pred_check_branch
    %25 = sbr.rel (0) target = $region29
  $region28: #{_lambda_.19} parent=0 // pred_region
    _
  $region29: #{_lambda_.19} parent=0 // pred_fallthru
    _
  %v26 = vld [vmem:[%s0] sm:$0xff]
  %v27 = vld [vmem:[%s0 + $0x8] sm:$0xff]
  %v28 = vld [vmem:[%s0 + $0x10] sm:$0xff]
  %v29 = vld [vmem:[%s0 + $0x18] sm:$0xff]
  %v30 = vld [vmem:[%s0 + $0x20] sm:$0x33]
  %v31 = vunpack.c.l.bf16 %v26
  %v32 = vunpack.c.h.bf16 %v26
  %v33 = vunpack.c.l.bf16 %v27
  %v34 = vunpack.c.h.bf16 %v27
  %v35 = vunpack.c.l.bf16 %v28
  %v36 = vunpack.c.h.bf16 %v28
  %v37 = vunpack.c.l.bf16 %v29
  %v38 = vunpack.c.h.bf16 %v29
  %v39 = vunpack.c.l.bf16 %v30
  %v40 = vunpack.c.h.bf16 %v30
  %v41 = vld [vmem:[%s1] sm:$0x3]
  %v42 = vld [vmem:[%s2] sm:$0x3]
  %v43 = vadd.f32 %v31, %v32
  %44 = vadd.xlane.f32.xlu0 %v43
  %v45 = vpop.xlane.xlu0 %44
  %v46 = vadd.f32 %v33, %v34
  %47 = vadd.xlane.f32.xlu0 %v46
  %v48 = vpop.xlane.xlu0 %47
  %v49 = vadd.f32 %v35, %v36
  %50 = vadd.xlane.f32.xlu0 %v49
  %v51 = vpop.xlane.xlu0 %50
  %v52 = vadd.f32 %v37, %v38
  %53 = vadd.xlane.f32.xlu0 %v52
  %v54 = vpop.xlane.xlu0 %53
  %vm55 = vcmask 1043456
  %v56 = vsel %vm55, %v39, 0.0
  %v57 = vsel %vm55, %v40, 0.0
  %v58 = vadd.f32 %v56, %v57
  %59 = vadd.xlane.f32.xlu0 %v58
  %v60 = vpop.xlane.xlu0 %59
  %v61 = vrcp.pop 256.0
  %v62 = vmul.f32 %v45, %v61
  %v63 = vmul.f32 %v48, %v61
  %v64 = vmul.f32 %v51, %v61
  %v65 = vmul.f32 %v54, %v61
  %v66 = vmul.f32 %v60, %v61
  %v67 = vsub.f32 %v31, %v62
  %v68 = vsub.f32 %v32, %v62
  %v69 = vsub.f32 %v33, %v63
  %v70 = vsub.f32 %v34, %v63
  %v71 = vsub.f32 %v35, %v64
  %v72 = vsub.f32 %v36, %v64
  %v73 = vsub.f32 %v37, %v65
  %v74 = vsub.f32 %v38, %v65
  %v75 = vsub.f32 %v39, %v66
  %v76 = vsub.f32 %v40, %v66
  %v77 = vmul.f32 %v67, %v67
  %v78 = vmul.f32 %v68, %v68
  %v79 = vmul.f32 %v69, %v69
  %v80 = vmul.f32 %v70, %v70
  %v81 = vmul.f32 %v71, %v71
  %v82 = vmul.f32 %v72, %v72
  %v83 = vmul.f32 %v73, %v73
  %v84 = vmul.f32 %v74, %v74
  %v85 = vmul.f32 %v75, %v75
  %v86 = vmul.f32 %v76, %v76
  %v87 = vadd.f32 %v77, %v78
  %88 = vadd.xlane.f32.xlu0 %v87
  %v89 = vpop.xlane.xlu0 %88
  %v90 = vadd.f32 %v79, %v80
  %91 = vadd.xlane.f32.xlu0 %v90
  %v92 = vpop.xlane.xlu0 %91
  %v93 = vadd.f32 %v81, %v82
  %94 = vadd.xlane.f32.xlu0 %v93
  %v95 = vpop.xlane.xlu0 %94
  %v96 = vadd.f32 %v83, %v84
  %97 = vadd.xlane.f32.xlu0 %v96
  %v98 = vpop.xlane.xlu0 %97
  %v99 = vsel %vm55, %v85, 0.0
  %v100 = vsel %vm55, %v86, 0.0
  %v101 = vadd.f32 %v99, %v100
  %102 = vadd.xlane.f32.xlu0 %v101
  %v103 = vpop.xlane.xlu0 %102
  %v104 = vmul.f32 %v89, %v61
  %v105 = vmul.f32 %v92, %v61
  %v106 = vmul.f32 %v95, %v61
  %v107 = vmul.f32 %v98, %v61
  %v108 = vmul.f32 %v103, %v61
  %v109 = vadd.f32 %v104, 1e-05
  %v110 = vadd.f32 %v105, 1e-05
  %v111 = vadd.f32 %v106, 1e-05
  %v112 = vadd.f32 %v107, 1e-05
  %v113 = vadd.f32 %v108, 1e-05
  %v114 = vrsqrt.pop %v109
  %v115 = vrsqrt.pop %v110
  %v116 = vrsqrt.pop %v111
  %v117 = vrsqrt.pop %v112
  %v118 = vrsqrt.pop %v113
  %v119 = vmul.f32 %v67, %v114
  %v120 = vmul.f32 %v68, %v114
  %v121 = vmul.f32 %v69, %v115
  %v122 = vmul.f32 %v70, %v115
  %v123 = vmul.f32 %v71, %v116
  %v124 = vmul.f32 %v72, %v116
  %v125 = vmul.f32 %v73, %v117
  %v126 = vmul.f32 %v74, %v117
  %v127 = vmul.f32 %v75, %v118
  %v128 = vmul.f32 %v76, %v118
  %v130 = vlaneseq
  %v131 = vshrl.u32 %v130, 7
  %v132 = vsub.s32 0, %v131
  %v133 = vrot.slane %v41, %v132
  %v134 = vlaneseq
  %v135 = vshrl.u32 %v134, 7
  %v136 = vsub.s32 1, %v135
  %v137 = vrot.slane %v41, %v136
  %v140 = vmul.f32 %v119, %v133
  %v141 = vmul.f32 %v120, %v137
  %v142 = vmul.f32 %v121, %v133
  %v143 = vmul.f32 %v122, %v137
  %v144 = vmul.f32 %v123, %v133
  %v145 = vmul.f32 %v124, %v137
  %v146 = vmul.f32 %v125, %v133
  %v147 = vmul.f32 %v126, %v137
  %v148 = vmul.f32 %v127, %v133
  %v149 = vmul.f32 %v128, %v137
  %v151 = vlaneseq
  %v152 = vshrl.u32 %v151, 7
  %v153 = vsub.s32 0, %v152
  %v154 = vrot.slane %v42, %v153
  %v155 = vlaneseq
  %v156 = vshrl.u32 %v155, 7
  %v157 = vsub.s32 1, %v156
  %v158 = vrot.slane %v42, %v157
  %v161 = vadd.f32 %v140, %v154
  %v162 = vadd.f32 %v141, %v158
  %v163 = vadd.f32 %v142, %v154
  %v164 = vadd.f32 %v143, %v158
  %v165 = vadd.f32 %v144, %v154
  %v166 = vadd.f32 %v145, %v158
  %v167 = vadd.f32 %v146, %v154
  %v168 = vadd.f32 %v147, %v158
  %v169 = vadd.f32 %v148, %v154
  %v170 = vadd.f32 %v149, %v158
  %v171 = vpack.c.bf16 %v163, %v161
  %v172 = vpack.c.bf16 %v164, %v162
  %v173 = vpack.c.bf16 %v167, %v165
  %v174 = vpack.c.bf16 %v168, %v166
  %v175 = vpack.c.bf16 %v169, %v169
  %v176 = vpack.c.bf16 %v170, %v170
  %v177 = vld [vmem:[%s6] sm:$0x3]
  %v179 = vlaneseq
  %v180 = vshrl.u32 %v179, 7
  %v181 = vsub.s32 0, %v180
  %v182 = vrot.slane %v177, %v181
  %v183 = vlaneseq
  %v184 = vshrl.u32 %v183, 7
  %v185 = vsub.s32 1, %v184
  %v186 = vrot.slane %v177, %v185
  %v189 = vadd.f32 %v31, %v182
  %v190 = vadd.f32 %v32, %v186
  %v191 = vadd.f32 %v33, %v182
  %v192 = vadd.f32 %v34, %v186
  %v193 = vadd.f32 %v35, %v182
  %v194 = vadd.f32 %v36, %v186
  %v195 = vadd.f32 %v37, %v182
  %v196 = vadd.f32 %v38, %v186
  %v197 = vadd.f32 %v39, %v182
  %v198 = vadd.f32 %v40, %v186
  %199 = vst [vmem:[#allocation2] sm:$0xff] %v189
  %200 = vst [vmem:[#allocation2 + $0x8] sm:$0xff] %v190
  %201 = vst [vmem:[#allocation2 + $0x10] sm:$0xff] %v191
  %202 = vst [vmem:[#allocation2 + $0x18] sm:$0xff] %v192
  %203 = vst [vmem:[#allocation2 + $0x20] sm:$0xff] %v193
  %204 = vst [vmem:[#allocation2 + $0x28] sm:$0xff] %v194
  %205 = vst [vmem:[#allocation2 + $0x30] sm:$0xff] %v195
  %206 = vst [vmem:[#allocation2 + $0x38] sm:$0xff] %v196
  %207 = vst [vmem:[#allocation2 + $0x40] sm:$0xf] %v197
  %208 = vst [vmem:[#allocation2 + $0x48] sm:$0xf] %v198
  %v209 = vld [vmem:[%s3] sm:$0xff]
  %v210 = vld [vmem:[%s3 + $0x8] sm:$0xff]
  %v211 = vld [vmem:[%s3 + $0x10] sm:$0xff]
  %v212 = vld [vmem:[%s3 + $0x18] sm:$0xff]
  %v213 = vld [vmem:[%s3 + $0x20] sm:$0xff]
  %v214 = vld [vmem:[%s3 + $0x28] sm:$0xff]
  %v215 = vld [vmem:[%s3 + $0x30] sm:$0xff]
  %v216 = vld [vmem:[%s3 + $0x38] sm:$0xff]
  %v217 = vld [vmem:[%s3 + $0x40] sm:$0xff]
  %v218 = vld [vmem:[%s3 + $0x48] sm:$0xff]
  %v219 = vld [vmem:[%s3 + $0x50] sm:$0xff]
  %v220 = vld [vmem:[%s3 + $0x58] sm:$0xff]
  %v221 = vld [vmem:[%s3 + $0x60] sm:$0xff]
  %v222 = vld [vmem:[%s3 + $0x68] sm:$0xff]
  %v223 = vld [vmem:[%s3 + $0x70] sm:$0xff]
  %v224 = vld [vmem:[%s3 + $0x78] sm:$0xff]
  %v225 = vld [vmem:[%s3 + $0x80] sm:$0xff]
  %v226 = vld [vmem:[%s3 + $0x88] sm:$0xff]
  %v227 = vld [vmem:[%s3 + $0x90] sm:$0xff]
  %v228 = vld [vmem:[%s3 + $0x98] sm:$0xff]
  %v229 = vld [vmem:[%s3 + $0xa0] sm:$0xff]
  %v230 = vld [vmem:[%s3 + $0xa8] sm:$0xff]
  %v231 = vld [vmem:[%s3 + $0xb0] sm:$0xff]
  %v232 = vld [vmem:[%s3 + $0xb8] sm:$0xff]
  %v233 = vld [vmem:[%s3 + $0xc0] sm:$0xff]
  %v234 = vld [vmem:[%s3 + $0xc8] sm:$0xff]
  %v235 = vld [vmem:[%s3 + $0xd0] sm:$0xff]
  %v236 = vld [vmem:[%s3 + $0xd8] sm:$0xff]
  %v237 = vld [vmem:[%s3 + $0xe0] sm:$0xff]
  %v238 = vld [vmem:[%s3 + $0xe8] sm:$0xff]
  %v239 = vld [vmem:[%s3 + $0xf0] sm:$0xff]
  %v240 = vld [vmem:[%s3 + $0xf8] sm:$0xff]
  %v241 = vld [vmem:[%s3 + $0x100] sm:$0xff]
  %v242 = vld [vmem:[%s3 + $0x108] sm:$0xff]
  %v243 = vld [vmem:[%s3 + $0x110] sm:$0xff]
  %v244 = vld [vmem:[%s3 + $0x118] sm:$0xff]
  %v245 = vld [vmem:[%s3 + $0x120] sm:$0xff]
  %v246 = vld [vmem:[%s3 + $0x128] sm:$0xff]
  %v247 = vld [vmem:[%s3 + $0x130] sm:$0xff]
  %v248 = vld [vmem:[%s3 + $0x138] sm:$0xff]
  %v249 = vld [vmem:[%s3 + $0x140] sm:$0xff]
  %v250 = vld [vmem:[%s3 + $0x148] sm:$0xff]
  %v251 = vld [vmem:[%s3 + $0x150] sm:$0xff]
  %v252 = vld [vmem:[%s3 + $0x158] sm:$0xff]
  %v253 = vld [vmem:[%s3 + $0x160] sm:$0xff]
  %v254 = vld [vmem:[%s3 + $0x168] sm:$0xff]
  %v255 = vld [vmem:[%s3 + $0x170] sm:$0xff]
  %v256 = vld [vmem:[%s3 + $0x178] sm:$0xff]
  %v257 = vld [vmem:[%s3 + $0x180] sm:$0xff]
  %v258 = vld [vmem:[%s3 + $0x188] sm:$0xff]
  %v259 = vld [vmem:[%s3 + $0x190] sm:$0xff]
  %v260 = vld [vmem:[%s3 + $0x198] sm:$0xff]
  %v261 = vld [vmem:[%s3 + $0x1a0] sm:$0xff]
  %v262 = vld [vmem:[%s3 + $0x1a8] sm:$0xff]
  %v263 = vld [vmem:[%s3 + $0x1b0] sm:$0xff]
  %v264 = vld [vmem:[%s3 + $0x1b8] sm:$0xff]
  %v265 = vld [vmem:[%s3 + $0x1c0] sm:$0xff]
  %v266 = vld [vmem:[%s3 + $0x1c8] sm:$0xff]
  %v267 = vld [vmem:[%s3 + $0x1d0] sm:$0xff]
  %v268 = vld [vmem:[%s3 + $0x1d8] sm:$0xff]
  %v269 = vld [vmem:[%s3 + $0x1e0] sm:$0xff]
  %v270 = vld [vmem:[%s3 + $0x1e8] sm:$0xff]
  %v271 = vld [vmem:[%s3 + $0x1f0] sm:$0xff]
  %v272 = vld [vmem:[%s3 + $0x1f8] sm:$0xff]
  %v273 = vld [vmem:[%s4] sm:$0xf]
  %v275 = vlaneseq
  %v276 = vshrl.u32 %v275, 7
  %v277 = vsub.s32 0, %v276
  %v278 = vrot.slane %v273, %v277
  %v279 = vlaneseq
  %v280 = vshrl.u32 %v279, 7
  %v281 = vsub.s32 1, %v280
  %v282 = vrot.slane %v273, %v281
  %v283 = vlaneseq
  %v284 = vshrl.u32 %v283, 7
  %v285 = vsub.s32 2, %v284
  %v286 = vrot.slane %v273, %v285
  %v287 = vlaneseq
  %v288 = vshrl.u32 %v287, 7
  %v289 = vsub.s32 3, %v288
  %v290 = vrot.slane %v273, %v289
  %v359 = vunpack.c.l.b16 %v209
  %v360 = vunpack.c.h.b16 %v209
  %v361 = vunpack.c.l.b16 %v210
  %v362 = vunpack.c.h.b16 %v210
  %v363 = vunpack.c.l.b16 %v211
  %v364 = vunpack.c.h.b16 %v211
  %v365 = vunpack.c.l.b16 %v212
  %v366 = vunpack.c.h.b16 %v212
  %v367 = vunpack.c.l.b16 %v213
  %v368 = vunpack.c.h.b16 %v213
  %v369 = vunpack.c.l.b16 %v214
  %v370 = vunpack.c.h.b16 %v214
  %v371 = vunpack.c.l.b16 %v215
  %v372 = vunpack.c.h.b16 %v215
  %v373 = vunpack.c.l.b16 %v216
  %v374 = vunpack.c.h.b16 %v216
  %v375 = vunpack.c.l.b16 %v217
  %v376 = vunpack.c.h.b16 %v217
  %v377 = vunpack.c.l.b16 %v218
  %v378 = vunpack.c.h.b16 %v218
  %v379 = vunpack.c.l.b16 %v219
  %v380 = vunpack.c.h.b16 %v219
  %v381 = vunpack.c.l.b16 %v220
  %v382 = vunpack.c.h.b16 %v220
  %v383 = vunpack.c.l.b16 %v221
  %v384 = vunpack.c.h.b16 %v221
  %v385 = vunpack.c.l.b16 %v222
  %v386 = vunpack.c.h.b16 %v222
  %v387 = vunpack.c.l.b16 %v223
  %v388 = vunpack.c.h.b16 %v223
  %v389 = vunpack.c.l.b16 %v224
  %v390 = vunpack.c.h.b16 %v224
  %v391 = vunpack.c.l.b16 %v225
  %v392 = vunpack.c.h.b16 %v225
  %v393 = vunpack.c.l.b16 %v226
  %v394 = vunpack.c.h.b16 %v226
  %v395 = vunpack.c.l.b16 %v227
  %v396 = vunpack.c.h.b16 %v227
  %v397 = vunpack.c.l.b16 %v228
  %v398 = vunpack.c.h.b16 %v228
  %v399 = vunpack.c.l.b16 %v229
  %v400 = vunpack.c.h.b16 %v229
  %v401 = vunpack.c.l.b16 %v230
  %v402 = vunpack.c.h.b16 %v230
  %v403 = vunpack.c.l.b16 %v231
  %v404 = vunpack.c.h.b16 %v231
  %v405 = vunpack.c.l.b16 %v232
  %v406 = vunpack.c.h.b16 %v232
  %v407 = vunpack.c.l.b16 %v233
  %v408 = vunpack.c.h.b16 %v233
  %v409 = vunpack.c.l.b16 %v234
  %v410 = vunpack.c.h.b16 %v234
  %v411 = vunpack.c.l.b16 %v235
  %v412 = vunpack.c.h.b16 %v235
  %v413 = vunpack.c.l.b16 %v236
  %v414 = vunpack.c.h.b16 %v236
  %v415 = vunpack.c.l.b16 %v237
  %v416 = vunpack.c.h.b16 %v237
  %v417 = vunpack.c.l.b16 %v238
  %v418 = vunpack.c.h.b16 %v238
  %v419 = vunpack.c.l.b16 %v239
  %v420 = vunpack.c.h.b16 %v239
  %v421 = vunpack.c.l.b16 %v240
  %v422 = vunpack.c.h.b16 %v240
  %v423 = vunpack.c.l.b16 %v241
  %v424 = vunpack.c.h.b16 %v241
  %v425 = vunpack.c.l.b16 %v242
  %v426 = vunpack.c.h.b16 %v242
  %v427 = vunpack.c.l.b16 %v243
  %v428 = vunpack.c.h.b16 %v243
  %v429 = vunpack.c.l.b16 %v244
  %v430 = vunpack.c.h.b16 %v244
  %v431 = vunpack.c.l.b16 %v245
  %v432 = vunpack.c.h.b16 %v245
  %v433 = vunpack.c.l.b16 %v246
  %v434 = vunpack.c.h.b16 %v246
  %v435 = vunpack.c.l.b16 %v247
  %v436 = vunpack.c.h.b16 %v247
  %v437 = vunpack.c.l.b16 %v248
  %v438 = vunpack.c.h.b16 %v248
  %v439 = vunpack.c.l.b16 %v249
  %v440 = vunpack.c.h.b16 %v249
  %v441 = vunpack.c.l.b16 %v250
  %v442 = vunpack.c.h.b16 %v250
  %v443 = vunpack.c.l.b16 %v251
  %v444 = vunpack.c.h.b16 %v251
  %v445 = vunpack.c.l.b16 %v252
  %v446 = vunpack.c.h.b16 %v252
  %v447 = vunpack.c.l.b16 %v253
  %v448 = vunpack.c.h.b16 %v253
  %v449 = vunpack.c.l.b16 %v254
  %v450 = vunpack.c.h.b16 %v254
  %v451 = vunpack.c.l.b16 %v255
  %v452 = vunpack.c.h.b16 %v255
  %v453 = vunpack.c.l.b16 %v256
  %v454 = vunpack.c.h.b16 %v256
  %v455 = vunpack.c.l.b16 %v257
  %v456 = vunpack.c.h.b16 %v257
  %v457 = vunpack.c.l.b16 %v258
  %v458 = vunpack.c.h.b16 %v258
  %v459 = vunpack.c.l.b16 %v259
  %v460 = vunpack.c.h.b16 %v259
  %v461 = vunpack.c.l.b16 %v260
  %v462 = vunpack.c.h.b16 %v260
  %v463 = vunpack.c.l.b16 %v261
  %v464 = vunpack.c.h.b16 %v261
  %v465 = vunpack.c.l.b16 %v262
  %v466 = vunpack.c.h.b16 %v262
  %v467 = vunpack.c.l.b16 %v263
  %v468 = vunpack.c.h.b16 %v263
  %v469 = vunpack.c.l.b16 %v264
  %v470 = vunpack.c.h.b16 %v264
  %v471 = vunpack.c.l.b16 %v265
  %v472 = vunpack.c.h.b16 %v265
  %v473 = vunpack.c.l.b16 %v266
  %v474 = vunpack.c.h.b16 %v266
  %v475 = vunpack.c.l.b16 %v267
  %v476 = vunpack.c.h.b16 %v267
  %v477 = vunpack.c.l.b16 %v268
  %v478 = vunpack.c.h.b16 %v268
  %v479 = vunpack.c.l.b16 %v269
  %v480 = vunpack.c.h.b16 %v269
  %v481 = vunpack.c.l.b16 %v270
  %v482 = vunpack.c.h.b16 %v270
  %v483 = vunpack.c.l.b16 %v271
  %v484 = vunpack.c.h.b16 %v271
  %v485 = vunpack.c.l.b16 %v272
  %v486 = vunpack.c.h.b16 %v272
  %v487 = vpack.c.b16 %v363, %v359
  %v488 = vpack.c.b16 %v364, %v360
  %v489 = vpack.c.b16 %v365, %v361
  %v490 = vpack.c.b16 %v366, %v362
  %v491 = vpack.c.b16 %v371, %v367
  %v492 = vpack.c.b16 %v372, %v368
  %v493 = vpack.c.b16 %v373, %v369
  %v494 = vpack.c.b16 %v374, %v370
  %v495 = vpack.c.b16 %v379, %v375
  %v496 = vpack.c.b16 %v380, %v376
  %v497 = vpack.c.b16 %v381, %v377
  %v498 = vpack.c.b16 %v382, %v378
  %v499 = vpack.c.b16 %v387, %v383
  %v500 = vpack.c.b16 %v388, %v384
  %v501 = vpack.c.b16 %v389, %v385
  %v502 = vpack.c.b16 %v390, %v386
  %v503 = vpack.c.b16 %v395, %v391
  %v504 = vpack.c.b16 %v396, %v392
  %v505 = vpack.c.b16 %v397, %v393
  %v506 = vpack.c.b16 %v398, %v394
  %v507 = vpack.c.b16 %v403, %v399
  %v508 = vpack.c.b16 %v404, %v400
  %v509 = vpack.c.b16 %v405, %v401
  %v510 = vpack.c.b16 %v406, %v402
  %v511 = vpack.c.b16 %v411, %v407
  %v512 = vpack.c.b16 %v412, %v408
  %v513 = vpack.c.b16 %v413, %v409
  %v514 = vpack.c.b16 %v414, %v410
  %v515 = vpack.c.b16 %v419, %v415
  %v516 = vpack.c.b16 %v420, %v416
  %v517 = vpack.c.b16 %v421, %v417
  %v518 = vpack.c.b16 %v422, %v418
  %v519 = vpack.c.b16 %v427, %v423
  %v520 = vpack.c.b16 %v428, %v424
  %v521 = vpack.c.b16 %v429, %v425
  %v522 = vpack.c.b16 %v430, %v426
  %v523 = vpack.c.b16 %v435, %v431
  %v524 = vpack.c.b16 %v436, %v432
  %v525 = vpack.c.b16 %v437, %v433
  %v526 = vpack.c.b16 %v438, %v434
  %v527 = vpack.c.b16 %v443, %v439
  %v528 = vpack.c.b16 %v444, %v440
  %v529 = vpack.c.b16 %v445, %v441
  %v530 = vpack.c.b16 %v446, %v442
  %v531 = vpack.c.b16 %v451, %v447
  %v532 = vpack.c.b16 %v452, %v448
  %v533 = vpack.c.b16 %v453, %v449
  %v534 = vpack.c.b16 %v454, %v450
  %v535 = vpack.c.b16 %v459, %v455
  %v536 = vpack.c.b16 %v460, %v456
  %v537 = vpack.c.b16 %v461, %v457
  %v538 = vpack.c.b16 %v462, %v458
  %v539 = vpack.c.b16 %v467, %v463
  %v540 = vpack.c.b16 %v468, %v464
  %v541 = vpack.c.b16 %v469, %v465
  %v542 = vpack.c.b16 %v470, %v466
  %v543 = vpack.c.b16 %v475, %v471
  %v544 = vpack.c.b16 %v476, %v472
  %v545 = vpack.c.b16 %v477, %v473
  %v546 = vpack.c.b16 %v478, %v474
  %v547 = vpack.c.b16 %v483, %v479
  %v548 = vpack.c.b16 %v484, %v480
  %v549 = vpack.c.b16 %v485, %v481
  %v550 = vpack.c.b16 %v486, %v482
  %615 = vmatprep.subr.bf16.mxu0 %v516
  %616 = vmatpush1.bf16.msra.mxu0 %v515
  %617 = vmatprep.subr.bf16.mxu0 %v512
  %618 = vmatpush1.bf16.msra.mxu0 %v511
  %619 = vmatprep.subr.bf16.mxu0 %v508
  %620 = vmatpush1.bf16.msra.mxu0 %v507
  %621 = vmatprep.subr.bf16.mxu0 %v504
  %622 = vmatpush1.bf16.msra.mxu0 %v503
  %623 = vmatprep.subr.bf16.mxu0 %v500
  %624 = vmatpush1.bf16.msra.mxu0 %v499
  %625 = vmatprep.subr.bf16.mxu0 %v496
  %626 = vmatpush1.bf16.msra.mxu0 %v495
  %627 = vmatprep.subr.bf16.mxu0 %v492
  %628 = vmatpush1.bf16.msra.mxu0 %v491
  %629 = vmatprep.subr.bf16.mxu0 %v488
  %630 = vmatpush1.bf16.msra.mxu0 %v487
  %631 = vmatprep.subr.bf16.mxu0 %v548
  %632 = vmatpush2.bf16.msra.mxu0 %v547
  %633 = vmatprep.subr.bf16.mxu0 %v544
  %634 = vmatpush2.bf16.msra.mxu0 %v543
  %635 = vmatprep.subr.bf16.mxu0 %v540
  %636 = vmatpush2.bf16.msra.mxu0 %v539
  %637 = vmatprep.subr.bf16.mxu0 %v536
  %638 = vmatpush2.bf16.msra.mxu0 %v535
  %639 = vmatprep.subr.bf16.mxu0 %v532
  %640 = vmatpush2.bf16.msra.mxu0 %v531
  %641 = vmatprep.subr.bf16.mxu0 %v528
  %642 = vmatpush2.bf16.msra.mxu0 %v527
  %643 = vmatprep.subr.bf16.mxu0 %v524
  %644 = vmatpush2.bf16.msra.mxu0 %v523
  %645 = vmatprep.subr.bf16.mxu0 %v520
  %646 = vmatpush2.bf16.msra.mxu0 %v519
  %647 = vmatprep.mubr.bf16.mxu0 %v172
  %648 = vmatmul.mubr.bf16.gmra.mxu0 %v171
  %v649 = vpop.f32.mrf.mxu0
  %v650 = vadd.f32 %v278, %v649
  %v651 = vpop.f32.mrf.mxu0
  %v652 = vadd.f32 %v282, %v651
  %v653 = vpop.f32.mrf.mxu0
  %v654 = vadd.f32 %v278, %v653
  %v655 = vpop.f32.mrf.mxu0
  %v656 = vadd.f32 %v282, %v655
  %657 = vmatprep.mubr.bf16.mxu0 %v174
  %658 = vmatmul.mubr.bf16.gmra.mxu0 %v173
  %v659 = vpop.f32.mrf.mxu0
  %v660 = vadd.f32 %v278, %v659
  %v661 = vpop.f32.mrf.mxu0
  %v662 = vadd.f32 %v282, %v661
  %v663 = vpop.f32.mrf.mxu0
  %v664 = vadd.f32 %v278, %v663
  %v665 = vpop.f32.mrf.mxu0
  %v666 = vadd.f32 %v282, %v665
  %667 = vmatprep.mubr.bf16.mxu0 %v176
  %668 = vmatmul.mubr.bf16.gmra.mxu0 %v175
  %v669 = vpop.f32.mrf.mxu0
  %v670 = vadd.f32 %v278, %v669
  %v671 = vpop.f32.mrf.mxu0
  %v672 = vadd.f32 %v282, %v671
  %v673 = vpop.f32.mrf.mxu0
  %v674 = vpop.f32.mrf.mxu0
  %675 = vdwg.mxu0
  %676 = vmatprep.subr.bf16.mxu0 %v518
  %677 = vmatpush1.bf16.msra.mxu0 %v517
  %678 = vmatprep.subr.bf16.mxu0 %v514
  %679 = vmatpush1.bf16.msra.mxu0 %v513
  %680 = vmatprep.subr.bf16.mxu0 %v510
  %681 = vmatpush1.bf16.msra.mxu0 %v509
  %682 = vmatprep.subr.bf16.mxu0 %v506
  %683 = vmatpush1.bf16.msra.mxu0 %v505
  %684 = vmatprep.subr.bf16.mxu0 %v502
  %685 = vmatpush1.bf16.msra.mxu0 %v501
  %686 = vmatprep.subr.bf16.mxu0 %v498
  %687 = vmatpush1.bf16.msra.mxu0 %v497
  %688 = vmatprep.subr.bf16.mxu0 %v494
  %689 = vmatpush1.bf16.msra.mxu0 %v493
  %690 = vmatprep.subr.bf16.mxu0 %v490
  %691 = vmatpush1.bf16.msra.mxu0 %v489
  %692 = vmatprep.subr.bf16.mxu0 %v550
  %693 = vmatpush2.bf16.msra.mxu0 %v549
  %694 = vmatprep.subr.bf16.mxu0 %v546
  %695 = vmatpush2.bf16.msra.mxu0 %v545
  %696 = vmatprep.subr.bf16.mxu0 %v542
  %697 = vmatpush2.bf16.msra.mxu0 %v541
  %698 = vmatprep.subr.bf16.mxu0 %v538
  %699 = vmatpush2.bf16.msra.mxu0 %v537
  %700 = vmatprep.subr.bf16.mxu0 %v534
  %701 = vmatpush2.bf16.msra.mxu0 %v533
  %702 = vmatprep.subr.bf16.mxu0 %v530
  %703 = vmatpush2.bf16.msra.mxu0 %v529
  %704 = vmatprep.subr.bf16.mxu0 %v526
  %705 = vmatpush2.bf16.msra.mxu0 %v525
  %706 = vmatprep.subr.bf16.mxu0 %v522
  %707 = vmatpush2.bf16.msra.mxu0 %v521
  %708 = vmatprep.mubr.bf16.mxu0 %v172
  %709 = vmatmul.mubr.bf16.gmra.mxu0 %v171
  %v710 = vpop.f32.mrf.mxu0
  %v711 = vadd.f32 %v286, %v710
  %v712 = vpop.f32.mrf.mxu0
  %v713 = vadd.f32 %v290, %v712
  %v714 = vpop.f32.mrf.mxu0
  %v715 = vadd.f32 %v286, %v714
  %v716 = vpop.f32.mrf.mxu0
  %v717 = vadd.f32 %v290, %v716
  %718 = vmatprep.mubr.bf16.mxu0 %v174
  %719 = vmatmul.mubr.bf16.gmra.mxu0 %v173
  %v720 = vpop.f32.mrf.mxu0
  %v721 = vadd.f32 %v286, %v720
  %v722 = vpop.f32.mrf.mxu0
  %v723 = vadd.f32 %v290, %v722
  %v724 = vpop.f32.mrf.mxu0
  %v725 = vadd.f32 %v286, %v724
  %v726 = vpop.f32.mrf.mxu0
  %v727 = vadd.f32 %v290, %v726
  %728 = vmatprep.mubr.bf16.mxu0 %v176
  %729 = vmatmul.mubr.bf16.gmra.mxu0 %v175
  %v730 = vpop.f32.mrf.mxu0
  %v731 = vadd.f32 %v286, %v730
  %v732 = vpop.f32.mrf.mxu0
  %v733 = vadd.f32 %v290, %v732
  %v734 = vpop.f32.mrf.mxu0
  %v735 = vpop.f32.mrf.mxu0
  %736 = vdwg.mxu0
  %v737 = vmul.f32 %v650, 0.5
  %v738 = vmul.f32 %v652, 0.5
  %v739 = vmul.f32 %v711, 0.5
  %v740 = vmul.f32 %v713, 0.5
  %v741 = vmul.f32 %v654, 0.5
  %v742 = vmul.f32 %v656, 0.5
  %v743 = vmul.f32 %v715, 0.5
  %v744 = vmul.f32 %v717, 0.5
  %v745 = vmul.f32 %v660, 0.5
  %v746 = vmul.f32 %v662, 0.5
  %v747 = vmul.f32 %v721, 0.5
  %v748 = vmul.f32 %v723, 0.5
  %v749 = vmul.f32 %v664, 0.5
  %v750 = vmul.f32 %v666, 0.5
  %v751 = vmul.f32 %v725, 0.5
  %v752 = vmul.f32 %v727, 0.5
  %v753 = vmul.f32 %v670, 0.5
  %v754 = vmul.f32 %v672, 0.5
  %v755 = vmul.f32 %v731, 0.5
  %v756 = vmul.f32 %v733, 0.5
  %v757 = vmul.f32 %v650, 0.044715
  %v758 = vmul.f32 %v652, 0.044715
  %v759 = vmul.f32 %v711, 0.044715
  %v760 = vmul.f32 %v713, 0.044715
  %v761 = vmul.f32 %v654, 0.044715
  %v762 = vmul.f32 %v656, 0.044715
  %v763 = vmul.f32 %v715, 0.044715
  %v764 = vmul.f32 %v717, 0.044715
  %v765 = vmul.f32 %v660, 0.044715
  %v766 = vmul.f32 %v662, 0.044715
  %v767 = vmul.f32 %v721, 0.044715
  %v768 = vmul.f32 %v723, 0.044715
  %v769 = vmul.f32 %v664, 0.044715
  %v770 = vmul.f32 %v666, 0.044715
  %v771 = vmul.f32 %v725, 0.044715
  %v772 = vmul.f32 %v727, 0.044715
  %v773 = vmul.f32 %v670, 0.044715
  %v774 = vmul.f32 %v672, 0.044715
  %v775 = vmul.f32 %v731, 0.044715
  %v776 = vmul.f32 %v733, 0.044715
  %v777 = vmul.f32 %v757, %v650
  %v778 = vmul.f32 %v758, %v652
  %v779 = vmul.f32 %v759, %v711
  %v780 = vmul.f32 %v760, %v713
  %v781 = vmul.f32 %v761, %v654
  %v782 = vmul.f32 %v762, %v656
  %v783 = vmul.f32 %v763, %v715
  %v784 = vmul.f32 %v764, %v717
  %v785 = vmul.f32 %v765, %v660
  %v786 = vmul.f32 %v766, %v662
  %v787 = vmul.f32 %v767, %v721
  %v788 = vmul.f32 %v768, %v723
  %v789 = vmul.f32 %v769, %v664
  %v790 = vmul.f32 %v770, %v666
  %v791 = vmul.f32 %v771, %v725
  %v792 = vmul.f32 %v772, %v727
  %v793 = vmul.f32 %v773, %v670
  %v794 = vmul.f32 %v774, %v672
  %v795 = vmul.f32 %v775, %v731
  %v796 = vmul.f32 %v776, %v733
  %v797 = vmul.f32 %v777, %v650
  %v798 = vmul.f32 %v778, %v652
  %v799 = vmul.f32 %v779, %v711
  %v800 = vmul.f32 %v780, %v713
  %v801 = vmul.f32 %v781, %v654
  %v802 = vmul.f32 %v782, %v656
  %v803 = vmul.f32 %v783, %v715
  %v804 = vmul.f32 %v784, %v717
  %v805 = vmul.f32 %v785, %v660
  %v806 = vmul.f32 %v786, %v662
  %v807 = vmul.f32 %v787, %v721
  %v808 = vmul.f32 %v788, %v723
  %v809 = vmul.f32 %v789, %v664
  %v810 = vmul.f32 %v790, %v666
  %v811 = vmul.f32 %v791, %v725
  %v812 = vmul.f32 %v792, %v727
  %v813 = vmul.f32 %v793, %v670
  %v814 = vmul.f32 %v794, %v672
  %v815 = vmul.f32 %v795, %v731
  %v816 = vmul.f32 %v796, %v733
  %v817 = vadd.f32 %v650, %v797
  %v818 = vadd.f32 %v652, %v798
  %v819 = vadd.f32 %v711, %v799
  %v820 = vadd.f32 %v713, %v800
  %v821 = vadd.f32 %v654, %v801
  %v822 = vadd.f32 %v656, %v802
  %v823 = vadd.f32 %v715, %v803
  %v824 = vadd.f32 %v717, %v804
  %v825 = vadd.f32 %v660, %v805
  %v826 = vadd.f32 %v662, %v806
  %v827 = vadd.f32 %v721, %v807
  %v828 = vadd.f32 %v723, %v808
  %v829 = vadd.f32 %v664, %v809
  %v830 = vadd.f32 %v666, %v810
  %v831 = vadd.f32 %v725, %v811
  %v832 = vadd.f32 %v727, %v812
  %v833 = vadd.f32 %v670, %v813
  %v834 = vadd.f32 %v672, %v814
  %v835 = vadd.f32 %v731, %v815
  %v836 = vadd.f32 %v733, %v816
  %v837 = vmul.f32 %v817, 0.7978846
  %v838 = vmul.f32 %v818, 0.7978846
  %v839 = vmul.f32 %v819, 0.7978846
  %v840 = vmul.f32 %v820, 0.7978846
  %v841 = vmul.f32 %v821, 0.7978846
  %v842 = vmul.f32 %v822, 0.7978846
  %v843 = vmul.f32 %v823, 0.7978846
  %v844 = vmul.f32 %v824, 0.7978846
  %v845 = vmul.f32 %v825, 0.7978846
  %v846 = vmul.f32 %v826, 0.7978846
  %v847 = vmul.f32 %v827, 0.7978846
  %v848 = vmul.f32 %v828, 0.7978846
  %v849 = vmul.f32 %v829, 0.7978846
  %v850 = vmul.f32 %v830, 0.7978846
  %v851 = vmul.f32 %v831, 0.7978846
  %v852 = vmul.f32 %v832, 0.7978846
  %v853 = vmul.f32 %v833, 0.7978846
  %v854 = vmul.f32 %v834, 0.7978846
  %v855 = vmul.f32 %v835, 0.7978846
  %v856 = vmul.f32 %v836, 0.7978846
  %v857 = vtanh.pop %v837
  %v858 = vtanh.pop %v838
  %v859 = vtanh.pop %v839
  %v860 = vtanh.pop %v840
  %v861 = vtanh.pop %v841
  %v862 = vtanh.pop %v842
  %v863 = vtanh.pop %v843
  %v864 = vtanh.pop %v844
  %v865 = vtanh.pop %v845
  %v866 = vtanh.pop %v846
  %v867 = vtanh.pop %v847
  %v868 = vtanh.pop %v848
  %v869 = vtanh.pop %v849
  %v870 = vtanh.pop %v850
  %v871 = vtanh.pop %v851
  %v872 = vtanh.pop %v852
  %v873 = vtanh.pop %v853
  %v874 = vtanh.pop %v854
  %v875 = vtanh.pop %v855
  %v876 = vtanh.pop %v856
  %v877 = vadd.f32 %v857, 1.0
  %v878 = vadd.f32 %v858, 1.0
  %v879 = vadd.f32 %v859, 1.0
  %v880 = vadd.f32 %v860, 1.0
  %v881 = vadd.f32 %v861, 1.0
  %v882 = vadd.f32 %v862, 1.0
  %v883 = vadd.f32 %v863, 1.0
  %v884 = vadd.f32 %v864, 1.0
  %v885 = vadd.f32 %v865, 1.0
  %v886 = vadd.f32 %v866, 1.0
  %v887 = vadd.f32 %v867, 1.0
  %v888 = vadd.f32 %v868, 1.0
  %v889 = vadd.f32 %v869, 1.0
  %v890 = vadd.f32 %v870, 1.0
  %v891 = vadd.f32 %v871, 1.0
  %v892 = vadd.f32 %v872, 1.0
  %v893 = vadd.f32 %v873, 1.0
  %v894 = vadd.f32 %v874, 1.0
  %v895 = vadd.f32 %v875, 1.0
  %v896 = vadd.f32 %v876, 1.0
  %v897 = vmul.f32 %v737, %v877
  %v898 = vmul.f32 %v738, %v878
  %v899 = vmul.f32 %v739, %v879
  %v900 = vmul.f32 %v740, %v880
  %v901 = vmul.f32 %v741, %v881
  %v902 = vmul.f32 %v742, %v882
  %v903 = vmul.f32 %v743, %v883
  %v904 = vmul.f32 %v744, %v884
  %v905 = vmul.f32 %v745, %v885
  %v906 = vmul.f32 %v746, %v886
  %v907 = vmul.f32 %v747, %v887
  %v908 = vmul.f32 %v748, %v888
  %v909 = vmul.f32 %v749, %v889
  %v910 = vmul.f32 %v750, %v890
  %v911 = vmul.f32 %v751, %v891
  %v912 = vmul.f32 %v752, %v892
  %v913 = vmul.f32 %v753, %v893
  %v914 = vmul.f32 %v754, %v894
  %v915 = vmul.f32 %v755, %v895
  %v916 = vmul.f32 %v756, %v896
  %v917 = vld [vmem:[#allocation2] sm:$0xff]
  %v918 = vld [vmem:[#allocation2 + $0x8] sm:$0xff]
  %v919 = vld [vmem:[#allocation2 + $0x10] sm:$0xff]
  %v920 = vld [vmem:[#allocation2 + $0x18] sm:$0xff]
  %v921 = vld [vmem:[#allocation2 + $0x20] sm:$0xff]
  %v922 = vld [vmem:[#allocation2 + $0x28] sm:$0xff]
  %v923 = vld [vmem:[#allocation2 + $0x30] sm:$0xff]
  %v924 = vld [vmem:[#allocation2 + $0x38] sm:$0xff]
  %v925 = vld [vmem:[#allocation2 + $0x40] sm:$0xf]
  %v926 = vld [vmem:[#allocation2 + $0x48] sm:$0xf]
  %v927 = vpack.c.bf16 %v901, %v897
  %v928 = vpack.c.bf16 %v902, %v898
  %v929 = vpack.c.bf16 %v903, %v899
  %v930 = vpack.c.bf16 %v904, %v900
  %v931 = vpack.c.bf16 %v909, %v905
  %v932 = vpack.c.bf16 %v910, %v906
  %v933 = vpack.c.bf16 %v911, %v907
  %v934 = vpack.c.bf16 %v912, %v908
  %v935 = vpack.c.bf16 %v913, %v913
  %v936 = vpack.c.bf16 %v914, %v914
  %v937 = vpack.c.bf16 %v915, %v915
  %v938 = vpack.c.bf16 %v916, %v916
  %v939 = vld [vmem:[%s5] sm:$0xff]
  %v940 = vld [vmem:[%s5 + $0x8] sm:$0xff]
  %v941 = vld [vmem:[%s5 + $0x10] sm:$0xff]
  %v942 = vld [vmem:[%s5 + $0x18] sm:$0xff]
  %v943 = vld [vmem:[%s5 + $0x20] sm:$0xff]
  %v944 = vld [vmem:[%s5 + $0x28] sm:$0xff]
  %v945 = vld [vmem:[%s5 + $0x30] sm:$0xff]
  %v946 = vld [vmem:[%s5 + $0x38] sm:$0xff]
  %v947 = vld [vmem:[%s5 + $0x40] sm:$0xff]
  %v948 = vld [vmem:[%s5 + $0x48] sm:$0xff]
  %v949 = vld [vmem:[%s5 + $0x50] sm:$0xff]
  %v950 = vld [vmem:[%s5 + $0x58] sm:$0xff]
  %v951 = vld [vmem:[%s5 + $0x60] sm:$0xff]
  %v952 = vld [vmem:[%s5 + $0x68] sm:$0xff]
  %v953 = vld [vmem:[%s5 + $0x70] sm:$0xff]
  %v954 = vld [vmem:[%s5 + $0x78] sm:$0xff]
  %v955 = vld [vmem:[%s5 + $0x80] sm:$0xff]
  %v956 = vld [vmem:[%s5 + $0x88] sm:$0xff]
  %v957 = vld [vmem:[%s5 + $0x90] sm:$0xff]
  %v958 = vld [vmem:[%s5 + $0x98] sm:$0xff]
  %v959 = vld [vmem:[%s5 + $0xa0] sm:$0xff]
  %v960 = vld [vmem:[%s5 + $0xa8] sm:$0xff]
  %v961 = vld [vmem:[%s5 + $0xb0] sm:$0xff]
  %v962 = vld [vmem:[%s5 + $0xb8] sm:$0xff]
  %v963 = vld [vmem:[%s5 + $0xc0] sm:$0xff]
  %v964 = vld [vmem:[%s5 + $0xc8] sm:$0xff]
  %v965 = vld [vmem:[%s5 + $0xd0] sm:$0xff]
  %v966 = vld [vmem:[%s5 + $0xd8] sm:$0xff]
  %v967 = vld [vmem:[%s5 + $0xe0] sm:$0xff]
  %v968 = vld [vmem:[%s5 + $0xe8] sm:$0xff]
  %v969 = vld [vmem:[%s5 + $0xf0] sm:$0xff]
  %v970 = vld [vmem:[%s5 + $0xf8] sm:$0xff]
  %v971 = vld [vmem:[%s5 + $0x100] sm:$0xff]
  %v972 = vld [vmem:[%s5 + $0x108] sm:$0xff]
  %v973 = vld [vmem:[%s5 + $0x110] sm:$0xff]
  %v974 = vld [vmem:[%s5 + $0x118] sm:$0xff]
  %v975 = vld [vmem:[%s5 + $0x120] sm:$0xff]
  %v976 = vld [vmem:[%s5 + $0x128] sm:$0xff]
  %v977 = vld [vmem:[%s5 + $0x130] sm:$0xff]
  %v978 = vld [vmem:[%s5 + $0x138] sm:$0xff]
  %v979 = vld [vmem:[%s5 + $0x140] sm:$0xff]
  %v980 = vld [vmem:[%s5 + $0x148] sm:$0xff]
  %v981 = vld [vmem:[%s5 + $0x150] sm:$0xff]
  %v982 = vld [vmem:[%s5 + $0x158] sm:$0xff]
  %v983 = vld [vmem:[%s5 + $0x160] sm:$0xff]
  %v984 = vld [vmem:[%s5 + $0x168] sm:$0xff]
  %v985 = vld [vmem:[%s5 + $0x170] sm:$0xff]
  %v986 = vld [vmem:[%s5 + $0x178] sm:$0xff]
  %v987 = vld [vmem:[%s5 + $0x180] sm:$0xff]
  %v988 = vld [vmem:[%s5 + $0x188] sm:$0xff]
  %v989 = vld [vmem:[%s5 + $0x190] sm:$0xff]
  %v990 = vld [vmem:[%s5 + $0x198] sm:$0xff]
  %v991 = vld [vmem:[%s5 + $0x1a0] sm:$0xff]
  %v992 = vld [vmem:[%s5 + $0x1a8] sm:$0xff]
  %v993 = vld [vmem:[%s5 + $0x1b0] sm:$0xff]
  %v994 = vld [vmem:[%s5 + $0x1b8] sm:$0xff]
  %v995 = vld [vmem:[%s5 + $0x1c0] sm:$0xff]
  %v996 = vld [vmem:[%s5 + $0x1c8] sm:$0xff]
  %v997 = vld [vmem:[%s5 + $0x1d0] sm:$0xff]
  %v998 = vld [vmem:[%s5 + $0x1d8] sm:$0xff]
  %v999 = vld [vmem:[%s5 + $0x1e0] sm:$0xff]
  %v1000 = vld [vmem:[%s5 + $0x1e8] sm:$0xff]
  %v1001 = vld [vmem:[%s5 + $0x1f0] sm:$0xff]
  %v1002 = vld [vmem:[%s5 + $0x1f8] sm:$0xff]
  %v1067 = vunpack.c.l.b16 %v939
  %v1068 = vunpack.c.h.b16 %v939
  %v1069 = vunpack.c.l.b16 %v940
  %v1070 = vunpack.c.h.b16 %v940
  %v1071 = vunpack.c.l.b16 %v941
  %v1072 = vunpack.c.h.b16 %v941
  %v1073 = vunpack.c.l.b16 %v942
  %v1074 = vunpack.c.h.b16 %v942
  %v1075 = vunpack.c.l.b16 %v943
  %v1076 = vunpack.c.h.b16 %v943
  %v1077 = vunpack.c.l.b16 %v944
  %v1078 = vunpack.c.h.b16 %v944
  %v1079 = vunpack.c.l.b16 %v945
  %v1080 = vunpack.c.h.b16 %v945
  %v1081 = vunpack.c.l.b16 %v946
  %v1082 = vunpack.c.h.b16 %v946
  %v1083 = vunpack.c.l.b16 %v947
  %v1084 = vunpack.c.h.b16 %v947
  %v1085 = vunpack.c.l.b16 %v948
  %v1086 = vunpack.c.h.b16 %v948
  %v1087 = vunpack.c.l.b16 %v949
  %v1088 = vunpack.c.h.b16 %v949
  %v1089 = vunpack.c.l.b16 %v950
  %v1090 = vunpack.c.h.b16 %v950
  %v1091 = vunpack.c.l.b16 %v951
  %v1092 = vunpack.c.h.b16 %v951
  %v1093 = vunpack.c.l.b16 %v952
  %v1094 = vunpack.c.h.b16 %v952
  %v1095 = vunpack.c.l.b16 %v953
  %v1096 = vunpack.c.h.b16 %v953
  %v1097 = vunpack.c.l.b16 %v954
  %v1098 = vunpack.c.h.b16 %v954
  %v1099 = vunpack.c.l.b16 %v955
  %v1100 = vunpack.c.h.b16 %v955
  %v1101 = vunpack.c.l.b16 %v956
  %v1102 = vunpack.c.h.b16 %v956
  %v1103 = vunpack.c.l.b16 %v957
  %v1104 = vunpack.c.h.b16 %v957
  %v1105 = vunpack.c.l.b16 %v958
  %v1106 = vunpack.c.h.b16 %v958
  %v1107 = vunpack.c.l.b16 %v959
  %v1108 = vunpack.c.h.b16 %v959
  %v1109 = vunpack.c.l.b16 %v960
  %v1110 = vunpack.c.h.b16 %v960
  %v1111 = vunpack.c.l.b16 %v961
  %v1112 = vunpack.c.h.b16 %v961
  %v1113 = vunpack.c.l.b16 %v962
  %v1114 = vunpack.c.h.b16 %v962
  %v1115 = vunpack.c.l.b16 %v963
  %v1116 = vunpack.c.h.b16 %v963
  %v1117 = vunpack.c.l.b16 %v964
  %v1118 = vunpack.c.h.b16 %v964
  %v1119 = vunpack.c.l.b16 %v965
  %v1120 = vunpack.c.h.b16 %v965
  %v1121 = vunpack.c.l.b16 %v966
  %v1122 = vunpack.c.h.b16 %v966
  %v1123 = vunpack.c.l.b16 %v967
  %v1124 = vunpack.c.h.b16 %v967
  %v1125 = vunpack.c.l.b16 %v968
  %v1126 = vunpack.c.h.b16 %v968
  %v1127 = vunpack.c.l.b16 %v969
  %v1128 = vunpack.c.h.b16 %v969
  %v1129 = vunpack.c.l.b16 %v970
  %v1130 = vunpack.c.h.b16 %v970
  %v1131 = vunpack.c.l.b16 %v971
  %v1132 = vunpack.c.h.b16 %v971
  %v1133 = vunpack.c.l.b16 %v972
  %v1134 = vunpack.c.h.b16 %v972
  %v1135 = vunpack.c.l.b16 %v973
  %v1136 = vunpack.c.h.b16 %v973
  %v1137 = vunpack.c.l.b16 %v974
  %v1138 = vunpack.c.h.b16 %v974
  %v1139 = vunpack.c.l.b16 %v975
  %v1140 = vunpack.c.h.b16 %v975
  %v1141 = vunpack.c.l.b16 %v976
  %v1142 = vunpack.c.h.b16 %v976
  %v1143 = vunpack.c.l.b16 %v977
  %v1144 = vunpack.c.h.b16 %v977
  %v1145 = vunpack.c.l.b16 %v978
  %v1146 = vunpack.c.h.b16 %v978
  %v1147 = vunpack.c.l.b16 %v979
  %v1148 = vunpack.c.h.b16 %v979
  %v1149 = vunpack.c.l.b16 %v980
  %v1150 = vunpack.c.h.b16 %v980
  %v1151 = vunpack.c.l.b16 %v981
  %v1152 = vunpack.c.h.b16 %v981
  %v1153 = vunpack.c.l.b16 %v982
  %v1154 = vunpack.c.h.b16 %v982
  %v1155 = vunpack.c.l.b16 %v983
  %v1156 = vunpack.c.h.b16 %v983
  %v1157 = vunpack.c.l.b16 %v984
  %v1158 = vunpack.c.h.b16 %v984
  %v1159 = vunpack.c.l.b16 %v985
  %v1160 = vunpack.c.h.b16 %v985
  %v1161 = vunpack.c.l.b16 %v986
  %v1162 = vunpack.c.h.b16 %v986
  %v1163 = vunpack.c.l.b16 %v987
  %v1164 = vunpack.c.h.b16 %v987
  %v1165 = vunpack.c.l.b16 %v988
  %v1166 = vunpack.c.h.b16 %v988
  %v1167 = vunpack.c.l.b16 %v989
  %v1168 = vunpack.c.h.b16 %v989
  %v1169 = vunpack.c.l.b16 %v990
  %v1170 = vunpack.c.h.b16 %v990
  %v1171 = vunpack.c.l.b16 %v991
  %v1172 = vunpack.c.h.b16 %v991
  %v1173 = vunpack.c.l.b16 %v992
  %v1174 = vunpack.c.h.b16 %v992
  %v1175 = vunpack.c.l.b16 %v993
  %v1176 = vunpack.c.h.b16 %v993
  %v1177 = vunpack.c.l.b16 %v994
  %v1178 = vunpack.c.h.b16 %v994
  %v1179 = vunpack.c.l.b16 %v995
  %v1180 = vunpack.c.h.b16 %v995
  %v1181 = vunpack.c.l.b16 %v996
  %v1182 = vunpack.c.h.b16 %v996
  %v1183 = vunpack.c.l.b16 %v997
  %v1184 = vunpack.c.h.b16 %v997
  %v1185 = vunpack.c.l.b16 %v998
  %v1186 = vunpack.c.h.b16 %v998
  %v1187 = vunpack.c.l.b16 %v999
  %v1188 = vunpack.c.h.b16 %v999
  %v1189 = vunpack.c.l.b16 %v1000
  %v1190 = vunpack.c.h.b16 %v1000
  %v1191 = vunpack.c.l.b16 %v1001
  %v1192 = vunpack.c.h.b16 %v1001
  %v1193 = vunpack.c.l.b16 %v1002
  %v1194 = vunpack.c.h.b16 %v1002
  %v1195 = vpack.c.b16 %v1069, %v1067
  %v1196 = vpack.c.b16 %v1070, %v1068
  %v1197 = vpack.c.b16 %v1073, %v1071
  %v1198 = vpack.c.b16 %v1074, %v1072
  %v1199 = vpack.c.b16 %v1077, %v1075
  %v1200 = vpack.c.b16 %v1078, %v1076
  %v1201 = vpack.c.b16 %v1081, %v1079
  %v1202 = vpack.c.b16 %v1082, %v1080
  %v1203 = vpack.c.b16 %v1085, %v1083
  %v1204 = vpack.c.b16 %v1086, %v1084
  %v1205 = vpack.c.b16 %v1089, %v1087
  %v1206 = vpack.c.b16 %v1090, %v1088
  %v1207 = vpack.c.b16 %v1093, %v1091
  %v1208 = vpack.c.b16 %v1094, %v1092
  %v1209 = vpack.c.b16 %v1097, %v1095
  %v1210 = vpack.c.b16 %v1098, %v1096
  %v1211 = vpack.c.b16 %v1101, %v1099
  %v1212 = vpack.c.b16 %v1102, %v1100
  %v1213 = vpack.c.b16 %v1105, %v1103
  %v1214 = vpack.c.b16 %v1106, %v1104
  %v1215 = vpack.c.b16 %v1109, %v1107
  %v1216 = vpack.c.b16 %v1110, %v1108
  %v1217 = vpack.c.b16 %v1113, %v1111
  %v1218 = vpack.c.b16 %v1114, %v1112
  %v1219 = vpack.c.b16 %v1117, %v1115
  %v1220 = vpack.c.b16 %v1118, %v1116
  %v1221 = vpack.c.b16 %v1121, %v1119
  %v1222 = vpack.c.b16 %v1122, %v1120
  %v1223 = vpack.c.b16 %v1125, %v1123
  %v1224 = vpack.c.b16 %v1126, %v1124
  %v1225 = vpack.c.b16 %v1129, %v1127
  %v1226 = vpack.c.b16 %v1130, %v1128
  %v1227 = vpack.c.b16 %v1133, %v1131
  %v1228 = vpack.c.b16 %v1134, %v1132
  %v1229 = vpack.c.b16 %v1137, %v1135
  %v1230 = vpack.c.b16 %v1138, %v1136
  %v1231 = vpack.c.b16 %v1141, %v1139
  %v1232 = vpack.c.b16 %v1142, %v1140
  %v1233 = vpack.c.b16 %v1145, %v1143
  %v1234 = vpack.c.b16 %v1146, %v1144
  %v1235 = vpack.c.b16 %v1149, %v1147
  %v1236 = vpack.c.b16 %v1150, %v1148
  %v1237 = vpack.c.b16 %v1153, %v1151
  %v1238 = vpack.c.b16 %v1154, %v1152
  %v1239 = vpack.c.b16 %v1157, %v1155
  %v1240 = vpack.c.b16 %v1158, %v1156
  %v1241 = vpack.c.b16 %v1161, %v1159
  %v1242 = vpack.c.b16 %v1162, %v1160
  %v1243 = vpack.c.b16 %v1165, %v1163
  %v1244 = vpack.c.b16 %v1166, %v1164
  %v1245 = vpack.c.b16 %v1169, %v1167
  %v1246 = vpack.c.b16 %v1170, %v1168
  %v1247 = vpack.c.b16 %v1173, %v1171
  %v1248 = vpack.c.b16 %v1174, %v1172
  %v1249 = vpack.c.b16 %v1177, %v1175
  %v1250 = vpack.c.b16 %v1178, %v1176
  %v1251 = vpack.c.b16 %v1181, %v1179
  %v1252 = vpack.c.b16 %v1182, %v1180
  %v1253 = vpack.c.b16 %v1185, %v1183
  %v1254 = vpack.c.b16 %v1186, %v1184
  %v1255 = vpack.c.b16 %v1189, %v1187
  %v1256 = vpack.c.b16 %v1190, %v1188
  %v1257 = vpack.c.b16 %v1193, %v1191
  %v1258 = vpack.c.b16 %v1194, %v1192
  %1323 = vmatprep.subr.bf16.mxu0 %v1210
  %1324 = vmatpush1.bf16.msra.mxu0 %v1209
  %1325 = vmatprep.subr.bf16.mxu0 %v1208
  %1326 = vmatpush1.bf16.msra.mxu0 %v1207
  %1327 = vmatprep.subr.bf16.mxu0 %v1206
  %1328 = vmatpush1.bf16.msra.mxu0 %v1205
  %1329 = vmatprep.subr.bf16.mxu0 %v1204
  %1330 = vmatpush1.bf16.msra.mxu0 %v1203
  %1331 = vmatprep.subr.bf16.mxu0 %v1202
  %1332 = vmatpush1.bf16.msra.mxu0 %v1201
  %1333 = vmatprep.subr.bf16.mxu0 %v1200
  %1334 = vmatpush1.bf16.msra.mxu0 %v1199
  %1335 = vmatprep.subr.bf16.mxu0 %v1198
  %1336 = vmatpush1.bf16.msra.mxu0 %v1197
  %1337 = vmatprep.subr.bf16.mxu0 %v1196
  %1338 = vmatpush1.bf16.msra.mxu0 %v1195
  %1339 = vmatprep.subr.bf16.mxu0 %v1226
  %1340 = vmatpush2.bf16.msra.mxu0 %v1225
  %1341 = vmatprep.subr.bf16.mxu0 %v1224
  %1342 = vmatpush2.bf16.msra.mxu0 %v1223
  %1343 = vmatprep.subr.bf16.mxu0 %v1222
  %1344 = vmatpush2.bf16.msra.mxu0 %v1221
  %1345 = vmatprep.subr.bf16.mxu0 %v1220
  %1346 = vmatpush2.bf16.msra.mxu0 %v1219
  %1347 = vmatprep.subr.bf16.mxu0 %v1218
  %1348 = vmatpush2.bf16.msra.mxu0 %v1217
  %1349 = vmatprep.subr.bf16.mxu0 %v1216
  %1350 = vmatpush2.bf16.msra.mxu0 %v1215
  %1351 = vmatprep.subr.bf16.mxu0 %v1214
  %1352 = vmatpush2.bf16.msra.mxu0 %v1213
  %1353 = vmatprep.subr.bf16.mxu0 %v1212
  %1354 = vmatpush2.bf16.msra.mxu0 %v1211
  %1355 = vmatprep.mubr.bf16.mxu0 %v928
  %1356 = vmatmul.mubr.bf16.gmra.mxu0 %v927
  %v1357 = vpop.f32.mrf.mxu0
  %v1358 = vadd.f32 0.0, %v1357
  %v1359 = vpop.f32.mrf.mxu0
  %v1360 = vadd.f32 0.0, %v1359
  %v1361 = vpop.f32.mrf.mxu0
  %v1362 = vadd.f32 0.0, %v1361
  %v1363 = vpop.f32.mrf.mxu0
  %v1364 = vadd.f32 0.0, %v1363
  %1365 = vmatprep.mubr.bf16.mxu0 %v932
  %1366 = vmatmul.mubr.bf16.gmra.mxu0 %v931
  %v1367 = vpop.f32.mrf.mxu0
  %v1368 = vadd.f32 0.0, %v1367
  %v1369 = vpop.f32.mrf.mxu0
  %v1370 = vadd.f32 0.0, %v1369
  %v1371 = vpop.f32.mrf.mxu0
  %v1372 = vadd.f32 0.0, %v1371
  %v1373 = vpop.f32.mrf.mxu0
  %v1374 = vadd.f32 0.0, %v1373
  %1375 = vmatprep.mubr.bf16.mxu0 %v936
  %1376 = vmatmul.mubr.bf16.gmra.mxu0 %v935
  %v1377 = vpop.f32.mrf.mxu0
  %v1378 = vadd.f32 0.0, %v1377
  %v1379 = vpop.f32.mrf.mxu0
  %v1380 = vadd.f32 0.0, %v1379
  %v1381 = vpop.f32.mrf.mxu0
  %v1382 = vpop.f32.mrf.mxu0
  %1383 = vdwg.mxu0
  %1384 = vmatprep.subr.bf16.mxu0 %v1242
  %1385 = vmatpush1.bf16.msra.mxu0 %v1241
  %1386 = vmatprep.subr.bf16.mxu0 %v1240
  %1387 = vmatpush1.bf16.msra.mxu0 %v1239
  %1388 = vmatprep.subr.bf16.mxu0 %v1238
  %1389 = vmatpush1.bf16.msra.mxu0 %v1237
  %1390 = vmatprep.subr.bf16.mxu0 %v1236
  %1391 = vmatpush1.bf16.msra.mxu0 %v1235
  %1392 = vmatprep.subr.bf16.mxu0 %v1234
  %1393 = vmatpush1.bf16.msra.mxu0 %v1233
  %1394 = vmatprep.subr.bf16.mxu0 %v1232
  %1395 = vmatpush1.bf16.msra.mxu0 %v1231
  %1396 = vmatprep.subr.bf16.mxu0 %v1230
  %1397 = vmatpush1.bf16.msra.mxu0 %v1229
  %1398 = vmatprep.subr.bf16.mxu0 %v1228
  %1399 = vmatpush1.bf16.msra.mxu0 %v1227
  %1400 = vmatprep.subr.bf16.mxu0 %v1258
  %1401 = vmatpush2.bf16.msra.mxu0 %v1257
  %1402 = vmatprep.subr.bf16.mxu0 %v1256
  %1403 = vmatpush2.bf16.msra.mxu0 %v1255
  %1404 = vmatprep.subr.bf16.mxu0 %v1254
  %1405 = vmatpush2.bf16.msra.mxu0 %v1253
  %1406 = vmatprep.subr.bf16.mxu0 %v1252
  %1407 = vmatpush2.bf16.msra.mxu0 %v1251
  %1408 = vmatprep.subr.bf16.mxu0 %v1250
  %1409 = vmatpush2.bf16.msra.mxu0 %v1249
  %1410 = vmatprep.subr.bf16.mxu0 %v1248
  %1411 = vmatpush2.bf16.msra.mxu0 %v1247
  %1412 = vmatprep.subr.bf16.mxu0 %v1246
  %1413 = vmatpush2.bf16.msra.mxu0 %v1245
  %1414 = vmatprep.subr.bf16.mxu0 %v1244
  %1415 = vmatpush2.bf16.msra.mxu0 %v1243
  %1416 = vmatprep.mubr.bf16.mxu0 %v930
  %1417 = vmatmul.mubr.bf16.gmra.mxu0 %v929
  %v1418 = vpop.f32.mrf.mxu0
  %v1419 = vadd.f32 %v1358, %v1418
  %v1420 = vpop.f32.mrf.mxu0
  %v1421 = vadd.f32 %v1360, %v1420
  %v1422 = vpop.f32.mrf.mxu0
  %v1423 = vadd.f32 %v1362, %v1422
  %v1424 = vpop.f32.mrf.mxu0
  %v1425 = vadd.f32 %v1364, %v1424
  %1426 = vmatprep.mubr.bf16.mxu0 %v934
  %1427 = vmatmul.mubr.bf16.gmra.mxu0 %v933
  %v1428 = vpop.f32.mrf.mxu0
  %v1429 = vadd.f32 %v1368, %v1428
  %v1430 = vpop.f32.mrf.mxu0
  %v1431 = vadd.f32 %v1370, %v1430
  %v1432 = vpop.f32.mrf.mxu0
  %v1433 = vadd.f32 %v1372, %v1432
  %v1434 = vpop.f32.mrf.mxu0
  %v1435 = vadd.f32 %v1374, %v1434
  %1436 = vmatprep.mubr.bf16.mxu0 %v938
  %1437 = vmatmul.mubr.bf16.gmra.mxu0 %v937
  %v1438 = vpop.f32.mrf.mxu0
  %v1439 = vadd.f32 %v1378, %v1438
  %v1440 = vpop.f32.mrf.mxu0
  %v1441 = vadd.f32 %v1380, %v1440
  %v1442 = vpop.f32.mrf.mxu0
  %v1443 = vpop.f32.mrf.mxu0
  %1444 = vdwg.mxu0
  %v1445 = vadd.f32 %v917, %v1419
  %v1446 = vadd.f32 %v918, %v1421
  %v1447 = vadd.f32 %v919, %v1423
  %v1448 = vadd.f32 %v920, %v1425
  %v1449 = vadd.f32 %v921, %v1429
  %v1450 = vadd.f32 %v922, %v1431
  %v1451 = vadd.f32 %v923, %v1433
  %v1452 = vadd.f32 %v924, %v1435
  %v1453 = vadd.f32 %v925, %v1439
  %v1454 = vadd.f32 %v926, %v1441
  %1455 = vst [vmem:[#allocation2] sm:$0xff] %v1445
  %1456 = vst [vmem:[#allocation2 + $0x8] sm:$0xff] %v1446
  %1457 = vst [vmem:[#allocation2 + $0x10] sm:$0xff] %v1447
  %1458 = vst [vmem:[#allocation2 + $0x18] sm:$0xff] %v1448
  %1459 = vst [vmem:[#allocation2 + $0x20] sm:$0xff] %v1449
  %1460 = vst [vmem:[#allocation2 + $0x28] sm:$0xff] %v1450
  %1461 = vst [vmem:[#allocation2 + $0x30] sm:$0xff] %v1451
  %1462 = vst [vmem:[#allocation2 + $0x38] sm:$0xff] %v1452
  %1463 = vst [vmem:[#allocation2 + $0x40] sm:$0xf] %v1453
  %1464 = vst [vmem:[#allocation2 + $0x48] sm:$0xf] %v1454
  %v1465 = vld [vmem:[#allocation2] sm:$0xff]
  %v1466 = vld [vmem:[#allocation2 + $0x8] sm:$0xff]
  %v1467 = vld [vmem:[#allocation2 + $0x10] sm:$0xff]
  %v1468 = vld [vmem:[#allocation2 + $0x18] sm:$0xff]
  %v1469 = vld [vmem:[#allocation2 + $0x20] sm:$0xff]
  %v1470 = vld [vmem:[#allocation2 + $0x28] sm:$0xff]
  %v1471 = vld [vmem:[#allocation2 + $0x30] sm:$0xff]
  %v1472 = vld [vmem:[#allocation2 + $0x38] sm:$0xff]
  %v1473 = vld [vmem:[#allocation2 + $0x40] sm:$0xf]
  %v1474 = vld [vmem:[#allocation2 + $0x48] sm:$0xf]
  %v1475 = vpack.c.bf16 %v1467, %v1465
  %v1476 = vpack.c.bf16 %v1468, %v1466
  %v1477 = vpack.c.bf16 %v1471, %v1469
  %v1478 = vpack.c.bf16 %v1472, %v1470
  %v1479 = vpack.c.bf16 %v1473, %v1473
  %v1480 = vpack.c.bf16 %v1474, %v1474
  %v1487 = vunpack.c.l.b16 %v1475
  %v1488 = vunpack.c.l.b16 %v1476
  %v1489 = vunpack.c.h.b16 %v1475
  %v1490 = vunpack.c.h.b16 %v1476
  %v1491 = vunpack.c.l.b16 %v1477
  %v1492 = vunpack.c.l.b16 %v1478
  %v1493 = vunpack.c.h.b16 %v1477
  %v1494 = vunpack.c.h.b16 %v1478
  %v1495 = vunpack.c.l.b16 %v1479
  %v1496 = vunpack.c.l.b16 %v1480
  %v1497 = vpack.c.b16 %v1488, %v1487
  %v1498 = vpack.c.b16 %v1490, %v1489
  %v1499 = vpack.c.b16 %v1492, %v1491
  %v1500 = vpack.c.b16 %v1494, %v1493
  %v1501 = vpack.c.b16 %v1496, %v1495
  %1507 = vst [vmem:[%s7] sm:$0xff] %v1497
  %1508 = vst [vmem:[%s7 + $0x8] sm:$0xff] %v1498
  %1509 = vst [vmem:[%s7 + $0x10] sm:$0xff] %v1499
  %1510 = vst [vmem:[%s7 + $0x18] sm:$0xff] %v1500
  %1511 = vst [vmem:[%s7 + $0x20] sm:$0x33] %v1501
  // Predicated region
  $region30: #{_lambda_.19} parent=0 // pred_check
    _
  $region31: #{_lambda_.19} parent=0 // pred_check_branch
    %1513 = sbr.rel (0) target = $region33
  $region32: #{_lambda_.19} parent=0 // pred_region
    _
  $region33: #{_lambda_.19} parent=0 // pred_fallthru
    _
  // Predicated region
  $region34: #{_lambda_.19} parent=0 // pred_check
    _
  $region35: #{_lambda_.19} parent=0 // pred_check_branch
    %1515 = sbr.rel (0) target = $region37
  $region36: #{_lambda_.19} parent=0 // pred_region
    _
  $region37: #{_lambda_.19} parent=0 // pred_fallthru
    _

</llo_original>
